<compile_context>
chip_gen: v7x
topology: tpu7x:2x2x1
jax: 0.10.0
libtpu: 0.0.40
codegen_flags: <defaults>
</compile_context>

<pallas_src>
import jax
import jax.numpy as jnp
from jax import lax
from jax.experimental import pallas as pl
from jax.experimental.pallas import tpu as pltpu

# ---------------- configuration (small, consistent with the module) ----------------
B = 2                 # batch
C_IN = 4              # backbone.num_channels
C_PAD = 16            # input channels zero-padded for clean bf16 slab alignment
VOX = (4, 4, 4)       # voxel spatial dims (D, H, W)
S = VOX[0] * VOX[1] * VOX[2]          # 64 spatial tokens
HIDDEN = 32           # transformer.d_model
HEADS = 4
HEAD_DIM = HIDDEN // HEADS            # 8
NUM_QUERIES = 8
NUM_CLASSES = 5       # -> class head outputs NUM_CLASSES + 1 = 6 logits
FFN_DIM = 64
NUM_ENC_LAYERS = 1
NUM_DEC_LAYERS = 2
LN_EPS = 1e-5
HEAD_PAD = 128        # lane-dense slab width for the prediction-head outputs


# ============================ weight-slab static layouts ============================

def _round16(n):
    return ((n + 15) // 16) * 16


def _build_layouts():
    """Static layouts for the bf16 matrix slab and the f32 vector slab."""
    mat_entries = [("inp_w", C_PAD, HIDDEN)]
    vec_entries = [("inp_b", HIDDEN)]

    for li in range(NUM_ENC_LAYERS):
        p = f"e{li}_"
        mat_entries += [(p + "wqk", HIDDEN, 2 * HIDDEN), (p + "wv", HIDDEN, HIDDEN),
                        (p + "wo", HIDDEN, HIDDEN),
                        (p + "w1", HIDDEN, FFN_DIM), (p + "w2", FFN_DIM, HIDDEN)]
        vec_entries += [(p + "bqk", 2 * HIDDEN), (p + "bv", HIDDEN), (p + "bo", HIDDEN),
                        (p + "b1", FFN_DIM), (p + "b2", HIDDEN),
                        (p + "n1g", HIDDEN), (p + "n1b", HIDDEN),
                        (p + "n2g", HIDDEN), (p + "n2b", HIDDEN)]

    for li in range(NUM_DEC_LAYERS):
        p = f"d{li}_"
        mat_entries += [(p + "swqk", HIDDEN, 2 * HIDDEN), (p + "swv", HIDDEN, HIDDEN),
                        (p + "swo", HIDDEN, HIDDEN),
                        (p + "cwq", HIDDEN, HIDDEN), (p + "cwk", HIDDEN, HIDDEN),
                        (p + "cwv", HIDDEN, HIDDEN), (p + "cwo", HIDDEN, HIDDEN),
                        (p + "w1", HIDDEN, FFN_DIM), (p + "w2", FFN_DIM, HIDDEN)]
        vec_entries += [(p + "sbqk", 2 * HIDDEN), (p + "sbv", HIDDEN), (p + "sbo", HIDDEN),
                        (p + "cbq", HIDDEN), (p + "cbk", HIDDEN),
                        (p + "cbv", HIDDEN), (p + "cbo", HIDDEN),
                        (p + "b1", FFN_DIM), (p + "b2", HIDDEN),
                        (p + "n1g", HIDDEN), (p + "n1b", HIDDEN),
                        (p + "n2g", HIDDEN), (p + "n2b", HIDDEN),
                        (p + "n3g", HIDDEN), (p + "n3b", HIDDEN)]

    mat_entries += [("cls_w", HIDDEN, HEAD_PAD), ("bb_w1", HIDDEN, HIDDEN),
                    ("bb_w2", HIDDEN, HIDDEN), ("bb_w3", HIDDEN, HEAD_PAD)]
    vec_entries += [("dn_g", HIDDEN), ("dn_b", HIDDEN), ("cls_b", HEAD_PAD),
                    ("bb_b1", HIDDEN), ("bb_b2", HIDDEN), ("bb_b3", HEAD_PAD)]

    mat, off = {}, 0
    for name, r, c in mat_entries:
        mat[name] = (off, r, c)
        off += _round16(r)                     # 16-row aligned offsets (bf16 packing)
    vec = {name: (i, c) for i, (name, c) in enumerate(vec_entries)}
    return mat, off, vec, _round16(len(vec_entries))


_MAT, MAT_ROWS, _VEC, VEC_ROWS = _build_layouts()


# ============================== in-kernel helpers ==============================

def _mm(a, w_bf16):
    """MXU matmul: bf16 operands (weights pre-cast to bf16 in the slab), f32 accum."""
    return jnp.dot(a.astype(jnp.bfloat16), w_bf16, preferred_element_type=jnp.float32)


def _layernorm(x, g, b, eps=LN_EPS):
    """LayerNorm over the last dim, f32 math, fused into the surrounding kernel."""
    mean = jnp.mean(x, axis=-1, keepdims=True)
    c = x - mean
    var = jnp.mean(c * c, axis=-1, keepdims=True)
    return c * lax.rsqrt(var + eps) * g + b


def _mha(q, k, v, wo, bo):
    """Multi-head attention core for one batch element.

    q: [Lq, D], k/v: [Lk, D] f32; wo: [D, D] bf16; bo: [1, D] f32.
    bf16 casts (and the 1/sqrt(Dh) scale) are hoisted out of the head loop; per-head
    outputs are lane-concatenated so a single output-projection matmul is used.
    """
    scale = 1.0 / (HEAD_DIM ** 0.5)
    qb = (q * scale).astype(jnp.bfloat16)
    kb = k.astype(jnp.bfloat16)
    vb = v.astype(jnp.bfloat16)
    outs = []
    for h in range(HEADS):
        sl = slice(h * HEAD_DIM, (h + 1) * HEAD_DIM)
        s = lax.dot_general(qb[:, sl], kb[:, sl], (((1,), (1,)), ((), ())),
                            preferred_element_type=jnp.float32)
        s = s - jnp.max(s, axis=-1, keepdims=True)
        p = jnp.exp(s)
        p = p * pl.reciprocal(jnp.sum(p, axis=-1, keepdims=True), approx=True)
        outs.append(jnp.dot(p.astype(jnp.bfloat16), vb[:, sl],
                            preferred_element_type=jnp.float32))
    o = jnp.concatenate(outs, axis=-1)          # [Lq, D]
    return _mm(o, wo) + bo


# ================================ the fused kernel ================================

def _detr_kernel(tokens_ref, pos_ref, qpos_ref, wmat_ref, vec_ref,
                 logits_ref, boxes_ref):
    """Whole DETR forward for one batch element (grid=(B,), all weights VMEM-resident)."""
    pos = pos_ref[...]                # [S, D]
    qpos = qpos_ref[...]              # [NQ, D]
    x = tokens_ref[0]                 # [S, C_PAD]

    def W(name):                      # bf16 weight matrix, static 16-aligned row slice
        off, r, c = _MAT[name]
        return wmat_ref[off:off + r, :c]

    def V(name):                      # f32 bias / LN row, [1, c]
        row, c = _VEC[name]
        return vec_ref[row:row + 1, :c]

    # ---- input_proj: Conv3d(kernel_size=1) == pointwise linear over channels ----
    src = _mm(x, W("inp_w")) + V("inp_b")                       # [S, D]

    # ---- encoder (post-norm) ----
    for li in range(NUM_ENC_LAYERS):
        p = f"e{li}_"
        # self-attention: q = k = src + pos (fused Wq|Wk matmul), v = src
        qk = _mm(src + pos, W(p + "wqk")) + V(p + "bqk")        # [S, 2D]
        v = _mm(src, W(p + "wv")) + V(p + "bv")
        att = _mha(qk[:, :HIDDEN], qk[:, HIDDEN:], v, W(p + "wo"), V(p + "bo"))
        src = _layernorm(src + att, V(p + "n1g"), V(p + "n1b"))
        # feed-forward
        h = jnp.maximum(_mm(src, W(p + "w1")) + V(p + "b1"), 0.0)
        ff = _mm(h, W(p + "w2")) + V(p + "b2")
        src = _layernorm(src + ff, V(p + "n2g"), V(p + "n2b"))

    mem = src
    mem_p = mem + pos                 # hoisted: key input for every cross-attention

    # ---- decoder (post-norm) ----
    tgt = jnp.zeros((NUM_QUERIES, HIDDEN), jnp.float32)
    for li in range(NUM_DEC_LAYERS):
        p = f"d{li}_"
        # self-attention: q = k = tgt + query_pos (fused Wq|Wk), v = tgt
        qk = _mm(tgt + qpos, W(p + "swqk")) + V(p + "sbqk")
        v = _mm(tgt, W(p + "swv")) + V(p + "sbv")
        att = _mha(qk[:, :HIDDEN], qk[:, HIDDEN:], v, W(p + "swo"), V(p + "sbo"))
        tgt = _layernorm(tgt + att, V(p + "n1g"), V(p + "n1b"))
        # cross-attention: q = tgt + query_pos, k = memory + pos, v = memory
        q = _mm(tgt + qpos, W(p + "cwq")) + V(p + "cbq")
        k = _mm(mem_p, W(p + "cwk")) + V(p + "cbk")
        v = _mm(mem, W(p + "cwv")) + V(p + "cbv")
        att = _mha(q, k, v, W(p + "cwo"), V(p + "cbo"))
        tgt = _layernorm(tgt + att, V(p + "n2g"), V(p + "n2b"))
        # feed-forward
        h = jnp.maximum(_mm(tgt, W(p + "w1")) + V(p + "b1"), 0.0)
        ff = _mm(h, W(p + "w2")) + V(p + "b2")
        tgt = _layernorm(tgt + ff, V(p + "n3g"), V(p + "n3b"))

    # ---- prediction heads: decoder final norm + class head + bbox MLP (sigmoid) ----
    hs = _layernorm(tgt, V("dn_g"), V("dn_b"))
    logits_ref[0] = (_mm(hs, W("cls_w")) + V("cls_b")).astype(logits_ref.dtype)
    h1 = jnp.maximum(_mm(hs, W("bb_w1")) + V("bb_b1"), 0.0)
    h2 = jnp.maximum(_mm(h1, W("bb_w2")) + V("bb_b2"), 0.0)
    z = _mm(h2, W("bb_w3")) + V("bb_b3")
    boxes_ref[0] = (1.0 / (1.0 + jnp.exp(-z))).astype(boxes_ref.dtype)


# ================================== DETR forward ==================================

def detr_forward(samples, params):
    """samples: [B, C, D, H, W] float32 (PyTorch NCDHW)."""
    b, c, dv, hv, wv = samples.shape
    s = dv * hv * wv

    # synthetic backbone: identity features + fixed positional embedding, no padding.
    # NCDHW -> channels-last token axis [B, S, C], channels zero-padded to C_PAD.
    tokens = jnp.transpose(samples, (0, 2, 3, 4, 1)).reshape(b, s, c)
    tokens = jnp.pad(tokens, ((0, 0), (0, 0), (0, C_PAD - c)))

    # advisory only: ~1.4M MACs + ~22K transcendentals per batch element
    cost = pl.CostEstimate(flops=6_000_000, transcendentals=50_000,
                           bytes_accessed=400_000)

    logits_slab, boxes_slab = pl.pallas_call(
        _detr_kernel,
        out_shape=(jax.ShapeDtypeStruct((b, NUM_QUERIES, HEAD_PAD), jnp.float32),
                   jax.ShapeDtypeStruct((b, NUM_QUERIES, HEAD_PAD), jnp.float32)),
        grid=(b,),
        in_specs=[
            pl.BlockSpec((1, s, C_PAD), lambda i: (i, 0, 0)),        # per-batch tokens
            pl.BlockSpec((s, HIDDEN), lambda i: (0, 0)),             # pos embed (rep.)
            pl.BlockSpec((NUM_QUERIES, HIDDEN), lambda i: (0, 0)),   # query embed (rep.)
            pl.BlockSpec((MAT_ROWS, 128), lambda i: (0, 0)),         # bf16 weight slab
            pl.BlockSpec((VEC_ROWS, 128), lambda i: (0, 0)),         # f32 bias/LN slab
        ],
        out_specs=(
            pl.BlockSpec((1, NUM_QUERIES, HEAD_PAD), lambda i: (i, 0, 0)),
            pl.BlockSpec((1, NUM_QUERIES, HEAD_PAD), lambda i: (i, 0, 0)),
        ),
        compiler_params=pltpu.CompilerParams(dimension_semantics=("parallel",)),
        cost_estimate=cost,
    )(tokens, params["pos_embed"], params["query_embed"],
      params["wmat"], params["vecs"])

    # aux_loss=False -> only the last decoder layer feeds the prediction heads
    return {"pred_logits": logits_slab[..., : NUM_CLASSES + 1],
            "pred_boxes": boxes_slab[..., :6]}


# ============================== parameter construction ==============================

def init_params(key):
    keys = iter(jax.random.split(key, 256))

    def w(shape, scale=0.02):
        return jax.random.normal(next(keys), shape, jnp.float32) * scale

    mats, vecs = {}, {}

    def lin(mname, bname, din, dout):
        mats[mname] = w((din, dout))
        vecs[bname] = jnp.zeros((dout,), jnp.float32)

    def ln(gname, bname):
        vecs[gname] = jnp.ones((HIDDEN,), jnp.float32)
        vecs[bname] = jnp.zeros((HIDDEN,), jnp.float32)

    # input_proj (Conv3d k=1): weight rows zero-padded from C_IN to C_PAD
    mats["inp_w"] = jnp.zeros((C_PAD, HIDDEN), jnp.float32).at[:C_IN].set(w((C_IN, HIDDEN)))
    vecs["inp_b"] = jnp.zeros((HIDDEN,), jnp.float32)

    for li in range(NUM_ENC_LAYERS):
        p = f"e{li}_"
        lin(p + "wqk", p + "bqk", HIDDEN, 2 * HIDDEN)       # fused Wq|Wk
        lin(p + "wv", p + "bv", HIDDEN, HIDDEN)
        lin(p + "wo", p + "bo", HIDDEN, HIDDEN)
        lin(p + "w1", p + "b1", HIDDEN, FFN_DIM)
        lin(p + "w2", p + "b2", FFN_DIM, HIDDEN)
        ln(p + "n1g", p + "n1b"); ln(p + "n2g", p + "n2b")

    for li in range(NUM_DEC_LAYERS):
        p = f"d{li}_"
        lin(p + "swqk", p + "sbqk", HIDDEN, 2 * HIDDEN)     # fused self-attn Wq|Wk
        lin(p + "swv", p + "sbv", HIDDEN, HIDDEN)
        lin(p + "swo", p + "sbo", HIDDEN, HIDDEN)
        lin(p + "cwq", p + "cbq", HIDDEN, HIDDEN)
        lin(p + "cwk", p + "cbk", HIDDEN, HIDDEN)
        lin(p + "cwv", p + "cbv", HIDDEN, HIDDEN)
        lin(p + "cwo", p + "cbo", HIDDEN, HIDDEN)
        lin(p + "w1", p + "b1", HIDDEN, FFN_DIM)
        lin(p + "w2", p + "b2", FFN_DIM, HIDDEN)
        ln(p + "n1g", p + "n1b"); ln(p + "n2g", p + "n2b"); ln(p + "n3g", p + "n3b")

    ln("dn_g", "dn_b")
    # class / bbox-final weights zero-padded to 128 lanes -> lane-dense head stores
    n_cls = NUM_CLASSES + 1
    mats["cls_w"] = jnp.zeros((HIDDEN, HEAD_PAD), jnp.float32).at[:, :n_cls].set(
        w((HIDDEN, n_cls)))
    vecs["cls_b"] = jnp.zeros((HEAD_PAD,), jnp.float32)
    lin("bb_w1", "bb_b1", HIDDEN, HIDDEN)
    lin("bb_w2", "bb_b2", HIDDEN, HIDDEN)
    mats["bb_w3"] = jnp.zeros((HIDDEN, HEAD_PAD), jnp.float32).at[:, :6].set(
        w((HIDDEN, 6)))
    vecs["bb_b3"] = jnp.zeros((HEAD_PAD,), jnp.float32)

    # pack the slabs (matrices -> bf16, biases/LN -> f32)
    wmat = jnp.zeros((MAT_ROWS, 128), jnp.float32)
    for name, (off, r, c) in _MAT.items():
        wmat = wmat.at[off:off + r, :c].set(mats[name])
    wmat = wmat.astype(jnp.bfloat16)

    vslab = jnp.zeros((VEC_ROWS, 128), jnp.float32)
    for name, (row, c) in _VEC.items():
        vslab = vslab.at[row, :c].set(vecs[name])

    return dict(
        pos_embed=w((S, HIDDEN)),                          # backbone pos[-1] (synthetic)
        query_embed=w((NUM_QUERIES, HIDDEN), scale=1.0),   # nn.Embedding weight
        wmat=wmat,
        vecs=vslab,
    )


# ===================================== main =====================================

if __name__ == "__main__":
    root = jax.random.PRNGKey(0)
    k_in, k_par = jax.random.split(root)
    samples = jax.random.normal(k_in, (B, C_IN) + VOX, jnp.float32)   # NCDHW
    params = init_params(k_par)

    fwd = jax.jit(detr_forward)
    out = fwd(samples, params)
    jax.block_until_ready(out)

    assert out["pred_logits"].shape == (B, NUM_QUERIES, NUM_CLASSES + 1)
    assert out["pred_boxes"].shape == (B, NUM_QUERIES, 6)
    assert bool(jnp.all(jnp.isfinite(out["pred_logits"])))
    assert bool(jnp.all((out["pred_boxes"] >= 0.0) & (out["pred_boxes"] <= 1.0)))
    print("KERNEL_OK")
</pallas_src>

<mosaic_0001>
module attributes {stable_mosaic.version = 11 : i64} {
  func.func @_detr_kernel(%arg0: i32, %arg1: memref<1x64x16xf32, #tpu.memory_space<vmem>>, %arg2: memref<64x32xf32, #tpu.memory_space<vmem>>, %arg3: memref<8x32xf32, #tpu.memory_space<vmem>>, %arg4: memref<976x128xbf16, #tpu.memory_space<vmem>>, %arg5: memref<48x128xf32, #tpu.memory_space<vmem>>, %arg6: memref<1x8x128xf32, #tpu.memory_space<vmem>>, %arg7: memref<1x8x128xf32, #tpu.memory_space<vmem>>) attributes {dimension_semantics = [#tpu.dimension_semantics<parallel>], iteration_bounds = array<i64: 2>, scalar_prefetch = 0 : i64, scratch_operands = 0 : i64, tpu.core_type = #tpu.core_type<tc>, window_params = [{transform_indices = @transform_0, window_bounds = array<i64: 1, 64, 16>}, {pipeline_mode = #tpu.pipeline_mode<synchronous>, transform_indices = @transform_1, window_bounds = array<i64: 64, 32>}, {pipeline_mode = #tpu.pipeline_mode<synchronous>, transform_indices = @transform_2, window_bounds = array<i64: 8, 32>}, {pipeline_mode = #tpu.pipeline_mode<synchronous>, transform_indices = @transform_3, window_bounds = array<i64: 976, 128>}, {pipeline_mode = #tpu.pipeline_mode<synchronous>, transform_indices = @transform_4, window_bounds = array<i64: 48, 128>}, {transform_indices = @transform_5, window_bounds = array<i64: 1, 8, 128>}, {transform_indices = @transform_6, window_bounds = array<i64: 1, 8, 128>}]} {
    %c0 = arith.constant 0 : index
    %c0_0 = arith.constant 0 : index
    %0 = vector.load %arg2[%c0, %c0_0] : memref<64x32xf32, #tpu.memory_space<vmem>>, vector<64x32xf32>
    %c0_1 = arith.constant 0 : index
    %c0_2 = arith.constant 0 : index
    %1 = vector.load %arg3[%c0_1, %c0_2] : memref<8x32xf32, #tpu.memory_space<vmem>>, vector<8x32xf32>
    %c0_3 = arith.constant 0 : index
    %c0_4 = arith.constant 0 : index
    %c0_5 = arith.constant 0 : index
    %2 = vector.load %arg1[%c0_3, %c0_4, %c0_5] : memref<1x64x16xf32, #tpu.memory_space<vmem>>, vector<1x64x16xf32>
    %3 = vector.shape_cast %2 : vector<1x64x16xf32> to vector<64x16xf32>
    %c0_6 = arith.constant 0 : index
    %c0_7 = arith.constant 0 : index
    %4 = vector.load %arg4[%c0_6, %c0_7] : memref<976x128xbf16, #tpu.memory_space<vmem>>, vector<16x32xbf16>
    %5 = arith.truncf %3 : vector<64x16xf32> to vector<64x16xbf16>
    %cst = arith.constant dense<0.000000e+00> : vector<64x32xf32>
    %6 = tpu.matmul %5, %4, %cst {dimension_numbers = #tpu.dot_dimension_numbers<[1], [0], [0], [1], [0, 0, 1, 1], [], []>} : vector<64x16xbf16>, vector<16x32xbf16>, vector<64x32xf32> -> vector<64x32xf32>
    %c0_8 = arith.constant 0 : index
    %c0_9 = arith.constant 0 : index
    %7 = vector.load %arg5[%c0_8, %c0_9] : memref<48x128xf32, #tpu.memory_space<vmem>>, vector<1x32xf32>
    %8 = vector.broadcast %7 : vector<1x32xf32> to vector<64x32xf32>
    %9 = arith.addf %6, %8 : vector<64x32xf32>
    %10 = arith.addf %9, %0 : vector<64x32xf32>
    %c16 = arith.constant 16 : index
    %c0_10 = arith.constant 0 : index
    %11 = vector.load %arg4[%c16, %c0_10] : memref<976x128xbf16, #tpu.memory_space<vmem>>, vector<32x64xbf16>
    %12 = arith.truncf %10 : vector<64x32xf32> to vector<64x32xbf16>
    %cst_11 = arith.constant dense<0.000000e+00> : vector<64x64xf32>
    %13 = tpu.matmul %12, %11, %cst_11 {dimension_numbers = #tpu.dot_dimension_numbers<[1], [0], [0], [1], [0, 0, 1, 1], [], []>} : vector<64x32xbf16>, vector<32x64xbf16>, vector<64x64xf32> -> vector<64x64xf32>
    %c1 = arith.constant 1 : index
    %c0_12 = arith.constant 0 : index
    %14 = vector.load %arg5[%c1, %c0_12] : memref<48x128xf32, #tpu.memory_space<vmem>>, vector<1x64xf32>
    %15 = vector.broadcast %14 : vector<1x64xf32> to vector<64x64xf32>
    %16 = arith.addf %13, %15 : vector<64x64xf32>
    %c48 = arith.constant 48 : index
    %c0_13 = arith.constant 0 : index
    %17 = vector.load %arg4[%c48, %c0_13] : memref<976x128xbf16, #tpu.memory_space<vmem>>, vector<32x32xbf16>
    %18 = arith.truncf %9 : vector<64x32xf32> to vector<64x32xbf16>
    %cst_14 = arith.constant dense<0.000000e+00> : vector<64x32xf32>
    %19 = tpu.matmul %18, %17, %cst_14 {dimension_numbers = #tpu.dot_dimension_numbers<[1], [0], [0], [1], [0, 0, 1, 1], [], []>} : vector<64x32xbf16>, vector<32x32xbf16>, vector<64x32xf32> -> vector<64x32xf32>
    %c2 = arith.constant 2 : index
    %c0_15 = arith.constant 0 : index
    %20 = vector.load %arg5[%c2, %c0_15] : memref<48x128xf32, #tpu.memory_space<vmem>>, vector<1x32xf32>
    %21 = vector.broadcast %20 : vector<1x32xf32> to vector<64x32xf32>
    %22 = arith.addf %19, %21 : vector<64x32xf32>
    %23 = vector.extract_strided_slice %16 {offsets = [0, 0], sizes = [64, 32], strides = [1, 1]} : vector<64x64xf32> to vector<64x32xf32>
    %24 = vector.extract_strided_slice %16 {offsets = [0, 32], sizes = [64, 32], strides = [1, 1]} : vector<64x64xf32> to vector<64x32xf32>
    %c80 = arith.constant 80 : index
    %c0_16 = arith.constant 0 : index
    %25 = vector.load %arg4[%c80, %c0_16] : memref<976x128xbf16, #tpu.memory_space<vmem>>, vector<32x32xbf16>
    %c3 = arith.constant 3 : index
    %c0_17 = arith.constant 0 : index
    %26 = vector.load %arg5[%c3, %c0_17] : memref<48x128xf32, #tpu.memory_space<vmem>>, vector<1x32xf32>
    %cst_18 = arith.constant 0.353553385 : f32
    %27 = vector.broadcast %cst_18 : f32 to vector<64x32xf32>
    %28 = arith.mulf %23, %27 : vector<64x32xf32>
    %29 = arith.truncf %28 : vector<64x32xf32> to vector<64x32xbf16>
    %30 = arith.truncf %24 : vector<64x32xf32> to vector<64x32xbf16>
    %31 = arith.truncf %22 : vector<64x32xf32> to vector<64x32xbf16>
    %32 = vector.extract_strided_slice %29 {offsets = [0, 0], sizes = [64, 8], strides = [1, 1]} : vector<64x32xbf16> to vector<64x8xbf16>
    %33 = vector.extract_strided_slice %30 {offsets = [0, 0], sizes = [64, 8], strides = [1, 1]} : vector<64x32xbf16> to vector<64x8xbf16>
    %cst_19 = arith.constant dense<0.000000e+00> : vector<64x64xf32>
    %34 = tpu.matmul %32, %33, %cst_19 {dimension_numbers = #tpu.dot_dimension_numbers<[1], [1], [0], [0], [0, 0, 1, 0], [], []>} : vector<64x8xbf16>, vector<64x8xbf16>, vector<64x64xf32> -> vector<64x64xf32>
    %cst_20 = arith.constant dense<0xFF800000> : vector<64xf32>
    %35 = vector.multi_reduction <maximumf>, %34, %cst_20 [1] : vector<64x64xf32> to vector<64xf32>
    %36 = vector.shape_cast %35 : vector<64xf32> to vector<64x1xf32>
    %37 = vector.broadcast %36 : vector<64x1xf32> to vector<64x64xf32>
    %38 = arith.subf %34, %37 : vector<64x64xf32>
    %39 = math.exp %38 : vector<64x64xf32>
    %cst_21 = arith.constant dense<0.000000e+00> : vector<64xf32>
    %40 = vector.multi_reduction <add>, %39, %cst_21 [1] : vector<64x64xf32> to vector<64xf32>
    %41 = vector.shape_cast %40 : vector<64xf32> to vector<64x1xf32>
    %42 = tpu.reciprocal %41 {approx = true} : vector<64x1xf32> -> vector<64x1xf32>
    %43 = vector.broadcast %42 : vector<64x1xf32> to vector<64x64xf32>
    %44 = arith.mulf %39, %43 : vector<64x64xf32>
    %45 = arith.truncf %44 : vector<64x64xf32> to vector<64x64xbf16>
    %46 = vector.extract_strided_slice %31 {offsets = [0, 0], sizes = [64, 8], strides = [1, 1]} : vector<64x32xbf16> to vector<64x8xbf16>
    %cst_22 = arith.constant dense<0.000000e+00> : vector<64x8xf32>
    %47 = tpu.matmul %45, %46, %cst_22 {dimension_numbers = #tpu.dot_dimension_numbers<[1], [0], [0], [1], [0, 0, 1, 1], [], []>} : vector<64x64xbf16>, vector<64x8xbf16>, vector<64x8xf32> -> vector<64x8xf32>
    %48 = vector.extract_strided_slice %29 {offsets = [0, 8], sizes = [64, 8], strides = [1, 1]} : vector<64x32xbf16> to vector<64x8xbf16>
    %49 = vector.extract_strided_slice %30 {offsets = [0, 8], sizes = [64, 8], strides = [1, 1]} : vector<64x32xbf16> to vector<64x8xbf16>
    %cst_23 = arith.constant dense<0.000000e+00> : vector<64x64xf32>
    %50 = tpu.matmul %48, %49, %cst_23 {dimension_numbers = #tpu.dot_dimension_numbers<[1], [1], [0], [0], [0, 0, 1, 0], [], []>} : vector<64x8xbf16>, vector<64x8xbf16>, vector<64x64xf32> -> vector<64x64xf32>
    %cst_24 = arith.constant dense<0xFF800000> : vector<64xf32>
    %51 = vector.multi_reduction <maximumf>, %50, %cst_24 [1] : vector<64x64xf32> to vector<64xf32>
    %52 = vector.shape_cast %51 : vector<64xf32> to vector<64x1xf32>
    %53 = vector.broadcast %52 : vector<64x1xf32> to vector<64x64xf32>
    %54 = arith.subf %50, %53 : vector<64x64xf32>
    %55 = math.exp %54 : vector<64x64xf32>
    %cst_25 = arith.constant dense<0.000000e+00> : vector<64xf32>
    %56 = vector.multi_reduction <add>, %55, %cst_25 [1] : vector<64x64xf32> to vector<64xf32>
    %57 = vector.shape_cast %56 : vector<64xf32> to vector<64x1xf32>
    %58 = tpu.reciprocal %57 {approx = true} : vector<64x1xf32> -> vector<64x1xf32>
    %59 = vector.broadcast %58 : vector<64x1xf32> to vector<64x64xf32>
    %60 = arith.mulf %55, %59 : vector<64x64xf32>
    %61 = arith.truncf %60 : vector<64x64xf32> to vector<64x64xbf16>
    %62 = vector.extract_strided_slice %31 {offsets = [0, 8], sizes = [64, 8], strides = [1, 1]} : vector<64x32xbf16> to vector<64x8xbf16>
    %cst_26 = arith.constant dense<0.000000e+00> : vector<64x8xf32>
    %63 = tpu.matmul %61, %62, %cst_26 {dimension_numbers = #tpu.dot_dimension_numbers<[1], [0], [0], [1], [0, 0, 1, 1], [], []>} : vector<64x64xbf16>, vector<64x8xbf16>, vector<64x8xf32> -> vector<64x8xf32>
    %64 = vector.extract_strided_slice %29 {offsets = [0, 16], sizes = [64, 8], strides = [1, 1]} : vector<64x32xbf16> to vector<64x8xbf16>
    %65 = vector.extract_strided_slice %30 {offsets = [0, 16], sizes = [64, 8], strides = [1, 1]} : vector<64x32xbf16> to vector<64x8xbf16>
    %cst_27 = arith.constant dense<0.000000e+00> : vector<64x64xf32>
    %66 = tpu.matmul %64, %65, %cst_27 {dimension_numbers = #tpu.dot_dimension_numbers<[1], [1], [0], [0], [0, 0, 1, 0], [], []>} : vector<64x8xbf16>, vector<64x8xbf16>, vector<64x64xf32> -> vector<64x64xf32>
    %cst_28 = arith.constant dense<0xFF800000> : vector<64xf32>
    %67 = vector.multi_reduction <maximumf>, %66, %cst_28 [1] : vector<64x64xf32> to vector<64xf32>
    %68 = vector.shape_cast %67 : vector<64xf32> to vector<64x1xf32>
    %69 = vector.broadcast %68 : vector<64x1xf32> to vector<64x64xf32>
    %70 = arith.subf %66, %69 : vector<64x64xf32>
    %71 = math.exp %70 : vector<64x64xf32>
    %cst_29 = arith.constant dense<0.000000e+00> : vector<64xf32>
    %72 = vector.multi_reduction <add>, %71, %cst_29 [1] : vector<64x64xf32> to vector<64xf32>
    %73 = vector.shape_cast %72 : vector<64xf32> to vector<64x1xf32>
    %74 = tpu.reciprocal %73 {approx = true} : vector<64x1xf32> -> vector<64x1xf32>
    %75 = vector.broadcast %74 : vector<64x1xf32> to vector<64x64xf32>
    %76 = arith.mulf %71, %75 : vector<64x64xf32>
    %77 = arith.truncf %76 : vector<64x64xf32> to vector<64x64xbf16>
    %78 = vector.extract_strided_slice %31 {offsets = [0, 16], sizes = [64, 8], strides = [1, 1]} : vector<64x32xbf16> to vector<64x8xbf16>
    %cst_30 = arith.constant dense<0.000000e+00> : vector<64x8xf32>
    %79 = tpu.matmul %77, %78, %cst_30 {dimension_numbers = #tpu.dot_dimension_numbers<[1], [0], [0], [1], [0, 0, 1, 1], [], []>} : vector<64x64xbf16>, vector<64x8xbf16>, vector<64x8xf32> -> vector<64x8xf32>
    %80 = vector.extract_strided_slice %29 {offsets = [0, 24], sizes = [64, 8], strides = [1, 1]} : vector<64x32xbf16> to vector<64x8xbf16>
    %81 = vector.extract_strided_slice %30 {offsets = [0, 24], sizes = [64, 8], strides = [1, 1]} : vector<64x32xbf16> to vector<64x8xbf16>
    %cst_31 = arith.constant dense<0.000000e+00> : vector<64x64xf32>
    %82 = tpu.matmul %80, %81, %cst_31 {dimension_numbers = #tpu.dot_dimension_numbers<[1], [1], [0], [0], [0, 0, 1, 0], [], []>} : vector<64x8xbf16>, vector<64x8xbf16>, vector<64x64xf32> -> vector<64x64xf32>
    %cst_32 = arith.constant dense<0xFF800000> : vector<64xf32>
    %83 = vector.multi_reduction <maximumf>, %82, %cst_32 [1] : vector<64x64xf32> to vector<64xf32>
    %84 = vector.shape_cast %83 : vector<64xf32> to vector<64x1xf32>
    %85 = vector.broadcast %84 : vector<64x1xf32> to vector<64x64xf32>
    %86 = arith.subf %82, %85 : vector<64x64xf32>
    %87 = math.exp %86 : vector<64x64xf32>
    %cst_33 = arith.constant dense<0.000000e+00> : vector<64xf32>
    %88 = vector.multi_reduction <add>, %87, %cst_33 [1] : vector<64x64xf32> to vector<64xf32>
    %89 = vector.shape_cast %88 : vector<64xf32> to vector<64x1xf32>
    %90 = tpu.reciprocal %89 {approx = true} : vector<64x1xf32> -> vector<64x1xf32>
    %91 = vector.broadcast %90 : vector<64x1xf32> to vector<64x64xf32>
    %92 = arith.mulf %87, %91 : vector<64x64xf32>
    %93 = arith.truncf %92 : vector<64x64xf32> to vector<64x64xbf16>
    %94 = vector.extract_strided_slice %31 {offsets = [0, 24], sizes = [64, 8], strides = [1, 1]} : vector<64x32xbf16> to vector<64x8xbf16>
    %cst_34 = arith.constant dense<0.000000e+00> : vector<64x8xf32>
    %95 = tpu.matmul %93, %94, %cst_34 {dimension_numbers = #tpu.dot_dimension_numbers<[1], [0], [0], [1], [0, 0, 1, 1], [], []>} : vector<64x64xbf16>, vector<64x8xbf16>, vector<64x8xf32> -> vector<64x8xf32>
    %96 = tpu.concatenate %47, %63, %79, %95 in 1 : vector<64x8xf32>, vector<64x8xf32>, vector<64x8xf32>, vector<64x8xf32> -> vector<64x32xf32>
    %97 = arith.truncf %96 : vector<64x32xf32> to vector<64x32xbf16>
    %cst_35 = arith.constant dense<0.000000e+00> : vector<64x32xf32>
    %98 = tpu.matmul %97, %25, %cst_35 {dimension_numbers = #tpu.dot_dimension_numbers<[1], [0], [0], [1], [0, 0, 1, 1], [], []>} : vector<64x32xbf16>, vector<32x32xbf16>, vector<64x32xf32> -> vector<64x32xf32>
    %99 = vector.broadcast %26 : vector<1x32xf32> to vector<64x32xf32>
    %100 = arith.addf %98, %99 : vector<64x32xf32>
    %101 = arith.addf %9, %100 : vector<64x32xf32>
    %c6 = arith.constant 6 : index
    %c0_36 = arith.constant 0 : index
    %102 = vector.load %arg5[%c6, %c0_36] : memref<48x128xf32, #tpu.memory_space<vmem>>, vector<1x32xf32>
    %c7 = arith.constant 7 : index
    %c0_37 = arith.constant 0 : index
    %103 = vector.load %arg5[%c7, %c0_37] : memref<48x128xf32, #tpu.memory_space<vmem>>, vector<1x32xf32>
    %cst_38 = arith.constant dense<0.000000e+00> : vector<64xf32>
    %104 = vector.multi_reduction <add>, %101, %cst_38 [1] : vector<64x32xf32> to vector<64xf32>
    %105 = vector.shape_cast %104 : vector<64xf32> to vector<64x1xf32>
    %cst_39 = arith.constant 3.200000e+01 : f32
    %106 = vector.broadcast %cst_39 : f32 to vector<64x1xf32>
    %107 = arith.divf %105, %106 : vector<64x1xf32>
    %108 = vector.broadcast %107 : vector<64x1xf32> to vector<64x32xf32>
    %109 = arith.subf %101, %108 : vector<64x32xf32>
    %110 = arith.mulf %109, %109 : vector<64x32xf32>
    %cst_40 = arith.constant dense<0.000000e+00> : vector<64xf32>
    %111 = vector.multi_reduction <add>, %110, %cst_40 [1] : vector<64x32xf32> to vector<64xf32>
    %112 = vector.shape_cast %111 : vector<64xf32> to vector<64x1xf32>
    %cst_41 = arith.constant 3.200000e+01 : f32
    %113 = vector.broadcast %cst_41 : f32 to vector<64x1xf32>
    %114 = arith.divf %112, %113 : vector<64x1xf32>
    %cst_42 = arith.constant 9.99999974E-6 : f32
    %115 = vector.broadcast %cst_42 : f32 to vector<64x1xf32>
    %116 = arith.addf %114, %115 : vector<64x1xf32>
    %117 = math.rsqrt %116 : vector<64x1xf32>
    %118 = vector.broadcast %117 : vector<64x1xf32> to vector<64x32xf32>
    %119 = arith.mulf %109, %118 : vector<64x32xf32>
    %120 = vector.broadcast %102 : vector<1x32xf32> to vector<64x32xf32>
    %121 = arith.mulf %119, %120 : vector<64x32xf32>
    %122 = vector.broadcast %103 : vector<1x32xf32> to vector<64x32xf32>
    %123 = arith.addf %121, %122 : vector<64x32xf32>
    %c112 = arith.constant 112 : index
    %c0_43 = arith.constant 0 : index
    %124 = vector.load %arg4[%c112, %c0_43] : memref<976x128xbf16, #tpu.memory_space<vmem>>, vector<32x64xbf16>
    %125 = arith.truncf %123 : vector<64x32xf32> to vector<64x32xbf16>
    %cst_44 = arith.constant dense<0.000000e+00> : vector<64x64xf32>
    %126 = tpu.matmul %125, %124, %cst_44 {dimension_numbers = #tpu.dot_dimension_numbers<[1], [0], [0], [1], [0, 0, 1, 1], [], []>} : vector<64x32xbf16>, vector<32x64xbf16>, vector<64x64xf32> -> vector<64x64xf32>
    %c4 = arith.constant 4 : index
    %c0_45 = arith.constant 0 : index
    %127 = vector.load %arg5[%c4, %c0_45] : memref<48x128xf32, #tpu.memory_space<vmem>>, vector<1x64xf32>
    %128 = vector.broadcast %127 : vector<1x64xf32> to vector<64x64xf32>
    %129 = arith.addf %126, %128 : vector<64x64xf32>
    %cst_46 = arith.constant 0.000000e+00 : f32
    %130 = vector.broadcast %cst_46 : f32 to vector<64x64xf32>
    %131 = arith.maximumf %129, %130 : vector<64x64xf32>
    %c144 = arith.constant 144 : index
    %c0_47 = arith.constant 0 : index
    %132 = vector.load %arg4[%c144, %c0_47] : memref<976x128xbf16, #tpu.memory_space<vmem>>, vector<64x32xbf16>
    %133 = arith.truncf %131 : vector<64x64xf32> to vector<64x64xbf16>
    %cst_48 = arith.constant dense<0.000000e+00> : vector<64x32xf32>
    %134 = tpu.matmul %133, %132, %cst_48 {dimension_numbers = #tpu.dot_dimension_numbers<[1], [0], [0], [1], [0, 0, 1, 1], [], []>} : vector<64x64xbf16>, vector<64x32xbf16>, vector<64x32xf32> -> vector<64x32xf32>
    %c5 = arith.constant 5 : index
    %c0_49 = arith.constant 0 : index
    %135 = vector.load %arg5[%c5, %c0_49] : memref<48x128xf32, #tpu.memory_space<vmem>>, vector<1x32xf32>
    %136 = vector.broadcast %135 : vector<1x32xf32> to vector<64x32xf32>
    %137 = arith.addf %134, %136 : vector<64x32xf32>
    %138 = arith.addf %123, %137 : vector<64x32xf32>
    %c8 = arith.constant 8 : index
    %c0_50 = arith.constant 0 : index
    %139 = vector.load %arg5[%c8, %c0_50] : memref<48x128xf32, #tpu.memory_space<vmem>>, vector<1x32xf32>
    %c9 = arith.constant 9 : index
    %c0_51 = arith.constant 0 : index
    %140 = vector.load %arg5[%c9, %c0_51] : memref<48x128xf32, #tpu.memory_space<vmem>>, vector<1x32xf32>
    %cst_52 = arith.constant dense<0.000000e+00> : vector<64xf32>
    %141 = vector.multi_reduction <add>, %138, %cst_52 [1] : vector<64x32xf32> to vector<64xf32>
    %142 = vector.shape_cast %141 : vector<64xf32> to vector<64x1xf32>
    %cst_53 = arith.constant 3.200000e+01 : f32
    %143 = vector.broadcast %cst_53 : f32 to vector<64x1xf32>
    %144 = arith.divf %142, %143 : vector<64x1xf32>
    %145 = vector.broadcast %144 : vector<64x1xf32> to vector<64x32xf32>
    %146 = arith.subf %138, %145 : vector<64x32xf32>
    %147 = arith.mulf %146, %146 : vector<64x32xf32>
    %cst_54 = arith.constant dense<0.000000e+00> : vector<64xf32>
    %148 = vector.multi_reduction <add>, %147, %cst_54 [1] : vector<64x32xf32> to vector<64xf32>
    %149 = vector.shape_cast %148 : vector<64xf32> to vector<64x1xf32>
    %cst_55 = arith.constant 3.200000e+01 : f32
    %150 = vector.broadcast %cst_55 : f32 to vector<64x1xf32>
    %151 = arith.divf %149, %150 : vector<64x1xf32>
    %cst_56 = arith.constant 9.99999974E-6 : f32
    %152 = vector.broadcast %cst_56 : f32 to vector<64x1xf32>
    %153 = arith.addf %151, %152 : vector<64x1xf32>
    %154 = math.rsqrt %153 : vector<64x1xf32>
    %155 = vector.broadcast %154 : vector<64x1xf32> to vector<64x32xf32>
    %156 = arith.mulf %146, %155 : vector<64x32xf32>
    %157 = vector.broadcast %139 : vector<1x32xf32> to vector<64x32xf32>
    %158 = arith.mulf %156, %157 : vector<64x32xf32>
    %159 = vector.broadcast %140 : vector<1x32xf32> to vector<64x32xf32>
    %160 = arith.addf %158, %159 : vector<64x32xf32>
    %161 = arith.addf %160, %0 : vector<64x32xf32>
    %cst_57 = arith.constant 0.000000e+00 : f32
    %162 = vector.broadcast %cst_57 : f32 to vector<8x32xf32>
    %163 = arith.addf %162, %1 : vector<8x32xf32>
    %c208 = arith.constant 208 : index
    %c0_58 = arith.constant 0 : index
    %164 = vector.load %arg4[%c208, %c0_58] : memref<976x128xbf16, #tpu.memory_space<vmem>>, vector<32x64xbf16>
    %165 = arith.truncf %163 : vector<8x32xf32> to vector<8x32xbf16>
    %cst_59 = arith.constant dense<0.000000e+00> : vector<8x64xf32>
    %166 = tpu.matmul %165, %164, %cst_59 {dimension_numbers = #tpu.dot_dimension_numbers<[1], [0], [0], [1], [0, 0, 1, 1], [], []>} : vector<8x32xbf16>, vector<32x64xbf16>, vector<8x64xf32> -> vector<8x64xf32>
    %c10 = arith.constant 10 : index
    %c0_60 = arith.constant 0 : index
    %167 = vector.load %arg5[%c10, %c0_60] : memref<48x128xf32, #tpu.memory_space<vmem>>, vector<1x64xf32>
    %168 = vector.broadcast %167 : vector<1x64xf32> to vector<8x64xf32>
    %169 = arith.addf %166, %168 : vector<8x64xf32>
    %c240 = arith.constant 240 : index
    %c0_61 = arith.constant 0 : index
    %170 = vector.load %arg4[%c240, %c0_61] : memref<976x128xbf16, #tpu.memory_space<vmem>>, vector<32x32xbf16>
    %171 = arith.truncf %162 : vector<8x32xf32> to vector<8x32xbf16>
    %cst_62 = arith.constant dense<0.000000e+00> : vector<8x32xf32>
    %172 = tpu.matmul %171, %170, %cst_62 {dimension_numbers = #tpu.dot_dimension_numbers<[1], [0], [0], [1], [0, 0, 1, 1], [], []>} : vector<8x32xbf16>, vector<32x32xbf16>, vector<8x32xf32> -> vector<8x32xf32>
    %c11 = arith.constant 11 : index
    %c0_63 = arith.constant 0 : index
    %173 = vector.load %arg5[%c11, %c0_63] : memref<48x128xf32, #tpu.memory_space<vmem>>, vector<1x32xf32>
    %174 = vector.broadcast %173 : vector<1x32xf32> to vector<8x32xf32>
    %175 = arith.addf %172, %174 : vector<8x32xf32>
    %176 = vector.extract_strided_slice %169 {offsets = [0, 0], sizes = [8, 32], strides = [1, 1]} : vector<8x64xf32> to vector<8x32xf32>
    %177 = vector.extract_strided_slice %169 {offsets = [0, 32], sizes = [8, 32], strides = [1, 1]} : vector<8x64xf32> to vector<8x32xf32>
    %c272 = arith.constant 272 : index
    %c0_64 = arith.constant 0 : index
    %178 = vector.load %arg4[%c272, %c0_64] : memref<976x128xbf16, #tpu.memory_space<vmem>>, vector<32x32xbf16>
    %c12 = arith.constant 12 : index
    %c0_65 = arith.constant 0 : index
    %179 = vector.load %arg5[%c12, %c0_65] : memref<48x128xf32, #tpu.memory_space<vmem>>, vector<1x32xf32>
    %cst_66 = arith.constant 0.353553385 : f32
    %180 = vector.broadcast %cst_66 : f32 to vector<8x32xf32>
    %181 = arith.mulf %176, %180 : vector<8x32xf32>
    %182 = arith.truncf %181 : vector<8x32xf32> to vector<8x32xbf16>
    %183 = arith.truncf %177 : vector<8x32xf32> to vector<8x32xbf16>
    %184 = arith.truncf %175 : vector<8x32xf32> to vector<8x32xbf16>
    %185 = vector.extract_strided_slice %182 {offsets = [0, 0], sizes = [8, 8], strides = [1, 1]} : vector<8x32xbf16> to vector<8x8xbf16>
    %186 = vector.extract_strided_slice %183 {offsets = [0, 0], sizes = [8, 8], strides = [1, 1]} : vector<8x32xbf16> to vector<8x8xbf16>
    %cst_67 = arith.constant dense<0.000000e+00> : vector<8x8xf32>
    %187 = tpu.matmul %185, %186, %cst_67 {dimension_numbers = #tpu.dot_dimension_numbers<[1], [1], [0], [0], [0, 0, 1, 0], [], []>} : vector<8x8xbf16>, vector<8x8xbf16>, vector<8x8xf32> -> vector<8x8xf32>
    %cst_68 = arith.constant dense<0xFF800000> : vector<8xf32>
    %188 = vector.multi_reduction <maximumf>, %187, %cst_68 [1] : vector<8x8xf32> to vector<8xf32>
    %189 = vector.shape_cast %188 : vector<8xf32> to vector<8x1xf32>
    %190 = vector.broadcast %189 : vector<8x1xf32> to vector<8x8xf32>
    %191 = arith.subf %187, %190 : vector<8x8xf32>
    %192 = math.exp %191 : vector<8x8xf32>
    %cst_69 = arith.constant dense<0.000000e+00> : vector<8xf32>
    %193 = vector.multi_reduction <add>, %192, %cst_69 [1] : vector<8x8xf32> to vector<8xf32>
    %194 = vector.shape_cast %193 : vector<8xf32> to vector<8x1xf32>
    %195 = tpu.reciprocal %194 {approx = true} : vector<8x1xf32> -> vector<8x1xf32>
    %196 = vector.broadcast %195 : vector<8x1xf32> to vector<8x8xf32>
    %197 = arith.mulf %192, %196 : vector<8x8xf32>
    %198 = arith.truncf %197 : vector<8x8xf32> to vector<8x8xbf16>
    %199 = vector.extract_strided_slice %184 {offsets = [0, 0], sizes = [8, 8], strides = [1, 1]} : vector<8x32xbf16> to vector<8x8xbf16>
    %cst_70 = arith.constant dense<0.000000e+00> : vector<8x8xf32>
    %200 = tpu.matmul %198, %199, %cst_70 {dimension_numbers = #tpu.dot_dimension_numbers<[1], [0], [0], [1], [0, 0, 1, 1], [], []>} : vector<8x8xbf16>, vector<8x8xbf16>, vector<8x8xf32> -> vector<8x8xf32>
    %201 = vector.extract_strided_slice %182 {offsets = [0, 8], sizes = [8, 8], strides = [1, 1]} : vector<8x32xbf16> to vector<8x8xbf16>
    %202 = vector.extract_strided_slice %183 {offsets = [0, 8], sizes = [8, 8], strides = [1, 1]} : vector<8x32xbf16> to vector<8x8xbf16>
    %cst_71 = arith.constant dense<0.000000e+00> : vector<8x8xf32>
    %203 = tpu.matmul %201, %202, %cst_71 {dimension_numbers = #tpu.dot_dimension_numbers<[1], [1], [0], [0], [0, 0, 1, 0], [], []>} : vector<8x8xbf16>, vector<8x8xbf16>, vector<8x8xf32> -> vector<8x8xf32>
    %cst_72 = arith.constant dense<0xFF800000> : vector<8xf32>
    %204 = vector.multi_reduction <maximumf>, %203, %cst_72 [1] : vector<8x8xf32> to vector<8xf32>
    %205 = vector.shape_cast %204 : vector<8xf32> to vector<8x1xf32>
    %206 = vector.broadcast %205 : vector<8x1xf32> to vector<8x8xf32>
    %207 = arith.subf %203, %206 : vector<8x8xf32>
    %208 = math.exp %207 : vector<8x8xf32>
    %cst_73 = arith.constant dense<0.000000e+00> : vector<8xf32>
    %209 = vector.multi_reduction <add>, %208, %cst_73 [1] : vector<8x8xf32> to vector<8xf32>
    %210 = vector.shape_cast %209 : vector<8xf32> to vector<8x1xf32>
    %211 = tpu.reciprocal %210 {approx = true} : vector<8x1xf32> -> vector<8x1xf32>
    %212 = vector.broadcast %211 : vector<8x1xf32> to vector<8x8xf32>
    %213 = arith.mulf %208, %212 : vector<8x8xf32>
    %214 = arith.truncf %213 : vector<8x8xf32> to vector<8x8xbf16>
    %215 = vector.extract_strided_slice %184 {offsets = [0, 8], sizes = [8, 8], strides = [1, 1]} : vector<8x32xbf16> to vector<8x8xbf16>
    %cst_74 = arith.constant dense<0.000000e+00> : vector<8x8xf32>
    %216 = tpu.matmul %214, %215, %cst_74 {dimension_numbers = #tpu.dot_dimension_numbers<[1], [0], [0], [1], [0, 0, 1, 1], [], []>} : vector<8x8xbf16>, vector<8x8xbf16>, vector<8x8xf32> -> vector<8x8xf32>
    %217 = vector.extract_strided_slice %182 {offsets = [0, 16], sizes = [8, 8], strides = [1, 1]} : vector<8x32xbf16> to vector<8x8xbf16>
    %218 = vector.extract_strided_slice %183 {offsets = [0, 16], sizes = [8, 8], strides = [1, 1]} : vector<8x32xbf16> to vector<8x8xbf16>
    %cst_75 = arith.constant dense<0.000000e+00> : vector<8x8xf32>
    %219 = tpu.matmul %217, %218, %cst_75 {dimension_numbers = #tpu.dot_dimension_numbers<[1], [1], [0], [0], [0, 0, 1, 0], [], []>} : vector<8x8xbf16>, vector<8x8xbf16>, vector<8x8xf32> -> vector<8x8xf32>
    %cst_76 = arith.constant dense<0xFF800000> : vector<8xf32>
    %220 = vector.multi_reduction <maximumf>, %219, %cst_76 [1] : vector<8x8xf32> to vector<8xf32>
    %221 = vector.shape_cast %220 : vector<8xf32> to vector<8x1xf32>
    %222 = vector.broadcast %221 : vector<8x1xf32> to vector<8x8xf32>
    %223 = arith.subf %219, %222 : vector<8x8xf32>
    %224 = math.exp %223 : vector<8x8xf32>
    %cst_77 = arith.constant dense<0.000000e+00> : vector<8xf32>
    %225 = vector.multi_reduction <add>, %224, %cst_77 [1] : vector<8x8xf32> to vector<8xf32>
    %226 = vector.shape_cast %225 : vector<8xf32> to vector<8x1xf32>
    %227 = tpu.reciprocal %226 {approx = true} : vector<8x1xf32> -> vector<8x1xf32>
    %228 = vector.broadcast %227 : vector<8x1xf32> to vector<8x8xf32>
    %229 = arith.mulf %224, %228 : vector<8x8xf32>
    %230 = arith.truncf %229 : vector<8x8xf32> to vector<8x8xbf16>
    %231 = vector.extract_strided_slice %184 {offsets = [0, 16], sizes = [8, 8], strides = [1, 1]} : vector<8x32xbf16> to vector<8x8xbf16>
    %cst_78 = arith.constant dense<0.000000e+00> : vector<8x8xf32>
    %232 = tpu.matmul %230, %231, %cst_78 {dimension_numbers = #tpu.dot_dimension_numbers<[1], [0], [0], [1], [0, 0, 1, 1], [], []>} : vector<8x8xbf16>, vector<8x8xbf16>, vector<8x8xf32> -> vector<8x8xf32>
    %233 = vector.extract_strided_slice %182 {offsets = [0, 24], sizes = [8, 8], strides = [1, 1]} : vector<8x32xbf16> to vector<8x8xbf16>
    %234 = vector.extract_strided_slice %183 {offsets = [0, 24], sizes = [8, 8], strides = [1, 1]} : vector<8x32xbf16> to vector<8x8xbf16>
    %cst_79 = arith.constant dense<0.000000e+00> : vector<8x8xf32>
    %235 = tpu.matmul %233, %234, %cst_79 {dimension_numbers = #tpu.dot_dimension_numbers<[1], [1], [0], [0], [0, 0, 1, 0], [], []>} : vector<8x8xbf16>, vector<8x8xbf16>, vector<8x8xf32> -> vector<8x8xf32>
    %cst_80 = arith.constant dense<0xFF800000> : vector<8xf32>
    %236 = vector.multi_reduction <maximumf>, %235, %cst_80 [1] : vector<8x8xf32> to vector<8xf32>
    %237 = vector.shape_cast %236 : vector<8xf32> to vector<8x1xf32>
    %238 = vector.broadcast %237 : vector<8x1xf32> to vector<8x8xf32>
    %239 = arith.subf %235, %238 : vector<8x8xf32>
    %240 = math.exp %239 : vector<8x8xf32>
    %cst_81 = arith.constant dense<0.000000e+00> : vector<8xf32>
    %241 = vector.multi_reduction <add>, %240, %cst_81 [1] : vector<8x8xf32> to vector<8xf32>
    %242 = vector.shape_cast %241 : vector<8xf32> to vector<8x1xf32>
    %243 = tpu.reciprocal %242 {approx = true} : vector<8x1xf32> -> vector<8x1xf32>
    %244 = vector.broadcast %243 : vector<8x1xf32> to vector<8x8xf32>
    %245 = arith.mulf %240, %244 : vector<8x8xf32>
    %246 = arith.truncf %245 : vector<8x8xf32> to vector<8x8xbf16>
    %247 = vector.extract_strided_slice %184 {offsets = [0, 24], sizes = [8, 8], strides = [1, 1]} : vector<8x32xbf16> to vector<8x8xbf16>
    %cst_82 = arith.constant dense<0.000000e+00> : vector<8x8xf32>
    %248 = tpu.matmul %246, %247, %cst_82 {dimension_numbers = #tpu.dot_dimension_numbers<[1], [0], [0], [1], [0, 0, 1, 1], [], []>} : vector<8x8xbf16>, vector<8x8xbf16>, vector<8x8xf32> -> vector<8x8xf32>
    %249 = tpu.concatenate %200, %216, %232, %248 in 1 : vector<8x8xf32>, vector<8x8xf32>, vector<8x8xf32>, vector<8x8xf32> -> vector<8x32xf32>
    %250 = arith.truncf %249 : vector<8x32xf32> to vector<8x32xbf16>
    %cst_83 = arith.constant dense<0.000000e+00> : vector<8x32xf32>
    %251 = tpu.matmul %250, %178, %cst_83 {dimension_numbers = #tpu.dot_dimension_numbers<[1], [0], [0], [1], [0, 0, 1, 1], [], []>} : vector<8x32xbf16>, vector<32x32xbf16>, vector<8x32xf32> -> vector<8x32xf32>
    %252 = vector.broadcast %179 : vector<1x32xf32> to vector<8x32xf32>
    %253 = arith.addf %251, %252 : vector<8x32xf32>
    %254 = arith.addf %162, %253 : vector<8x32xf32>
    %c19 = arith.constant 19 : index
    %c0_84 = arith.constant 0 : index
    %255 = vector.load %arg5[%c19, %c0_84] : memref<48x128xf32, #tpu.memory_space<vmem>>, vector<1x32xf32>
    %c20 = arith.constant 20 : index
    %c0_85 = arith.constant 0 : index
    %256 = vector.load %arg5[%c20, %c0_85] : memref<48x128xf32, #tpu.memory_space<vmem>>, vector<1x32xf32>
    %cst_86 = arith.constant dense<0.000000e+00> : vector<8xf32>
    %257 = vector.multi_reduction <add>, %254, %cst_86 [1] : vector<8x32xf32> to vector<8xf32>
    %258 = vector.shape_cast %257 : vector<8xf32> to vector<8x1xf32>
    %cst_87 = arith.constant 3.200000e+01 : f32
    %259 = vector.broadcast %cst_87 : f32 to vector<8x1xf32>
    %260 = arith.divf %258, %259 : vector<8x1xf32>
    %261 = vector.broadcast %260 : vector<8x1xf32> to vector<8x32xf32>
    %262 = arith.subf %254, %261 : vector<8x32xf32>
    %263 = arith.mulf %262, %262 : vector<8x32xf32>
    %cst_88 = arith.constant dense<0.000000e+00> : vector<8xf32>
    %264 = vector.multi_reduction <add>, %263, %cst_88 [1] : vector<8x32xf32> to vector<8xf32>
    %265 = vector.shape_cast %264 : vector<8xf32> to vector<8x1xf32>
    %cst_89 = arith.constant 3.200000e+01 : f32
    %266 = vector.broadcast %cst_89 : f32 to vector<8x1xf32>
    %267 = arith.divf %265, %266 : vector<8x1xf32>
    %cst_90 = arith.constant 9.99999974E-6 : f32
    %268 = vector.broadcast %cst_90 : f32 to vector<8x1xf32>
    %269 = arith.addf %267, %268 : vector<8x1xf32>
    %270 = math.rsqrt %269 : vector<8x1xf32>
    %271 = vector.broadcast %270 : vector<8x1xf32> to vector<8x32xf32>
    %272 = arith.mulf %262, %271 : vector<8x32xf32>
    %273 = vector.broadcast %255 : vector<1x32xf32> to vector<8x32xf32>
    %274 = arith.mulf %272, %273 : vector<8x32xf32>
    %275 = vector.broadcast %256 : vector<1x32xf32> to vector<8x32xf32>
    %276 = arith.addf %274, %275 : vector<8x32xf32>
    %277 = arith.addf %276, %1 : vector<8x32xf32>
    %c304 = arith.constant 304 : index
    %c0_91 = arith.constant 0 : index
    %278 = vector.load %arg4[%c304, %c0_91] : memref<976x128xbf16, #tpu.memory_space<vmem>>, vector<32x32xbf16>
    %279 = arith.truncf %277 : vector<8x32xf32> to vector<8x32xbf16>
    %cst_92 = arith.constant dense<0.000000e+00> : vector<8x32xf32>
    %280 = tpu.matmul %279, %278, %cst_92 {dimension_numbers = #tpu.dot_dimension_numbers<[1], [0], [0], [1], [0, 0, 1, 1], [], []>} : vector<8x32xbf16>, vector<32x32xbf16>, vector<8x32xf32> -> vector<8x32xf32>
    %c13 = arith.constant 13 : index
    %c0_93 = arith.constant 0 : index
    %281 = vector.load %arg5[%c13, %c0_93] : memref<48x128xf32, #tpu.memory_space<vmem>>, vector<1x32xf32>
    %282 = vector.broadcast %281 : vector<1x32xf32> to vector<8x32xf32>
    %283 = arith.addf %280, %282 : vector<8x32xf32>
    %c336 = arith.constant 336 : index
    %c0_94 = arith.constant 0 : index
    %284 = vector.load %arg4[%c336, %c0_94] : memref<976x128xbf16, #tpu.memory_space<vmem>>, vector<32x32xbf16>
    %285 = arith.truncf %161 : vector<64x32xf32> to vector<64x32xbf16>
    %cst_95 = arith.constant dense<0.000000e+00> : vector<64x32xf32>
    %286 = tpu.matmul %285, %284, %cst_95 {dimension_numbers = #tpu.dot_dimension_numbers<[1], [0], [0], [1], [0, 0, 1, 1], [], []>} : vector<64x32xbf16>, vector<32x32xbf16>, vector<64x32xf32> -> vector<64x32xf32>
    %c14 = arith.constant 14 : index
    %c0_96 = arith.constant 0 : index
    %287 = vector.load %arg5[%c14, %c0_96] : memref<48x128xf32, #tpu.memory_space<vmem>>, vector<1x32xf32>
    %288 = vector.broadcast %287 : vector<1x32xf32> to vector<64x32xf32>
    %289 = arith.addf %286, %288 : vector<64x32xf32>
    %c368 = arith.constant 368 : index
    %c0_97 = arith.constant 0 : index
    %290 = vector.load %arg4[%c368, %c0_97] : memref<976x128xbf16, #tpu.memory_space<vmem>>, vector<32x32xbf16>
    %291 = arith.truncf %160 : vector<64x32xf32> to vector<64x32xbf16>
    %cst_98 = arith.constant dense<0.000000e+00> : vector<64x32xf32>
    %292 = tpu.matmul %291, %290, %cst_98 {dimension_numbers = #tpu.dot_dimension_numbers<[1], [0], [0], [1], [0, 0, 1, 1], [], []>} : vector<64x32xbf16>, vector<32x32xbf16>, vector<64x32xf32> -> vector<64x32xf32>
    %c15 = arith.constant 15 : index
    %c0_99 = arith.constant 0 : index
    %293 = vector.load %arg5[%c15, %c0_99] : memref<48x128xf32, #tpu.memory_space<vmem>>, vector<1x32xf32>
    %294 = vector.broadcast %293 : vector<1x32xf32> to vector<64x32xf32>
    %295 = arith.addf %292, %294 : vector<64x32xf32>
    %c400 = arith.constant 400 : index
    %c0_100 = arith.constant 0 : index
    %296 = vector.load %arg4[%c400, %c0_100] : memref<976x128xbf16, #tpu.memory_space<vmem>>, vector<32x32xbf16>
    %c16_101 = arith.constant 16 : index
    %c0_102 = arith.constant 0 : index
    %297 = vector.load %arg5[%c16_101, %c0_102] : memref<48x128xf32, #tpu.memory_space<vmem>>, vector<1x32xf32>
    %cst_103 = arith.constant 0.353553385 : f32
    %298 = vector.broadcast %cst_103 : f32 to vector<8x32xf32>
    %299 = arith.mulf %283, %298 : vector<8x32xf32>
    %300 = arith.truncf %299 : vector<8x32xf32> to vector<8x32xbf16>
    %301 = arith.truncf %289 : vector<64x32xf32> to vector<64x32xbf16>
    %302 = arith.truncf %295 : vector<64x32xf32> to vector<64x32xbf16>
    %303 = vector.extract_strided_slice %300 {offsets = [0, 0], sizes = [8, 8], strides = [1, 1]} : vector<8x32xbf16> to vector<8x8xbf16>
    %304 = vector.extract_strided_slice %301 {offsets = [0, 0], sizes = [64, 8], strides = [1, 1]} : vector<64x32xbf16> to vector<64x8xbf16>
    %cst_104 = arith.constant dense<0.000000e+00> : vector<8x64xf32>
    %305 = tpu.matmul %303, %304, %cst_104 {dimension_numbers = #tpu.dot_dimension_numbers<[1], [1], [0], [0], [0, 0, 1, 0], [], []>} : vector<8x8xbf16>, vector<64x8xbf16>, vector<8x64xf32> -> vector<8x64xf32>
    %cst_105 = arith.constant dense<0xFF800000> : vector<8xf32>
    %306 = vector.multi_reduction <maximumf>, %305, %cst_105 [1] : vector<8x64xf32> to vector<8xf32>
    %307 = vector.shape_cast %306 : vector<8xf32> to vector<8x1xf32>
    %308 = vector.broadcast %307 : vector<8x1xf32> to vector<8x64xf32>
    %309 = arith.subf %305, %308 : vector<8x64xf32>
    %310 = math.exp %309 : vector<8x64xf32>
    %cst_106 = arith.constant dense<0.000000e+00> : vector<8xf32>
    %311 = vector.multi_reduction <add>, %310, %cst_106 [1] : vector<8x64xf32> to vector<8xf32>
    %312 = vector.shape_cast %311 : vector<8xf32> to vector<8x1xf32>
    %313 = tpu.reciprocal %312 {approx = true} : vector<8x1xf32> -> vector<8x1xf32>
    %314 = vector.broadcast %313 : vector<8x1xf32> to vector<8x64xf32>
    %315 = arith.mulf %310, %314 : vector<8x64xf32>
    %316 = arith.truncf %315 : vector<8x64xf32> to vector<8x64xbf16>
    %317 = vector.extract_strided_slice %302 {offsets = [0, 0], sizes = [64, 8], strides = [1, 1]} : vector<64x32xbf16> to vector<64x8xbf16>
    %cst_107 = arith.constant dense<0.000000e+00> : vector<8x8xf32>
    %318 = tpu.matmul %316, %317, %cst_107 {dimension_numbers = #tpu.dot_dimension_numbers<[1], [0], [0], [1], [0, 0, 1, 1], [], []>} : vector<8x64xbf16>, vector<64x8xbf16>, vector<8x8xf32> -> vector<8x8xf32>
    %319 = vector.extract_strided_slice %300 {offsets = [0, 8], sizes = [8, 8], strides = [1, 1]} : vector<8x32xbf16> to vector<8x8xbf16>
    %320 = vector.extract_strided_slice %301 {offsets = [0, 8], sizes = [64, 8], strides = [1, 1]} : vector<64x32xbf16> to vector<64x8xbf16>
    %cst_108 = arith.constant dense<0.000000e+00> : vector<8x64xf32>
    %321 = tpu.matmul %319, %320, %cst_108 {dimension_numbers = #tpu.dot_dimension_numbers<[1], [1], [0], [0], [0, 0, 1, 0], [], []>} : vector<8x8xbf16>, vector<64x8xbf16>, vector<8x64xf32> -> vector<8x64xf32>
    %cst_109 = arith.constant dense<0xFF800000> : vector<8xf32>
    %322 = vector.multi_reduction <maximumf>, %321, %cst_109 [1] : vector<8x64xf32> to vector<8xf32>
    %323 = vector.shape_cast %322 : vector<8xf32> to vector<8x1xf32>
    %324 = vector.broadcast %323 : vector<8x1xf32> to vector<8x64xf32>
    %325 = arith.subf %321, %324 : vector<8x64xf32>
    %326 = math.exp %325 : vector<8x64xf32>
    %cst_110 = arith.constant dense<0.000000e+00> : vector<8xf32>
    %327 = vector.multi_reduction <add>, %326, %cst_110 [1] : vector<8x64xf32> to vector<8xf32>
    %328 = vector.shape_cast %327 : vector<8xf32> to vector<8x1xf32>
    %329 = tpu.reciprocal %328 {approx = true} : vector<8x1xf32> -> vector<8x1xf32>
    %330 = vector.broadcast %329 : vector<8x1xf32> to vector<8x64xf32>
    %331 = arith.mulf %326, %330 : vector<8x64xf32>
    %332 = arith.truncf %331 : vector<8x64xf32> to vector<8x64xbf16>
    %333 = vector.extract_strided_slice %302 {offsets = [0, 8], sizes = [64, 8], strides = [1, 1]} : vector<64x32xbf16> to vector<64x8xbf16>
    %cst_111 = arith.constant dense<0.000000e+00> : vector<8x8xf32>
    %334 = tpu.matmul %332, %333, %cst_111 {dimension_numbers = #tpu.dot_dimension_numbers<[1], [0], [0], [1], [0, 0, 1, 1], [], []>} : vector<8x64xbf16>, vector<64x8xbf16>, vector<8x8xf32> -> vector<8x8xf32>
    %335 = vector.extract_strided_slice %300 {offsets = [0, 16], sizes = [8, 8], strides = [1, 1]} : vector<8x32xbf16> to vector<8x8xbf16>
    %336 = vector.extract_strided_slice %301 {offsets = [0, 16], sizes = [64, 8], strides = [1, 1]} : vector<64x32xbf16> to vector<64x8xbf16>
    %cst_112 = arith.constant dense<0.000000e+00> : vector<8x64xf32>
    %337 = tpu.matmul %335, %336, %cst_112 {dimension_numbers = #tpu.dot_dimension_numbers<[1], [1], [0], [0], [0, 0, 1, 0], [], []>} : vector<8x8xbf16>, vector<64x8xbf16>, vector<8x64xf32> -> vector<8x64xf32>
    %cst_113 = arith.constant dense<0xFF800000> : vector<8xf32>
    %338 = vector.multi_reduction <maximumf>, %337, %cst_113 [1] : vector<8x64xf32> to vector<8xf32>
    %339 = vector.shape_cast %338 : vector<8xf32> to vector<8x1xf32>
    %340 = vector.broadcast %339 : vector<8x1xf32> to vector<8x64xf32>
    %341 = arith.subf %337, %340 : vector<8x64xf32>
    %342 = math.exp %341 : vector<8x64xf32>
    %cst_114 = arith.constant dense<0.000000e+00> : vector<8xf32>
    %343 = vector.multi_reduction <add>, %342, %cst_114 [1] : vector<8x64xf32> to vector<8xf32>
    %344 = vector.shape_cast %343 : vector<8xf32> to vector<8x1xf32>
    %345 = tpu.reciprocal %344 {approx = true} : vector<8x1xf32> -> vector<8x1xf32>
    %346 = vector.broadcast %345 : vector<8x1xf32> to vector<8x64xf32>
    %347 = arith.mulf %342, %346 : vector<8x64xf32>
    %348 = arith.truncf %347 : vector<8x64xf32> to vector<8x64xbf16>
    %349 = vector.extract_strided_slice %302 {offsets = [0, 16], sizes = [64, 8], strides = [1, 1]} : vector<64x32xbf16> to vector<64x8xbf16>
    %cst_115 = arith.constant dense<0.000000e+00> : vector<8x8xf32>
    %350 = tpu.matmul %348, %349, %cst_115 {dimension_numbers = #tpu.dot_dimension_numbers<[1], [0], [0], [1], [0, 0, 1, 1], [], []>} : vector<8x64xbf16>, vector<64x8xbf16>, vector<8x8xf32> -> vector<8x8xf32>
    %351 = vector.extract_strided_slice %300 {offsets = [0, 24], sizes = [8, 8], strides = [1, 1]} : vector<8x32xbf16> to vector<8x8xbf16>
    %352 = vector.extract_strided_slice %301 {offsets = [0, 24], sizes = [64, 8], strides = [1, 1]} : vector<64x32xbf16> to vector<64x8xbf16>
    %cst_116 = arith.constant dense<0.000000e+00> : vector<8x64xf32>
    %353 = tpu.matmul %351, %352, %cst_116 {dimension_numbers = #tpu.dot_dimension_numbers<[1], [1], [0], [0], [0, 0, 1, 0], [], []>} : vector<8x8xbf16>, vector<64x8xbf16>, vector<8x64xf32> -> vector<8x64xf32>
    %cst_117 = arith.constant dense<0xFF800000> : vector<8xf32>
    %354 = vector.multi_reduction <maximumf>, %353, %cst_117 [1] : vector<8x64xf32> to vector<8xf32>
    %355 = vector.shape_cast %354 : vector<8xf32> to vector<8x1xf32>
    %356 = vector.broadcast %355 : vector<8x1xf32> to vector<8x64xf32>
    %357 = arith.subf %353, %356 : vector<8x64xf32>
    %358 = math.exp %357 : vector<8x64xf32>
    %cst_118 = arith.constant dense<0.000000e+00> : vector<8xf32>
    %359 = vector.multi_reduction <add>, %358, %cst_118 [1] : vector<8x64xf32> to vector<8xf32>
    %360 = vector.shape_cast %359 : vector<8xf32> to vector<8x1xf32>
    %361 = tpu.reciprocal %360 {approx = true} : vector<8x1xf32> -> vector<8x1xf32>
    %362 = vector.broadcast %361 : vector<8x1xf32> to vector<8x64xf32>
    %363 = arith.mulf %358, %362 : vector<8x64xf32>
    %364 = arith.truncf %363 : vector<8x64xf32> to vector<8x64xbf16>
    %365 = vector.extract_strided_slice %302 {offsets = [0, 24], sizes = [64, 8], strides = [1, 1]} : vector<64x32xbf16> to vector<64x8xbf16>
    %cst_119 = arith.constant dense<0.000000e+00> : vector<8x8xf32>
    %366 = tpu.matmul %364, %365, %cst_119 {dimension_numbers = #tpu.dot_dimension_numbers<[1], [0], [0], [1], [0, 0, 1, 1], [], []>} : vector<8x64xbf16>, vector<64x8xbf16>, vector<8x8xf32> -> vector<8x8xf32>
    %367 = tpu.concatenate %318, %334, %350, %366 in 1 : vector<8x8xf32>, vector<8x8xf32>, vector<8x8xf32>, vector<8x8xf32> -> vector<8x32xf32>
    %368 = arith.truncf %367 : vector<8x32xf32> to vector<8x32xbf16>
    %cst_120 = arith.constant dense<0.000000e+00> : vector<8x32xf32>
    %369 = tpu.matmul %368, %296, %cst_120 {dimension_numbers = #tpu.dot_dimension_numbers<[1], [0], [0], [1], [0, 0, 1, 1], [], []>} : vector<8x32xbf16>, vector<32x32xbf16>, vector<8x32xf32> -> vector<8x32xf32>
    %370 = vector.broadcast %297 : vector<1x32xf32> to vector<8x32xf32>
    %371 = arith.addf %369, %370 : vector<8x32xf32>
    %372 = arith.addf %276, %371 : vector<8x32xf32>
    %c21 = arith.constant 21 : index
    %c0_121 = arith.constant 0 : index
    %373 = vector.load %arg5[%c21, %c0_121] : memref<48x128xf32, #tpu.memory_space<vmem>>, vector<1x32xf32>
    %c22 = arith.constant 22 : index
    %c0_122 = arith.constant 0 : index
    %374 = vector.load %arg5[%c22, %c0_122] : memref<48x128xf32, #tpu.memory_space<vmem>>, vector<1x32xf32>
    %cst_123 = arith.constant dense<0.000000e+00> : vector<8xf32>
    %375 = vector.multi_reduction <add>, %372, %cst_123 [1] : vector<8x32xf32> to vector<8xf32>
    %376 = vector.shape_cast %375 : vector<8xf32> to vector<8x1xf32>
    %cst_124 = arith.constant 3.200000e+01 : f32
    %377 = vector.broadcast %cst_124 : f32 to vector<8x1xf32>
    %378 = arith.divf %376, %377 : vector<8x1xf32>
    %379 = vector.broadcast %378 : vector<8x1xf32> to vector<8x32xf32>
    %380 = arith.subf %372, %379 : vector<8x32xf32>
    %381 = arith.mulf %380, %380 : vector<8x32xf32>
    %cst_125 = arith.constant dense<0.000000e+00> : vector<8xf32>
    %382 = vector.multi_reduction <add>, %381, %cst_125 [1] : vector<8x32xf32> to vector<8xf32>
    %383 = vector.shape_cast %382 : vector<8xf32> to vector<8x1xf32>
    %cst_126 = arith.constant 3.200000e+01 : f32
    %384 = vector.broadcast %cst_126 : f32 to vector<8x1xf32>
    %385 = arith.divf %383, %384 : vector<8x1xf32>
    %cst_127 = arith.constant 9.99999974E-6 : f32
    %386 = vector.broadcast %cst_127 : f32 to vector<8x1xf32>
    %387 = arith.addf %385, %386 : vector<8x1xf32>
    %388 = math.rsqrt %387 : vector<8x1xf32>
    %389 = vector.broadcast %388 : vector<8x1xf32> to vector<8x32xf32>
    %390 = arith.mulf %380, %389 : vector<8x32xf32>
    %391 = vector.broadcast %373 : vector<1x32xf32> to vector<8x32xf32>
    %392 = arith.mulf %390, %391 : vector<8x32xf32>
    %393 = vector.broadcast %374 : vector<1x32xf32> to vector<8x32xf32>
    %394 = arith.addf %392, %393 : vector<8x32xf32>
    %c432 = arith.constant 432 : index
    %c0_128 = arith.constant 0 : index
    %395 = vector.load %arg4[%c432, %c0_128] : memref<976x128xbf16, #tpu.memory_space<vmem>>, vector<32x64xbf16>
    %396 = arith.truncf %394 : vector<8x32xf32> to vector<8x32xbf16>
    %cst_129 = arith.constant dense<0.000000e+00> : vector<8x64xf32>
    %397 = tpu.matmul %396, %395, %cst_129 {dimension_numbers = #tpu.dot_dimension_numbers<[1], [0], [0], [1], [0, 0, 1, 1], [], []>} : vector<8x32xbf16>, vector<32x64xbf16>, vector<8x64xf32> -> vector<8x64xf32>
    %c17 = arith.constant 17 : index
    %c0_130 = arith.constant 0 : index
    %398 = vector.load %arg5[%c17, %c0_130] : memref<48x128xf32, #tpu.memory_space<vmem>>, vector<1x64xf32>
    %399 = vector.broadcast %398 : vector<1x64xf32> to vector<8x64xf32>
    %400 = arith.addf %397, %399 : vector<8x64xf32>
    %cst_131 = arith.constant 0.000000e+00 : f32
    %401 = vector.broadcast %cst_131 : f32 to vector<8x64xf32>
    %402 = arith.maximumf %400, %401 : vector<8x64xf32>
    %c464 = arith.constant 464 : index
    %c0_132 = arith.constant 0 : index
    %403 = vector.load %arg4[%c464, %c0_132] : memref<976x128xbf16, #tpu.memory_space<vmem>>, vector<64x32xbf16>
    %404 = arith.truncf %402 : vector<8x64xf32> to vector<8x64xbf16>
    %cst_133 = arith.constant dense<0.000000e+00> : vector<8x32xf32>
    %405 = tpu.matmul %404, %403, %cst_133 {dimension_numbers = #tpu.dot_dimension_numbers<[1], [0], [0], [1], [0, 0, 1, 1], [], []>} : vector<8x64xbf16>, vector<64x32xbf16>, vector<8x32xf32> -> vector<8x32xf32>
    %c18 = arith.constant 18 : index
    %c0_134 = arith.constant 0 : index
    %406 = vector.load %arg5[%c18, %c0_134] : memref<48x128xf32, #tpu.memory_space<vmem>>, vector<1x32xf32>
    %407 = vector.broadcast %406 : vector<1x32xf32> to vector<8x32xf32>
    %408 = arith.addf %405, %407 : vector<8x32xf32>
    %409 = arith.addf %394, %408 : vector<8x32xf32>
    %c23 = arith.constant 23 : index
    %c0_135 = arith.constant 0 : index
    %410 = vector.load %arg5[%c23, %c0_135] : memref<48x128xf32, #tpu.memory_space<vmem>>, vector<1x32xf32>
    %c24 = arith.constant 24 : index
    %c0_136 = arith.constant 0 : index
    %411 = vector.load %arg5[%c24, %c0_136] : memref<48x128xf32, #tpu.memory_space<vmem>>, vector<1x32xf32>
    %cst_137 = arith.constant dense<0.000000e+00> : vector<8xf32>
    %412 = vector.multi_reduction <add>, %409, %cst_137 [1] : vector<8x32xf32> to vector<8xf32>
    %413 = vector.shape_cast %412 : vector<8xf32> to vector<8x1xf32>
    %cst_138 = arith.constant 3.200000e+01 : f32
    %414 = vector.broadcast %cst_138 : f32 to vector<8x1xf32>
    %415 = arith.divf %413, %414 : vector<8x1xf32>
    %416 = vector.broadcast %415 : vector<8x1xf32> to vector<8x32xf32>
    %417 = arith.subf %409, %416 : vector<8x32xf32>
    %418 = arith.mulf %417, %417 : vector<8x32xf32>
    %cst_139 = arith.constant dense<0.000000e+00> : vector<8xf32>
    %419 = vector.multi_reduction <add>, %418, %cst_139 [1] : vector<8x32xf32> to vector<8xf32>
    %420 = vector.shape_cast %419 : vector<8xf32> to vector<8x1xf32>
    %cst_140 = arith.constant 3.200000e+01 : f32
    %421 = vector.broadcast %cst_140 : f32 to vector<8x1xf32>
    %422 = arith.divf %420, %421 : vector<8x1xf32>
    %cst_141 = arith.constant 9.99999974E-6 : f32
    %423 = vector.broadcast %cst_141 : f32 to vector<8x1xf32>
    %424 = arith.addf %422, %423 : vector<8x1xf32>
    %425 = math.rsqrt %424 : vector<8x1xf32>
    %426 = vector.broadcast %425 : vector<8x1xf32> to vector<8x32xf32>
    %427 = arith.mulf %417, %426 : vector<8x32xf32>
    %428 = vector.broadcast %410 : vector<1x32xf32> to vector<8x32xf32>
    %429 = arith.mulf %427, %428 : vector<8x32xf32>
    %430 = vector.broadcast %411 : vector<1x32xf32> to vector<8x32xf32>
    %431 = arith.addf %429, %430 : vector<8x32xf32>
    %432 = arith.addf %431, %1 : vector<8x32xf32>
    %c528 = arith.constant 528 : index
    %c0_142 = arith.constant 0 : index
    %433 = vector.load %arg4[%c528, %c0_142] : memref<976x128xbf16, #tpu.memory_space<vmem>>, vector<32x64xbf16>
    %434 = arith.truncf %432 : vector<8x32xf32> to vector<8x32xbf16>
    %cst_143 = arith.constant dense<0.000000e+00> : vector<8x64xf32>
    %435 = tpu.matmul %434, %433, %cst_143 {dimension_numbers = #tpu.dot_dimension_numbers<[1], [0], [0], [1], [0, 0, 1, 1], [], []>} : vector<8x32xbf16>, vector<32x64xbf16>, vector<8x64xf32> -> vector<8x64xf32>
    %c25 = arith.constant 25 : index
    %c0_144 = arith.constant 0 : index
    %436 = vector.load %arg5[%c25, %c0_144] : memref<48x128xf32, #tpu.memory_space<vmem>>, vector<1x64xf32>
    %437 = vector.broadcast %436 : vector<1x64xf32> to vector<8x64xf32>
    %438 = arith.addf %435, %437 : vector<8x64xf32>
    %c560 = arith.constant 560 : index
    %c0_145 = arith.constant 0 : index
    %439 = vector.load %arg4[%c560, %c0_145] : memref<976x128xbf16, #tpu.memory_space<vmem>>, vector<32x32xbf16>
    %440 = arith.truncf %431 : vector<8x32xf32> to vector<8x32xbf16>
    %cst_146 = arith.constant dense<0.000000e+00> : vector<8x32xf32>
    %441 = tpu.matmul %440, %439, %cst_146 {dimension_numbers = #tpu.dot_dimension_numbers<[1], [0], [0], [1], [0, 0, 1, 1], [], []>} : vector<8x32xbf16>, vector<32x32xbf16>, vector<8x32xf32> -> vector<8x32xf32>
    %c26 = arith.constant 26 : index
    %c0_147 = arith.constant 0 : index
    %442 = vector.load %arg5[%c26, %c0_147] : memref<48x128xf32, #tpu.memory_space<vmem>>, vector<1x32xf32>
    %443 = vector.broadcast %442 : vector<1x32xf32> to vector<8x32xf32>
    %444 = arith.addf %441, %443 : vector<8x32xf32>
    %445 = vector.extract_strided_slice %438 {offsets = [0, 0], sizes = [8, 32], strides = [1, 1]} : vector<8x64xf32> to vector<8x32xf32>
    %446 = vector.extract_strided_slice %438 {offsets = [0, 32], sizes = [8, 32], strides = [1, 1]} : vector<8x64xf32> to vector<8x32xf32>
    %c592 = arith.constant 592 : index
    %c0_148 = arith.constant 0 : index
    %447 = vector.load %arg4[%c592, %c0_148] : memref<976x128xbf16, #tpu.memory_space<vmem>>, vector<32x32xbf16>
    %c27 = arith.constant 27 : index
    %c0_149 = arith.constant 0 : index
    %448 = vector.load %arg5[%c27, %c0_149] : memref<48x128xf32, #tpu.memory_space<vmem>>, vector<1x32xf32>
    %cst_150 = arith.constant 0.353553385 : f32
    %449 = vector.broadcast %cst_150 : f32 to vector<8x32xf32>
    %450 = arith.mulf %445, %449 : vector<8x32xf32>
    %451 = arith.truncf %450 : vector<8x32xf32> to vector<8x32xbf16>
    %452 = arith.truncf %446 : vector<8x32xf32> to vector<8x32xbf16>
    %453 = arith.truncf %444 : vector<8x32xf32> to vector<8x32xbf16>
    %454 = vector.extract_strided_slice %451 {offsets = [0, 0], sizes = [8, 8], strides = [1, 1]} : vector<8x32xbf16> to vector<8x8xbf16>
    %455 = vector.extract_strided_slice %452 {offsets = [0, 0], sizes = [8, 8], strides = [1, 1]} : vector<8x32xbf16> to vector<8x8xbf16>
    %cst_151 = arith.constant dense<0.000000e+00> : vector<8x8xf32>
    %456 = tpu.matmul %454, %455, %cst_151 {dimension_numbers = #tpu.dot_dimension_numbers<[1], [1], [0], [0], [0, 0, 1, 0], [], []>} : vector<8x8xbf16>, vector<8x8xbf16>, vector<8x8xf32> -> vector<8x8xf32>
    %cst_152 = arith.constant dense<0xFF800000> : vector<8xf32>
    %457 = vector.multi_reduction <maximumf>, %456, %cst_152 [1] : vector<8x8xf32> to vector<8xf32>
    %458 = vector.shape_cast %457 : vector<8xf32> to vector<8x1xf32>
    %459 = vector.broadcast %458 : vector<8x1xf32> to vector<8x8xf32>
    %460 = arith.subf %456, %459 : vector<8x8xf32>
    %461 = math.exp %460 : vector<8x8xf32>
    %cst_153 = arith.constant dense<0.000000e+00> : vector<8xf32>
    %462 = vector.multi_reduction <add>, %461, %cst_153 [1] : vector<8x8xf32> to vector<8xf32>
    %463 = vector.shape_cast %462 : vector<8xf32> to vector<8x1xf32>
    %464 = tpu.reciprocal %463 {approx = true} : vector<8x1xf32> -> vector<8x1xf32>
    %465 = vector.broadcast %464 : vector<8x1xf32> to vector<8x8xf32>
    %466 = arith.mulf %461, %465 : vector<8x8xf32>
    %467 = arith.truncf %466 : vector<8x8xf32> to vector<8x8xbf16>
    %468 = vector.extract_strided_slice %453 {offsets = [0, 0], sizes = [8, 8], strides = [1, 1]} : vector<8x32xbf16> to vector<8x8xbf16>
    %cst_154 = arith.constant dense<0.000000e+00> : vector<8x8xf32>
    %469 = tpu.matmul %467, %468, %cst_154 {dimension_numbers = #tpu.dot_dimension_numbers<[1], [0], [0], [1], [0, 0, 1, 1], [], []>} : vector<8x8xbf16>, vector<8x8xbf16>, vector<8x8xf32> -> vector<8x8xf32>
    %470 = vector.extract_strided_slice %451 {offsets = [0, 8], sizes = [8, 8], strides = [1, 1]} : vector<8x32xbf16> to vector<8x8xbf16>
    %471 = vector.extract_strided_slice %452 {offsets = [0, 8], sizes = [8, 8], strides = [1, 1]} : vector<8x32xbf16> to vector<8x8xbf16>
    %cst_155 = arith.constant dense<0.000000e+00> : vector<8x8xf32>
    %472 = tpu.matmul %470, %471, %cst_155 {dimension_numbers = #tpu.dot_dimension_numbers<[1], [1], [0], [0], [0, 0, 1, 0], [], []>} : vector<8x8xbf16>, vector<8x8xbf16>, vector<8x8xf32> -> vector<8x8xf32>
    %cst_156 = arith.constant dense<0xFF800000> : vector<8xf32>
    %473 = vector.multi_reduction <maximumf>, %472, %cst_156 [1] : vector<8x8xf32> to vector<8xf32>
    %474 = vector.shape_cast %473 : vector<8xf32> to vector<8x1xf32>
    %475 = vector.broadcast %474 : vector<8x1xf32> to vector<8x8xf32>
    %476 = arith.subf %472, %475 : vector<8x8xf32>
    %477 = math.exp %476 : vector<8x8xf32>
    %cst_157 = arith.constant dense<0.000000e+00> : vector<8xf32>
    %478 = vector.multi_reduction <add>, %477, %cst_157 [1] : vector<8x8xf32> to vector<8xf32>
    %479 = vector.shape_cast %478 : vector<8xf32> to vector<8x1xf32>
    %480 = tpu.reciprocal %479 {approx = true} : vector<8x1xf32> -> vector<8x1xf32>
    %481 = vector.broadcast %480 : vector<8x1xf32> to vector<8x8xf32>
    %482 = arith.mulf %477, %481 : vector<8x8xf32>
    %483 = arith.truncf %482 : vector<8x8xf32> to vector<8x8xbf16>
    %484 = vector.extract_strided_slice %453 {offsets = [0, 8], sizes = [8, 8], strides = [1, 1]} : vector<8x32xbf16> to vector<8x8xbf16>
    %cst_158 = arith.constant dense<0.000000e+00> : vector<8x8xf32>
    %485 = tpu.matmul %483, %484, %cst_158 {dimension_numbers = #tpu.dot_dimension_numbers<[1], [0], [0], [1], [0, 0, 1, 1], [], []>} : vector<8x8xbf16>, vector<8x8xbf16>, vector<8x8xf32> -> vector<8x8xf32>
    %486 = vector.extract_strided_slice %451 {offsets = [0, 16], sizes = [8, 8], strides = [1, 1]} : vector<8x32xbf16> to vector<8x8xbf16>
    %487 = vector.extract_strided_slice %452 {offsets = [0, 16], sizes = [8, 8], strides = [1, 1]} : vector<8x32xbf16> to vector<8x8xbf16>
    %cst_159 = arith.constant dense<0.000000e+00> : vector<8x8xf32>
    %488 = tpu.matmul %486, %487, %cst_159 {dimension_numbers = #tpu.dot_dimension_numbers<[1], [1], [0], [0], [0, 0, 1, 0], [], []>} : vector<8x8xbf16>, vector<8x8xbf16>, vector<8x8xf32> -> vector<8x8xf32>
    %cst_160 = arith.constant dense<0xFF800000> : vector<8xf32>
    %489 = vector.multi_reduction <maximumf>, %488, %cst_160 [1] : vector<8x8xf32> to vector<8xf32>
    %490 = vector.shape_cast %489 : vector<8xf32> to vector<8x1xf32>
    %491 = vector.broadcast %490 : vector<8x1xf32> to vector<8x8xf32>
    %492 = arith.subf %488, %491 : vector<8x8xf32>
    %493 = math.exp %492 : vector<8x8xf32>
    %cst_161 = arith.constant dense<0.000000e+00> : vector<8xf32>
    %494 = vector.multi_reduction <add>, %493, %cst_161 [1] : vector<8x8xf32> to vector<8xf32>
    %495 = vector.shape_cast %494 : vector<8xf32> to vector<8x1xf32>
    %496 = tpu.reciprocal %495 {approx = true} : vector<8x1xf32> -> vector<8x1xf32>
    %497 = vector.broadcast %496 : vector<8x1xf32> to vector<8x8xf32>
    %498 = arith.mulf %493, %497 : vector<8x8xf32>
    %499 = arith.truncf %498 : vector<8x8xf32> to vector<8x8xbf16>
    %500 = vector.extract_strided_slice %453 {offsets = [0, 16], sizes = [8, 8], strides = [1, 1]} : vector<8x32xbf16> to vector<8x8xbf16>
    %cst_162 = arith.constant dense<0.000000e+00> : vector<8x8xf32>
    %501 = tpu.matmul %499, %500, %cst_162 {dimension_numbers = #tpu.dot_dimension_numbers<[1], [0], [0], [1], [0, 0, 1, 1], [], []>} : vector<8x8xbf16>, vector<8x8xbf16>, vector<8x8xf32> -> vector<8x8xf32>
    %502 = vector.extract_strided_slice %451 {offsets = [0, 24], sizes = [8, 8], strides = [1, 1]} : vector<8x32xbf16> to vector<8x8xbf16>
    %503 = vector.extract_strided_slice %452 {offsets = [0, 24], sizes = [8, 8], strides = [1, 1]} : vector<8x32xbf16> to vector<8x8xbf16>
    %cst_163 = arith.constant dense<0.000000e+00> : vector<8x8xf32>
    %504 = tpu.matmul %502, %503, %cst_163 {dimension_numbers = #tpu.dot_dimension_numbers<[1], [1], [0], [0], [0, 0, 1, 0], [], []>} : vector<8x8xbf16>, vector<8x8xbf16>, vector<8x8xf32> -> vector<8x8xf32>
    %cst_164 = arith.constant dense<0xFF800000> : vector<8xf32>
    %505 = vector.multi_reduction <maximumf>, %504, %cst_164 [1] : vector<8x8xf32> to vector<8xf32>
    %506 = vector.shape_cast %505 : vector<8xf32> to vector<8x1xf32>
    %507 = vector.broadcast %506 : vector<8x1xf32> to vector<8x8xf32>
    %508 = arith.subf %504, %507 : vector<8x8xf32>
    %509 = math.exp %508 : vector<8x8xf32>
    %cst_165 = arith.constant dense<0.000000e+00> : vector<8xf32>
    %510 = vector.multi_reduction <add>, %509, %cst_165 [1] : vector<8x8xf32> to vector<8xf32>
    %511 = vector.shape_cast %510 : vector<8xf32> to vector<8x1xf32>
    %512 = tpu.reciprocal %511 {approx = true} : vector<8x1xf32> -> vector<8x1xf32>
    %513 = vector.broadcast %512 : vector<8x1xf32> to vector<8x8xf32>
    %514 = arith.mulf %509, %513 : vector<8x8xf32>
    %515 = arith.truncf %514 : vector<8x8xf32> to vector<8x8xbf16>
    %516 = vector.extract_strided_slice %453 {offsets = [0, 24], sizes = [8, 8], strides = [1, 1]} : vector<8x32xbf16> to vector<8x8xbf16>
    %cst_166 = arith.constant dense<0.000000e+00> : vector<8x8xf32>
    %517 = tpu.matmul %515, %516, %cst_166 {dimension_numbers = #tpu.dot_dimension_numbers<[1], [0], [0], [1], [0, 0, 1, 1], [], []>} : vector<8x8xbf16>, vector<8x8xbf16>, vector<8x8xf32> -> vector<8x8xf32>
    %518 = tpu.concatenate %469, %485, %501, %517 in 1 : vector<8x8xf32>, vector<8x8xf32>, vector<8x8xf32>, vector<8x8xf32> -> vector<8x32xf32>
    %519 = arith.truncf %518 : vector<8x32xf32> to vector<8x32xbf16>
    %cst_167 = arith.constant dense<0.000000e+00> : vector<8x32xf32>
    %520 = tpu.matmul %519, %447, %cst_167 {dimension_numbers = #tpu.dot_dimension_numbers<[1], [0], [0], [1], [0, 0, 1, 1], [], []>} : vector<8x32xbf16>, vector<32x32xbf16>, vector<8x32xf32> -> vector<8x32xf32>
    %521 = vector.broadcast %448 : vector<1x32xf32> to vector<8x32xf32>
    %522 = arith.addf %520, %521 : vector<8x32xf32>
    %523 = arith.addf %431, %522 : vector<8x32xf32>
    %c34 = arith.constant 34 : index
    %c0_168 = arith.constant 0 : index
    %524 = vector.load %arg5[%c34, %c0_168] : memref<48x128xf32, #tpu.memory_space<vmem>>, vector<1x32xf32>
    %c35 = arith.constant 35 : index
    %c0_169 = arith.constant 0 : index
    %525 = vector.load %arg5[%c35, %c0_169] : memref<48x128xf32, #tpu.memory_space<vmem>>, vector<1x32xf32>
    %cst_170 = arith.constant dense<0.000000e+00> : vector<8xf32>
    %526 = vector.multi_reduction <add>, %523, %cst_170 [1] : vector<8x32xf32> to vector<8xf32>
    %527 = vector.shape_cast %526 : vector<8xf32> to vector<8x1xf32>
    %cst_171 = arith.constant 3.200000e+01 : f32
    %528 = vector.broadcast %cst_171 : f32 to vector<8x1xf32>
    %529 = arith.divf %527, %528 : vector<8x1xf32>
    %530 = vector.broadcast %529 : vector<8x1xf32> to vector<8x32xf32>
    %531 = arith.subf %523, %530 : vector<8x32xf32>
    %532 = arith.mulf %531, %531 : vector<8x32xf32>
    %cst_172 = arith.constant dense<0.000000e+00> : vector<8xf32>
    %533 = vector.multi_reduction <add>, %532, %cst_172 [1] : vector<8x32xf32> to vector<8xf32>
    %534 = vector.shape_cast %533 : vector<8xf32> to vector<8x1xf32>
    %cst_173 = arith.constant 3.200000e+01 : f32
    %535 = vector.broadcast %cst_173 : f32 to vector<8x1xf32>
    %536 = arith.divf %534, %535 : vector<8x1xf32>
    %cst_174 = arith.constant 9.99999974E-6 : f32
    %537 = vector.broadcast %cst_174 : f32 to vector<8x1xf32>
    %538 = arith.addf %536, %537 : vector<8x1xf32>
    %539 = math.rsqrt %538 : vector<8x1xf32>
    %540 = vector.broadcast %539 : vector<8x1xf32> to vector<8x32xf32>
    %541 = arith.mulf %531, %540 : vector<8x32xf32>
    %542 = vector.broadcast %524 : vector<1x32xf32> to vector<8x32xf32>
    %543 = arith.mulf %541, %542 : vector<8x32xf32>
    %544 = vector.broadcast %525 : vector<1x32xf32> to vector<8x32xf32>
    %545 = arith.addf %543, %544 : vector<8x32xf32>
    %546 = arith.addf %545, %1 : vector<8x32xf32>
    %c624 = arith.constant 624 : index
    %c0_175 = arith.constant 0 : index
    %547 = vector.load %arg4[%c624, %c0_175] : memref<976x128xbf16, #tpu.memory_space<vmem>>, vector<32x32xbf16>
    %548 = arith.truncf %546 : vector<8x32xf32> to vector<8x32xbf16>
    %cst_176 = arith.constant dense<0.000000e+00> : vector<8x32xf32>
    %549 = tpu.matmul %548, %547, %cst_176 {dimension_numbers = #tpu.dot_dimension_numbers<[1], [0], [0], [1], [0, 0, 1, 1], [], []>} : vector<8x32xbf16>, vector<32x32xbf16>, vector<8x32xf32> -> vector<8x32xf32>
    %c28 = arith.constant 28 : index
    %c0_177 = arith.constant 0 : index
    %550 = vector.load %arg5[%c28, %c0_177] : memref<48x128xf32, #tpu.memory_space<vmem>>, vector<1x32xf32>
    %551 = vector.broadcast %550 : vector<1x32xf32> to vector<8x32xf32>
    %552 = arith.addf %549, %551 : vector<8x32xf32>
    %c656 = arith.constant 656 : index
    %c0_178 = arith.constant 0 : index
    %553 = vector.load %arg4[%c656, %c0_178] : memref<976x128xbf16, #tpu.memory_space<vmem>>, vector<32x32xbf16>
    %554 = arith.truncf %161 : vector<64x32xf32> to vector<64x32xbf16>
    %cst_179 = arith.constant dense<0.000000e+00> : vector<64x32xf32>
    %555 = tpu.matmul %554, %553, %cst_179 {dimension_numbers = #tpu.dot_dimension_numbers<[1], [0], [0], [1], [0, 0, 1, 1], [], []>} : vector<64x32xbf16>, vector<32x32xbf16>, vector<64x32xf32> -> vector<64x32xf32>
    %c29 = arith.constant 29 : index
    %c0_180 = arith.constant 0 : index
    %556 = vector.load %arg5[%c29, %c0_180] : memref<48x128xf32, #tpu.memory_space<vmem>>, vector<1x32xf32>
    %557 = vector.broadcast %556 : vector<1x32xf32> to vector<64x32xf32>
    %558 = arith.addf %555, %557 : vector<64x32xf32>
    %c688 = arith.constant 688 : index
    %c0_181 = arith.constant 0 : index
    %559 = vector.load %arg4[%c688, %c0_181] : memref<976x128xbf16, #tpu.memory_space<vmem>>, vector<32x32xbf16>
    %560 = arith.truncf %160 : vector<64x32xf32> to vector<64x32xbf16>
    %cst_182 = arith.constant dense<0.000000e+00> : vector<64x32xf32>
    %561 = tpu.matmul %560, %559, %cst_182 {dimension_numbers = #tpu.dot_dimension_numbers<[1], [0], [0], [1], [0, 0, 1, 1], [], []>} : vector<64x32xbf16>, vector<32x32xbf16>, vector<64x32xf32> -> vector<64x32xf32>
    %c30 = arith.constant 30 : index
    %c0_183 = arith.constant 0 : index
    %562 = vector.load %arg5[%c30, %c0_183] : memref<48x128xf32, #tpu.memory_space<vmem>>, vector<1x32xf32>
    %563 = vector.broadcast %562 : vector<1x32xf32> to vector<64x32xf32>
    %564 = arith.addf %561, %563 : vector<64x32xf32>
    %c720 = arith.constant 720 : index
    %c0_184 = arith.constant 0 : index
    %565 = vector.load %arg4[%c720, %c0_184] : memref<976x128xbf16, #tpu.memory_space<vmem>>, vector<32x32xbf16>
    %c31 = arith.constant 31 : index
    %c0_185 = arith.constant 0 : index
    %566 = vector.load %arg5[%c31, %c0_185] : memref<48x128xf32, #tpu.memory_space<vmem>>, vector<1x32xf32>
    %cst_186 = arith.constant 0.353553385 : f32
    %567 = vector.broadcast %cst_186 : f32 to vector<8x32xf32>
    %568 = arith.mulf %552, %567 : vector<8x32xf32>
    %569 = arith.truncf %568 : vector<8x32xf32> to vector<8x32xbf16>
    %570 = arith.truncf %558 : vector<64x32xf32> to vector<64x32xbf16>
    %571 = arith.truncf %564 : vector<64x32xf32> to vector<64x32xbf16>
    %572 = vector.extract_strided_slice %569 {offsets = [0, 0], sizes = [8, 8], strides = [1, 1]} : vector<8x32xbf16> to vector<8x8xbf16>
    %573 = vector.extract_strided_slice %570 {offsets = [0, 0], sizes = [64, 8], strides = [1, 1]} : vector<64x32xbf16> to vector<64x8xbf16>
    %cst_187 = arith.constant dense<0.000000e+00> : vector<8x64xf32>
    %574 = tpu.matmul %572, %573, %cst_187 {dimension_numbers = #tpu.dot_dimension_numbers<[1], [1], [0], [0], [0, 0, 1, 0], [], []>} : vector<8x8xbf16>, vector<64x8xbf16>, vector<8x64xf32> -> vector<8x64xf32>
    %cst_188 = arith.constant dense<0xFF800000> : vector<8xf32>
    %575 = vector.multi_reduction <maximumf>, %574, %cst_188 [1] : vector<8x64xf32> to vector<8xf32>
    %576 = vector.shape_cast %575 : vector<8xf32> to vector<8x1xf32>
    %577 = vector.broadcast %576 : vector<8x1xf32> to vector<8x64xf32>
    %578 = arith.subf %574, %577 : vector<8x64xf32>
    %579 = math.exp %578 : vector<8x64xf32>
    %cst_189 = arith.constant dense<0.000000e+00> : vector<8xf32>
    %580 = vector.multi_reduction <add>, %579, %cst_189 [1] : vector<8x64xf32> to vector<8xf32>
    %581 = vector.shape_cast %580 : vector<8xf32> to vector<8x1xf32>
    %582 = tpu.reciprocal %581 {approx = true} : vector<8x1xf32> -> vector<8x1xf32>
    %583 = vector.broadcast %582 : vector<8x1xf32> to vector<8x64xf32>
    %584 = arith.mulf %579, %583 : vector<8x64xf32>
    %585 = arith.truncf %584 : vector<8x64xf32> to vector<8x64xbf16>
    %586 = vector.extract_strided_slice %571 {offsets = [0, 0], sizes = [64, 8], strides = [1, 1]} : vector<64x32xbf16> to vector<64x8xbf16>
    %cst_190 = arith.constant dense<0.000000e+00> : vector<8x8xf32>
    %587 = tpu.matmul %585, %586, %cst_190 {dimension_numbers = #tpu.dot_dimension_numbers<[1], [0], [0], [1], [0, 0, 1, 1], [], []>} : vector<8x64xbf16>, vector<64x8xbf16>, vector<8x8xf32> -> vector<8x8xf32>
    %588 = vector.extract_strided_slice %569 {offsets = [0, 8], sizes = [8, 8], strides = [1, 1]} : vector<8x32xbf16> to vector<8x8xbf16>
    %589 = vector.extract_strided_slice %570 {offsets = [0, 8], sizes = [64, 8], strides = [1, 1]} : vector<64x32xbf16> to vector<64x8xbf16>
    %cst_191 = arith.constant dense<0.000000e+00> : vector<8x64xf32>
    %590 = tpu.matmul %588, %589, %cst_191 {dimension_numbers = #tpu.dot_dimension_numbers<[1], [1], [0], [0], [0, 0, 1, 0], [], []>} : vector<8x8xbf16>, vector<64x8xbf16>, vector<8x64xf32> -> vector<8x64xf32>
    %cst_192 = arith.constant dense<0xFF800000> : vector<8xf32>
    %591 = vector.multi_reduction <maximumf>, %590, %cst_192 [1] : vector<8x64xf32> to vector<8xf32>
    %592 = vector.shape_cast %591 : vector<8xf32> to vector<8x1xf32>
    %593 = vector.broadcast %592 : vector<8x1xf32> to vector<8x64xf32>
    %594 = arith.subf %590, %593 : vector<8x64xf32>
    %595 = math.exp %594 : vector<8x64xf32>
    %cst_193 = arith.constant dense<0.000000e+00> : vector<8xf32>
    %596 = vector.multi_reduction <add>, %595, %cst_193 [1] : vector<8x64xf32> to vector<8xf32>
    %597 = vector.shape_cast %596 : vector<8xf32> to vector<8x1xf32>
    %598 = tpu.reciprocal %597 {approx = true} : vector<8x1xf32> -> vector<8x1xf32>
    %599 = vector.broadcast %598 : vector<8x1xf32> to vector<8x64xf32>
    %600 = arith.mulf %595, %599 : vector<8x64xf32>
    %601 = arith.truncf %600 : vector<8x64xf32> to vector<8x64xbf16>
    %602 = vector.extract_strided_slice %571 {offsets = [0, 8], sizes = [64, 8], strides = [1, 1]} : vector<64x32xbf16> to vector<64x8xbf16>
    %cst_194 = arith.constant dense<0.000000e+00> : vector<8x8xf32>
    %603 = tpu.matmul %601, %602, %cst_194 {dimension_numbers = #tpu.dot_dimension_numbers<[1], [0], [0], [1], [0, 0, 1, 1], [], []>} : vector<8x64xbf16>, vector<64x8xbf16>, vector<8x8xf32> -> vector<8x8xf32>
    %604 = vector.extract_strided_slice %569 {offsets = [0, 16], sizes = [8, 8], strides = [1, 1]} : vector<8x32xbf16> to vector<8x8xbf16>
    %605 = vector.extract_strided_slice %570 {offsets = [0, 16], sizes = [64, 8], strides = [1, 1]} : vector<64x32xbf16> to vector<64x8xbf16>
    %cst_195 = arith.constant dense<0.000000e+00> : vector<8x64xf32>
    %606 = tpu.matmul %604, %605, %cst_195 {dimension_numbers = #tpu.dot_dimension_numbers<[1], [1], [0], [0], [0, 0, 1, 0], [], []>} : vector<8x8xbf16>, vector<64x8xbf16>, vector<8x64xf32> -> vector<8x64xf32>
    %cst_196 = arith.constant dense<0xFF800000> : vector<8xf32>
    %607 = vector.multi_reduction <maximumf>, %606, %cst_196 [1] : vector<8x64xf32> to vector<8xf32>
    %608 = vector.shape_cast %607 : vector<8xf32> to vector<8x1xf32>
    %609 = vector.broadcast %608 : vector<8x1xf32> to vector<8x64xf32>
    %610 = arith.subf %606, %609 : vector<8x64xf32>
    %611 = math.exp %610 : vector<8x64xf32>
    %cst_197 = arith.constant dense<0.000000e+00> : vector<8xf32>
    %612 = vector.multi_reduction <add>, %611, %cst_197 [1] : vector<8x64xf32> to vector<8xf32>
    %613 = vector.shape_cast %612 : vector<8xf32> to vector<8x1xf32>
    %614 = tpu.reciprocal %613 {approx = true} : vector<8x1xf32> -> vector<8x1xf32>
    %615 = vector.broadcast %614 : vector<8x1xf32> to vector<8x64xf32>
    %616 = arith.mulf %611, %615 : vector<8x64xf32>
    %617 = arith.truncf %616 : vector<8x64xf32> to vector<8x64xbf16>
    %618 = vector.extract_strided_slice %571 {offsets = [0, 16], sizes = [64, 8], strides = [1, 1]} : vector<64x32xbf16> to vector<64x8xbf16>
    %cst_198 = arith.constant dense<0.000000e+00> : vector<8x8xf32>
    %619 = tpu.matmul %617, %618, %cst_198 {dimension_numbers = #tpu.dot_dimension_numbers<[1], [0], [0], [1], [0, 0, 1, 1], [], []>} : vector<8x64xbf16>, vector<64x8xbf16>, vector<8x8xf32> -> vector<8x8xf32>
    %620 = vector.extract_strided_slice %569 {offsets = [0, 24], sizes = [8, 8], strides = [1, 1]} : vector<8x32xbf16> to vector<8x8xbf16>
    %621 = vector.extract_strided_slice %570 {offsets = [0, 24], sizes = [64, 8], strides = [1, 1]} : vector<64x32xbf16> to vector<64x8xbf16>
    %cst_199 = arith.constant dense<0.000000e+00> : vector<8x64xf32>
    %622 = tpu.matmul %620, %621, %cst_199 {dimension_numbers = #tpu.dot_dimension_numbers<[1], [1], [0], [0], [0, 0, 1, 0], [], []>} : vector<8x8xbf16>, vector<64x8xbf16>, vector<8x64xf32> -> vector<8x64xf32>
    %cst_200 = arith.constant dense<0xFF800000> : vector<8xf32>
    %623 = vector.multi_reduction <maximumf>, %622, %cst_200 [1] : vector<8x64xf32> to vector<8xf32>
    %624 = vector.shape_cast %623 : vector<8xf32> to vector<8x1xf32>
    %625 = vector.broadcast %624 : vector<8x1xf32> to vector<8x64xf32>
    %626 = arith.subf %622, %625 : vector<8x64xf32>
    %627 = math.exp %626 : vector<8x64xf32>
    %cst_201 = arith.constant dense<0.000000e+00> : vector<8xf32>
    %628 = vector.multi_reduction <add>, %627, %cst_201 [1] : vector<8x64xf32> to vector<8xf32>
    %629 = vector.shape_cast %628 : vector<8xf32> to vector<8x1xf32>
    %630 = tpu.reciprocal %629 {approx = true} : vector<8x1xf32> -> vector<8x1xf32>
    %631 = vector.broadcast %630 : vector<8x1xf32> to vector<8x64xf32>
    %632 = arith.mulf %627, %631 : vector<8x64xf32>
    %633 = arith.truncf %632 : vector<8x64xf32> to vector<8x64xbf16>
    %634 = vector.extract_strided_slice %571 {offsets = [0, 24], sizes = [64, 8], strides = [1, 1]} : vector<64x32xbf16> to vector<64x8xbf16>
    %cst_202 = arith.constant dense<0.000000e+00> : vector<8x8xf32>
    %635 = tpu.matmul %633, %634, %cst_202 {dimension_numbers = #tpu.dot_dimension_numbers<[1], [0], [0], [1], [0, 0, 1, 1], [], []>} : vector<8x64xbf16>, vector<64x8xbf16>, vector<8x8xf32> -> vector<8x8xf32>
    %636 = tpu.concatenate %587, %603, %619, %635 in 1 : vector<8x8xf32>, vector<8x8xf32>, vector<8x8xf32>, vector<8x8xf32> -> vector<8x32xf32>
    %637 = arith.truncf %636 : vector<8x32xf32> to vector<8x32xbf16>
    %cst_203 = arith.constant dense<0.000000e+00> : vector<8x32xf32>
    %638 = tpu.matmul %637, %565, %cst_203 {dimension_numbers = #tpu.dot_dimension_numbers<[1], [0], [0], [1], [0, 0, 1, 1], [], []>} : vector<8x32xbf16>, vector<32x32xbf16>, vector<8x32xf32> -> vector<8x32xf32>
    %639 = vector.broadcast %566 : vector<1x32xf32> to vector<8x32xf32>
    %640 = arith.addf %638, %639 : vector<8x32xf32>
    %641 = arith.addf %545, %640 : vector<8x32xf32>
    %c36 = arith.constant 36 : index
    %c0_204 = arith.constant 0 : index
    %642 = vector.load %arg5[%c36, %c0_204] : memref<48x128xf32, #tpu.memory_space<vmem>>, vector<1x32xf32>
    %c37 = arith.constant 37 : index
    %c0_205 = arith.constant 0 : index
    %643 = vector.load %arg5[%c37, %c0_205] : memref<48x128xf32, #tpu.memory_space<vmem>>, vector<1x32xf32>
    %cst_206 = arith.constant dense<0.000000e+00> : vector<8xf32>
    %644 = vector.multi_reduction <add>, %641, %cst_206 [1] : vector<8x32xf32> to vector<8xf32>
    %645 = vector.shape_cast %644 : vector<8xf32> to vector<8x1xf32>
    %cst_207 = arith.constant 3.200000e+01 : f32
    %646 = vector.broadcast %cst_207 : f32 to vector<8x1xf32>
    %647 = arith.divf %645, %646 : vector<8x1xf32>
    %648 = vector.broadcast %647 : vector<8x1xf32> to vector<8x32xf32>
    %649 = arith.subf %641, %648 : vector<8x32xf32>
    %650 = arith.mulf %649, %649 : vector<8x32xf32>
    %cst_208 = arith.constant dense<0.000000e+00> : vector<8xf32>
    %651 = vector.multi_reduction <add>, %650, %cst_208 [1] : vector<8x32xf32> to vector<8xf32>
    %652 = vector.shape_cast %651 : vector<8xf32> to vector<8x1xf32>
    %cst_209 = arith.constant 3.200000e+01 : f32
    %653 = vector.broadcast %cst_209 : f32 to vector<8x1xf32>
    %654 = arith.divf %652, %653 : vector<8x1xf32>
    %cst_210 = arith.constant 9.99999974E-6 : f32
    %655 = vector.broadcast %cst_210 : f32 to vector<8x1xf32>
    %656 = arith.addf %654, %655 : vector<8x1xf32>
    %657 = math.rsqrt %656 : vector<8x1xf32>
    %658 = vector.broadcast %657 : vector<8x1xf32> to vector<8x32xf32>
    %659 = arith.mulf %649, %658 : vector<8x32xf32>
    %660 = vector.broadcast %642 : vector<1x32xf32> to vector<8x32xf32>
    %661 = arith.mulf %659, %660 : vector<8x32xf32>
    %662 = vector.broadcast %643 : vector<1x32xf32> to vector<8x32xf32>
    %663 = arith.addf %661, %662 : vector<8x32xf32>
    %c752 = arith.constant 752 : index
    %c0_211 = arith.constant 0 : index
    %664 = vector.load %arg4[%c752, %c0_211] : memref<976x128xbf16, #tpu.memory_space<vmem>>, vector<32x64xbf16>
    %665 = arith.truncf %663 : vector<8x32xf32> to vector<8x32xbf16>
    %cst_212 = arith.constant dense<0.000000e+00> : vector<8x64xf32>
    %666 = tpu.matmul %665, %664, %cst_212 {dimension_numbers = #tpu.dot_dimension_numbers<[1], [0], [0], [1], [0, 0, 1, 1], [], []>} : vector<8x32xbf16>, vector<32x64xbf16>, vector<8x64xf32> -> vector<8x64xf32>
    %c32 = arith.constant 32 : index
    %c0_213 = arith.constant 0 : index
    %667 = vector.load %arg5[%c32, %c0_213] : memref<48x128xf32, #tpu.memory_space<vmem>>, vector<1x64xf32>
    %668 = vector.broadcast %667 : vector<1x64xf32> to vector<8x64xf32>
    %669 = arith.addf %666, %668 : vector<8x64xf32>
    %cst_214 = arith.constant 0.000000e+00 : f32
    %670 = vector.broadcast %cst_214 : f32 to vector<8x64xf32>
    %671 = arith.maximumf %669, %670 : vector<8x64xf32>
    %c784 = arith.constant 784 : index
    %c0_215 = arith.constant 0 : index
    %672 = vector.load %arg4[%c784, %c0_215] : memref<976x128xbf16, #tpu.memory_space<vmem>>, vector<64x32xbf16>
    %673 = arith.truncf %671 : vector<8x64xf32> to vector<8x64xbf16>
    %cst_216 = arith.constant dense<0.000000e+00> : vector<8x32xf32>
    %674 = tpu.matmul %673, %672, %cst_216 {dimension_numbers = #tpu.dot_dimension_numbers<[1], [0], [0], [1], [0, 0, 1, 1], [], []>} : vector<8x64xbf16>, vector<64x32xbf16>, vector<8x32xf32> -> vector<8x32xf32>
    %c33 = arith.constant 33 : index
    %c0_217 = arith.constant 0 : index
    %675 = vector.load %arg5[%c33, %c0_217] : memref<48x128xf32, #tpu.memory_space<vmem>>, vector<1x32xf32>
    %676 = vector.broadcast %675 : vector<1x32xf32> to vector<8x32xf32>
    %677 = arith.addf %674, %676 : vector<8x32xf32>
    %678 = arith.addf %663, %677 : vector<8x32xf32>
    %c38 = arith.constant 38 : index
    %c0_218 = arith.constant 0 : index
    %679 = vector.load %arg5[%c38, %c0_218] : memref<48x128xf32, #tpu.memory_space<vmem>>, vector<1x32xf32>
    %c39 = arith.constant 39 : index
    %c0_219 = arith.constant 0 : index
    %680 = vector.load %arg5[%c39, %c0_219] : memref<48x128xf32, #tpu.memory_space<vmem>>, vector<1x32xf32>
    %cst_220 = arith.constant dense<0.000000e+00> : vector<8xf32>
    %681 = vector.multi_reduction <add>, %678, %cst_220 [1] : vector<8x32xf32> to vector<8xf32>
    %682 = vector.shape_cast %681 : vector<8xf32> to vector<8x1xf32>
    %cst_221 = arith.constant 3.200000e+01 : f32
    %683 = vector.broadcast %cst_221 : f32 to vector<8x1xf32>
    %684 = arith.divf %682, %683 : vector<8x1xf32>
    %685 = vector.broadcast %684 : vector<8x1xf32> to vector<8x32xf32>
    %686 = arith.subf %678, %685 : vector<8x32xf32>
    %687 = arith.mulf %686, %686 : vector<8x32xf32>
    %cst_222 = arith.constant dense<0.000000e+00> : vector<8xf32>
    %688 = vector.multi_reduction <add>, %687, %cst_222 [1] : vector<8x32xf32> to vector<8xf32>
    %689 = vector.shape_cast %688 : vector<8xf32> to vector<8x1xf32>
    %cst_223 = arith.constant 3.200000e+01 : f32
    %690 = vector.broadcast %cst_223 : f32 to vector<8x1xf32>
    %691 = arith.divf %689, %690 : vector<8x1xf32>
    %cst_224 = arith.constant 9.99999974E-6 : f32
    %692 = vector.broadcast %cst_224 : f32 to vector<8x1xf32>
    %693 = arith.addf %691, %692 : vector<8x1xf32>
    %694 = math.rsqrt %693 : vector<8x1xf32>
    %695 = vector.broadcast %694 : vector<8x1xf32> to vector<8x32xf32>
    %696 = arith.mulf %686, %695 : vector<8x32xf32>
    %697 = vector.broadcast %679 : vector<1x32xf32> to vector<8x32xf32>
    %698 = arith.mulf %696, %697 : vector<8x32xf32>
    %699 = vector.broadcast %680 : vector<1x32xf32> to vector<8x32xf32>
    %700 = arith.addf %698, %699 : vector<8x32xf32>
    %c40 = arith.constant 40 : index
    %c0_225 = arith.constant 0 : index
    %701 = vector.load %arg5[%c40, %c0_225] : memref<48x128xf32, #tpu.memory_space<vmem>>, vector<1x32xf32>
    %c41 = arith.constant 41 : index
    %c0_226 = arith.constant 0 : index
    %702 = vector.load %arg5[%c41, %c0_226] : memref<48x128xf32, #tpu.memory_space<vmem>>, vector<1x32xf32>
    %cst_227 = arith.constant dense<0.000000e+00> : vector<8xf32>
    %703 = vector.multi_reduction <add>, %700, %cst_227 [1] : vector<8x32xf32> to vector<8xf32>
    %704 = vector.shape_cast %703 : vector<8xf32> to vector<8x1xf32>
    %cst_228 = arith.constant 3.200000e+01 : f32
    %705 = vector.broadcast %cst_228 : f32 to vector<8x1xf32>
    %706 = arith.divf %704, %705 : vector<8x1xf32>
    %707 = vector.broadcast %706 : vector<8x1xf32> to vector<8x32xf32>
    %708 = arith.subf %700, %707 : vector<8x32xf32>
    %709 = arith.mulf %708, %708 : vector<8x32xf32>
    %cst_229 = arith.constant dense<0.000000e+00> : vector<8xf32>
    %710 = vector.multi_reduction <add>, %709, %cst_229 [1] : vector<8x32xf32> to vector<8xf32>
    %711 = vector.shape_cast %710 : vector<8xf32> to vector<8x1xf32>
    %cst_230 = arith.constant 3.200000e+01 : f32
    %712 = vector.broadcast %cst_230 : f32 to vector<8x1xf32>
    %713 = arith.divf %711, %712 : vector<8x1xf32>
    %cst_231 = arith.constant 9.99999974E-6 : f32
    %714 = vector.broadcast %cst_231 : f32 to vector<8x1xf32>
    %715 = arith.addf %713, %714 : vector<8x1xf32>
    %716 = math.rsqrt %715 : vector<8x1xf32>
    %717 = vector.broadcast %716 : vector<8x1xf32> to vector<8x32xf32>
    %718 = arith.mulf %708, %717 : vector<8x32xf32>
    %719 = vector.broadcast %701 : vector<1x32xf32> to vector<8x32xf32>
    %720 = arith.mulf %718, %719 : vector<8x32xf32>
    %721 = vector.broadcast %702 : vector<1x32xf32> to vector<8x32xf32>
    %722 = arith.addf %720, %721 : vector<8x32xf32>
    %c848 = arith.constant 848 : index
    %c0_232 = arith.constant 0 : index
    %723 = vector.load %arg4[%c848, %c0_232] : memref<976x128xbf16, #tpu.memory_space<vmem>>, vector<32x128xbf16>
    %724 = arith.truncf %722 : vector<8x32xf32> to vector<8x32xbf16>
    %cst_233 = arith.constant dense<0.000000e+00> : vector<8x128xf32>
    %725 = tpu.matmul %724, %723, %cst_233 {dimension_numbers = #tpu.dot_dimension_numbers<[1], [0], [0], [1], [0, 0, 1, 1], [], []>} : vector<8x32xbf16>, vector<32x128xbf16>, vector<8x128xf32> -> vector<8x128xf32>
    %c42 = arith.constant 42 : index
    %c0_234 = arith.constant 0 : index
    %726 = vector.load %arg5[%c42, %c0_234] : memref<48x128xf32, #tpu.memory_space<vmem>>, vector<1x128xf32>
    %727 = vector.broadcast %726 : vector<1x128xf32> to vector<8x128xf32>
    %728 = arith.addf %725, %727 : vector<8x128xf32>
    %c0_235 = arith.constant 0 : index
    %c0_236 = arith.constant 0 : index
    %c0_237 = arith.constant 0 : index
    %729 = vector.load %arg6[%c0_235, %c0_236, %c0_237] : memref<1x8x128xf32, #tpu.memory_space<vmem>>, vector<1x8x128xf32>
    %730 = vector.shape_cast %729 : vector<1x8x128xf32> to vector<8x128xf32>
    %731 = vector.shape_cast %728 : vector<8x128xf32> to vector<1x8x128xf32>
    tpu.vector_store %arg6[%c0_235, %c0_236, %c0_237], %731 {strides = array<i32>} : memref<1x8x128xf32, #tpu.memory_space<vmem>>, vector<1x8x128xf32>,
    %c880 = arith.constant 880 : index
    %c0_238 = arith.constant 0 : index
    %732 = vector.load %arg4[%c880, %c0_238] : memref<976x128xbf16, #tpu.memory_space<vmem>>, vector<32x32xbf16>
    %733 = arith.truncf %722 : vector<8x32xf32> to vector<8x32xbf16>
    %cst_239 = arith.constant dense<0.000000e+00> : vector<8x32xf32>
    %734 = tpu.matmul %733, %732, %cst_239 {dimension_numbers = #tpu.dot_dimension_numbers<[1], [0], [0], [1], [0, 0, 1, 1], [], []>} : vector<8x32xbf16>, vector<32x32xbf16>, vector<8x32xf32> -> vector<8x32xf32>
    %c43 = arith.constant 43 : index
    %c0_240 = arith.constant 0 : index
    %735 = vector.load %arg5[%c43, %c0_240] : memref<48x128xf32, #tpu.memory_space<vmem>>, vector<1x32xf32>
    %736 = vector.broadcast %735 : vector<1x32xf32> to vector<8x32xf32>
    %737 = arith.addf %734, %736 : vector<8x32xf32>
    %cst_241 = arith.constant 0.000000e+00 : f32
    %738 = vector.broadcast %cst_241 : f32 to vector<8x32xf32>
    %739 = arith.maximumf %737, %738 : vector<8x32xf32>
    %c912 = arith.constant 912 : index
    %c0_242 = arith.constant 0 : index
    %740 = vector.load %arg4[%c912, %c0_242] : memref<976x128xbf16, #tpu.memory_space<vmem>>, vector<32x32xbf16>
    %741 = arith.truncf %739 : vector<8x32xf32> to vector<8x32xbf16>
    %cst_243 = arith.constant dense<0.000000e+00> : vector<8x32xf32>
    %742 = tpu.matmul %741, %740, %cst_243 {dimension_numbers = #tpu.dot_dimension_numbers<[1], [0], [0], [1], [0, 0, 1, 1], [], []>} : vector<8x32xbf16>, vector<32x32xbf16>, vector<8x32xf32> -> vector<8x32xf32>
    %c44 = arith.constant 44 : index
    %c0_244 = arith.constant 0 : index
    %743 = vector.load %arg5[%c44, %c0_244] : memref<48x128xf32, #tpu.memory_space<vmem>>, vector<1x32xf32>
    %744 = vector.broadcast %743 : vector<1x32xf32> to vector<8x32xf32>
    %745 = arith.addf %742, %744 : vector<8x32xf32>
    %cst_245 = arith.constant 0.000000e+00 : f32
    %746 = vector.broadcast %cst_245 : f32 to vector<8x32xf32>
    %747 = arith.maximumf %745, %746 : vector<8x32xf32>
    %c944 = arith.constant 944 : index
    %c0_246 = arith.constant 0 : index
    %748 = vector.load %arg4[%c944, %c0_246] : memref<976x128xbf16, #tpu.memory_space<vmem>>, vector<32x128xbf16>
    %749 = arith.truncf %747 : vector<8x32xf32> to vector<8x32xbf16>
    %cst_247 = arith.constant dense<0.000000e+00> : vector<8x128xf32>
    %750 = tpu.matmul %749, %748, %cst_247 {dimension_numbers = #tpu.dot_dimension_numbers<[1], [0], [0], [1], [0, 0, 1, 1], [], []>} : vector<8x32xbf16>, vector<32x128xbf16>, vector<8x128xf32> -> vector<8x128xf32>
    %c45 = arith.constant 45 : index
    %c0_248 = arith.constant 0 : index
    %751 = vector.load %arg5[%c45, %c0_248] : memref<48x128xf32, #tpu.memory_space<vmem>>, vector<1x128xf32>
    %752 = vector.broadcast %751 : vector<1x128xf32> to vector<8x128xf32>
    %753 = arith.addf %750, %752 : vector<8x128xf32>
    %cst_249 = arith.constant 0.000000e+00 : f32
    %754 = vector.broadcast %cst_249 : f32 to vector<8x128xf32>
    %755 = arith.subf %754, %753 : vector<8x128xf32>
    %756 = math.exp %755 : vector<8x128xf32>
    %cst_250 = arith.constant 1.000000e+00 : f32
    %757 = vector.broadcast %cst_250 : f32 to vector<8x128xf32>
    %758 = arith.addf %757, %756 : vector<8x128xf32>
    %cst_251 = arith.constant 1.000000e+00 : f32
    %759 = vector.broadcast %cst_251 : f32 to vector<8x128xf32>
    %760 = arith.divf %759, %758 : vector<8x128xf32>
    %c0_252 = arith.constant 0 : index
    %c0_253 = arith.constant 0 : index
    %c0_254 = arith.constant 0 : index
    %761 = vector.load %arg7[%c0_252, %c0_253, %c0_254] : memref<1x8x128xf32, #tpu.memory_space<vmem>>, vector<1x8x128xf32>
    %762 = vector.shape_cast %761 : vector<1x8x128xf32> to vector<8x128xf32>
    %763 = vector.shape_cast %760 : vector<8x128xf32> to vector<1x8x128xf32>
    tpu.vector_store %arg7[%c0_252, %c0_253, %c0_254], %763 {strides = array<i32>} : memref<1x8x128xf32, #tpu.memory_space<vmem>>, vector<1x8x128xf32>,
    return
  }
  func.func @transform_0(%arg0: i32) -> (i32, i32, i32) {
    %c0_i32 = arith.constant 0 : i32
    %c0_i32_0 = arith.constant 0 : i32
    %c0_i32_1 = arith.constant 0 : i32
    return %arg0, %c0_i32, %c0_i32_0 : i32, i32, i32
  }
  func.func @transform_1(%arg0: i32) -> (i32, i32) {
    %c0_i32 = arith.constant 0 : i32
    %c0_i32_0 = arith.constant 0 : i32
    %c0_i32_1 = arith.constant 0 : i32
    return %c0_i32, %c0_i32_0 : i32, i32
  }
  func.func @transform_2(%arg0: i32) -> (i32, i32) {
    %c0_i32 = arith.constant 0 : i32
    %c0_i32_0 = arith.constant 0 : i32
    %c0_i32_1 = arith.constant 0 : i32
    return %c0_i32, %c0_i32_0 : i32, i32
  }
  func.func @transform_3(%arg0: i32) -> (i32, i32) {
    %c0_i32 = arith.constant 0 : i32
    %c0_i32_0 = arith.constant 0 : i32
    %c0_i32_1 = arith.constant 0 : i32
    return %c0_i32, %c0_i32_0 : i32, i32
  }
  func.func @transform_4(%arg0: i32) -> (i32, i32) {
    %c0_i32 = arith.constant 0 : i32
    %c0_i32_0 = arith.constant 0 : i32
    %c0_i32_1 = arith.constant 0 : i32
    return %c0_i32, %c0_i32_0 : i32, i32
  }
  func.func @transform_5(%arg0: i32) -> (i32, i32, i32) {
    %c0_i32 = arith.constant 0 : i32
    %c0_i32_0 = arith.constant 0 : i32
    %c0_i32_1 = arith.constant 0 : i32
    return %arg0, %c0_i32, %c0_i32_0 : i32, i32, i32
  }
  func.func @transform_6(%arg0: i32) -> (i32, i32, i32) {
    %c0_i32 = arith.constant 0 : i32
    %c0_i32_0 = arith.constant 0 : i32
    %c0_i32_1 = arith.constant 0 : i32
    return %arg0, %c0_i32, %c0_i32_0 : i32, i32, i32
  }
}

</mosaic_0001>

<llo_original>
// kernel: detr_forward.1
$region0: #{detr_forward.1}
  #allocation0 [shape = 'u32[]', space=smem, size = 0x4, offset = 0x4, fixed_abs, tag = 'smem constant byte address 0x4 - core index']
  #allocation1 [shape = 'u32[144,128]{1,0:T(1,128)}', space=vmem, size = 0x12000, scoped, tag = 'internal scratch']
  %s0 = inlined_call_operand.vmem [shape: f32[2,64,16], index: 0, kind: input, shape index: {}]
  %s1 = inlined_call_operand.vmem [shape: f32[64,32], index: 1, kind: input, shape index: {}]
  %s2 = inlined_call_operand.vmem [shape: f32[8,32], index: 2, kind: input, shape index: {}]
  %s3 = inlined_call_operand.vmem [shape: bf16[976,128], index: 3, kind: input, shape index: {}]
  %s4 = inlined_call_operand.vmem [shape: f32[48,128], index: 4, kind: input, shape index: {}]
  %s5 = inlined_call_operand.vmem [shape: f32[2,8,128], index: 5, kind: output, shape index: {0}]
  %s6 = inlined_call_operand.vmem [shape: f32[2,8,128], index: 6, kind: output, shape index: {1}]
  %7 = xla_tuple %s5, %s6
  %s8 = sld [smem:[#allocation0]]
  $region61: #{detr_forward.1} parent=0
    _
  %s10 = ssub.s32 1, %s8
  %s11 = scalar_select 0, %s10, %s8
  loop: start=0, step=1, limit=4
  $region2: #{detr_forward.1} parent=0 // loop_pre_header
    _
  $region3: #{detr_forward.1} parent=0 // loop_header
    %s13 = sphi 0, %s17
    %p14 = scmp.ge.s32.totalorder %s13, 4
    %s23 = sphi 0, %s25
    %s26 = sphi 0, %s23
    %s27 = sphi 0, %s26
    %s43 = sphi 0, %s27
    %s47 = sphi 0, %s47
    %s49 = sphi 0, %s47
    %s50 = sphi 0, %s49
    %s64 = sphi 0, %s50
    %s68 = sphi 0, %s68
    %s70 = sphi 0, %s68
    %s71 = sphi 0, %s70
    %s85 = sphi 0, %s71
    %s89 = sphi 0, %s89
    %s91 = sphi 0, %s89
    %s92 = sphi 0, %s91
    %s106 = sphi 0, %s92
    %s110 = sphi 0, %s110
    %s112 = sphi 0, %s110
    %s113 = sphi 0, %s112
    %s127 = sphi 0, %s113
    %s133 = sphi 0, %s135
    %s136 = sphi 0, %s133
    %s137 = sphi 0, %s136
    %s153 = sphi 0, %s137
    %s159 = sphi 0, %s161
    %s162 = sphi 0, %s159
    %s163 = sphi 0, %s162
    %s179 = sphi 0, %s163
  $region4: #{detr_forward.1} parent=0 // loop_header_branch
    %16 = sbr.rel (%p14) target = $region8
  $region5: #{detr_forward.1} parent=0 // loop_body
    %s18 = ssub.s32 %s13, 1
    %s19 = ssub.s32 %s13, 2
    %s20 = sadd.s32 %s13, 1
    %s21 = ssub.s32 %s13, %s20
    %p22 = scmp.eq.s32.totalorder %s21, 0
    %s24 = sadd.s32 %s23, 1
    %s25 = scalar_select %p22, %s23, %s24
    %p28 = pneg %p22
    %p29 = scmp.eq.s32.totalorder %s13, 1
    %p30 = por %p28, %p29
    %p31 = scmp.ne.s32.totalorder %s23, %s26
    %p32 = scmp.eq.s32.totalorder %s13, 0
    %p33 = por %p31, %p32
    %p34 = scmp.ne.s32.totalorder %s23, %s26
    %p35 = scmp.eq.s32.totalorder %s18, 1
    %p36 = por %p34, %p35
    %p37 = scmp.ne.s32.totalorder %s26, %s27
    %p38 = scmp.eq.s32.totalorder %s18, 0
    %p39 = por %p37, %p38
    %p40 = scmp.ne.s32.totalorder %s26, %s27
    %p41 = scmp.eq.s32.totalorder %s19, 1
    %p42 = por %p40, %p41
    %p44 = scmp.ne.s32.totalorder %s27, %s43
    %p45 = scmp.eq.s32.totalorder %s19, 0
    %p46 = por %p44, %p45
    %s48 = sadd.s32 %s47, 1
    %p51 = scmp.eq.s32.totalorder %s13, 1
    %p52 = scmp.ne.s32.totalorder %s47, %s49
    %p53 = scmp.eq.s32.totalorder %s13, 0
    %p54 = por %p52, %p53
    %p55 = scmp.ne.s32.totalorder %s47, %s49
    %p56 = scmp.eq.s32.totalorder %s18, 1
    %p57 = por %p55, %p56
    %p58 = scmp.ne.s32.totalorder %s49, %s50
    %p59 = scmp.eq.s32.totalorder %s18, 0
    %p60 = por %p58, %p59
    %p61 = scmp.ne.s32.totalorder %s49, %s50
    %p62 = scmp.eq.s32.totalorder %s19, 1
    %p63 = por %p61, %p62
    %p65 = scmp.ne.s32.totalorder %s50, %s64
    %p66 = scmp.eq.s32.totalorder %s19, 0
    %p67 = por %p65, %p66
    %s69 = sadd.s32 %s68, 1
    %p72 = scmp.eq.s32.totalorder %s13, 1
    %p73 = scmp.ne.s32.totalorder %s68, %s70
    %p74 = scmp.eq.s32.totalorder %s13, 0
    %p75 = por %p73, %p74
    %p76 = scmp.ne.s32.totalorder %s68, %s70
    %p77 = scmp.eq.s32.totalorder %s18, 1
    %p78 = por %p76, %p77
    %p79 = scmp.ne.s32.totalorder %s70, %s71
    %p80 = scmp.eq.s32.totalorder %s18, 0
    %p81 = por %p79, %p80
    %p82 = scmp.ne.s32.totalorder %s70, %s71
    %p83 = scmp.eq.s32.totalorder %s19, 1
    %p84 = por %p82, %p83
    %p86 = scmp.ne.s32.totalorder %s71, %s85
    %p87 = scmp.eq.s32.totalorder %s19, 0
    %p88 = por %p86, %p87
    %s90 = sadd.s32 %s89, 1
    %p93 = scmp.eq.s32.totalorder %s13, 1
    %p94 = scmp.ne.s32.totalorder %s89, %s91
    %p95 = scmp.eq.s32.totalorder %s13, 0
    %p96 = por %p94, %p95
    %p97 = scmp.ne.s32.totalorder %s89, %s91
    %p98 = scmp.eq.s32.totalorder %s18, 1
    %p99 = por %p97, %p98
    %p100 = scmp.ne.s32.totalorder %s91, %s92
    %p101 = scmp.eq.s32.totalorder %s18, 0
    %p102 = por %p100, %p101
    %p103 = scmp.ne.s32.totalorder %s91, %s92
    %p104 = scmp.eq.s32.totalorder %s19, 1
    %p105 = por %p103, %p104
    %p107 = scmp.ne.s32.totalorder %s92, %s106
    %p108 = scmp.eq.s32.totalorder %s19, 0
    %p109 = por %p107, %p108
    %s111 = sadd.s32 %s110, 1
    %p114 = scmp.eq.s32.totalorder %s13, 1
    %p115 = scmp.ne.s32.totalorder %s110, %s112
    %p116 = scmp.eq.s32.totalorder %s13, 0
    %p117 = por %p115, %p116
    %p118 = scmp.ne.s32.totalorder %s110, %s112
    %p119 = scmp.eq.s32.totalorder %s18, 1
    %p120 = por %p118, %p119
    %p121 = scmp.ne.s32.totalorder %s112, %s113
    %p122 = scmp.eq.s32.totalorder %s18, 0
    %p123 = por %p121, %p122
    %p124 = scmp.ne.s32.totalorder %s112, %s113
    %p125 = scmp.eq.s32.totalorder %s19, 1
    %p126 = por %p124, %p125
    %p128 = scmp.ne.s32.totalorder %s113, %s127
    %p129 = scmp.eq.s32.totalorder %s19, 0
    %p130 = por %p128, %p129
    %s131 = ssub.s32 %s13, %s20
    %p132 = scmp.eq.s32.totalorder %s131, 0
    %s134 = sadd.s32 %s133, 1
    %s135 = scalar_select %p132, %s133, %s134
    %p138 = pneg %p132
    %p139 = scmp.eq.s32.totalorder %s13, 1
    %p140 = por %p138, %p139
    %p141 = scmp.ne.s32.totalorder %s133, %s136
    %p142 = scmp.eq.s32.totalorder %s13, 0
    %p143 = por %p141, %p142
    %p144 = scmp.ne.s32.totalorder %s133, %s136
    %p145 = scmp.eq.s32.totalorder %s18, 1
    %p146 = por %p144, %p145
    %p147 = scmp.ne.s32.totalorder %s136, %s137
    %p148 = scmp.eq.s32.totalorder %s18, 0
    %p149 = por %p147, %p148
    %p150 = scmp.ne.s32.totalorder %s136, %s137
    %p151 = scmp.eq.s32.totalorder %s19, 1
    %p152 = por %p150, %p151
    %p154 = scmp.ne.s32.totalorder %s137, %s153
    %p155 = scmp.eq.s32.totalorder %s19, 0
    %p156 = por %p154, %p155
    %s157 = ssub.s32 %s13, %s20
    %p158 = scmp.eq.s32.totalorder %s157, 0
    %s160 = sadd.s32 %s159, 1
    %s161 = scalar_select %p158, %s159, %s160
    %p164 = pneg %p158
    %p165 = scmp.eq.s32.totalorder %s13, 1
    %p166 = por %p164, %p165
    %p167 = scmp.ne.s32.totalorder %s159, %s162
    %p168 = scmp.eq.s32.totalorder %s13, 0
    %p169 = por %p167, %p168
    %p170 = scmp.ne.s32.totalorder %s159, %s162
    %p171 = scmp.eq.s32.totalorder %s18, 1
    %p172 = por %p170, %p171
    %p173 = scmp.ne.s32.totalorder %s162, %s163
    %p174 = scmp.eq.s32.totalorder %s18, 0
    %p175 = por %p173, %p174
    %p176 = scmp.ne.s32.totalorder %s162, %s163
    %p177 = scmp.eq.s32.totalorder %s19, 1
    %p178 = por %p176, %p177
    %p180 = scmp.ne.s32.totalorder %s163, %s179
    %p181 = scmp.eq.s32.totalorder %s19, 0
    %p182 = por %p180, %p181
    %p183 = scmp.le.s32.totalorder 1, %s13
    %p184 = scmp.lt.s32.totalorder %s13, 3
    %p185 = pnand %p183, %p184
    %p186 = pneg %p185
    // Predicated region
    $region9: #{detr_forward.1} parent=5 // pred_check
      _
    $region10: #{detr_forward.1} parent=5 // pred_check_branch
      %188 = sbr.rel (%p185) target = $region12
    $region11: #{detr_forward.1} parent=5 // pred_region
      %s189 = ssub.s32 %s13, 1
      // Predicated region
      $region13: #{detr_forward.1} parent=11 // pred_check
        %p190 = pneg %p60
      $region14: #{detr_forward.1} parent=11 // pred_check_branch
        %192 = sbr.rel (%p190) target = $region16
      $region15: #{detr_forward.1} parent=11 // pred_region
        _
      $region16: #{detr_forward.1} parent=11 // pred_fallthru
        _
      // Predicated region
      $region17: #{detr_forward.1} parent=11 // pred_check
        %p193 = pneg %p81
      $region18: #{detr_forward.1} parent=11 // pred_check_branch
        %195 = sbr.rel (%p193) target = $region20
      $region19: #{detr_forward.1} parent=11 // pred_region
        _
      $region20: #{detr_forward.1} parent=11 // pred_fallthru
        _
      // Predicated region
      $region21: #{detr_forward.1} parent=11 // pred_check
        %p196 = pneg %p102
      $region22: #{detr_forward.1} parent=11 // pred_check_branch
        %198 = sbr.rel (%p196) target = $region24
      $region23: #{detr_forward.1} parent=11 // pred_region
        _
      $region24: #{detr_forward.1} parent=11 // pred_fallthru
        _
      // Predicated region
      $region25: #{detr_forward.1} parent=11 // pred_check
        %p199 = pneg %p123
      $region26: #{detr_forward.1} parent=11 // pred_check_branch
        %201 = sbr.rel (%p199) target = $region28
      $region27: #{detr_forward.1} parent=11 // pred_region
        _
      $region28: #{detr_forward.1} parent=11 // pred_fallthru
        _
    $region12: #{detr_forward.1} parent=5 // pred_fallthru
      _
    %p202 = scmp.lt.s32.totalorder %s13, 2
    // Predicated region
    $region29: #{detr_forward.1} parent=5 // pred_check
      %p203 = pneg %p202
    $region30: #{detr_forward.1} parent=5 // pred_check_branch
      %205 = sbr.rel (%p203) target = $region32
    $region31: #{detr_forward.1} parent=5 // pred_region
      // Predicated region
      $region33: #{detr_forward.1} parent=31 // pred_check
        %p206 = pneg %p33
      $region34: #{detr_forward.1} parent=31 // pred_check_branch
        %208 = sbr.rel (%p206) target = $region36
      $region35: #{detr_forward.1} parent=31 // pred_region
        %p209 = scmp.lt.s32.totalorder %s13, 1
        %s210 = scalar_select %p209, %s13, 1
        %s211 = smul.addr %s210, 8
        %s212 = smul.addr %s211, 8
        %s213 = scalar_lea.vmem %s0, %s212
      $region36: #{detr_forward.1} parent=31 // pred_fallthru
        _
    $region32: #{detr_forward.1} parent=5 // pred_fallthru
      _
    %p214 = scmp.le.s32.totalorder 1, %s13
    %p215 = scmp.lt.s32.totalorder %s13, 3
    %p216 = pnand %p214, %p215
    %p217 = pneg %p216
    // Predicated region
    $region37: #{detr_forward.1} parent=5 // pred_check
      _
    $region38: #{detr_forward.1} parent=5 // pred_check_branch
      %219 = sbr.rel (%p216) target = $region40
    $region39: #{detr_forward.1} parent=5 // pred_region
      %s220 = ssub.s32 %s13, 1
      %p221 = scmp.lt.s32.totalorder %s18, 1
      %s222 = scalar_select %p221, %s18, 1
      %s223 = smul.addr %s222, 8
      %s224 = smul.addr %s223, 8
      %s225 = scalar_lea.vmem %s0, %s224
      %p226 = pneg %p39
      %p227 = pneg %p36
      %p228 = pneg %p60
      %p229 = pneg %p57
      %p230 = pneg %p81
      %p231 = pneg %p78
      %p232 = pneg %p102
      %p233 = pneg %p99
      %p234 = pneg %p123
      %p235 = pneg %p120
      %p236 = pneg %p149
      %p237 = pneg %p146
      %p238 = scmp.lt.s32.totalorder %s18, 1
      %s239 = scalar_select %p238, %s18, 1
      %s240 = smul.addr %s239, 8
      %s241 = scalar_lea.vmem %s5, %s240
      %p242 = pneg %p175
      %p243 = pneg %p172
      %p244 = scmp.lt.s32.totalorder %s18, 1
      %s245 = scalar_select %p244, %s18, 1
      %s246 = smul.addr %s245, 8
      %s247 = scalar_lea.vmem %s6, %s246
      %p248 = scmp.lt.s32.totalorder %s18, 1
      %s249 = scalar_select %p248, %s18, 1
      %s250 = smul.addr %s249, 8
      %s251 = smul.addr %s250, 8
      %s252 = scalar_lea.vmem %s0, %s251
      %p253 = scmp.lt.s32.totalorder %s18, 1
      %s254 = scalar_select %p253, %s18, 1
      %s255 = smul.addr %s254, 8
      %s256 = scalar_lea.vmem %s5, %s255
      %p257 = scmp.lt.s32.totalorder %s18, 1
      %s258 = scalar_select %p257, %s18, 1
      %s259 = smul.addr %s258, 8
      %s260 = scalar_lea.vmem %s6, %s259
      %v262 = vld [vmem:[%s1] sm:$0xff]
      %v263 = vld [vmem:[%s1 + $0x8] sm:$0xff]
      %v264 = vld [vmem:[%s1 + $0x10] sm:$0xff]
      %v265 = vld [vmem:[%s1 + $0x18] sm:$0xff]
      %v266 = vld [vmem:[%s1 + $0x20] sm:$0xff]
      %v267 = vld [vmem:[%s1 + $0x28] sm:$0xff]
      %v268 = vld [vmem:[%s1 + $0x30] sm:$0xff]
      %v269 = vld [vmem:[%s1 + $0x38] sm:$0xff]
      %v270 = vld [vmem:[%s2] sm:$0xff]
      %v271 = vld [vmem:[%s252] sm:$0xff]
      %v272 = vld [vmem:[%s252 + $0x8] sm:$0xff]
      %v273 = vld [vmem:[%s252 + $0x10] sm:$0xff]
      %v274 = vld [vmem:[%s252 + $0x18] sm:$0xff]
      %v275 = vld [vmem:[%s252 + $0x20] sm:$0xff]
      %v276 = vld [vmem:[%s252 + $0x28] sm:$0xff]
      %v277 = vld [vmem:[%s252 + $0x30] sm:$0xff]
      %v278 = vld [vmem:[%s252 + $0x38] sm:$0xff]
      %v279 = vld [vmem:[%s3] sm:$0xf]
      %v280 = vld [vmem:[%s3 + $0x4] sm:$0xf]
      %v281 = vpack.c.bf16 %v272, %v271
      %v282 = vpack.c.bf16 %v274, %v273
      %v283 = vpack.c.bf16 %v276, %v275
      %v284 = vpack.c.bf16 %v278, %v277
      %v285 = vld [vmem:[%s4] sm:$0x1]
      %v286 = vlaneseq
      %v287 = vshrl.u32 %v286, 7
      %v288 = vsub.s32 0, %v287
      %v289 = vrot.slane %v285, %v288
      %v292 = vunpack.c.l.b16 %v279
      %v293 = vunpack.c.l.b16 %v280
      %v294 = vpack.c.b16 %v293, %v292
      %vm296 = vcmask 130048
      %v298 = vsel %vm296, %v281, 0
      %v301 = vsel %vm296, %v282, 0
      %v304 = vsel %vm296, %v283, 0
      %v307 = vsel %vm296, %v284, 0
      %309 = vmatprep.subr.bf16.mxu0 0
      %310 = vmatpush1.bf16.msra.mxu0 %v294
      %311 = vmatprep.subr.bf16.mxu0 0
      %312 = vmatpush1.bf16.msra.mxu0 0
      %313 = vmatprep.subr.bf16.mxu0 0
      %314 = vmatpush1.bf16.msra.mxu0 0
      %315 = vmatprep.subr.bf16.mxu0 0
      %316 = vmatpush1.bf16.msra.mxu0 0
      %317 = vmatprep.subr.bf16.mxu0 0
      %318 = vmatpush1.bf16.msra.mxu0 0
      %319 = vmatprep.subr.bf16.mxu0 0
      %320 = vmatpush1.bf16.msra.mxu0 0
      %321 = vmatprep.subr.bf16.mxu0 0
      %322 = vmatpush1.bf16.msra.mxu0 0
      %323 = vmatprep.subr.bf16.mxu0 0
      %324 = vmatpush1.bf16.msra.mxu0 0
      %325 = vmatprep.subr.bf16.mxu0 0
      %326 = vmatpush1.bf16.msra.mxu0 0
      %327 = vmatprep.subr.bf16.mxu0 0
      %328 = vmatpush1.bf16.msra.mxu0 0
      %329 = vmatprep.subr.bf16.mxu0 0
      %330 = vmatpush1.bf16.msra.mxu0 0
      %331 = vmatprep.subr.bf16.mxu0 0
      %332 = vmatpush1.bf16.msra.mxu0 0
      %333 = vmatprep.subr.bf16.mxu0 0
      %334 = vmatpush1.bf16.msra.mxu0 0
      %335 = vmatprep.subr.bf16.mxu0 0
      %336 = vmatpush1.bf16.msra.mxu0 0
      %337 = vmatprep.subr.bf16.mxu0 0
      %338 = vmatpush1.bf16.msra.mxu0 0
      %339 = vmatprep.subr.bf16.mxu0 0
      %340 = vmatpush1.bf16.msra.mxu0 0
      %341 = vmatprep.mubr.bf16.mxu0 0
      %342 = vmatmul.mubr.bf16.gmra.mrb[0].mxu0 %v298
      %v343 = vpop.f32.mrb[0].mxu0
      %v344 = vadd.f32 %v289, %v343
      %v345 = vpop.f32.mrb[0].mxu0
      %v346 = vpop.f32.mrb[0].mxu0
      %v347 = vadd.f32 %v289, %v346
      %v348 = vpop.f32.mrb[0].mxu0
      %349 = vmatprep.mubr.bf16.mxu0 0
      %350 = vmatmul.mubr.bf16.gmra.mrb[0].mxu0 %v301
      %v351 = vpop.f32.mrb[0].mxu0
      %v352 = vadd.f32 %v289, %v351
      %v353 = vpop.f32.mrb[0].mxu0
      %v354 = vpop.f32.mrb[0].mxu0
      %v355 = vadd.f32 %v289, %v354
      %v356 = vpop.f32.mrb[0].mxu0
      %357 = vmatprep.mubr.bf16.mxu0 0
      %358 = vmatmul.mubr.bf16.gmra.mrb[0].mxu0 %v304
      %v359 = vpop.f32.mrb[0].mxu0
      %v360 = vadd.f32 %v289, %v359
      %v361 = vpop.f32.mrb[0].mxu0
      %v362 = vpop.f32.mrb[0].mxu0
      %v363 = vadd.f32 %v289, %v362
      %v364 = vpop.f32.mrb[0].mxu0
      %365 = vmatprep.mubr.bf16.mxu0 0
      %366 = vmatmul.mubr.bf16.gmra.mrb[0].mxu0 %v307
      %v367 = vpop.f32.mrb[0].mxu0
      %v368 = vadd.f32 %v289, %v367
      %v369 = vpop.f32.mrb[0].mxu0
      %v370 = vpop.f32.mrb[0].mxu0
      %v371 = vadd.f32 %v289, %v370
      %v372 = vpop.f32.mrb[0].mxu0
      %373 = vdwg.mxu0
      %v374 = vadd.f32 %v344, %v262
      %v375 = vadd.f32 %v347, %v263
      %v376 = vadd.f32 %v352, %v264
      %v377 = vadd.f32 %v355, %v265
      %v378 = vadd.f32 %v360, %v266
      %v379 = vadd.f32 %v363, %v267
      %v380 = vadd.f32 %v368, %v268
      %v381 = vadd.f32 %v371, %v269
      %v382 = vld [vmem:[%s3 + $0x8] sm:$0xf]
      %v383 = vld [vmem:[%s3 + $0xc] sm:$0xf]
      %v384 = vld [vmem:[%s3 + $0x10] sm:$0xf]
      %v385 = vld [vmem:[%s3 + $0x14] sm:$0xf]
      %v386 = vpack.c.bf16 %v375, %v374
      %v387 = vpack.c.bf16 %v377, %v376
      %v388 = vpack.c.bf16 %v379, %v378
      %v389 = vpack.c.bf16 %v381, %v380
      %v390 = vld [vmem:[%s4 + $0x1] sm:$0x1]
      %v391 = vlaneseq
      %v392 = vshrl.u32 %v391, 7
      %v393 = vsub.s32 0, %v392
      %v394 = vrot.slane %v390, %v393
      %v399 = vunpack.c.l.b16 %v382
      %v400 = vunpack.c.l.b16 %v383
      %v401 = vunpack.c.l.b16 %v384
      %v402 = vunpack.c.l.b16 %v385
      %v403 = vpack.c.b16 %v400, %v399
      %v404 = vpack.c.b16 %v402, %v401
      %vm407 = vcmask 261120
      %v409 = vsel %vm407, %v386, 0
      %v412 = vsel %vm407, %v387, 0
      %v415 = vsel %vm407, %v388, 0
      %v418 = vsel %vm407, %v389, 0
      %420 = vmatprep.subr.bf16.mxu0 0
      %421 = vmatpush1.bf16.msra.mxu0 %v403
      %422 = vmatprep.subr.bf16.mxu0 0
      %423 = vmatpush1.bf16.msra.mxu0 %v404
      %424 = vmatprep.subr.bf16.mxu0 0
      %425 = vmatpush1.bf16.msra.mxu0 0
      %426 = vmatprep.subr.bf16.mxu0 0
      %427 = vmatpush1.bf16.msra.mxu0 0
      %428 = vmatprep.subr.bf16.mxu0 0
      %429 = vmatpush1.bf16.msra.mxu0 0
      %430 = vmatprep.subr.bf16.mxu0 0
      %431 = vmatpush1.bf16.msra.mxu0 0
      %432 = vmatprep.subr.bf16.mxu0 0
      %433 = vmatpush1.bf16.msra.mxu0 0
      %434 = vmatprep.subr.bf16.mxu0 0
      %435 = vmatpush1.bf16.msra.mxu0 0
      %436 = vmatprep.subr.bf16.mxu0 0
      %437 = vmatpush1.bf16.msra.mxu0 0
      %438 = vmatprep.subr.bf16.mxu0 0
      %439 = vmatpush1.bf16.msra.mxu0 0
      %440 = vmatprep.subr.bf16.mxu0 0
      %441 = vmatpush1.bf16.msra.mxu0 0
      %442 = vmatprep.subr.bf16.mxu0 0
      %443 = vmatpush1.bf16.msra.mxu0 0
      %444 = vmatprep.subr.bf16.mxu0 0
      %445 = vmatpush1.bf16.msra.mxu0 0
      %446 = vmatprep.subr.bf16.mxu0 0
      %447 = vmatpush1.bf16.msra.mxu0 0
      %448 = vmatprep.subr.bf16.mxu0 0
      %449 = vmatpush1.bf16.msra.mxu0 0
      %450 = vmatprep.subr.bf16.mxu0 0
      %451 = vmatpush1.bf16.msra.mxu0 0
      %452 = vmatprep.mubr.bf16.mxu0 0
      %453 = vmatmul.mubr.bf16.gmra.mrb[0].mxu0 %v409
      %v454 = vpop.f32.mrb[0].mxu0
      %v455 = vadd.f32 %v394, %v454
      %v456 = vpop.f32.mrb[0].mxu0
      %v457 = vpop.f32.mrb[0].mxu0
      %v458 = vadd.f32 %v394, %v457
      %v459 = vpop.f32.mrb[0].mxu0
      %460 = vmatprep.mubr.bf16.mxu0 0
      %461 = vmatmul.mubr.bf16.gmra.mrb[0].mxu0 %v412
      %v462 = vpop.f32.mrb[0].mxu0
      %v463 = vadd.f32 %v394, %v462
      %v464 = vpop.f32.mrb[0].mxu0
      %v465 = vpop.f32.mrb[0].mxu0
      %v466 = vadd.f32 %v394, %v465
      %v467 = vpop.f32.mrb[0].mxu0
      %468 = vmatprep.mubr.bf16.mxu0 0
      %469 = vmatmul.mubr.bf16.gmra.mrb[0].mxu0 %v415
      %v470 = vpop.f32.mrb[0].mxu0
      %v471 = vadd.f32 %v394, %v470
      %v472 = vpop.f32.mrb[0].mxu0
      %v473 = vpop.f32.mrb[0].mxu0
      %v474 = vadd.f32 %v394, %v473
      %v475 = vpop.f32.mrb[0].mxu0
      %476 = vmatprep.mubr.bf16.mxu0 0
      %477 = vmatmul.mubr.bf16.gmra.mrb[0].mxu0 %v418
      %v478 = vpop.f32.mrb[0].mxu0
      %v479 = vadd.f32 %v394, %v478
      %v480 = vpop.f32.mrb[0].mxu0
      %v481 = vpop.f32.mrb[0].mxu0
      %v482 = vadd.f32 %v394, %v481
      %v483 = vpop.f32.mrb[0].mxu0
      %484 = vdwg.mxu0
      %v485 = vld [vmem:[%s3 + $0x18] sm:$0xf]
      %v486 = vld [vmem:[%s3 + $0x1c] sm:$0xf]
      %v487 = vld [vmem:[%s3 + $0x20] sm:$0xf]
      %v488 = vld [vmem:[%s3 + $0x24] sm:$0xf]
      %v489 = vpack.c.bf16 %v347, %v344
      %v490 = vpack.c.bf16 %v355, %v352
      %v491 = vpack.c.bf16 %v363, %v360
      %v492 = vpack.c.bf16 %v371, %v368
      %v493 = vld [vmem:[%s4 + $0x2] sm:$0x1]
      %v494 = vlaneseq
      %v495 = vshrl.u32 %v494, 7
      %v496 = vsub.s32 0, %v495
      %v497 = vrot.slane %v493, %v496
      %v502 = vunpack.c.l.b16 %v485
      %v503 = vunpack.c.l.b16 %v486
      %v504 = vunpack.c.l.b16 %v487
      %v505 = vunpack.c.l.b16 %v488
      %v506 = vpack.c.b16 %v503, %v502
      %v507 = vpack.c.b16 %v505, %v504
      %v511 = vsel %vm407, %v489, 0
      %v514 = vsel %vm407, %v490, 0
      %v517 = vsel %vm407, %v491, 0
      %v520 = vsel %vm407, %v492, 0
      %522 = vmatprep.subr.bf16.mxu0 0
      %523 = vmatpush1.bf16.msra.mxu0 %v506
      %524 = vmatprep.subr.bf16.mxu0 0
      %525 = vmatpush1.bf16.msra.mxu0 %v507
      %526 = vmatprep.subr.bf16.mxu0 0
      %527 = vmatpush1.bf16.msra.mxu0 0
      %528 = vmatprep.subr.bf16.mxu0 0
      %529 = vmatpush1.bf16.msra.mxu0 0
      %530 = vmatprep.subr.bf16.mxu0 0
      %531 = vmatpush1.bf16.msra.mxu0 0
      %532 = vmatprep.subr.bf16.mxu0 0
      %533 = vmatpush1.bf16.msra.mxu0 0
      %534 = vmatprep.subr.bf16.mxu0 0
      %535 = vmatpush1.bf16.msra.mxu0 0
      %536 = vmatprep.subr.bf16.mxu0 0
      %537 = vmatpush1.bf16.msra.mxu0 0
      %538 = vmatprep.subr.bf16.mxu0 0
      %539 = vmatpush1.bf16.msra.mxu0 0
      %540 = vmatprep.subr.bf16.mxu0 0
      %541 = vmatpush1.bf16.msra.mxu0 0
      %542 = vmatprep.subr.bf16.mxu0 0
      %543 = vmatpush1.bf16.msra.mxu0 0
      %544 = vmatprep.subr.bf16.mxu0 0
      %545 = vmatpush1.bf16.msra.mxu0 0
      %546 = vmatprep.subr.bf16.mxu0 0
      %547 = vmatpush1.bf16.msra.mxu0 0
      %548 = vmatprep.subr.bf16.mxu0 0
      %549 = vmatpush1.bf16.msra.mxu0 0
      %550 = vmatprep.subr.bf16.mxu0 0
      %551 = vmatpush1.bf16.msra.mxu0 0
      %552 = vmatprep.subr.bf16.mxu0 0
      %553 = vmatpush1.bf16.msra.mxu0 0
      %554 = vmatprep.mubr.bf16.mxu0 0
      %555 = vmatmul.mubr.bf16.gmra.mrb[0].mxu0 %v511
      %v556 = vpop.f32.mrb[0].mxu0
      %v557 = vadd.f32 %v497, %v556
      %v558 = vpop.f32.mrb[0].mxu0
      %v559 = vpop.f32.mrb[0].mxu0
      %v560 = vadd.f32 %v497, %v559
      %v561 = vpop.f32.mrb[0].mxu0
      %562 = vmatprep.mubr.bf16.mxu0 0
      %563 = vmatmul.mubr.bf16.gmra.mrb[0].mxu0 %v514
      %v564 = vpop.f32.mrb[0].mxu0
      %v565 = vadd.f32 %v497, %v564
      %v566 = vpop.f32.mrb[0].mxu0
      %v567 = vpop.f32.mrb[0].mxu0
      %v568 = vadd.f32 %v497, %v567
      %v569 = vpop.f32.mrb[0].mxu0
      %570 = vmatprep.mubr.bf16.mxu0 0
      %571 = vmatmul.mubr.bf16.gmra.mrb[0].mxu0 %v517
      %v572 = vpop.f32.mrb[0].mxu0
      %v573 = vadd.f32 %v497, %v572
      %v574 = vpop.f32.mrb[0].mxu0
      %v575 = vpop.f32.mrb[0].mxu0
      %v576 = vadd.f32 %v497, %v575
      %v577 = vpop.f32.mrb[0].mxu0
      %578 = vmatprep.mubr.bf16.mxu0 0
      %579 = vmatmul.mubr.bf16.gmra.mrb[0].mxu0 %v520
      %v580 = vpop.f32.mrb[0].mxu0
      %v581 = vadd.f32 %v497, %v580
      %v582 = vpop.f32.mrb[0].mxu0
      %v583 = vpop.f32.mrb[0].mxu0
      %v584 = vadd.f32 %v497, %v583
      %v585 = vpop.f32.mrb[0].mxu0
      %586 = vdwg.mxu0
      %v587 = vld [vmem:[%s3 + $0x28] sm:$0xf]
      %v588 = vld [vmem:[%s3 + $0x2c] sm:$0xf]
      %v589 = vld [vmem:[%s3 + $0x30] sm:$0xf]
      %v590 = vld [vmem:[%s3 + $0x34] sm:$0xf]
      %v591 = vld [vmem:[%s4 + $0x3] sm:$0x1]
      %v592 = vmul.f32 %v455, 0.35355338
      %v593 = vmul.f32 %v458, 0.35355338
      %v594 = vmul.f32 %v463, 0.35355338
      %v595 = vmul.f32 %v466, 0.35355338
      %v596 = vmul.f32 %v471, 0.35355338
      %v597 = vmul.f32 %v474, 0.35355338
      %v598 = vmul.f32 %v479, 0.35355338
      %v599 = vmul.f32 %v482, 0.35355338
      %v600 = vpack.c.bf16 %v593, %v592
      %v601 = vpack.c.bf16 %v595, %v594
      %v602 = vpack.c.bf16 %v597, %v596
      %v603 = vpack.c.bf16 %v599, %v598
      %v604 = vpack.c.bf16 %v458, %v455
      %v605 = vpack.c.bf16 %v466, %v463
      %v606 = vpack.c.bf16 %v474, %v471
      %v607 = vpack.c.bf16 %v482, %v479
      %v608 = vpack.c.bf16 %v560, %v557
      %v609 = vpack.c.bf16 %v568, %v565
      %v610 = vpack.c.bf16 %v576, %v573
      %v611 = vpack.c.bf16 %v584, %v581
      %616 = vrot.lane.b32.xlu0 %v604, 96
      %v617 = vpop.permute.xlu0 %616
      %618 = vrot.lane.b32.xlu0 %v605, 96
      %v619 = vpop.permute.xlu0 %618
      %620 = vrot.lane.b32.xlu0 %v606, 96
      %v621 = vpop.permute.xlu0 %620
      %622 = vrot.lane.b32.xlu0 %v607, 96
      %v623 = vpop.permute.xlu0 %622
      %vm624 = vcmask 64512
      %v626 = vsel %vm624, %v600, 0
      %v629 = vsel %vm624, %v601, 0
      %v632 = vsel %vm624, %v602, 0
      %v635 = vsel %vm624, %v603, 0
      %v638 = vsel %vm624, %v617, 0
      %v641 = vsel %vm624, %v619, 0
      %v644 = vsel %vm624, %v621, 0
      %v647 = vsel %vm624, %v623, 0
      %649 = vmatprep.subr.bf16.mxu0 0
      %650 = vmatpush1.bf16.xpose.msra.mxu0 %v638
      %651 = vmatprep.subr.bf16.mxu0 0
      %652 = vmatpush1.bf16.xpose.msra.mxu0 %v641
      %653 = vmatprep.subr.bf16.mxu0 0
      %654 = vmatpush1.bf16.xpose.msra.mxu0 %v644
      %655 = vmatprep.subr.bf16.mxu0 0
      %656 = vmatpush1.bf16.xpose.msra.mxu0 %v647
      %657 = vmatprep.subr.bf16.mxu0 0
      %658 = vmatpush1.bf16.xpose.msra.mxu0 0
      %659 = vmatprep.subr.bf16.mxu0 0
      %660 = vmatpush1.bf16.xpose.msra.mxu0 0
      %661 = vmatprep.subr.bf16.mxu0 0
      %662 = vmatpush1.bf16.xpose.msra.mxu0 0
      %663 = vmatprep.subr.bf16.mxu0 0
      %664 = vmatpush1.bf16.xpose.msra.mxu0 0
      %665 = vmatprep.subr.bf16.mxu0 0
      %666 = vmatpush1.bf16.xpose.msra.mxu0 0
      %667 = vmatprep.subr.bf16.mxu0 0
      %668 = vmatpush1.bf16.xpose.msra.mxu0 0
      %669 = vmatprep.subr.bf16.mxu0 0
      %670 = vmatpush1.bf16.xpose.msra.mxu0 0
      %671 = vmatprep.subr.bf16.mxu0 0
      %672 = vmatpush1.bf16.xpose.msra.mxu0 0
      %673 = vmatprep.subr.bf16.mxu0 0
      %674 = vmatpush1.bf16.xpose.msra.mxu0 0
      %675 = vmatprep.subr.bf16.mxu0 0
      %676 = vmatpush1.bf16.xpose.msra.mxu0 0
      %677 = vmatprep.subr.bf16.mxu0 0
      %678 = vmatpush1.bf16.xpose.msra.mxu0 0
      %679 = vmatprep.subr.bf16.mxu0 0
      %680 = vmatpush1.bf16.xpose.msra.mxu0 0
      %681 = vmatprep.mubr.bf16.mxu0 0
      %682 = vmatmul.mubr.bf16.gmra.mrb[0].mxu0 %v626
      %v683 = vpop.f32.mrb[0].mxu0
      %v684 = vadd.f32 0.0, %v683
      %v685 = vpop.f32.mrb[0].mxu0
      %v686 = vpop.f32.mrb[0].mxu0
      %v687 = vadd.f32 0.0, %v686
      %v688 = vpop.f32.mrb[0].mxu0
      %689 = vmatprep.mubr.bf16.mxu0 0
      %690 = vmatmul.mubr.bf16.gmra.mrb[0].mxu0 %v629
      %v691 = vpop.f32.mrb[0].mxu0
      %v692 = vadd.f32 0.0, %v691
      %v693 = vpop.f32.mrb[0].mxu0
      %v694 = vpop.f32.mrb[0].mxu0
      %v695 = vadd.f32 0.0, %v694
      %v696 = vpop.f32.mrb[0].mxu0
      %697 = vmatprep.mubr.bf16.mxu0 0
      %698 = vmatmul.mubr.bf16.gmra.mrb[0].mxu0 %v632
      %v699 = vpop.f32.mrb[0].mxu0
      %v700 = vadd.f32 0.0, %v699
      %v701 = vpop.f32.mrb[0].mxu0
      %v702 = vpop.f32.mrb[0].mxu0
      %v703 = vadd.f32 0.0, %v702
      %v704 = vpop.f32.mrb[0].mxu0
      %705 = vmatprep.mubr.bf16.mxu0 0
      %706 = vmatmul.mubr.bf16.gmra.mrb[0].mxu0 %v635
      %v707 = vpop.f32.mrb[0].mxu0
      %v708 = vadd.f32 0.0, %v707
      %v709 = vpop.f32.mrb[0].mxu0
      %v710 = vpop.f32.mrb[0].mxu0
      %v711 = vadd.f32 0.0, %v710
      %v712 = vpop.f32.mrb[0].mxu0
      %713 = vdwg.mxu0
      %vm714 = vcmask 523264
      %v715 = vsel %vm714, %v684, -inf
      %716 = vmax.xlane.f32.xlu0 %v715
      %v717 = vpop.xlane.xlu0 %716
      %v718 = vsel %vm714, %v687, -inf
      %719 = vmax.xlane.f32.xlu0 %v718
      %v720 = vpop.xlane.xlu0 %719
      %v721 = vsel %vm714, %v692, -inf
      %722 = vmax.xlane.f32.xlu0 %v721
      %v723 = vpop.xlane.xlu0 %722
      %v724 = vsel %vm714, %v695, -inf
      %725 = vmax.xlane.f32.xlu0 %v724
      %v726 = vpop.xlane.xlu0 %725
      %v727 = vsel %vm714, %v700, -inf
      %728 = vmax.xlane.f32.xlu0 %v727
      %v729 = vpop.xlane.xlu0 %728
      %v730 = vsel %vm714, %v703, -inf
      %731 = vmax.xlane.f32.xlu0 %v730
      %v732 = vpop.xlane.xlu0 %731
      %v733 = vsel %vm714, %v708, -inf
      %734 = vmax.xlane.f32.xlu0 %v733
      %v735 = vpop.xlane.xlu0 %734
      %v736 = vsel %vm714, %v711, -inf
      %737 = vmax.xlane.f32.xlu0 %v736
      %v738 = vpop.xlane.xlu0 %737
      %v739 = vsub.f32 %v684, %v717
      %v740 = vsub.f32 %v687, %v720
      %v741 = vsub.f32 %v692, %v723
      %v742 = vsub.f32 %v695, %v726
      %v743 = vsub.f32 %v700, %v729
      %v744 = vsub.f32 %v703, %v732
      %v745 = vsub.f32 %v708, %v735
      %v746 = vsub.f32 %v711, %v738
      %v747 = vmul.f32 %v739, 1.442695
      %v748 = vpow.pop %v747
      %v749 = vmul.f32 %v740, 1.442695
      %v750 = vpow.pop %v749
      %v751 = vmul.f32 %v741, 1.442695
      %v752 = vpow.pop %v751
      %v753 = vmul.f32 %v742, 1.442695
      %v754 = vpow.pop %v753
      %v755 = vmul.f32 %v743, 1.442695
      %v756 = vpow.pop %v755
      %v757 = vmul.f32 %v744, 1.442695
      %v758 = vpow.pop %v757
      %v759 = vmul.f32 %v745, 1.442695
      %v760 = vpow.pop %v759
      %v761 = vmul.f32 %v746, 1.442695
      %v762 = vpow.pop %v761
      %v763 = vsel %vm714, %v748, 0.0
      %764 = vadd.xlane.f32.xlu0 %v763
      %v765 = vpop.xlane.xlu0 %764
      %v766 = vsel %vm714, %v750, 0.0
      %767 = vadd.xlane.f32.xlu0 %v766
      %v768 = vpop.xlane.xlu0 %767
      %v769 = vsel %vm714, %v752, 0.0
      %770 = vadd.xlane.f32.xlu0 %v769
      %v771 = vpop.xlane.xlu0 %770
      %v772 = vsel %vm714, %v754, 0.0
      %773 = vadd.xlane.f32.xlu0 %v772
      %v774 = vpop.xlane.xlu0 %773
      %v775 = vsel %vm714, %v756, 0.0
      %776 = vadd.xlane.f32.xlu0 %v775
      %v777 = vpop.xlane.xlu0 %776
      %v778 = vsel %vm714, %v758, 0.0
      %779 = vadd.xlane.f32.xlu0 %v778
      %v780 = vpop.xlane.xlu0 %779
      %v781 = vsel %vm714, %v760, 0.0
      %782 = vadd.xlane.f32.xlu0 %v781
      %v783 = vpop.xlane.xlu0 %782
      %v784 = vsel %vm714, %v762, 0.0
      %785 = vadd.xlane.f32.xlu0 %v784
      %v786 = vpop.xlane.xlu0 %785
      %v787 = vrcp.pop %v765
      %v788 = vrcp.pop %v768
      %v789 = vrcp.pop %v771
      %v790 = vrcp.pop %v774
      %v791 = vrcp.pop %v777
      %v792 = vrcp.pop %v780
      %v793 = vrcp.pop %v783
      %v794 = vrcp.pop %v786
      %v795 = vmul.f32 %v748, %v787
      %v796 = vmul.f32 %v750, %v788
      %v797 = vmul.f32 %v752, %v789
      %v798 = vmul.f32 %v754, %v790
      %v799 = vmul.f32 %v756, %v791
      %v800 = vmul.f32 %v758, %v792
      %v801 = vmul.f32 %v760, %v793
      %v802 = vmul.f32 %v762, %v794
      %v803 = vpack.c.bf16 %v796, %v795
      %v804 = vpack.c.bf16 %v798, %v797
      %v805 = vpack.c.bf16 %v800, %v799
      %v806 = vpack.c.bf16 %v802, %v801
      %v808 = vsel %vm714, %v803, 0
      %v811 = vsel %vm714, %v804, 0
      %v814 = vsel %vm714, %v805, 0
      %v817 = vsel %vm714, %v806, 0
      %819 = vmatprep.subr.bf16.mxu0 0
      %820 = vmatpush1.bf16.msra.mxu0 %v608
      %821 = vmatprep.subr.bf16.mxu0 0
      %822 = vmatpush1.bf16.msra.mxu0 %v609
      %823 = vmatprep.subr.bf16.mxu0 0
      %824 = vmatpush1.bf16.msra.mxu0 %v610
      %825 = vmatprep.subr.bf16.mxu0 0
      %826 = vmatpush1.bf16.msra.mxu0 %v611
      %827 = vmatprep.subr.bf16.mxu0 0
      %828 = vmatpush1.bf16.msra.mxu0 0
      %829 = vmatprep.subr.bf16.mxu0 0
      %830 = vmatpush1.bf16.msra.mxu0 0
      %831 = vmatprep.subr.bf16.mxu0 0
      %832 = vmatpush1.bf16.msra.mxu0 0
      %833 = vmatprep.subr.bf16.mxu0 0
      %834 = vmatpush1.bf16.msra.mxu0 0
      %835 = vmatprep.subr.bf16.mxu0 0
      %836 = vmatpush1.bf16.msra.mxu0 0
      %837 = vmatprep.subr.bf16.mxu0 0
      %838 = vmatpush1.bf16.msra.mxu0 0
      %839 = vmatprep.subr.bf16.mxu0 0
      %840 = vmatpush1.bf16.msra.mxu0 0
      %841 = vmatprep.subr.bf16.mxu0 0
      %842 = vmatpush1.bf16.msra.mxu0 0
      %843 = vmatprep.subr.bf16.mxu0 0
      %844 = vmatpush1.bf16.msra.mxu0 0
      %845 = vmatprep.subr.bf16.mxu0 0
      %846 = vmatpush1.bf16.msra.mxu0 0
      %847 = vmatprep.subr.bf16.mxu0 0
      %848 = vmatpush1.bf16.msra.mxu0 0
      %849 = vmatprep.subr.bf16.mxu0 0
      %850 = vmatpush1.bf16.msra.mxu0 0
      %851 = vmatprep.mubr.bf16.mxu0 0
      %852 = vmatmul.mubr.bf16.gmra.mrb[0].mxu0 %v808
      %v853 = vpop.f32.mrb[0].mxu0
      %v854 = vadd.f32 0.0, %v853
      %v855 = vpop.f32.mrb[0].mxu0
      %v856 = vpop.f32.mrb[0].mxu0
      %v857 = vadd.f32 0.0, %v856
      %v858 = vpop.f32.mrb[0].mxu0
      %859 = vmatprep.mubr.bf16.mxu0 0
      %860 = vmatmul.mubr.bf16.gmra.mrb[0].mxu0 %v811
      %v861 = vpop.f32.mrb[0].mxu0
      %v862 = vadd.f32 0.0, %v861
      %v863 = vpop.f32.mrb[0].mxu0
      %v864 = vpop.f32.mrb[0].mxu0
      %v865 = vadd.f32 0.0, %v864
      %v866 = vpop.f32.mrb[0].mxu0
      %867 = vmatprep.mubr.bf16.mxu0 0
      %868 = vmatmul.mubr.bf16.gmra.mrb[0].mxu0 %v814
      %v869 = vpop.f32.mrb[0].mxu0
      %v870 = vadd.f32 0.0, %v869
      %v871 = vpop.f32.mrb[0].mxu0
      %v872 = vpop.f32.mrb[0].mxu0
      %v873 = vadd.f32 0.0, %v872
      %v874 = vpop.f32.mrb[0].mxu0
      %875 = vmatprep.mubr.bf16.mxu0 0
      %876 = vmatmul.mubr.bf16.gmra.mrb[0].mxu0 %v817
      %v877 = vpop.f32.mrb[0].mxu0
      %v878 = vadd.f32 0.0, %v877
      %v879 = vpop.f32.mrb[0].mxu0
      %v880 = vpop.f32.mrb[0].mxu0
      %v881 = vadd.f32 0.0, %v880
      %v882 = vpop.f32.mrb[0].mxu0
      %883 = vdwg.mxu0
      %888 = vrot.lane.b32.xlu0 %v600, 120
      %v889 = vpop.permute.xlu0 %888
      %890 = vrot.lane.b32.xlu0 %v601, 120
      %v891 = vpop.permute.xlu0 %890
      %892 = vrot.lane.b32.xlu0 %v602, 120
      %v893 = vpop.permute.xlu0 %892
      %894 = vrot.lane.b32.xlu0 %v603, 120
      %v895 = vpop.permute.xlu0 %894
      %896 = vrot.lane.b32.xlu0 %v604, 88
      %v897 = vpop.permute.xlu0 %896
      %898 = vrot.lane.b32.xlu0 %v605, 88
      %v899 = vpop.permute.xlu0 %898
      %900 = vrot.lane.b32.xlu0 %v606, 88
      %v901 = vpop.permute.xlu0 %900
      %902 = vrot.lane.b32.xlu0 %v607, 88
      %v903 = vpop.permute.xlu0 %902
      %v905 = vsel %vm624, %v889, 0
      %v908 = vsel %vm624, %v891, 0
      %v911 = vsel %vm624, %v893, 0
      %v914 = vsel %vm624, %v895, 0
      %v917 = vsel %vm624, %v897, 0
      %v920 = vsel %vm624, %v899, 0
      %v923 = vsel %vm624, %v901, 0
      %v926 = vsel %vm624, %v903, 0
      %928 = vmatprep.subr.bf16.mxu0 0
      %929 = vmatpush1.bf16.xpose.msra.mxu0 %v917
      %930 = vmatprep.subr.bf16.mxu0 0
      %931 = vmatpush1.bf16.xpose.msra.mxu0 %v920
      %932 = vmatprep.subr.bf16.mxu0 0
      %933 = vmatpush1.bf16.xpose.msra.mxu0 %v923
      %934 = vmatprep.subr.bf16.mxu0 0
      %935 = vmatpush1.bf16.xpose.msra.mxu0 %v926
      %936 = vmatprep.subr.bf16.mxu0 0
      %937 = vmatpush1.bf16.xpose.msra.mxu0 0
      %938 = vmatprep.subr.bf16.mxu0 0
      %939 = vmatpush1.bf16.xpose.msra.mxu0 0
      %940 = vmatprep.subr.bf16.mxu0 0
      %941 = vmatpush1.bf16.xpose.msra.mxu0 0
      %942 = vmatprep.subr.bf16.mxu0 0
      %943 = vmatpush1.bf16.xpose.msra.mxu0 0
      %944 = vmatprep.subr.bf16.mxu0 0
      %945 = vmatpush1.bf16.xpose.msra.mxu0 0
      %946 = vmatprep.subr.bf16.mxu0 0
      %947 = vmatpush1.bf16.xpose.msra.mxu0 0
      %948 = vmatprep.subr.bf16.mxu0 0
      %949 = vmatpush1.bf16.xpose.msra.mxu0 0
      %950 = vmatprep.subr.bf16.mxu0 0
      %951 = vmatpush1.bf16.xpose.msra.mxu0 0
      %952 = vmatprep.subr.bf16.mxu0 0
      %953 = vmatpush1.bf16.xpose.msra.mxu0 0
      %954 = vmatprep.subr.bf16.mxu0 0
      %955 = vmatpush1.bf16.xpose.msra.mxu0 0
      %956 = vmatprep.subr.bf16.mxu0 0
      %957 = vmatpush1.bf16.xpose.msra.mxu0 0
      %958 = vmatprep.subr.bf16.mxu0 0
      %959 = vmatpush1.bf16.xpose.msra.mxu0 0
      %960 = vmatprep.mubr.bf16.mxu0 0
      %961 = vmatmul.mubr.bf16.gmra.mrb[0].mxu0 %v905
      %v962 = vpop.f32.mrb[0].mxu0
      %v963 = vadd.f32 0.0, %v962
      %v964 = vpop.f32.mrb[0].mxu0
      %v965 = vpop.f32.mrb[0].mxu0
      %v966 = vadd.f32 0.0, %v965
      %v967 = vpop.f32.mrb[0].mxu0
      %968 = vmatprep.mubr.bf16.mxu0 0
      %969 = vmatmul.mubr.bf16.gmra.mrb[0].mxu0 %v908
      %v970 = vpop.f32.mrb[0].mxu0
      %v971 = vadd.f32 0.0, %v970
      %v972 = vpop.f32.mrb[0].mxu0
      %v973 = vpop.f32.mrb[0].mxu0
      %v974 = vadd.f32 0.0, %v973
      %v975 = vpop.f32.mrb[0].mxu0
      %976 = vmatprep.mubr.bf16.mxu0 0
      %977 = vmatmul.mubr.bf16.gmra.mrb[0].mxu0 %v911
      %v978 = vpop.f32.mrb[0].mxu0
      %v979 = vadd.f32 0.0, %v978
      %v980 = vpop.f32.mrb[0].mxu0
      %v981 = vpop.f32.mrb[0].mxu0
      %v982 = vadd.f32 0.0, %v981
      %v983 = vpop.f32.mrb[0].mxu0
      %984 = vmatprep.mubr.bf16.mxu0 0
      %985 = vmatmul.mubr.bf16.gmra.mrb[0].mxu0 %v914
      %v986 = vpop.f32.mrb[0].mxu0
      %v987 = vadd.f32 0.0, %v986
      %v988 = vpop.f32.mrb[0].mxu0
      %v989 = vpop.f32.mrb[0].mxu0
      %v990 = vadd.f32 0.0, %v989
      %v991 = vpop.f32.mrb[0].mxu0
      %992 = vdwg.mxu0
      %v993 = vsel %vm714, %v963, -inf
      %994 = vmax.xlane.f32.xlu0 %v993
      %v995 = vpop.xlane.xlu0 %994
      %v996 = vsel %vm714, %v966, -inf
      %997 = vmax.xlane.f32.xlu0 %v996
      %v998 = vpop.xlane.xlu0 %997
      %v999 = vsel %vm714, %v971, -inf
      %1000 = vmax.xlane.f32.xlu0 %v999
      %v1001 = vpop.xlane.xlu0 %1000
      %v1002 = vsel %vm714, %v974, -inf
      %1003 = vmax.xlane.f32.xlu0 %v1002
      %v1004 = vpop.xlane.xlu0 %1003
      %v1005 = vsel %vm714, %v979, -inf
      %1006 = vmax.xlane.f32.xlu0 %v1005
      %v1007 = vpop.xlane.xlu0 %1006
      %v1008 = vsel %vm714, %v982, -inf
      %1009 = vmax.xlane.f32.xlu0 %v1008
      %v1010 = vpop.xlane.xlu0 %1009
      %v1011 = vsel %vm714, %v987, -inf
      %1012 = vmax.xlane.f32.xlu0 %v1011
      %v1013 = vpop.xlane.xlu0 %1012
      %v1014 = vsel %vm714, %v990, -inf
      %1015 = vmax.xlane.f32.xlu0 %v1014
      %v1016 = vpop.xlane.xlu0 %1015
      %v1017 = vsub.f32 %v963, %v995
      %v1018 = vsub.f32 %v966, %v998
      %v1019 = vsub.f32 %v971, %v1001
      %v1020 = vsub.f32 %v974, %v1004
      %v1021 = vsub.f32 %v979, %v1007
      %v1022 = vsub.f32 %v982, %v1010
      %v1023 = vsub.f32 %v987, %v1013
      %v1024 = vsub.f32 %v990, %v1016
      %v1025 = vmul.f32 %v1017, 1.442695
      %v1026 = vpow.pop %v1025
      %v1027 = vmul.f32 %v1018, 1.442695
      %v1028 = vpow.pop %v1027
      %v1029 = vmul.f32 %v1019, 1.442695
      %v1030 = vpow.pop %v1029
      %v1031 = vmul.f32 %v1020, 1.442695
      %v1032 = vpow.pop %v1031
      %v1033 = vmul.f32 %v1021, 1.442695
      %v1034 = vpow.pop %v1033
      %v1035 = vmul.f32 %v1022, 1.442695
      %v1036 = vpow.pop %v1035
      %v1037 = vmul.f32 %v1023, 1.442695
      %v1038 = vpow.pop %v1037
      %v1039 = vmul.f32 %v1024, 1.442695
      %v1040 = vpow.pop %v1039
      %v1041 = vsel %vm714, %v1026, 0.0
      %1042 = vadd.xlane.f32.xlu0 %v1041
      %v1043 = vpop.xlane.xlu0 %1042
      %v1044 = vsel %vm714, %v1028, 0.0
      %1045 = vadd.xlane.f32.xlu0 %v1044
      %v1046 = vpop.xlane.xlu0 %1045
      %v1047 = vsel %vm714, %v1030, 0.0
      %1048 = vadd.xlane.f32.xlu0 %v1047
      %v1049 = vpop.xlane.xlu0 %1048
      %v1050 = vsel %vm714, %v1032, 0.0
      %1051 = vadd.xlane.f32.xlu0 %v1050
      %v1052 = vpop.xlane.xlu0 %1051
      %v1053 = vsel %vm714, %v1034, 0.0
      %1054 = vadd.xlane.f32.xlu0 %v1053
      %v1055 = vpop.xlane.xlu0 %1054
      %v1056 = vsel %vm714, %v1036, 0.0
      %1057 = vadd.xlane.f32.xlu0 %v1056
      %v1058 = vpop.xlane.xlu0 %1057
      %v1059 = vsel %vm714, %v1038, 0.0
      %1060 = vadd.xlane.f32.xlu0 %v1059
      %v1061 = vpop.xlane.xlu0 %1060
      %v1062 = vsel %vm714, %v1040, 0.0
      %1063 = vadd.xlane.f32.xlu0 %v1062
      %v1064 = vpop.xlane.xlu0 %1063
      %v1065 = vrcp.pop %v1043
      %v1066 = vrcp.pop %v1046
      %v1067 = vrcp.pop %v1049
      %v1068 = vrcp.pop %v1052
      %v1069 = vrcp.pop %v1055
      %v1070 = vrcp.pop %v1058
      %v1071 = vrcp.pop %v1061
      %v1072 = vrcp.pop %v1064
      %v1073 = vmul.f32 %v1026, %v1065
      %v1074 = vmul.f32 %v1028, %v1066
      %v1075 = vmul.f32 %v1030, %v1067
      %v1076 = vmul.f32 %v1032, %v1068
      %v1077 = vmul.f32 %v1034, %v1069
      %v1078 = vmul.f32 %v1036, %v1070
      %v1079 = vmul.f32 %v1038, %v1071
      %v1080 = vmul.f32 %v1040, %v1072
      %v1081 = vpack.c.bf16 %v1074, %v1073
      %v1082 = vpack.c.bf16 %v1076, %v1075
      %v1083 = vpack.c.bf16 %v1078, %v1077
      %v1084 = vpack.c.bf16 %v1080, %v1079
      %1089 = vrot.lane.b32.xlu0 %v608, 120
      %v1090 = vpop.permute.xlu0 %1089
      %1091 = vrot.lane.b32.xlu0 %v609, 120
      %v1092 = vpop.permute.xlu0 %1091
      %1093 = vrot.lane.b32.xlu0 %v610, 120
      %v1094 = vpop.permute.xlu0 %1093
      %1095 = vrot.lane.b32.xlu0 %v611, 120
      %v1096 = vpop.permute.xlu0 %1095
      %v1102 = vsel %vm714, %v1081, 0
      %v1105 = vsel %vm714, %v1082, 0
      %v1108 = vsel %vm714, %v1083, 0
      %v1111 = vsel %vm714, %v1084, 0
      %1113 = vmatprep.subr.bf16.mxu0 0
      %1114 = vmatpush1.bf16.msra.mxu0 %v1090
      %1115 = vmatprep.subr.bf16.mxu0 0
      %1116 = vmatpush1.bf16.msra.mxu0 %v1092
      %1117 = vmatprep.subr.bf16.mxu0 0
      %1118 = vmatpush1.bf16.msra.mxu0 %v1094
      %1119 = vmatprep.subr.bf16.mxu0 0
      %1120 = vmatpush1.bf16.msra.mxu0 %v1096
      %1121 = vmatprep.subr.bf16.mxu0 0
      %1122 = vmatpush1.bf16.msra.mxu0 0
      %1123 = vmatprep.subr.bf16.mxu0 0
      %1124 = vmatpush1.bf16.msra.mxu0 0
      %1125 = vmatprep.subr.bf16.mxu0 0
      %1126 = vmatpush1.bf16.msra.mxu0 0
      %1127 = vmatprep.subr.bf16.mxu0 0
      %1128 = vmatpush1.bf16.msra.mxu0 0
      %1129 = vmatprep.subr.bf16.mxu0 0
      %1130 = vmatpush1.bf16.msra.mxu0 0
      %1131 = vmatprep.subr.bf16.mxu0 0
      %1132 = vmatpush1.bf16.msra.mxu0 0
      %1133 = vmatprep.subr.bf16.mxu0 0
      %1134 = vmatpush1.bf16.msra.mxu0 0
      %1135 = vmatprep.subr.bf16.mxu0 0
      %1136 = vmatpush1.bf16.msra.mxu0 0
      %1137 = vmatprep.subr.bf16.mxu0 0
      %1138 = vmatpush1.bf16.msra.mxu0 0
      %1139 = vmatprep.subr.bf16.mxu0 0
      %1140 = vmatpush1.bf16.msra.mxu0 0
      %1141 = vmatprep.subr.bf16.mxu0 0
      %1142 = vmatpush1.bf16.msra.mxu0 0
      %1143 = vmatprep.subr.bf16.mxu0 0
      %1144 = vmatpush1.bf16.msra.mxu0 0
      %1145 = vmatprep.mubr.bf16.mxu0 0
      %1146 = vmatmul.mubr.bf16.gmra.mrb[0].mxu0 %v1102
      %v1147 = vpop.f32.mrb[0].mxu0
      %v1148 = vadd.f32 0.0, %v1147
      %v1149 = vpop.f32.mrb[0].mxu0
      %v1150 = vpop.f32.mrb[0].mxu0
      %v1151 = vadd.f32 0.0, %v1150
      %v1152 = vpop.f32.mrb[0].mxu0
      %1153 = vmatprep.mubr.bf16.mxu0 0
      %1154 = vmatmul.mubr.bf16.gmra.mrb[0].mxu0 %v1105
      %v1155 = vpop.f32.mrb[0].mxu0
      %v1156 = vadd.f32 0.0, %v1155
      %v1157 = vpop.f32.mrb[0].mxu0
      %v1158 = vpop.f32.mrb[0].mxu0
      %v1159 = vadd.f32 0.0, %v1158
      %v1160 = vpop.f32.mrb[0].mxu0
      %1161 = vmatprep.mubr.bf16.mxu0 0
      %1162 = vmatmul.mubr.bf16.gmra.mrb[0].mxu0 %v1108
      %v1163 = vpop.f32.mrb[0].mxu0
      %v1164 = vadd.f32 0.0, %v1163
      %v1165 = vpop.f32.mrb[0].mxu0
      %v1166 = vpop.f32.mrb[0].mxu0
      %v1167 = vadd.f32 0.0, %v1166
      %v1168 = vpop.f32.mrb[0].mxu0
      %1169 = vmatprep.mubr.bf16.mxu0 0
      %1170 = vmatmul.mubr.bf16.gmra.mrb[0].mxu0 %v1111
      %v1171 = vpop.f32.mrb[0].mxu0
      %v1172 = vadd.f32 0.0, %v1171
      %v1173 = vpop.f32.mrb[0].mxu0
      %v1174 = vpop.f32.mrb[0].mxu0
      %v1175 = vadd.f32 0.0, %v1174
      %v1176 = vpop.f32.mrb[0].mxu0
      %1177 = vdwg.mxu0
      %1178 = vrot.lane.b32.xlu0 %v600, 112
      %v1179 = vpop.permute.xlu0 %1178
      %1180 = vrot.lane.b32.xlu0 %v601, 112
      %v1181 = vpop.permute.xlu0 %1180
      %1182 = vrot.lane.b32.xlu0 %v602, 112
      %v1183 = vpop.permute.xlu0 %1182
      %1184 = vrot.lane.b32.xlu0 %v603, 112
      %v1185 = vpop.permute.xlu0 %1184
      %1186 = vrot.lane.b32.xlu0 %v604, 80
      %v1187 = vpop.permute.xlu0 %1186
      %1188 = vrot.lane.b32.xlu0 %v605, 80
      %v1189 = vpop.permute.xlu0 %1188
      %1190 = vrot.lane.b32.xlu0 %v606, 80
      %v1191 = vpop.permute.xlu0 %1190
      %1192 = vrot.lane.b32.xlu0 %v607, 80
      %v1193 = vpop.permute.xlu0 %1192
      %v1195 = vsel %vm624, %v1179, 0
      %v1198 = vsel %vm624, %v1181, 0
      %v1201 = vsel %vm624, %v1183, 0
      %v1204 = vsel %vm624, %v1185, 0
      %v1207 = vsel %vm624, %v1187, 0
      %v1210 = vsel %vm624, %v1189, 0
      %v1213 = vsel %vm624, %v1191, 0
      %v1216 = vsel %vm624, %v1193, 0
      %1218 = vmatprep.subr.bf16.mxu0 0
      %1219 = vmatpush1.bf16.xpose.msra.mxu0 %v1207
      %1220 = vmatprep.subr.bf16.mxu0 0
      %1221 = vmatpush1.bf16.xpose.msra.mxu0 %v1210
      %1222 = vmatprep.subr.bf16.mxu0 0
      %1223 = vmatpush1.bf16.xpose.msra.mxu0 %v1213
      %1224 = vmatprep.subr.bf16.mxu0 0
      %1225 = vmatpush1.bf16.xpose.msra.mxu0 %v1216
      %1226 = vmatprep.subr.bf16.mxu0 0
      %1227 = vmatpush1.bf16.xpose.msra.mxu0 0
      %1228 = vmatprep.subr.bf16.mxu0 0
      %1229 = vmatpush1.bf16.xpose.msra.mxu0 0
      %1230 = vmatprep.subr.bf16.mxu0 0
      %1231 = vmatpush1.bf16.xpose.msra.mxu0 0
      %1232 = vmatprep.subr.bf16.mxu0 0
      %1233 = vmatpush1.bf16.xpose.msra.mxu0 0
      %1234 = vmatprep.subr.bf16.mxu0 0
      %1235 = vmatpush1.bf16.xpose.msra.mxu0 0
      %1236 = vmatprep.subr.bf16.mxu0 0
      %1237 = vmatpush1.bf16.xpose.msra.mxu0 0
      %1238 = vmatprep.subr.bf16.mxu0 0
      %1239 = vmatpush1.bf16.xpose.msra.mxu0 0
      %1240 = vmatprep.subr.bf16.mxu0 0
      %1241 = vmatpush1.bf16.xpose.msra.mxu0 0
      %1242 = vmatprep.subr.bf16.mxu0 0
      %1243 = vmatpush1.bf16.xpose.msra.mxu0 0
      %1244 = vmatprep.subr.bf16.mxu0 0
      %1245 = vmatpush1.bf16.xpose.msra.mxu0 0
      %1246 = vmatprep.subr.bf16.mxu0 0
      %1247 = vmatpush1.bf16.xpose.msra.mxu0 0
      %1248 = vmatprep.subr.bf16.mxu0 0
      %1249 = vmatpush1.bf16.xpose.msra.mxu0 0
      %1250 = vmatprep.mubr.bf16.mxu0 0
      %1251 = vmatmul.mubr.bf16.gmra.mrb[0].mxu0 %v1195
      %v1252 = vpop.f32.mrb[0].mxu0
      %v1253 = vadd.f32 0.0, %v1252
      %v1254 = vpop.f32.mrb[0].mxu0
      %v1255 = vpop.f32.mrb[0].mxu0
      %v1256 = vadd.f32 0.0, %v1255
      %v1257 = vpop.f32.mrb[0].mxu0
      %1258 = vmatprep.mubr.bf16.mxu0 0
      %1259 = vmatmul.mubr.bf16.gmra.mrb[0].mxu0 %v1198
      %v1260 = vpop.f32.mrb[0].mxu0
      %v1261 = vadd.f32 0.0, %v1260
      %v1262 = vpop.f32.mrb[0].mxu0
      %v1263 = vpop.f32.mrb[0].mxu0
      %v1264 = vadd.f32 0.0, %v1263
      %v1265 = vpop.f32.mrb[0].mxu0
      %1266 = vmatprep.mubr.bf16.mxu0 0
      %1267 = vmatmul.mubr.bf16.gmra.mrb[0].mxu0 %v1201
      %v1268 = vpop.f32.mrb[0].mxu0
      %v1269 = vadd.f32 0.0, %v1268
      %v1270 = vpop.f32.mrb[0].mxu0
      %v1271 = vpop.f32.mrb[0].mxu0
      %v1272 = vadd.f32 0.0, %v1271
      %v1273 = vpop.f32.mrb[0].mxu0
      %1274 = vmatprep.mubr.bf16.mxu0 0
      %1275 = vmatmul.mubr.bf16.gmra.mrb[0].mxu0 %v1204
      %v1276 = vpop.f32.mrb[0].mxu0
      %v1277 = vadd.f32 0.0, %v1276
      %v1278 = vpop.f32.mrb[0].mxu0
      %v1279 = vpop.f32.mrb[0].mxu0
      %v1280 = vadd.f32 0.0, %v1279
      %v1281 = vpop.f32.mrb[0].mxu0
      %1282 = vdwg.mxu0
      %v1283 = vsel %vm714, %v1253, -inf
      %1284 = vmax.xlane.f32.xlu0 %v1283
      %v1285 = vpop.xlane.xlu0 %1284
      %v1286 = vsel %vm714, %v1256, -inf
      %1287 = vmax.xlane.f32.xlu0 %v1286
      %v1288 = vpop.xlane.xlu0 %1287
      %v1289 = vsel %vm714, %v1261, -inf
      %1290 = vmax.xlane.f32.xlu0 %v1289
      %v1291 = vpop.xlane.xlu0 %1290
      %v1292 = vsel %vm714, %v1264, -inf
      %1293 = vmax.xlane.f32.xlu0 %v1292
      %v1294 = vpop.xlane.xlu0 %1293
      %v1295 = vsel %vm714, %v1269, -inf
      %1296 = vmax.xlane.f32.xlu0 %v1295
      %v1297 = vpop.xlane.xlu0 %1296
      %v1298 = vsel %vm714, %v1272, -inf
      %1299 = vmax.xlane.f32.xlu0 %v1298
      %v1300 = vpop.xlane.xlu0 %1299
      %v1301 = vsel %vm714, %v1277, -inf
      %1302 = vmax.xlane.f32.xlu0 %v1301
      %v1303 = vpop.xlane.xlu0 %1302
      %v1304 = vsel %vm714, %v1280, -inf
      %1305 = vmax.xlane.f32.xlu0 %v1304
      %v1306 = vpop.xlane.xlu0 %1305
      %v1307 = vsub.f32 %v1253, %v1285
      %v1308 = vsub.f32 %v1256, %v1288
      %v1309 = vsub.f32 %v1261, %v1291
      %v1310 = vsub.f32 %v1264, %v1294
      %v1311 = vsub.f32 %v1269, %v1297
      %v1312 = vsub.f32 %v1272, %v1300
      %v1313 = vsub.f32 %v1277, %v1303
      %v1314 = vsub.f32 %v1280, %v1306
      %v1315 = vmul.f32 %v1307, 1.442695
      %v1316 = vpow.pop %v1315
      %v1317 = vmul.f32 %v1308, 1.442695
      %v1318 = vpow.pop %v1317
      %v1319 = vmul.f32 %v1309, 1.442695
      %v1320 = vpow.pop %v1319
      %v1321 = vmul.f32 %v1310, 1.442695
      %v1322 = vpow.pop %v1321
      %v1323 = vmul.f32 %v1311, 1.442695
      %v1324 = vpow.pop %v1323
      %v1325 = vmul.f32 %v1312, 1.442695
      %v1326 = vpow.pop %v1325
      %v1327 = vmul.f32 %v1313, 1.442695
      %v1328 = vpow.pop %v1327
      %v1329 = vmul.f32 %v1314, 1.442695
      %v1330 = vpow.pop %v1329
      %v1331 = vsel %vm714, %v1316, 0.0
      %1332 = vadd.xlane.f32.xlu0 %v1331
      %v1333 = vpop.xlane.xlu0 %1332
      %v1334 = vsel %vm714, %v1318, 0.0
      %1335 = vadd.xlane.f32.xlu0 %v1334
      %v1336 = vpop.xlane.xlu0 %1335
      %v1337 = vsel %vm714, %v1320, 0.0
      %1338 = vadd.xlane.f32.xlu0 %v1337
      %v1339 = vpop.xlane.xlu0 %1338
      %v1340 = vsel %vm714, %v1322, 0.0
      %1341 = vadd.xlane.f32.xlu0 %v1340
      %v1342 = vpop.xlane.xlu0 %1341
      %v1343 = vsel %vm714, %v1324, 0.0
      %1344 = vadd.xlane.f32.xlu0 %v1343
      %v1345 = vpop.xlane.xlu0 %1344
      %v1346 = vsel %vm714, %v1326, 0.0
      %1347 = vadd.xlane.f32.xlu0 %v1346
      %v1348 = vpop.xlane.xlu0 %1347
      %v1349 = vsel %vm714, %v1328, 0.0
      %1350 = vadd.xlane.f32.xlu0 %v1349
      %v1351 = vpop.xlane.xlu0 %1350
      %v1352 = vsel %vm714, %v1330, 0.0
      %1353 = vadd.xlane.f32.xlu0 %v1352
      %v1354 = vpop.xlane.xlu0 %1353
      %v1355 = vrcp.pop %v1333
      %v1356 = vrcp.pop %v1336
      %v1357 = vrcp.pop %v1339
      %v1358 = vrcp.pop %v1342
      %v1359 = vrcp.pop %v1345
      %v1360 = vrcp.pop %v1348
      %v1361 = vrcp.pop %v1351
      %v1362 = vrcp.pop %v1354
      %v1363 = vmul.f32 %v1316, %v1355
      %v1364 = vmul.f32 %v1318, %v1356
      %v1365 = vmul.f32 %v1320, %v1357
      %v1366 = vmul.f32 %v1322, %v1358
      %v1367 = vmul.f32 %v1324, %v1359
      %v1368 = vmul.f32 %v1326, %v1360
      %v1369 = vmul.f32 %v1328, %v1361
      %v1370 = vmul.f32 %v1330, %v1362
      %v1371 = vpack.c.bf16 %v1364, %v1363
      %v1372 = vpack.c.bf16 %v1366, %v1365
      %v1373 = vpack.c.bf16 %v1368, %v1367
      %v1374 = vpack.c.bf16 %v1370, %v1369
      %1375 = vrot.lane.b32.xlu0 %v608, 112
      %v1376 = vpop.permute.xlu0 %1375
      %1377 = vrot.lane.b32.xlu0 %v609, 112
      %v1378 = vpop.permute.xlu0 %1377
      %1379 = vrot.lane.b32.xlu0 %v610, 112
      %v1380 = vpop.permute.xlu0 %1379
      %1381 = vrot.lane.b32.xlu0 %v611, 112
      %v1382 = vpop.permute.xlu0 %1381
      %v1388 = vsel %vm714, %v1371, 0
      %v1391 = vsel %vm714, %v1372, 0
      %v1394 = vsel %vm714, %v1373, 0
      %v1397 = vsel %vm714, %v1374, 0
      %1399 = vmatprep.subr.bf16.mxu0 0
      %1400 = vmatpush1.bf16.msra.mxu0 %v1376
      %1401 = vmatprep.subr.bf16.mxu0 0
      %1402 = vmatpush1.bf16.msra.mxu0 %v1378
      %1403 = vmatprep.subr.bf16.mxu0 0
      %1404 = vmatpush1.bf16.msra.mxu0 %v1380
      %1405 = vmatprep.subr.bf16.mxu0 0
      %1406 = vmatpush1.bf16.msra.mxu0 %v1382
      %1407 = vmatprep.subr.bf16.mxu0 0
      %1408 = vmatpush1.bf16.msra.mxu0 0
      %1409 = vmatprep.subr.bf16.mxu0 0
      %1410 = vmatpush1.bf16.msra.mxu0 0
      %1411 = vmatprep.subr.bf16.mxu0 0
      %1412 = vmatpush1.bf16.msra.mxu0 0
      %1413 = vmatprep.subr.bf16.mxu0 0
      %1414 = vmatpush1.bf16.msra.mxu0 0
      %1415 = vmatprep.subr.bf16.mxu0 0
      %1416 = vmatpush1.bf16.msra.mxu0 0
      %1417 = vmatprep.subr.bf16.mxu0 0
      %1418 = vmatpush1.bf16.msra.mxu0 0
      %1419 = vmatprep.subr.bf16.mxu0 0
      %1420 = vmatpush1.bf16.msra.mxu0 0
      %1421 = vmatprep.subr.bf16.mxu0 0
      %1422 = vmatpush1.bf16.msra.mxu0 0
      %1423 = vmatprep.subr.bf16.mxu0 0
      %1424 = vmatpush1.bf16.msra.mxu0 0
      %1425 = vmatprep.subr.bf16.mxu0 0
      %1426 = vmatpush1.bf16.msra.mxu0 0
      %1427 = vmatprep.subr.bf16.mxu0 0
      %1428 = vmatpush1.bf16.msra.mxu0 0
      %1429 = vmatprep.subr.bf16.mxu0 0
      %1430 = vmatpush1.bf16.msra.mxu0 0
      %1431 = vmatprep.mubr.bf16.mxu0 0
      %1432 = vmatmul.mubr.bf16.gmra.mrb[0].mxu0 %v1388
      %v1433 = vpop.f32.mrb[0].mxu0
      %v1434 = vadd.f32 0.0, %v1433
      %v1435 = vpop.f32.mrb[0].mxu0
      %v1436 = vpop.f32.mrb[0].mxu0
      %v1437 = vadd.f32 0.0, %v1436
      %v1438 = vpop.f32.mrb[0].mxu0
      %1439 = vmatprep.mubr.bf16.mxu0 0
      %1440 = vmatmul.mubr.bf16.gmra.mrb[0].mxu0 %v1391
      %v1441 = vpop.f32.mrb[0].mxu0
      %v1442 = vadd.f32 0.0, %v1441
      %v1443 = vpop.f32.mrb[0].mxu0
      %v1444 = vpop.f32.mrb[0].mxu0
      %v1445 = vadd.f32 0.0, %v1444
      %v1446 = vpop.f32.mrb[0].mxu0
      %1447 = vmatprep.mubr.bf16.mxu0 0
      %1448 = vmatmul.mubr.bf16.gmra.mrb[0].mxu0 %v1394
      %v1449 = vpop.f32.mrb[0].mxu0
      %v1450 = vadd.f32 0.0, %v1449
      %v1451 = vpop.f32.mrb[0].mxu0
      %v1452 = vpop.f32.mrb[0].mxu0
      %v1453 = vadd.f32 0.0, %v1452
      %v1454 = vpop.f32.mrb[0].mxu0
      %1455 = vmatprep.mubr.bf16.mxu0 0
      %1456 = vmatmul.mubr.bf16.gmra.mrb[0].mxu0 %v1397
      %v1457 = vpop.f32.mrb[0].mxu0
      %v1458 = vadd.f32 0.0, %v1457
      %v1459 = vpop.f32.mrb[0].mxu0
      %v1460 = vpop.f32.mrb[0].mxu0
      %v1461 = vadd.f32 0.0, %v1460
      %v1462 = vpop.f32.mrb[0].mxu0
      %1463 = vdwg.mxu0
      %1464 = vrot.lane.b32.xlu0 %v600, 104
      %v1465 = vpop.permute.xlu0 %1464
      %1466 = vrot.lane.b32.xlu0 %v601, 104
      %v1467 = vpop.permute.xlu0 %1466
      %1468 = vrot.lane.b32.xlu0 %v602, 104
      %v1469 = vpop.permute.xlu0 %1468
      %1470 = vrot.lane.b32.xlu0 %v603, 104
      %v1471 = vpop.permute.xlu0 %1470
      %1472 = vrot.lane.b32.xlu0 %v604, 72
      %v1473 = vpop.permute.xlu0 %1472
      %1474 = vrot.lane.b32.xlu0 %v605, 72
      %v1475 = vpop.permute.xlu0 %1474
      %1476 = vrot.lane.b32.xlu0 %v606, 72
      %v1477 = vpop.permute.xlu0 %1476
      %1478 = vrot.lane.b32.xlu0 %v607, 72
      %v1479 = vpop.permute.xlu0 %1478
      %v1481 = vsel %vm624, %v1465, 0
      %v1484 = vsel %vm624, %v1467, 0
      %v1487 = vsel %vm624, %v1469, 0
      %v1490 = vsel %vm624, %v1471, 0
      %v1493 = vsel %vm624, %v1473, 0
      %v1496 = vsel %vm624, %v1475, 0
      %v1499 = vsel %vm624, %v1477, 0
      %v1502 = vsel %vm624, %v1479, 0
      %1504 = vmatprep.subr.bf16.mxu0 0
      %1505 = vmatpush1.bf16.xpose.msra.mxu0 %v1493
      %1506 = vmatprep.subr.bf16.mxu0 0
      %1507 = vmatpush1.bf16.xpose.msra.mxu0 %v1496
      %1508 = vmatprep.subr.bf16.mxu0 0
      %1509 = vmatpush1.bf16.xpose.msra.mxu0 %v1499
      %1510 = vmatprep.subr.bf16.mxu0 0
      %1511 = vmatpush1.bf16.xpose.msra.mxu0 %v1502
      %1512 = vmatprep.subr.bf16.mxu0 0
      %1513 = vmatpush1.bf16.xpose.msra.mxu0 0
      %1514 = vmatprep.subr.bf16.mxu0 0
      %1515 = vmatpush1.bf16.xpose.msra.mxu0 0
      %1516 = vmatprep.subr.bf16.mxu0 0
      %1517 = vmatpush1.bf16.xpose.msra.mxu0 0
      %1518 = vmatprep.subr.bf16.mxu0 0
      %1519 = vmatpush1.bf16.xpose.msra.mxu0 0
      %1520 = vmatprep.subr.bf16.mxu0 0
      %1521 = vmatpush1.bf16.xpose.msra.mxu0 0
      %1522 = vmatprep.subr.bf16.mxu0 0
      %1523 = vmatpush1.bf16.xpose.msra.mxu0 0
      %1524 = vmatprep.subr.bf16.mxu0 0
      %1525 = vmatpush1.bf16.xpose.msra.mxu0 0
      %1526 = vmatprep.subr.bf16.mxu0 0
      %1527 = vmatpush1.bf16.xpose.msra.mxu0 0
      %1528 = vmatprep.subr.bf16.mxu0 0
      %1529 = vmatpush1.bf16.xpose.msra.mxu0 0
      %1530 = vmatprep.subr.bf16.mxu0 0
      %1531 = vmatpush1.bf16.xpose.msra.mxu0 0
      %1532 = vmatprep.subr.bf16.mxu0 0
      %1533 = vmatpush1.bf16.xpose.msra.mxu0 0
      %1534 = vmatprep.subr.bf16.mxu0 0
      %1535 = vmatpush1.bf16.xpose.msra.mxu0 0
      %1536 = vmatprep.mubr.bf16.mxu0 0
      %1537 = vmatmul.mubr.bf16.gmra.mrb[0].mxu0 %v1481
      %v1538 = vpop.f32.mrb[0].mxu0
      %v1539 = vadd.f32 0.0, %v1538
      %v1540 = vpop.f32.mrb[0].mxu0
      %v1541 = vpop.f32.mrb[0].mxu0
      %v1542 = vadd.f32 0.0, %v1541
      %v1543 = vpop.f32.mrb[0].mxu0
      %1544 = vmatprep.mubr.bf16.mxu0 0
      %1545 = vmatmul.mubr.bf16.gmra.mrb[0].mxu0 %v1484
      %v1546 = vpop.f32.mrb[0].mxu0
      %v1547 = vadd.f32 0.0, %v1546
      %v1548 = vpop.f32.mrb[0].mxu0
      %v1549 = vpop.f32.mrb[0].mxu0
      %v1550 = vadd.f32 0.0, %v1549
      %v1551 = vpop.f32.mrb[0].mxu0
      %1552 = vmatprep.mubr.bf16.mxu0 0
      %1553 = vmatmul.mubr.bf16.gmra.mrb[0].mxu0 %v1487
      %v1554 = vpop.f32.mrb[0].mxu0
      %v1555 = vadd.f32 0.0, %v1554
      %v1556 = vpop.f32.mrb[0].mxu0
      %v1557 = vpop.f32.mrb[0].mxu0
      %v1558 = vadd.f32 0.0, %v1557
      %v1559 = vpop.f32.mrb[0].mxu0
      %1560 = vmatprep.mubr.bf16.mxu0 0
      %1561 = vmatmul.mubr.bf16.gmra.mrb[0].mxu0 %v1490
      %v1562 = vpop.f32.mrb[0].mxu0
      %v1563 = vadd.f32 0.0, %v1562
      %v1564 = vpop.f32.mrb[0].mxu0
      %v1565 = vpop.f32.mrb[0].mxu0
      %v1566 = vadd.f32 0.0, %v1565
      %v1567 = vpop.f32.mrb[0].mxu0
      %1568 = vdwg.mxu0
      %v1569 = vsel %vm714, %v1539, -inf
      %1570 = vmax.xlane.f32.xlu0 %v1569
      %v1571 = vpop.xlane.xlu0 %1570
      %v1572 = vsel %vm714, %v1542, -inf
      %1573 = vmax.xlane.f32.xlu0 %v1572
      %v1574 = vpop.xlane.xlu0 %1573
      %v1575 = vsel %vm714, %v1547, -inf
      %1576 = vmax.xlane.f32.xlu0 %v1575
      %v1577 = vpop.xlane.xlu0 %1576
      %v1578 = vsel %vm714, %v1550, -inf
      %1579 = vmax.xlane.f32.xlu0 %v1578
      %v1580 = vpop.xlane.xlu0 %1579
      %v1581 = vsel %vm714, %v1555, -inf
      %1582 = vmax.xlane.f32.xlu0 %v1581
      %v1583 = vpop.xlane.xlu0 %1582
      %v1584 = vsel %vm714, %v1558, -inf
      %1585 = vmax.xlane.f32.xlu0 %v1584
      %v1586 = vpop.xlane.xlu0 %1585
      %v1587 = vsel %vm714, %v1563, -inf
      %1588 = vmax.xlane.f32.xlu0 %v1587
      %v1589 = vpop.xlane.xlu0 %1588
      %v1590 = vsel %vm714, %v1566, -inf
      %1591 = vmax.xlane.f32.xlu0 %v1590
      %v1592 = vpop.xlane.xlu0 %1591
      %v1593 = vsub.f32 %v1539, %v1571
      %v1594 = vsub.f32 %v1542, %v1574
      %v1595 = vsub.f32 %v1547, %v1577
      %v1596 = vsub.f32 %v1550, %v1580
      %v1597 = vsub.f32 %v1555, %v1583
      %v1598 = vsub.f32 %v1558, %v1586
      %v1599 = vsub.f32 %v1563, %v1589
      %v1600 = vsub.f32 %v1566, %v1592
      %v1601 = vmul.f32 %v1593, 1.442695
      %v1602 = vpow.pop %v1601
      %v1603 = vmul.f32 %v1594, 1.442695
      %v1604 = vpow.pop %v1603
      %v1605 = vmul.f32 %v1595, 1.442695
      %v1606 = vpow.pop %v1605
      %v1607 = vmul.f32 %v1596, 1.442695
      %v1608 = vpow.pop %v1607
      %v1609 = vmul.f32 %v1597, 1.442695
      %v1610 = vpow.pop %v1609
      %v1611 = vmul.f32 %v1598, 1.442695
      %v1612 = vpow.pop %v1611
      %v1613 = vmul.f32 %v1599, 1.442695
      %v1614 = vpow.pop %v1613
      %v1615 = vmul.f32 %v1600, 1.442695
      %v1616 = vpow.pop %v1615
      %v1617 = vsel %vm714, %v1602, 0.0
      %1618 = vadd.xlane.f32.xlu0 %v1617
      %v1619 = vpop.xlane.xlu0 %1618
      %v1620 = vsel %vm714, %v1604, 0.0
      %1621 = vadd.xlane.f32.xlu0 %v1620
      %v1622 = vpop.xlane.xlu0 %1621
      %v1623 = vsel %vm714, %v1606, 0.0
      %1624 = vadd.xlane.f32.xlu0 %v1623
      %v1625 = vpop.xlane.xlu0 %1624
      %v1626 = vsel %vm714, %v1608, 0.0
      %1627 = vadd.xlane.f32.xlu0 %v1626
      %v1628 = vpop.xlane.xlu0 %1627
      %v1629 = vsel %vm714, %v1610, 0.0
      %1630 = vadd.xlane.f32.xlu0 %v1629
      %v1631 = vpop.xlane.xlu0 %1630
      %v1632 = vsel %vm714, %v1612, 0.0
      %1633 = vadd.xlane.f32.xlu0 %v1632
      %v1634 = vpop.xlane.xlu0 %1633
      %v1635 = vsel %vm714, %v1614, 0.0
      %1636 = vadd.xlane.f32.xlu0 %v1635
      %v1637 = vpop.xlane.xlu0 %1636
      %v1638 = vsel %vm714, %v1616, 0.0
      %1639 = vadd.xlane.f32.xlu0 %v1638
      %v1640 = vpop.xlane.xlu0 %1639
      %v1641 = vrcp.pop %v1619
      %v1642 = vrcp.pop %v1622
      %v1643 = vrcp.pop %v1625
      %v1644 = vrcp.pop %v1628
      %v1645 = vrcp.pop %v1631
      %v1646 = vrcp.pop %v1634
      %v1647 = vrcp.pop %v1637
      %v1648 = vrcp.pop %v1640
      %v1649 = vmul.f32 %v1602, %v1641
      %v1650 = vmul.f32 %v1604, %v1642
      %v1651 = vmul.f32 %v1606, %v1643
      %v1652 = vmul.f32 %v1608, %v1644
      %v1653 = vmul.f32 %v1610, %v1645
      %v1654 = vmul.f32 %v1612, %v1646
      %v1655 = vmul.f32 %v1614, %v1647
      %v1656 = vmul.f32 %v1616, %v1648
      %v1657 = vpack.c.bf16 %v1650, %v1649
      %v1658 = vpack.c.bf16 %v1652, %v1651
      %v1659 = vpack.c.bf16 %v1654, %v1653
      %v1660 = vpack.c.bf16 %v1656, %v1655
      %1661 = vrot.lane.b32.xlu0 %v608, 104
      %v1662 = vpop.permute.xlu0 %1661
      %1663 = vrot.lane.b32.xlu0 %v609, 104
      %v1664 = vpop.permute.xlu0 %1663
      %1665 = vrot.lane.b32.xlu0 %v610, 104
      %v1666 = vpop.permute.xlu0 %1665
      %1667 = vrot.lane.b32.xlu0 %v611, 104
      %v1668 = vpop.permute.xlu0 %1667
      %v1674 = vsel %vm714, %v1657, 0
      %v1677 = vsel %vm714, %v1658, 0
      %v1680 = vsel %vm714, %v1659, 0
      %v1683 = vsel %vm714, %v1660, 0
      %1685 = vmatprep.subr.bf16.mxu0 0
      %1686 = vmatpush1.bf16.msra.mxu0 %v1662
      %1687 = vmatprep.subr.bf16.mxu0 0
      %1688 = vmatpush1.bf16.msra.mxu0 %v1664
      %1689 = vmatprep.subr.bf16.mxu0 0
      %1690 = vmatpush1.bf16.msra.mxu0 %v1666
      %1691 = vmatprep.subr.bf16.mxu0 0
      %1692 = vmatpush1.bf16.msra.mxu0 %v1668
      %1693 = vmatprep.subr.bf16.mxu0 0
      %1694 = vmatpush1.bf16.msra.mxu0 0
      %1695 = vmatprep.subr.bf16.mxu0 0
      %1696 = vmatpush1.bf16.msra.mxu0 0
      %1697 = vmatprep.subr.bf16.mxu0 0
      %1698 = vmatpush1.bf16.msra.mxu0 0
      %1699 = vmatprep.subr.bf16.mxu0 0
      %1700 = vmatpush1.bf16.msra.mxu0 0
      %1701 = vmatprep.subr.bf16.mxu0 0
      %1702 = vmatpush1.bf16.msra.mxu0 0
      %1703 = vmatprep.subr.bf16.mxu0 0
      %1704 = vmatpush1.bf16.msra.mxu0 0
      %1705 = vmatprep.subr.bf16.mxu0 0
      %1706 = vmatpush1.bf16.msra.mxu0 0
      %1707 = vmatprep.subr.bf16.mxu0 0
      %1708 = vmatpush1.bf16.msra.mxu0 0
      %1709 = vmatprep.subr.bf16.mxu0 0
      %1710 = vmatpush1.bf16.msra.mxu0 0
      %1711 = vmatprep.subr.bf16.mxu0 0
      %1712 = vmatpush1.bf16.msra.mxu0 0
      %1713 = vmatprep.subr.bf16.mxu0 0
      %1714 = vmatpush1.bf16.msra.mxu0 0
      %1715 = vmatprep.subr.bf16.mxu0 0
      %1716 = vmatpush1.bf16.msra.mxu0 0
      %1717 = vmatprep.mubr.bf16.mxu0 0
      %1718 = vmatmul.mubr.bf16.gmra.mrb[0].mxu0 %v1674
      %v1719 = vpop.f32.mrb[0].mxu0
      %v1720 = vadd.f32 0.0, %v1719
      %v1721 = vpop.f32.mrb[0].mxu0
      %v1722 = vpop.f32.mrb[0].mxu0
      %v1723 = vadd.f32 0.0, %v1722
      %v1724 = vpop.f32.mrb[0].mxu0
      %1725 = vmatprep.mubr.bf16.mxu0 0
      %1726 = vmatmul.mubr.bf16.gmra.mrb[0].mxu0 %v1677
      %v1727 = vpop.f32.mrb[0].mxu0
      %v1728 = vadd.f32 0.0, %v1727
      %v1729 = vpop.f32.mrb[0].mxu0
      %v1730 = vpop.f32.mrb[0].mxu0
      %v1731 = vadd.f32 0.0, %v1730
      %v1732 = vpop.f32.mrb[0].mxu0
      %1733 = vmatprep.mubr.bf16.mxu0 0
      %1734 = vmatmul.mubr.bf16.gmra.mrb[0].mxu0 %v1680
      %v1735 = vpop.f32.mrb[0].mxu0
      %v1736 = vadd.f32 0.0, %v1735
      %v1737 = vpop.f32.mrb[0].mxu0
      %v1738 = vpop.f32.mrb[0].mxu0
      %v1739 = vadd.f32 0.0, %v1738
      %v1740 = vpop.f32.mrb[0].mxu0
      %1741 = vmatprep.mubr.bf16.mxu0 0
      %1742 = vmatmul.mubr.bf16.gmra.mrb[0].mxu0 %v1683
      %v1743 = vpop.f32.mrb[0].mxu0
      %v1744 = vadd.f32 0.0, %v1743
      %v1745 = vpop.f32.mrb[0].mxu0
      %v1746 = vpop.f32.mrb[0].mxu0
      %v1747 = vadd.f32 0.0, %v1746
      %v1748 = vpop.f32.mrb[0].mxu0
      %1749 = vdwg.mxu0
      %1758 = vrot.lane.b32.xlu0 %v1148, 8
      %v1759 = vpop.permute.xlu0 %1758
      %1760 = vrot.lane.b32.xlu0 %v1151, 8
      %v1761 = vpop.permute.xlu0 %1760
      %1762 = vrot.lane.b32.xlu0 %v1156, 8
      %v1763 = vpop.permute.xlu0 %1762
      %1764 = vrot.lane.b32.xlu0 %v1159, 8
      %v1765 = vpop.permute.xlu0 %1764
      %1766 = vrot.lane.b32.xlu0 %v1164, 8
      %v1767 = vpop.permute.xlu0 %1766
      %1768 = vrot.lane.b32.xlu0 %v1167, 8
      %v1769 = vpop.permute.xlu0 %1768
      %1770 = vrot.lane.b32.xlu0 %v1172, 8
      %v1771 = vpop.permute.xlu0 %1770
      %1772 = vrot.lane.b32.xlu0 %v1175, 8
      %v1773 = vpop.permute.xlu0 %1772
      %1790 = vrot.lane.b32.xlu0 %v1434, 16
      %v1791 = vpop.permute.xlu0 %1790
      %1792 = vrot.lane.b32.xlu0 %v1437, 16
      %v1793 = vpop.permute.xlu0 %1792
      %1794 = vrot.lane.b32.xlu0 %v1442, 16
      %v1795 = vpop.permute.xlu0 %1794
      %1796 = vrot.lane.b32.xlu0 %v1445, 16
      %v1797 = vpop.permute.xlu0 %1796
      %1798 = vrot.lane.b32.xlu0 %v1450, 16
      %v1799 = vpop.permute.xlu0 %1798
      %1800 = vrot.lane.b32.xlu0 %v1453, 16
      %v1801 = vpop.permute.xlu0 %1800
      %1802 = vrot.lane.b32.xlu0 %v1458, 16
      %v1803 = vpop.permute.xlu0 %1802
      %1804 = vrot.lane.b32.xlu0 %v1461, 16
      %v1805 = vpop.permute.xlu0 %1804
      %1822 = vrot.lane.b32.xlu0 %v1720, 24
      %v1823 = vpop.permute.xlu0 %1822
      %1824 = vrot.lane.b32.xlu0 %v1723, 24
      %v1825 = vpop.permute.xlu0 %1824
      %1826 = vrot.lane.b32.xlu0 %v1728, 24
      %v1827 = vpop.permute.xlu0 %1826
      %1828 = vrot.lane.b32.xlu0 %v1731, 24
      %v1829 = vpop.permute.xlu0 %1828
      %1830 = vrot.lane.b32.xlu0 %v1736, 24
      %v1831 = vpop.permute.xlu0 %1830
      %1832 = vrot.lane.b32.xlu0 %v1739, 24
      %v1833 = vpop.permute.xlu0 %1832
      %1834 = vrot.lane.b32.xlu0 %v1744, 24
      %v1835 = vpop.permute.xlu0 %1834
      %1836 = vrot.lane.b32.xlu0 %v1747, 24
      %v1837 = vpop.permute.xlu0 %1836
      %v1846 = vsel %vm624, %v854, %v1759
      %v1847 = vsel %vm624, %v857, %v1761
      %v1848 = vsel %vm624, %v862, %v1763
      %v1849 = vsel %vm624, %v865, %v1765
      %v1850 = vsel %vm624, %v870, %v1767
      %v1851 = vsel %vm624, %v873, %v1769
      %v1852 = vsel %vm624, %v878, %v1771
      %v1853 = vsel %vm624, %v881, %v1773
      %v1854 = vsel %vm296, %v1846, %v1791
      %v1855 = vsel %vm296, %v1847, %v1793
      %v1856 = vsel %vm296, %v1848, %v1795
      %v1857 = vsel %vm296, %v1849, %v1797
      %v1858 = vsel %vm296, %v1850, %v1799
      %v1859 = vsel %vm296, %v1851, %v1801
      %v1860 = vsel %vm296, %v1852, %v1803
      %v1861 = vsel %vm296, %v1853, %v1805
      %vm1862 = vcmask 195584
      %v1863 = vsel %vm1862, %v1854, %v1823
      %v1864 = vsel %vm1862, %v1855, %v1825
      %v1865 = vsel %vm1862, %v1856, %v1827
      %v1866 = vsel %vm1862, %v1857, %v1829
      %v1867 = vsel %vm1862, %v1858, %v1831
      %v1868 = vsel %vm1862, %v1859, %v1833
      %v1869 = vsel %vm1862, %v1860, %v1835
      %v1870 = vsel %vm1862, %v1861, %v1837
      %v1871 = vpack.c.bf16 %v1864, %v1863
      %v1872 = vpack.c.bf16 %v1866, %v1865
      %v1873 = vpack.c.bf16 %v1868, %v1867
      %v1874 = vpack.c.bf16 %v1870, %v1869
      %v1875 = vlaneseq
      %v1876 = vshrl.u32 %v1875, 7
      %v1877 = vsub.s32 0, %v1876
      %v1878 = vrot.slane %v591, %v1877
      %v1883 = vunpack.c.l.b16 %v587
      %v1884 = vunpack.c.l.b16 %v588
      %v1885 = vunpack.c.l.b16 %v589
      %v1886 = vunpack.c.l.b16 %v590
      %v1887 = vpack.c.b16 %v1884, %v1883
      %v1888 = vpack.c.b16 %v1886, %v1885
      %v1892 = vsel %vm407, %v1871, 0
      %v1895 = vsel %vm407, %v1872, 0
      %v1898 = vsel %vm407, %v1873, 0
      %v1901 = vsel %vm407, %v1874, 0
      %1903 = vmatprep.subr.bf16.mxu0 0
      %1904 = vmatpush1.bf16.msra.mxu0 %v1887
      %1905 = vmatprep.subr.bf16.mxu0 0
      %1906 = vmatpush1.bf16.msra.mxu0 %v1888
      %1907 = vmatprep.subr.bf16.mxu0 0
      %1908 = vmatpush1.bf16.msra.mxu0 0
      %1909 = vmatprep.subr.bf16.mxu0 0
      %1910 = vmatpush1.bf16.msra.mxu0 0
      %1911 = vmatprep.subr.bf16.mxu0 0
      %1912 = vmatpush1.bf16.msra.mxu0 0
      %1913 = vmatprep.subr.bf16.mxu0 0
      %1914 = vmatpush1.bf16.msra.mxu0 0
      %1915 = vmatprep.subr.bf16.mxu0 0
      %1916 = vmatpush1.bf16.msra.mxu0 0
      %1917 = vmatprep.subr.bf16.mxu0 0
      %1918 = vmatpush1.bf16.msra.mxu0 0
      %1919 = vmatprep.subr.bf16.mxu0 0
      %1920 = vmatpush1.bf16.msra.mxu0 0
      %1921 = vmatprep.subr.bf16.mxu0 0
      %1922 = vmatpush1.bf16.msra.mxu0 0
      %1923 = vmatprep.subr.bf16.mxu0 0
      %1924 = vmatpush1.bf16.msra.mxu0 0
      %1925 = vmatprep.subr.bf16.mxu0 0
      %1926 = vmatpush1.bf16.msra.mxu0 0
      %1927 = vmatprep.subr.bf16.mxu0 0
      %1928 = vmatpush1.bf16.msra.mxu0 0
      %1929 = vmatprep.subr.bf16.mxu0 0
      %1930 = vmatpush1.bf16.msra.mxu0 0
      %1931 = vmatprep.subr.bf16.mxu0 0
      %1932 = vmatpush1.bf16.msra.mxu0 0
      %1933 = vmatprep.subr.bf16.mxu0 0
      %1934 = vmatpush1.bf16.msra.mxu0 0
      %1935 = vmatprep.mubr.bf16.mxu0 0
      %1936 = vmatmul.mubr.bf16.gmra.mrb[0].mxu0 %v1892
      %v1937 = vpop.f32.mrb[0].mxu0
      %v1938 = vadd.f32 %v1878, %v1937
      %v1939 = vpop.f32.mrb[0].mxu0
      %v1940 = vpop.f32.mrb[0].mxu0
      %v1941 = vadd.f32 %v1878, %v1940
      %v1942 = vpop.f32.mrb[0].mxu0
      %1943 = vmatprep.mubr.bf16.mxu0 0
      %1944 = vmatmul.mubr.bf16.gmra.mrb[0].mxu0 %v1895
      %v1945 = vpop.f32.mrb[0].mxu0
      %v1946 = vadd.f32 %v1878, %v1945
      %v1947 = vpop.f32.mrb[0].mxu0
      %v1948 = vpop.f32.mrb[0].mxu0
      %v1949 = vadd.f32 %v1878, %v1948
      %v1950 = vpop.f32.mrb[0].mxu0
      %1951 = vmatprep.mubr.bf16.mxu0 0
      %1952 = vmatmul.mubr.bf16.gmra.mrb[0].mxu0 %v1898
      %v1953 = vpop.f32.mrb[0].mxu0
      %v1954 = vadd.f32 %v1878, %v1953
      %v1955 = vpop.f32.mrb[0].mxu0
      %v1956 = vpop.f32.mrb[0].mxu0
      %v1957 = vadd.f32 %v1878, %v1956
      %v1958 = vpop.f32.mrb[0].mxu0
      %1959 = vmatprep.mubr.bf16.mxu0 0
      %1960 = vmatmul.mubr.bf16.gmra.mrb[0].mxu0 %v1901
      %v1961 = vpop.f32.mrb[0].mxu0
      %v1962 = vadd.f32 %v1878, %v1961
      %v1963 = vpop.f32.mrb[0].mxu0
      %v1964 = vpop.f32.mrb[0].mxu0
      %v1965 = vadd.f32 %v1878, %v1964
      %v1966 = vpop.f32.mrb[0].mxu0
      %1967 = vdwg.mxu0
      %v1968 = vadd.f32 %v344, %v1938
      %v1969 = vadd.f32 %v347, %v1941
      %v1970 = vadd.f32 %v352, %v1946
      %v1971 = vadd.f32 %v355, %v1949
      %v1972 = vadd.f32 %v360, %v1954
      %v1973 = vadd.f32 %v363, %v1957
      %v1974 = vadd.f32 %v368, %v1962
      %v1975 = vadd.f32 %v371, %v1965
      %v1976 = vld [vmem:[%s4 + $0x6] sm:$0x1]
      %v1977 = vld [vmem:[%s4 + $0x7] sm:$0x1]
      %v1978 = vsel %vm407, %v1968, 0.0
      %1979 = vadd.xlane.f32.xlu0 %v1978
      %v1980 = vpop.xlane.xlu0 %1979
      %v1981 = vsel %vm407, %v1969, 0.0
      %1982 = vadd.xlane.f32.xlu0 %v1981
      %v1983 = vpop.xlane.xlu0 %1982
      %v1984 = vsel %vm407, %v1970, 0.0
      %1985 = vadd.xlane.f32.xlu0 %v1984
      %v1986 = vpop.xlane.xlu0 %1985
      %v1987 = vsel %vm407, %v1971, 0.0
      %1988 = vadd.xlane.f32.xlu0 %v1987
      %v1989 = vpop.xlane.xlu0 %1988
      %v1990 = vsel %vm407, %v1972, 0.0
      %1991 = vadd.xlane.f32.xlu0 %v1990
      %v1992 = vpop.xlane.xlu0 %1991
      %v1993 = vsel %vm407, %v1973, 0.0
      %1994 = vadd.xlane.f32.xlu0 %v1993
      %v1995 = vpop.xlane.xlu0 %1994
      %v1996 = vsel %vm407, %v1974, 0.0
      %1997 = vadd.xlane.f32.xlu0 %v1996
      %v1998 = vpop.xlane.xlu0 %1997
      %v1999 = vsel %vm407, %v1975, 0.0
      %2000 = vadd.xlane.f32.xlu0 %v1999
      %v2001 = vpop.xlane.xlu0 %2000
      %v2002 = vrcp.pop 32.0
      %v2003 = vmul.f32 %v1980, %v2002
      %v2004 = vmul.f32 %v1983, %v2002
      %v2005 = vmul.f32 %v1986, %v2002
      %v2006 = vmul.f32 %v1989, %v2002
      %v2007 = vmul.f32 %v1992, %v2002
      %v2008 = vmul.f32 %v1995, %v2002
      %v2009 = vmul.f32 %v1998, %v2002
      %v2010 = vmul.f32 %v2001, %v2002
      %v2011 = vsub.f32 %v1968, %v2003
      %v2012 = vsub.f32 %v1969, %v2004
      %v2013 = vsub.f32 %v1970, %v2005
      %v2014 = vsub.f32 %v1971, %v2006
      %v2015 = vsub.f32 %v1972, %v2007
      %v2016 = vsub.f32 %v1973, %v2008
      %v2017 = vsub.f32 %v1974, %v2009
      %v2018 = vsub.f32 %v1975, %v2010
      %v2019 = vmul.f32 %v2011, %v2011
      %v2020 = vmul.f32 %v2012, %v2012
      %v2021 = vmul.f32 %v2013, %v2013
      %v2022 = vmul.f32 %v2014, %v2014
      %v2023 = vmul.f32 %v2015, %v2015
      %v2024 = vmul.f32 %v2016, %v2016
      %v2025 = vmul.f32 %v2017, %v2017
      %v2026 = vmul.f32 %v2018, %v2018
      %v2027 = vsel %vm407, %v2019, 0.0
      %2028 = vadd.xlane.f32.xlu0 %v2027
      %v2029 = vpop.xlane.xlu0 %2028
      %v2030 = vsel %vm407, %v2020, 0.0
      %2031 = vadd.xlane.f32.xlu0 %v2030
      %v2032 = vpop.xlane.xlu0 %2031
      %v2033 = vsel %vm407, %v2021, 0.0
      %2034 = vadd.xlane.f32.xlu0 %v2033
      %v2035 = vpop.xlane.xlu0 %2034
      %v2036 = vsel %vm407, %v2022, 0.0
      %2037 = vadd.xlane.f32.xlu0 %v2036
      %v2038 = vpop.xlane.xlu0 %2037
      %v2039 = vsel %vm407, %v2023, 0.0
      %2040 = vadd.xlane.f32.xlu0 %v2039
      %v2041 = vpop.xlane.xlu0 %2040
      %v2042 = vsel %vm407, %v2024, 0.0
      %2043 = vadd.xlane.f32.xlu0 %v2042
      %v2044 = vpop.xlane.xlu0 %2043
      %v2045 = vsel %vm407, %v2025, 0.0
      %2046 = vadd.xlane.f32.xlu0 %v2045
      %v2047 = vpop.xlane.xlu0 %2046
      %v2048 = vsel %vm407, %v2026, 0.0
      %2049 = vadd.xlane.f32.xlu0 %v2048
      %v2050 = vpop.xlane.xlu0 %2049
      %v2051 = vmul.f32 %v2029, %v2002
      %v2052 = vmul.f32 %v2032, %v2002
      %v2053 = vmul.f32 %v2035, %v2002
      %v2054 = vmul.f32 %v2038, %v2002
      %v2055 = vmul.f32 %v2041, %v2002
      %v2056 = vmul.f32 %v2044, %v2002
      %v2057 = vmul.f32 %v2047, %v2002
      %v2058 = vmul.f32 %v2050, %v2002
      %v2059 = vadd.f32 %v2051, 1e-05
      %v2060 = vadd.f32 %v2052, 1e-05
      %v2061 = vadd.f32 %v2053, 1e-05
      %v2062 = vadd.f32 %v2054, 1e-05
      %v2063 = vadd.f32 %v2055, 1e-05
      %v2064 = vadd.f32 %v2056, 1e-05
      %v2065 = vadd.f32 %v2057, 1e-05
      %v2066 = vadd.f32 %v2058, 1e-05
      %v2067 = vrsqrt.pop %v2059
      %v2068 = vrsqrt.pop %v2060
      %v2069 = vrsqrt.pop %v2061
      %v2070 = vrsqrt.pop %v2062
      %v2071 = vrsqrt.pop %v2063
      %v2072 = vrsqrt.pop %v2064
      %v2073 = vrsqrt.pop %v2065
      %v2074 = vrsqrt.pop %v2066
      %v2075 = vmul.f32 %v2011, %v2067
      %v2076 = vmul.f32 %v2012, %v2068
      %v2077 = vmul.f32 %v2013, %v2069
      %v2078 = vmul.f32 %v2014, %v2070
      %v2079 = vmul.f32 %v2015, %v2071
      %v2080 = vmul.f32 %v2016, %v2072
      %v2081 = vmul.f32 %v2017, %v2073
      %v2082 = vmul.f32 %v2018, %v2074
      %v2083 = vlaneseq
      %v2084 = vshrl.u32 %v2083, 7
      %v2085 = vsub.s32 0, %v2084
      %v2086 = vrot.slane %v1976, %v2085
      %v2087 = vmul.f32 %v2075, %v2086
      %v2088 = vmul.f32 %v2076, %v2086
      %v2089 = vmul.f32 %v2077, %v2086
      %v2090 = vmul.f32 %v2078, %v2086
      %v2091 = vmul.f32 %v2079, %v2086
      %v2092 = vmul.f32 %v2080, %v2086
      %v2093 = vmul.f32 %v2081, %v2086
      %v2094 = vmul.f32 %v2082, %v2086
      %v2095 = vlaneseq
      %v2096 = vshrl.u32 %v2095, 7
      %v2097 = vsub.s32 0, %v2096
      %v2098 = vrot.slane %v1977, %v2097
      %v2099 = vadd.f32 %v2087, %v2098
      %v2100 = vadd.f32 %v2088, %v2098
      %v2101 = vadd.f32 %v2089, %v2098
      %v2102 = vadd.f32 %v2090, %v2098
      %v2103 = vadd.f32 %v2091, %v2098
      %v2104 = vadd.f32 %v2092, %v2098
      %v2105 = vadd.f32 %v2093, %v2098
      %v2106 = vadd.f32 %v2094, %v2098
      %v2107 = vld [vmem:[%s3 + $0x38] sm:$0xf]
      %v2108 = vld [vmem:[%s3 + $0x3c] sm:$0xf]
      %v2109 = vld [vmem:[%s3 + $0x40] sm:$0xf]
      %v2110 = vld [vmem:[%s3 + $0x44] sm:$0xf]
      %v2111 = vpack.c.bf16 %v2100, %v2099
      %v2112 = vpack.c.bf16 %v2102, %v2101
      %v2113 = vpack.c.bf16 %v2104, %v2103
      %v2114 = vpack.c.bf16 %v2106, %v2105
      %v2115 = vld [vmem:[%s4 + $0x4] sm:$0x1]
      %v2116 = vlaneseq
      %v2117 = vshrl.u32 %v2116, 7
      %v2118 = vsub.s32 0, %v2117
      %v2119 = vrot.slane %v2115, %v2118
      %v2124 = vunpack.c.l.b16 %v2107
      %v2125 = vunpack.c.l.b16 %v2108
      %v2126 = vunpack.c.l.b16 %v2109
      %v2127 = vunpack.c.l.b16 %v2110
      %v2128 = vpack.c.b16 %v2125, %v2124
      %v2129 = vpack.c.b16 %v2127, %v2126
      %v2133 = vsel %vm407, %v2111, 0
      %v2136 = vsel %vm407, %v2112, 0
      %v2139 = vsel %vm407, %v2113, 0
      %v2142 = vsel %vm407, %v2114, 0
      %2144 = vmatprep.subr.bf16.mxu0 0
      %2145 = vmatpush1.bf16.msra.mxu0 %v2128
      %2146 = vmatprep.subr.bf16.mxu0 0
      %2147 = vmatpush1.bf16.msra.mxu0 %v2129
      %2148 = vmatprep.subr.bf16.mxu0 0
      %2149 = vmatpush1.bf16.msra.mxu0 0
      %2150 = vmatprep.subr.bf16.mxu0 0
      %2151 = vmatpush1.bf16.msra.mxu0 0
      %2152 = vmatprep.subr.bf16.mxu0 0
      %2153 = vmatpush1.bf16.msra.mxu0 0
      %2154 = vmatprep.subr.bf16.mxu0 0
      %2155 = vmatpush1.bf16.msra.mxu0 0
      %2156 = vmatprep.subr.bf16.mxu0 0
      %2157 = vmatpush1.bf16.msra.mxu0 0
      %2158 = vmatprep.subr.bf16.mxu0 0
      %2159 = vmatpush1.bf16.msra.mxu0 0
      %2160 = vmatprep.subr.bf16.mxu0 0
      %2161 = vmatpush1.bf16.msra.mxu0 0
      %2162 = vmatprep.subr.bf16.mxu0 0
      %2163 = vmatpush1.bf16.msra.mxu0 0
      %2164 = vmatprep.subr.bf16.mxu0 0
      %2165 = vmatpush1.bf16.msra.mxu0 0
      %2166 = vmatprep.subr.bf16.mxu0 0
      %2167 = vmatpush1.bf16.msra.mxu0 0
      %2168 = vmatprep.subr.bf16.mxu0 0
      %2169 = vmatpush1.bf16.msra.mxu0 0
      %2170 = vmatprep.subr.bf16.mxu0 0
      %2171 = vmatpush1.bf16.msra.mxu0 0
      %2172 = vmatprep.subr.bf16.mxu0 0
      %2173 = vmatpush1.bf16.msra.mxu0 0
      %2174 = vmatprep.subr.bf16.mxu0 0
      %2175 = vmatpush1.bf16.msra.mxu0 0
      %2176 = vmatprep.mubr.bf16.mxu0 0
      %2177 = vmatmul.mubr.bf16.gmra.mrb[0].mxu0 %v2133
      %v2178 = vpop.f32.mrb[0].mxu0
      %v2179 = vadd.f32 %v2119, %v2178
      %v2180 = vpop.f32.mrb[0].mxu0
      %v2181 = vpop.f32.mrb[0].mxu0
      %v2182 = vadd.f32 %v2119, %v2181
      %v2183 = vpop.f32.mrb[0].mxu0
      %2184 = vmatprep.mubr.bf16.mxu0 0
      %2185 = vmatmul.mubr.bf16.gmra.mrb[0].mxu0 %v2136
      %v2186 = vpop.f32.mrb[0].mxu0
      %v2187 = vadd.f32 %v2119, %v2186
      %v2188 = vpop.f32.mrb[0].mxu0
      %v2189 = vpop.f32.mrb[0].mxu0
      %v2190 = vadd.f32 %v2119, %v2189
      %v2191 = vpop.f32.mrb[0].mxu0
      %2192 = vmatprep.mubr.bf16.mxu0 0
      %2193 = vmatmul.mubr.bf16.gmra.mrb[0].mxu0 %v2139
      %v2194 = vpop.f32.mrb[0].mxu0
      %v2195 = vadd.f32 %v2119, %v2194
      %v2196 = vpop.f32.mrb[0].mxu0
      %v2197 = vpop.f32.mrb[0].mxu0
      %v2198 = vadd.f32 %v2119, %v2197
      %v2199 = vpop.f32.mrb[0].mxu0
      %2200 = vmatprep.mubr.bf16.mxu0 0
      %2201 = vmatmul.mubr.bf16.gmra.mrb[0].mxu0 %v2142
      %v2202 = vpop.f32.mrb[0].mxu0
      %v2203 = vadd.f32 %v2119, %v2202
      %v2204 = vpop.f32.mrb[0].mxu0
      %v2205 = vpop.f32.mrb[0].mxu0
      %v2206 = vadd.f32 %v2119, %v2205
      %v2207 = vpop.f32.mrb[0].mxu0
      %2208 = vdwg.mxu0
      %v2209 = vmax.f32 %v2179, 0.0
      %v2210 = vmax.f32 %v2182, 0.0
      %v2211 = vmax.f32 %v2187, 0.0
      %v2212 = vmax.f32 %v2190, 0.0
      %v2213 = vmax.f32 %v2195, 0.0
      %v2214 = vmax.f32 %v2198, 0.0
      %v2215 = vmax.f32 %v2203, 0.0
      %v2216 = vmax.f32 %v2206, 0.0
      %v2217 = vld [vmem:[%s3 + $0x48] sm:$0xf]
      %v2218 = vld [vmem:[%s3 + $0x4c] sm:$0xf]
      %v2219 = vld [vmem:[%s3 + $0x50] sm:$0xf]
      %v2220 = vld [vmem:[%s3 + $0x54] sm:$0xf]
      %v2221 = vld [vmem:[%s3 + $0x58] sm:$0xf]
      %v2222 = vld [vmem:[%s3 + $0x5c] sm:$0xf]
      %v2223 = vld [vmem:[%s3 + $0x60] sm:$0xf]
      %v2224 = vld [vmem:[%s3 + $0x64] sm:$0xf]
      %v2225 = vpack.c.bf16 %v2210, %v2209
      %v2226 = vpack.c.bf16 %v2212, %v2211
      %v2227 = vpack.c.bf16 %v2214, %v2213
      %v2228 = vpack.c.bf16 %v2216, %v2215
      %v2229 = vld [vmem:[%s4 + $0x5] sm:$0x1]
      %v2230 = vlaneseq
      %v2231 = vshrl.u32 %v2230, 7
      %v2232 = vsub.s32 0, %v2231
      %v2233 = vrot.slane %v2229, %v2232
      %v2242 = vunpack.c.l.b16 %v2217
      %v2243 = vunpack.c.l.b16 %v2218
      %v2244 = vunpack.c.l.b16 %v2219
      %v2245 = vunpack.c.l.b16 %v2220
      %v2246 = vunpack.c.l.b16 %v2221
      %v2247 = vunpack.c.l.b16 %v2222
      %v2248 = vunpack.c.l.b16 %v2223
      %v2249 = vunpack.c.l.b16 %v2224
      %v2250 = vpack.c.b16 %v2243, %v2242
      %v2251 = vpack.c.b16 %v2245, %v2244
      %v2252 = vpack.c.b16 %v2247, %v2246
      %v2253 = vpack.c.b16 %v2249, %v2248
      %v2259 = vsel %vm714, %v2225, 0
      %v2262 = vsel %vm714, %v2226, 0
      %v2265 = vsel %vm714, %v2227, 0
      %v2268 = vsel %vm714, %v2228, 0
      %2270 = vmatprep.subr.bf16.mxu0 0
      %2271 = vmatpush1.bf16.msra.mxu0 %v2250
      %2272 = vmatprep.subr.bf16.mxu0 0
      %2273 = vmatpush1.bf16.msra.mxu0 %v2251
      %2274 = vmatprep.subr.bf16.mxu0 0
      %2275 = vmatpush1.bf16.msra.mxu0 %v2252
      %2276 = vmatprep.subr.bf16.mxu0 0
      %2277 = vmatpush1.bf16.msra.mxu0 %v2253
      %2278 = vmatprep.subr.bf16.mxu0 0
      %2279 = vmatpush1.bf16.msra.mxu0 0
      %2280 = vmatprep.subr.bf16.mxu0 0
      %2281 = vmatpush1.bf16.msra.mxu0 0
      %2282 = vmatprep.subr.bf16.mxu0 0
      %2283 = vmatpush1.bf16.msra.mxu0 0
      %2284 = vmatprep.subr.bf16.mxu0 0
      %2285 = vmatpush1.bf16.msra.mxu0 0
      %2286 = vmatprep.subr.bf16.mxu0 0
      %2287 = vmatpush1.bf16.msra.mxu0 0
      %2288 = vmatprep.subr.bf16.mxu0 0
      %2289 = vmatpush1.bf16.msra.mxu0 0
      %2290 = vmatprep.subr.bf16.mxu0 0
      %2291 = vmatpush1.bf16.msra.mxu0 0
      %2292 = vmatprep.subr.bf16.mxu0 0
      %2293 = vmatpush1.bf16.msra.mxu0 0
      %2294 = vmatprep.subr.bf16.mxu0 0
      %2295 = vmatpush1.bf16.msra.mxu0 0
      %2296 = vmatprep.subr.bf16.mxu0 0
      %2297 = vmatpush1.bf16.msra.mxu0 0
      %2298 = vmatprep.subr.bf16.mxu0 0
      %2299 = vmatpush1.bf16.msra.mxu0 0
      %2300 = vmatprep.subr.bf16.mxu0 0
      %2301 = vmatpush1.bf16.msra.mxu0 0
      %2302 = vmatprep.mubr.bf16.mxu0 0
      %2303 = vmatmul.mubr.bf16.gmra.mrb[0].mxu0 %v2259
      %v2304 = vpop.f32.mrb[0].mxu0
      %v2305 = vadd.f32 %v2233, %v2304
      %v2306 = vpop.f32.mrb[0].mxu0
      %v2307 = vpop.f32.mrb[0].mxu0
      %v2308 = vadd.f32 %v2233, %v2307
      %v2309 = vpop.f32.mrb[0].mxu0
      %2310 = vmatprep.mubr.bf16.mxu0 0
      %2311 = vmatmul.mubr.bf16.gmra.mrb[0].mxu0 %v2262
      %v2312 = vpop.f32.mrb[0].mxu0
      %v2313 = vadd.f32 %v2233, %v2312
      %v2314 = vpop.f32.mrb[0].mxu0
      %v2315 = vpop.f32.mrb[0].mxu0
      %v2316 = vadd.f32 %v2233, %v2315
      %v2317 = vpop.f32.mrb[0].mxu0
      %2318 = vmatprep.mubr.bf16.mxu0 0
      %2319 = vmatmul.mubr.bf16.gmra.mrb[0].mxu0 %v2265
      %v2320 = vpop.f32.mrb[0].mxu0
      %v2321 = vadd.f32 %v2233, %v2320
      %v2322 = vpop.f32.mrb[0].mxu0
      %v2323 = vpop.f32.mrb[0].mxu0
      %v2324 = vadd.f32 %v2233, %v2323
      %v2325 = vpop.f32.mrb[0].mxu0
      %2326 = vmatprep.mubr.bf16.mxu0 0
      %2327 = vmatmul.mubr.bf16.gmra.mrb[0].mxu0 %v2268
      %v2328 = vpop.f32.mrb[0].mxu0
      %v2329 = vadd.f32 %v2233, %v2328
      %v2330 = vpop.f32.mrb[0].mxu0
      %v2331 = vpop.f32.mrb[0].mxu0
      %v2332 = vadd.f32 %v2233, %v2331
      %v2333 = vpop.f32.mrb[0].mxu0
      %2334 = vdwg.mxu0
      %v2335 = vadd.f32 %v2099, %v2305
      %v2336 = vadd.f32 %v2100, %v2308
      %v2337 = vadd.f32 %v2101, %v2313
      %v2338 = vadd.f32 %v2102, %v2316
      %v2339 = vadd.f32 %v2103, %v2321
      %v2340 = vadd.f32 %v2104, %v2324
      %v2341 = vadd.f32 %v2105, %v2329
      %v2342 = vadd.f32 %v2106, %v2332
      %v2343 = vld [vmem:[%s4 + $0x8] sm:$0x1]
      %v2344 = vld [vmem:[%s4 + $0x9] sm:$0x1]
      %v2345 = vsel %vm407, %v2335, 0.0
      %2346 = vadd.xlane.f32.xlu0 %v2345
      %v2347 = vpop.xlane.xlu0 %2346
      %v2348 = vsel %vm407, %v2336, 0.0
      %2349 = vadd.xlane.f32.xlu0 %v2348
      %v2350 = vpop.xlane.xlu0 %2349
      %v2351 = vsel %vm407, %v2337, 0.0
      %2352 = vadd.xlane.f32.xlu0 %v2351
      %v2353 = vpop.xlane.xlu0 %2352
      %v2354 = vsel %vm407, %v2338, 0.0
      %2355 = vadd.xlane.f32.xlu0 %v2354
      %v2356 = vpop.xlane.xlu0 %2355
      %v2357 = vsel %vm407, %v2339, 0.0
      %2358 = vadd.xlane.f32.xlu0 %v2357
      %v2359 = vpop.xlane.xlu0 %2358
      %v2360 = vsel %vm407, %v2340, 0.0
      %2361 = vadd.xlane.f32.xlu0 %v2360
      %v2362 = vpop.xlane.xlu0 %2361
      %v2363 = vsel %vm407, %v2341, 0.0
      %2364 = vadd.xlane.f32.xlu0 %v2363
      %v2365 = vpop.xlane.xlu0 %2364
      %v2366 = vsel %vm407, %v2342, 0.0
      %2367 = vadd.xlane.f32.xlu0 %v2366
      %v2368 = vpop.xlane.xlu0 %2367
      %v2369 = vmul.f32 %v2347, %v2002
      %v2370 = vmul.f32 %v2350, %v2002
      %v2371 = vmul.f32 %v2353, %v2002
      %v2372 = vmul.f32 %v2356, %v2002
      %v2373 = vmul.f32 %v2359, %v2002
      %v2374 = vmul.f32 %v2362, %v2002
      %v2375 = vmul.f32 %v2365, %v2002
      %v2376 = vmul.f32 %v2368, %v2002
      %v2377 = vsub.f32 %v2335, %v2369
      %v2378 = vsub.f32 %v2336, %v2370
      %v2379 = vsub.f32 %v2337, %v2371
      %v2380 = vsub.f32 %v2338, %v2372
      %v2381 = vsub.f32 %v2339, %v2373
      %v2382 = vsub.f32 %v2340, %v2374
      %v2383 = vsub.f32 %v2341, %v2375
      %v2384 = vsub.f32 %v2342, %v2376
      %v2385 = vmul.f32 %v2377, %v2377
      %v2386 = vmul.f32 %v2378, %v2378
      %v2387 = vmul.f32 %v2379, %v2379
      %v2388 = vmul.f32 %v2380, %v2380
      %v2389 = vmul.f32 %v2381, %v2381
      %v2390 = vmul.f32 %v2382, %v2382
      %v2391 = vmul.f32 %v2383, %v2383
      %v2392 = vmul.f32 %v2384, %v2384
      %v2393 = vsel %vm407, %v2385, 0.0
      %2394 = vadd.xlane.f32.xlu0 %v2393
      %v2395 = vpop.xlane.xlu0 %2394
      %v2396 = vsel %vm407, %v2386, 0.0
      %2397 = vadd.xlane.f32.xlu0 %v2396
      %v2398 = vpop.xlane.xlu0 %2397
      %v2399 = vsel %vm407, %v2387, 0.0
      %2400 = vadd.xlane.f32.xlu0 %v2399
      %v2401 = vpop.xlane.xlu0 %2400
      %v2402 = vsel %vm407, %v2388, 0.0
      %2403 = vadd.xlane.f32.xlu0 %v2402
      %v2404 = vpop.xlane.xlu0 %2403
      %v2405 = vsel %vm407, %v2389, 0.0
      %2406 = vadd.xlane.f32.xlu0 %v2405
      %v2407 = vpop.xlane.xlu0 %2406
      %v2408 = vsel %vm407, %v2390, 0.0
      %2409 = vadd.xlane.f32.xlu0 %v2408
      %v2410 = vpop.xlane.xlu0 %2409
      %v2411 = vsel %vm407, %v2391, 0.0
      %2412 = vadd.xlane.f32.xlu0 %v2411
      %v2413 = vpop.xlane.xlu0 %2412
      %v2414 = vsel %vm407, %v2392, 0.0
      %2415 = vadd.xlane.f32.xlu0 %v2414
      %v2416 = vpop.xlane.xlu0 %2415
      %v2417 = vmul.f32 %v2395, %v2002
      %v2418 = vmul.f32 %v2398, %v2002
      %v2419 = vmul.f32 %v2401, %v2002
      %v2420 = vmul.f32 %v2404, %v2002
      %v2421 = vmul.f32 %v2407, %v2002
      %v2422 = vmul.f32 %v2410, %v2002
      %v2423 = vmul.f32 %v2413, %v2002
      %v2424 = vmul.f32 %v2416, %v2002
      %v2425 = vadd.f32 %v2417, 1e-05
      %v2426 = vadd.f32 %v2418, 1e-05
      %v2427 = vadd.f32 %v2419, 1e-05
      %v2428 = vadd.f32 %v2420, 1e-05
      %v2429 = vadd.f32 %v2421, 1e-05
      %v2430 = vadd.f32 %v2422, 1e-05
      %v2431 = vadd.f32 %v2423, 1e-05
      %v2432 = vadd.f32 %v2424, 1e-05
      %v2433 = vrsqrt.pop %v2425
      %v2434 = vrsqrt.pop %v2426
      %v2435 = vrsqrt.pop %v2427
      %v2436 = vrsqrt.pop %v2428
      %v2437 = vrsqrt.pop %v2429
      %v2438 = vrsqrt.pop %v2430
      %v2439 = vrsqrt.pop %v2431
      %v2440 = vrsqrt.pop %v2432
      %v2441 = vmul.f32 %v2377, %v2433
      %v2442 = vmul.f32 %v2378, %v2434
      %v2443 = vmul.f32 %v2379, %v2435
      %v2444 = vmul.f32 %v2380, %v2436
      %v2445 = vmul.f32 %v2381, %v2437
      %v2446 = vmul.f32 %v2382, %v2438
      %v2447 = vmul.f32 %v2383, %v2439
      %v2448 = vmul.f32 %v2384, %v2440
      %v2449 = vlaneseq
      %v2450 = vshrl.u32 %v2449, 7
      %v2451 = vsub.s32 0, %v2450
      %v2452 = vrot.slane %v2343, %v2451
      %v2453 = vmul.f32 %v2441, %v2452
      %v2454 = vmul.f32 %v2442, %v2452
      %v2455 = vmul.f32 %v2443, %v2452
      %v2456 = vmul.f32 %v2444, %v2452
      %v2457 = vmul.f32 %v2445, %v2452
      %v2458 = vmul.f32 %v2446, %v2452
      %v2459 = vmul.f32 %v2447, %v2452
      %v2460 = vmul.f32 %v2448, %v2452
      %v2461 = vlaneseq
      %v2462 = vshrl.u32 %v2461, 7
      %v2463 = vsub.s32 0, %v2462
      %v2464 = vrot.slane %v2344, %v2463
      %v2465 = vadd.f32 %v2453, %v2464
      %v2466 = vadd.f32 %v2454, %v2464
      %v2467 = vadd.f32 %v2455, %v2464
      %v2468 = vadd.f32 %v2456, %v2464
      %v2469 = vadd.f32 %v2457, %v2464
      %v2470 = vadd.f32 %v2458, %v2464
      %v2471 = vadd.f32 %v2459, %v2464
      %v2472 = vadd.f32 %v2460, %v2464
      %v2473 = vadd.f32 %v2465, %v262
      %v2474 = vadd.f32 %v2466, %v263
      %v2475 = vadd.f32 %v2467, %v264
      %v2476 = vadd.f32 %v2468, %v265
      %v2477 = vadd.f32 %v2469, %v266
      %v2478 = vadd.f32 %v2470, %v267
      %v2479 = vadd.f32 %v2471, %v268
      %v2480 = vadd.f32 %v2472, %v269
      %v2481 = vadd.f32 %v270, 0.0
      %v2482 = vld [vmem:[%s3 + $0x68] sm:$0xf]
      %v2483 = vld [vmem:[%s3 + $0x6c] sm:$0xf]
      %v2484 = vld [vmem:[%s3 + $0x70] sm:$0xf]
      %v2485 = vld [vmem:[%s3 + $0x74] sm:$0xf]
      %v2486 = vpack.c.bf16 %v2481, %v2481
      %v2487 = vld [vmem:[%s4 + $0xa] sm:$0x1]
      %v2488 = vlaneseq
      %v2489 = vshrl.u32 %v2488, 7
      %v2490 = vsub.s32 0, %v2489
      %v2491 = vrot.slane %v2487, %v2490
      %v2496 = vunpack.c.l.b16 %v2482
      %v2497 = vunpack.c.l.b16 %v2483
      %v2498 = vunpack.c.l.b16 %v2484
      %v2499 = vunpack.c.l.b16 %v2485
      %v2500 = vpack.c.b16 %v2497, %v2496
      %v2501 = vpack.c.b16 %v2499, %v2498
      %v2505 = vsel %vm407, %v2486, 0
      %2507 = vmatprep.subr.bf16.mxu0 0
      %2508 = vmatpush1.bf16.msra.mxu0 %v2500
      %2509 = vmatprep.subr.bf16.mxu0 0
      %2510 = vmatpush1.bf16.msra.mxu0 %v2501
      %2511 = vmatprep.subr.bf16.mxu0 0
      %2512 = vmatpush1.bf16.msra.mxu0 0
      %2513 = vmatprep.subr.bf16.mxu0 0
      %2514 = vmatpush1.bf16.msra.mxu0 0
      %2515 = vmatprep.subr.bf16.mxu0 0
      %2516 = vmatpush1.bf16.msra.mxu0 0
      %2517 = vmatprep.subr.bf16.mxu0 0
      %2518 = vmatpush1.bf16.msra.mxu0 0
      %2519 = vmatprep.subr.bf16.mxu0 0
      %2520 = vmatpush1.bf16.msra.mxu0 0
      %2521 = vmatprep.subr.bf16.mxu0 0
      %2522 = vmatpush1.bf16.msra.mxu0 0
      %2523 = vmatprep.subr.bf16.mxu0 0
      %2524 = vmatpush1.bf16.msra.mxu0 0
      %2525 = vmatprep.subr.bf16.mxu0 0
      %2526 = vmatpush1.bf16.msra.mxu0 0
      %2527 = vmatprep.subr.bf16.mxu0 0
      %2528 = vmatpush1.bf16.msra.mxu0 0
      %2529 = vmatprep.subr.bf16.mxu0 0
      %2530 = vmatpush1.bf16.msra.mxu0 0
      %2531 = vmatprep.subr.bf16.mxu0 0
      %2532 = vmatpush1.bf16.msra.mxu0 0
      %2533 = vmatprep.subr.bf16.mxu0 0
      %2534 = vmatpush1.bf16.msra.mxu0 0
      %2535 = vmatprep.subr.bf16.mxu0 0
      %2536 = vmatpush1.bf16.msra.mxu0 0
      %2537 = vmatprep.subr.bf16.mxu0 0
      %2538 = vmatpush1.bf16.msra.mxu0 0
      %2539 = vmatprep.mubr.bf16.mxu0 0
      %2540 = vmatmul.mubr.bf16.gmra.mrb[0].mxu0 %v2505
      %v2541 = vpop.f32.mrb[0].mxu0
      %v2542 = vadd.f32 %v2491, %v2541
      %v2543 = vpop.f32.mrb[0].mxu0
      %v2544 = vpop.f32.mrb[0].mxu0
      %v2545 = vpop.f32.mrb[0].mxu0
      %2546 = vdwg.mxu0
      %v2547 = vld [vmem:[%s3 + $0x78] sm:$0xf]
      %v2548 = vld [vmem:[%s3 + $0x7c] sm:$0xf]
      %v2549 = vld [vmem:[%s3 + $0x80] sm:$0xf]
      %v2550 = vld [vmem:[%s3 + $0x84] sm:$0xf]
      %v2551 = vld [vmem:[%s4 + $0xb] sm:$0x1]
      %v2552 = vlaneseq
      %v2553 = vshrl.u32 %v2552, 7
      %v2554 = vsub.s32 0, %v2553
      %v2555 = vrot.slane %v2551, %v2554
      %v2560 = vunpack.c.l.b16 %v2547
      %v2561 = vunpack.c.l.b16 %v2548
      %v2562 = vunpack.c.l.b16 %v2549
      %v2563 = vunpack.c.l.b16 %v2550
      %v2564 = vpack.c.b16 %v2561, %v2560
      %v2565 = vpack.c.b16 %v2563, %v2562
      %v2569 = vsel %vm407, 0, 0
      %2571 = vmatprep.subr.bf16.mxu0 0
      %2572 = vmatpush1.bf16.msra.mxu0 %v2564
      %2573 = vmatprep.subr.bf16.mxu0 0
      %2574 = vmatpush1.bf16.msra.mxu0 %v2565
      %2575 = vmatprep.subr.bf16.mxu0 0
      %2576 = vmatpush1.bf16.msra.mxu0 0
      %2577 = vmatprep.subr.bf16.mxu0 0
      %2578 = vmatpush1.bf16.msra.mxu0 0
      %2579 = vmatprep.subr.bf16.mxu0 0
      %2580 = vmatpush1.bf16.msra.mxu0 0
      %2581 = vmatprep.subr.bf16.mxu0 0
      %2582 = vmatpush1.bf16.msra.mxu0 0
      %2583 = vmatprep.subr.bf16.mxu0 0
      %2584 = vmatpush1.bf16.msra.mxu0 0
      %2585 = vmatprep.subr.bf16.mxu0 0
      %2586 = vmatpush1.bf16.msra.mxu0 0
      %2587 = vmatprep.subr.bf16.mxu0 0
      %2588 = vmatpush1.bf16.msra.mxu0 0
      %2589 = vmatprep.subr.bf16.mxu0 0
      %2590 = vmatpush1.bf16.msra.mxu0 0
      %2591 = vmatprep.subr.bf16.mxu0 0
      %2592 = vmatpush1.bf16.msra.mxu0 0
      %2593 = vmatprep.subr.bf16.mxu0 0
      %2594 = vmatpush1.bf16.msra.mxu0 0
      %2595 = vmatprep.subr.bf16.mxu0 0
      %2596 = vmatpush1.bf16.msra.mxu0 0
      %2597 = vmatprep.subr.bf16.mxu0 0
      %2598 = vmatpush1.bf16.msra.mxu0 0
      %2599 = vmatprep.subr.bf16.mxu0 0
      %2600 = vmatpush1.bf16.msra.mxu0 0
      %2601 = vmatprep.subr.bf16.mxu0 0
      %2602 = vmatpush1.bf16.msra.mxu0 0
      %2603 = vmatprep.mubr.bf16.mxu0 0
      %2604 = vmatmul.mubr.bf16.gmra.mrb[0].mxu0 %v2569
      %v2605 = vpop.f32.mrb[0].mxu0
      %v2606 = vadd.f32 %v2555, %v2605
      %v2607 = vpop.f32.mrb[0].mxu0
      %v2608 = vpop.f32.mrb[0].mxu0
      %v2609 = vpop.f32.mrb[0].mxu0
      %2610 = vdwg.mxu0
      %v2611 = vld [vmem:[%s3 + $0x88] sm:$0xf]
      %v2612 = vld [vmem:[%s3 + $0x8c] sm:$0xf]
      %v2613 = vld [vmem:[%s3 + $0x90] sm:$0xf]
      %v2614 = vld [vmem:[%s3 + $0x94] sm:$0xf]
      %v2615 = vld [vmem:[%s4 + $0xc] sm:$0x1]
      %v2616 = vmul.f32 %v2542, 0.35355338
      %v2617 = vpack.c.bf16 %v2616, %v2616
      %v2618 = vpack.c.bf16 %v2542, %v2542
      %v2619 = vpack.c.bf16 %v2606, %v2606
      %2621 = vrot.lane.b32.xlu0 %v2618, 96
      %v2622 = vpop.permute.xlu0 %2621
      %v2624 = vsel %vm624, %v2617, 0
      %v2627 = vsel %vm624, %v2622, 0
      %2629 = vmatprep.subr.bf16.mxu0 0
      %2630 = vmatpush1.bf16.xpose.msra.mxu0 %v2627
      %2631 = vmatprep.subr.bf16.mxu0 0
      %2632 = vmatpush1.bf16.xpose.msra.mxu0 0
      %2633 = vmatprep.subr.bf16.mxu0 0
      %2634 = vmatpush1.bf16.xpose.msra.mxu0 0
      %2635 = vmatprep.subr.bf16.mxu0 0
      %2636 = vmatpush1.bf16.xpose.msra.mxu0 0
      %2637 = vmatprep.subr.bf16.mxu0 0
      %2638 = vmatpush1.bf16.xpose.msra.mxu0 0
      %2639 = vmatprep.subr.bf16.mxu0 0
      %2640 = vmatpush1.bf16.xpose.msra.mxu0 0
      %2641 = vmatprep.subr.bf16.mxu0 0
      %2642 = vmatpush1.bf16.xpose.msra.mxu0 0
      %2643 = vmatprep.subr.bf16.mxu0 0
      %2644 = vmatpush1.bf16.xpose.msra.mxu0 0
      %2645 = vmatprep.subr.bf16.mxu0 0
      %2646 = vmatpush1.bf16.xpose.msra.mxu0 0
      %2647 = vmatprep.subr.bf16.mxu0 0
      %2648 = vmatpush1.bf16.xpose.msra.mxu0 0
      %2649 = vmatprep.subr.bf16.mxu0 0
      %2650 = vmatpush1.bf16.xpose.msra.mxu0 0
      %2651 = vmatprep.subr.bf16.mxu0 0
      %2652 = vmatpush1.bf16.xpose.msra.mxu0 0
      %2653 = vmatprep.subr.bf16.mxu0 0
      %2654 = vmatpush1.bf16.xpose.msra.mxu0 0
      %2655 = vmatprep.subr.bf16.mxu0 0
      %2656 = vmatpush1.bf16.xpose.msra.mxu0 0
      %2657 = vmatprep.subr.bf16.mxu0 0
      %2658 = vmatpush1.bf16.xpose.msra.mxu0 0
      %2659 = vmatprep.subr.bf16.mxu0 0
      %2660 = vmatpush1.bf16.xpose.msra.mxu0 0
      %2661 = vmatprep.mubr.bf16.mxu0 0
      %2662 = vmatmul.mubr.bf16.gmra.mrb[0].mxu0 %v2624
      %v2663 = vpop.f32.mrb[0].mxu0
      %v2664 = vadd.f32 0.0, %v2663
      %v2665 = vpop.f32.mrb[0].mxu0
      %v2666 = vpop.f32.mrb[0].mxu0
      %v2667 = vpop.f32.mrb[0].mxu0
      %2668 = vdwg.mxu0
      %v2669 = vsel %vm624, %v2664, -inf
      %2670 = vmax.xlane.f32.xlu0 %v2669
      %v2671 = vpop.xlane.xlu0 %2670
      %v2672 = vsub.f32 %v2664, %v2671
      %v2673 = vmul.f32 %v2672, 1.442695
      %v2674 = vpow.pop %v2673
      %v2675 = vsel %vm624, %v2674, 0.0
      %2676 = vadd.xlane.f32.xlu0 %v2675
      %v2677 = vpop.xlane.xlu0 %2676
      %v2678 = vrcp.pop %v2677
      %v2679 = vmul.f32 %v2674, %v2678
      %v2680 = vpack.c.bf16 %v2679, %v2679
      %v2682 = vsel %vm624, %v2680, 0
      %vm2684 = vcmask 1043456
      %v2686 = vsel %vm2684, %v2619, 0
      %2688 = vmatprep.subr.bf16.mxu0 0
      %2689 = vmatpush1.bf16.msra.mxu0 %v2686
      %2690 = vmatprep.subr.bf16.mxu0 0
      %2691 = vmatpush1.bf16.msra.mxu0 0
      %2692 = vmatprep.subr.bf16.mxu0 0
      %2693 = vmatpush1.bf16.msra.mxu0 0
      %2694 = vmatprep.subr.bf16.mxu0 0
      %2695 = vmatpush1.bf16.msra.mxu0 0
      %2696 = vmatprep.subr.bf16.mxu0 0
      %2697 = vmatpush1.bf16.msra.mxu0 0
      %2698 = vmatprep.subr.bf16.mxu0 0
      %2699 = vmatpush1.bf16.msra.mxu0 0
      %2700 = vmatprep.subr.bf16.mxu0 0
      %2701 = vmatpush1.bf16.msra.mxu0 0
      %2702 = vmatprep.subr.bf16.mxu0 0
      %2703 = vmatpush1.bf16.msra.mxu0 0
      %2704 = vmatprep.subr.bf16.mxu0 0
      %2705 = vmatpush1.bf16.msra.mxu0 0
      %2706 = vmatprep.subr.bf16.mxu0 0
      %2707 = vmatpush1.bf16.msra.mxu0 0
      %2708 = vmatprep.subr.bf16.mxu0 0
      %2709 = vmatpush1.bf16.msra.mxu0 0
      %2710 = vmatprep.subr.bf16.mxu0 0
      %2711 = vmatpush1.bf16.msra.mxu0 0
      %2712 = vmatprep.subr.bf16.mxu0 0
      %2713 = vmatpush1.bf16.msra.mxu0 0
      %2714 = vmatprep.subr.bf16.mxu0 0
      %2715 = vmatpush1.bf16.msra.mxu0 0
      %2716 = vmatprep.subr.bf16.mxu0 0
      %2717 = vmatpush1.bf16.msra.mxu0 0
      %2718 = vmatprep.subr.bf16.mxu0 0
      %2719 = vmatpush1.bf16.msra.mxu0 0
      %2720 = vmatprep.mubr.bf16.mxu0 0
      %2721 = vmatmul.mubr.bf16.gmra.mrb[0].mxu0 %v2682
      %v2722 = vpop.f32.mrb[0].mxu0
      %v2723 = vadd.f32 0.0, %v2722
      %v2724 = vpop.f32.mrb[0].mxu0
      %v2725 = vpop.f32.mrb[0].mxu0
      %v2726 = vpop.f32.mrb[0].mxu0
      %2727 = vdwg.mxu0
      %2729 = vrot.lane.b32.xlu0 %v2617, 120
      %v2730 = vpop.permute.xlu0 %2729
      %2731 = vrot.lane.b32.xlu0 %v2618, 88
      %v2732 = vpop.permute.xlu0 %2731
      %v2734 = vsel %vm624, %v2730, 0
      %v2737 = vsel %vm624, %v2732, 0
      %2739 = vmatprep.subr.bf16.mxu0 0
      %2740 = vmatpush1.bf16.xpose.msra.mxu0 %v2737
      %2741 = vmatprep.subr.bf16.mxu0 0
      %2742 = vmatpush1.bf16.xpose.msra.mxu0 0
      %2743 = vmatprep.subr.bf16.mxu0 0
      %2744 = vmatpush1.bf16.xpose.msra.mxu0 0
      %2745 = vmatprep.subr.bf16.mxu0 0
      %2746 = vmatpush1.bf16.xpose.msra.mxu0 0
      %2747 = vmatprep.subr.bf16.mxu0 0
      %2748 = vmatpush1.bf16.xpose.msra.mxu0 0
      %2749 = vmatprep.subr.bf16.mxu0 0
      %2750 = vmatpush1.bf16.xpose.msra.mxu0 0
      %2751 = vmatprep.subr.bf16.mxu0 0
      %2752 = vmatpush1.bf16.xpose.msra.mxu0 0
      %2753 = vmatprep.subr.bf16.mxu0 0
      %2754 = vmatpush1.bf16.xpose.msra.mxu0 0
      %2755 = vmatprep.subr.bf16.mxu0 0
      %2756 = vmatpush1.bf16.xpose.msra.mxu0 0
      %2757 = vmatprep.subr.bf16.mxu0 0
      %2758 = vmatpush1.bf16.xpose.msra.mxu0 0
      %2759 = vmatprep.subr.bf16.mxu0 0
      %2760 = vmatpush1.bf16.xpose.msra.mxu0 0
      %2761 = vmatprep.subr.bf16.mxu0 0
      %2762 = vmatpush1.bf16.xpose.msra.mxu0 0
      %2763 = vmatprep.subr.bf16.mxu0 0
      %2764 = vmatpush1.bf16.xpose.msra.mxu0 0
      %2765 = vmatprep.subr.bf16.mxu0 0
      %2766 = vmatpush1.bf16.xpose.msra.mxu0 0
      %2767 = vmatprep.subr.bf16.mxu0 0
      %2768 = vmatpush1.bf16.xpose.msra.mxu0 0
      %2769 = vmatprep.subr.bf16.mxu0 0
      %2770 = vmatpush1.bf16.xpose.msra.mxu0 0
      %2771 = vmatprep.mubr.bf16.mxu0 0
      %2772 = vmatmul.mubr.bf16.gmra.mrb[0].mxu0 %v2734
      %v2773 = vpop.f32.mrb[0].mxu0
      %v2774 = vadd.f32 0.0, %v2773
      %v2775 = vpop.f32.mrb[0].mxu0
      %v2776 = vpop.f32.mrb[0].mxu0
      %v2777 = vpop.f32.mrb[0].mxu0
      %2778 = vdwg.mxu0
      %v2779 = vsel %vm624, %v2774, -inf
      %2780 = vmax.xlane.f32.xlu0 %v2779
      %v2781 = vpop.xlane.xlu0 %2780
      %v2782 = vsub.f32 %v2774, %v2781
      %v2783 = vmul.f32 %v2782, 1.442695
      %v2784 = vpow.pop %v2783
      %v2785 = vsel %vm624, %v2784, 0.0
      %2786 = vadd.xlane.f32.xlu0 %v2785
      %v2787 = vpop.xlane.xlu0 %2786
      %v2788 = vrcp.pop %v2787
      %v2789 = vmul.f32 %v2784, %v2788
      %v2790 = vpack.c.bf16 %v2789, %v2789
      %2792 = vrot.lane.b32.xlu0 %v2619, 120
      %v2793 = vpop.permute.xlu0 %2792
      %v2795 = vsel %vm624, %v2790, 0
      %v2798 = vsel %vm2684, %v2793, 0
      %2800 = vmatprep.subr.bf16.mxu0 0
      %2801 = vmatpush1.bf16.msra.mxu0 %v2798
      %2802 = vmatprep.subr.bf16.mxu0 0
      %2803 = vmatpush1.bf16.msra.mxu0 0
      %2804 = vmatprep.subr.bf16.mxu0 0
      %2805 = vmatpush1.bf16.msra.mxu0 0
      %2806 = vmatprep.subr.bf16.mxu0 0
      %2807 = vmatpush1.bf16.msra.mxu0 0
      %2808 = vmatprep.subr.bf16.mxu0 0
      %2809 = vmatpush1.bf16.msra.mxu0 0
      %2810 = vmatprep.subr.bf16.mxu0 0
      %2811 = vmatpush1.bf16.msra.mxu0 0
      %2812 = vmatprep.subr.bf16.mxu0 0
      %2813 = vmatpush1.bf16.msra.mxu0 0
      %2814 = vmatprep.subr.bf16.mxu0 0
      %2815 = vmatpush1.bf16.msra.mxu0 0
      %2816 = vmatprep.subr.bf16.mxu0 0
      %2817 = vmatpush1.bf16.msra.mxu0 0
      %2818 = vmatprep.subr.bf16.mxu0 0
      %2819 = vmatpush1.bf16.msra.mxu0 0
      %2820 = vmatprep.subr.bf16.mxu0 0
      %2821 = vmatpush1.bf16.msra.mxu0 0
      %2822 = vmatprep.subr.bf16.mxu0 0
      %2823 = vmatpush1.bf16.msra.mxu0 0
      %2824 = vmatprep.subr.bf16.mxu0 0
      %2825 = vmatpush1.bf16.msra.mxu0 0
      %2826 = vmatprep.subr.bf16.mxu0 0
      %2827 = vmatpush1.bf16.msra.mxu0 0
      %2828 = vmatprep.subr.bf16.mxu0 0
      %2829 = vmatpush1.bf16.msra.mxu0 0
      %2830 = vmatprep.subr.bf16.mxu0 0
      %2831 = vmatpush1.bf16.msra.mxu0 0
      %2832 = vmatprep.mubr.bf16.mxu0 0
      %2833 = vmatmul.mubr.bf16.gmra.mrb[0].mxu0 %v2795
      %v2834 = vpop.f32.mrb[0].mxu0
      %v2835 = vadd.f32 0.0, %v2834
      %v2836 = vpop.f32.mrb[0].mxu0
      %v2837 = vpop.f32.mrb[0].mxu0
      %v2838 = vpop.f32.mrb[0].mxu0
      %2839 = vdwg.mxu0
      %2840 = vrot.lane.b32.xlu0 %v2617, 112
      %v2841 = vpop.permute.xlu0 %2840
      %2842 = vrot.lane.b32.xlu0 %v2618, 80
      %v2843 = vpop.permute.xlu0 %2842
      %v2845 = vsel %vm624, %v2841, 0
      %v2848 = vsel %vm624, %v2843, 0
      %2850 = vmatprep.subr.bf16.mxu0 0
      %2851 = vmatpush1.bf16.xpose.msra.mxu0 %v2848
      %2852 = vmatprep.subr.bf16.mxu0 0
      %2853 = vmatpush1.bf16.xpose.msra.mxu0 0
      %2854 = vmatprep.subr.bf16.mxu0 0
      %2855 = vmatpush1.bf16.xpose.msra.mxu0 0
      %2856 = vmatprep.subr.bf16.mxu0 0
      %2857 = vmatpush1.bf16.xpose.msra.mxu0 0
      %2858 = vmatprep.subr.bf16.mxu0 0
      %2859 = vmatpush1.bf16.xpose.msra.mxu0 0
      %2860 = vmatprep.subr.bf16.mxu0 0
      %2861 = vmatpush1.bf16.xpose.msra.mxu0 0
      %2862 = vmatprep.subr.bf16.mxu0 0
      %2863 = vmatpush1.bf16.xpose.msra.mxu0 0
      %2864 = vmatprep.subr.bf16.mxu0 0
      %2865 = vmatpush1.bf16.xpose.msra.mxu0 0
      %2866 = vmatprep.subr.bf16.mxu0 0
      %2867 = vmatpush1.bf16.xpose.msra.mxu0 0
      %2868 = vmatprep.subr.bf16.mxu0 0
      %2869 = vmatpush1.bf16.xpose.msra.mxu0 0
      %2870 = vmatprep.subr.bf16.mxu0 0
      %2871 = vmatpush1.bf16.xpose.msra.mxu0 0
      %2872 = vmatprep.subr.bf16.mxu0 0
      %2873 = vmatpush1.bf16.xpose.msra.mxu0 0
      %2874 = vmatprep.subr.bf16.mxu0 0
      %2875 = vmatpush1.bf16.xpose.msra.mxu0 0
      %2876 = vmatprep.subr.bf16.mxu0 0
      %2877 = vmatpush1.bf16.xpose.msra.mxu0 0
      %2878 = vmatprep.subr.bf16.mxu0 0
      %2879 = vmatpush1.bf16.xpose.msra.mxu0 0
      %2880 = vmatprep.subr.bf16.mxu0 0
      %2881 = vmatpush1.bf16.xpose.msra.mxu0 0
      %2882 = vmatprep.mubr.bf16.mxu0 0
      %2883 = vmatmul.mubr.bf16.gmra.mrb[0].mxu0 %v2845
      %v2884 = vpop.f32.mrb[0].mxu0
      %v2885 = vadd.f32 0.0, %v2884
      %v2886 = vpop.f32.mrb[0].mxu0
      %v2887 = vpop.f32.mrb[0].mxu0
      %v2888 = vpop.f32.mrb[0].mxu0
      %2889 = vdwg.mxu0
      %v2890 = vsel %vm624, %v2885, -inf
      %2891 = vmax.xlane.f32.xlu0 %v2890
      %v2892 = vpop.xlane.xlu0 %2891
      %v2893 = vsub.f32 %v2885, %v2892
      %v2894 = vmul.f32 %v2893, 1.442695
      %v2895 = vpow.pop %v2894
      %v2896 = vsel %vm624, %v2895, 0.0
      %2897 = vadd.xlane.f32.xlu0 %v2896
      %v2898 = vpop.xlane.xlu0 %2897
      %v2899 = vrcp.pop %v2898
      %v2900 = vmul.f32 %v2895, %v2899
      %v2901 = vpack.c.bf16 %v2900, %v2900
      %2902 = vrot.lane.b32.xlu0 %v2619, 112
      %v2903 = vpop.permute.xlu0 %2902
      %v2905 = vsel %vm624, %v2901, 0
      %v2908 = vsel %vm2684, %v2903, 0
      %2910 = vmatprep.subr.bf16.mxu0 0
      %2911 = vmatpush1.bf16.msra.mxu0 %v2908
      %2912 = vmatprep.subr.bf16.mxu0 0
      %2913 = vmatpush1.bf16.msra.mxu0 0
      %2914 = vmatprep.subr.bf16.mxu0 0
      %2915 = vmatpush1.bf16.msra.mxu0 0
      %2916 = vmatprep.subr.bf16.mxu0 0
      %2917 = vmatpush1.bf16.msra.mxu0 0
      %2918 = vmatprep.subr.bf16.mxu0 0
      %2919 = vmatpush1.bf16.msra.mxu0 0
      %2920 = vmatprep.subr.bf16.mxu0 0
      %2921 = vmatpush1.bf16.msra.mxu0 0
      %2922 = vmatprep.subr.bf16.mxu0 0
      %2923 = vmatpush1.bf16.msra.mxu0 0
      %2924 = vmatprep.subr.bf16.mxu0 0
      %2925 = vmatpush1.bf16.msra.mxu0 0
      %2926 = vmatprep.subr.bf16.mxu0 0
      %2927 = vmatpush1.bf16.msra.mxu0 0
      %2928 = vmatprep.subr.bf16.mxu0 0
      %2929 = vmatpush1.bf16.msra.mxu0 0
      %2930 = vmatprep.subr.bf16.mxu0 0
      %2931 = vmatpush1.bf16.msra.mxu0 0
      %2932 = vmatprep.subr.bf16.mxu0 0
      %2933 = vmatpush1.bf16.msra.mxu0 0
      %2934 = vmatprep.subr.bf16.mxu0 0
      %2935 = vmatpush1.bf16.msra.mxu0 0
      %2936 = vmatprep.subr.bf16.mxu0 0
      %2937 = vmatpush1.bf16.msra.mxu0 0
      %2938 = vmatprep.subr.bf16.mxu0 0
      %2939 = vmatpush1.bf16.msra.mxu0 0
      %2940 = vmatprep.subr.bf16.mxu0 0
      %2941 = vmatpush1.bf16.msra.mxu0 0
      %2942 = vmatprep.mubr.bf16.mxu0 0
      %2943 = vmatmul.mubr.bf16.gmra.mrb[0].mxu0 %v2905
      %v2944 = vpop.f32.mrb[0].mxu0
      %v2945 = vadd.f32 0.0, %v2944
      %v2946 = vpop.f32.mrb[0].mxu0
      %v2947 = vpop.f32.mrb[0].mxu0
      %v2948 = vpop.f32.mrb[0].mxu0
      %2949 = vdwg.mxu0
      %2950 = vrot.lane.b32.xlu0 %v2617, 104
      %v2951 = vpop.permute.xlu0 %2950
      %2952 = vrot.lane.b32.xlu0 %v2618, 72
      %v2953 = vpop.permute.xlu0 %2952
      %v2955 = vsel %vm624, %v2951, 0
      %v2958 = vsel %vm624, %v2953, 0
      %2960 = vmatprep.subr.bf16.mxu0 0
      %2961 = vmatpush1.bf16.xpose.msra.mxu0 %v2958
      %2962 = vmatprep.subr.bf16.mxu0 0
      %2963 = vmatpush1.bf16.xpose.msra.mxu0 0
      %2964 = vmatprep.subr.bf16.mxu0 0
      %2965 = vmatpush1.bf16.xpose.msra.mxu0 0
      %2966 = vmatprep.subr.bf16.mxu0 0
      %2967 = vmatpush1.bf16.xpose.msra.mxu0 0
      %2968 = vmatprep.subr.bf16.mxu0 0
      %2969 = vmatpush1.bf16.xpose.msra.mxu0 0
      %2970 = vmatprep.subr.bf16.mxu0 0
      %2971 = vmatpush1.bf16.xpose.msra.mxu0 0
      %2972 = vmatprep.subr.bf16.mxu0 0
      %2973 = vmatpush1.bf16.xpose.msra.mxu0 0
      %2974 = vmatprep.subr.bf16.mxu0 0
      %2975 = vmatpush1.bf16.xpose.msra.mxu0 0
      %2976 = vmatprep.subr.bf16.mxu0 0
      %2977 = vmatpush1.bf16.xpose.msra.mxu0 0
      %2978 = vmatprep.subr.bf16.mxu0 0
      %2979 = vmatpush1.bf16.xpose.msra.mxu0 0
      %2980 = vmatprep.subr.bf16.mxu0 0
      %2981 = vmatpush1.bf16.xpose.msra.mxu0 0
      %2982 = vmatprep.subr.bf16.mxu0 0
      %2983 = vmatpush1.bf16.xpose.msra.mxu0 0
      %2984 = vmatprep.subr.bf16.mxu0 0
      %2985 = vmatpush1.bf16.xpose.msra.mxu0 0
      %2986 = vmatprep.subr.bf16.mxu0 0
      %2987 = vmatpush1.bf16.xpose.msra.mxu0 0
      %2988 = vmatprep.subr.bf16.mxu0 0
      %2989 = vmatpush1.bf16.xpose.msra.mxu0 0
      %2990 = vmatprep.subr.bf16.mxu0 0
      %2991 = vmatpush1.bf16.xpose.msra.mxu0 0
      %2992 = vmatprep.mubr.bf16.mxu0 0
      %2993 = vmatmul.mubr.bf16.gmra.mrb[0].mxu0 %v2955
      %v2994 = vpop.f32.mrb[0].mxu0
      %v2995 = vadd.f32 0.0, %v2994
      %v2996 = vpop.f32.mrb[0].mxu0
      %v2997 = vpop.f32.mrb[0].mxu0
      %v2998 = vpop.f32.mrb[0].mxu0
      %2999 = vdwg.mxu0
      %v3000 = vsel %vm624, %v2995, -inf
      %3001 = vmax.xlane.f32.xlu0 %v3000
      %v3002 = vpop.xlane.xlu0 %3001
      %v3003 = vsub.f32 %v2995, %v3002
      %v3004 = vmul.f32 %v3003, 1.442695
      %v3005 = vpow.pop %v3004
      %v3006 = vsel %vm624, %v3005, 0.0
      %3007 = vadd.xlane.f32.xlu0 %v3006
      %v3008 = vpop.xlane.xlu0 %3007
      %v3009 = vrcp.pop %v3008
      %v3010 = vmul.f32 %v3005, %v3009
      %v3011 = vpack.c.bf16 %v3010, %v3010
      %3012 = vrot.lane.b32.xlu0 %v2619, 104
      %v3013 = vpop.permute.xlu0 %3012
      %v3015 = vsel %vm624, %v3011, 0
      %v3018 = vsel %vm2684, %v3013, 0
      %3020 = vmatprep.subr.bf16.mxu0 0
      %3021 = vmatpush1.bf16.msra.mxu0 %v3018
      %3022 = vmatprep.subr.bf16.mxu0 0
      %3023 = vmatpush1.bf16.msra.mxu0 0
      %3024 = vmatprep.subr.bf16.mxu0 0
      %3025 = vmatpush1.bf16.msra.mxu0 0
      %3026 = vmatprep.subr.bf16.mxu0 0
      %3027 = vmatpush1.bf16.msra.mxu0 0
      %3028 = vmatprep.subr.bf16.mxu0 0
      %3029 = vmatpush1.bf16.msra.mxu0 0
      %3030 = vmatprep.subr.bf16.mxu0 0
      %3031 = vmatpush1.bf16.msra.mxu0 0
      %3032 = vmatprep.subr.bf16.mxu0 0
      %3033 = vmatpush1.bf16.msra.mxu0 0
      %3034 = vmatprep.subr.bf16.mxu0 0
      %3035 = vmatpush1.bf16.msra.mxu0 0
      %3036 = vmatprep.subr.bf16.mxu0 0
      %3037 = vmatpush1.bf16.msra.mxu0 0
      %3038 = vmatprep.subr.bf16.mxu0 0
      %3039 = vmatpush1.bf16.msra.mxu0 0
      %3040 = vmatprep.subr.bf16.mxu0 0
      %3041 = vmatpush1.bf16.msra.mxu0 0
      %3042 = vmatprep.subr.bf16.mxu0 0
      %3043 = vmatpush1.bf16.msra.mxu0 0
      %3044 = vmatprep.subr.bf16.mxu0 0
      %3045 = vmatpush1.bf16.msra.mxu0 0
      %3046 = vmatprep.subr.bf16.mxu0 0
      %3047 = vmatpush1.bf16.msra.mxu0 0
      %3048 = vmatprep.subr.bf16.mxu0 0
      %3049 = vmatpush1.bf16.msra.mxu0 0
      %3050 = vmatprep.subr.bf16.mxu0 0
      %3051 = vmatpush1.bf16.msra.mxu0 0
      %3052 = vmatprep.mubr.bf16.mxu0 0
      %3053 = vmatmul.mubr.bf16.gmra.mrb[0].mxu0 %v3015
      %v3054 = vpop.f32.mrb[0].mxu0
      %v3055 = vadd.f32 0.0, %v3054
      %v3056 = vpop.f32.mrb[0].mxu0
      %v3057 = vpop.f32.mrb[0].mxu0
      %v3058 = vpop.f32.mrb[0].mxu0
      %3059 = vdwg.mxu0
      %3061 = vrot.lane.b32.xlu0 %v2835, 8
      %v3062 = vpop.permute.xlu0 %3061
      %3065 = vrot.lane.b32.xlu0 %v2945, 16
      %v3066 = vpop.permute.xlu0 %3065
      %3069 = vrot.lane.b32.xlu0 %v3055, 24
      %v3070 = vpop.permute.xlu0 %3069
      %v3072 = vsel %vm624, %v2723, %v3062
      %v3073 = vsel %vm296, %v3072, %v3066
      %v3074 = vsel %vm1862, %v3073, %v3070
      %v3075 = vpack.c.bf16 %v3074, %v3074
      %v3076 = vlaneseq
      %v3077 = vshrl.u32 %v3076, 7
      %v3078 = vsub.s32 0, %v3077
      %v3079 = vrot.slane %v2615, %v3078
      %v3084 = vunpack.c.l.b16 %v2611
      %v3085 = vunpack.c.l.b16 %v2612
      %v3086 = vunpack.c.l.b16 %v2613
      %v3087 = vunpack.c.l.b16 %v2614
      %v3088 = vpack.c.b16 %v3085, %v3084
      %v3089 = vpack.c.b16 %v3087, %v3086
      %v3093 = vsel %vm407, %v3075, 0
      %3095 = vmatprep.subr.bf16.mxu0 0
      %3096 = vmatpush1.bf16.msra.mxu0 %v3088
      %3097 = vmatprep.subr.bf16.mxu0 0
      %3098 = vmatpush1.bf16.msra.mxu0 %v3089
      %3099 = vmatprep.subr.bf16.mxu0 0
      %3100 = vmatpush1.bf16.msra.mxu0 0
      %3101 = vmatprep.subr.bf16.mxu0 0
      %3102 = vmatpush1.bf16.msra.mxu0 0
      %3103 = vmatprep.subr.bf16.mxu0 0
      %3104 = vmatpush1.bf16.msra.mxu0 0
      %3105 = vmatprep.subr.bf16.mxu0 0
      %3106 = vmatpush1.bf16.msra.mxu0 0
      %3107 = vmatprep.subr.bf16.mxu0 0
      %3108 = vmatpush1.bf16.msra.mxu0 0
      %3109 = vmatprep.subr.bf16.mxu0 0
      %3110 = vmatpush1.bf16.msra.mxu0 0
      %3111 = vmatprep.subr.bf16.mxu0 0
      %3112 = vmatpush1.bf16.msra.mxu0 0
      %3113 = vmatprep.subr.bf16.mxu0 0
      %3114 = vmatpush1.bf16.msra.mxu0 0
      %3115 = vmatprep.subr.bf16.mxu0 0
      %3116 = vmatpush1.bf16.msra.mxu0 0
      %3117 = vmatprep.subr.bf16.mxu0 0
      %3118 = vmatpush1.bf16.msra.mxu0 0
      %3119 = vmatprep.subr.bf16.mxu0 0
      %3120 = vmatpush1.bf16.msra.mxu0 0
      %3121 = vmatprep.subr.bf16.mxu0 0
      %3122 = vmatpush1.bf16.msra.mxu0 0
      %3123 = vmatprep.subr.bf16.mxu0 0
      %3124 = vmatpush1.bf16.msra.mxu0 0
      %3125 = vmatprep.subr.bf16.mxu0 0
      %3126 = vmatpush1.bf16.msra.mxu0 0
      %3127 = vmatprep.mubr.bf16.mxu0 0
      %3128 = vmatmul.mubr.bf16.gmra.mrb[0].mxu0 %v3093
      %v3129 = vpop.f32.mrb[0].mxu0
      %v3130 = vadd.f32 %v3079, %v3129
      %v3131 = vpop.f32.mrb[0].mxu0
      %v3132 = vpop.f32.mrb[0].mxu0
      %v3133 = vpop.f32.mrb[0].mxu0
      %3134 = vdwg.mxu0
      %v3135 = vadd.f32 %v3130, 0.0
      %v3136 = vld [vmem:[%s4 + $0x13] sm:$0x1]
      %v3137 = vld [vmem:[%s4 + $0x14] sm:$0x1]
      %v3138 = vsel %vm407, %v3135, 0.0
      %3139 = vadd.xlane.f32.xlu0 %v3138
      %v3140 = vpop.xlane.xlu0 %3139
      %v3141 = vmul.f32 %v3140, %v2002
      %v3142 = vsub.f32 %v3135, %v3141
      %v3143 = vmul.f32 %v3142, %v3142
      %v3144 = vsel %vm407, %v3143, 0.0
      %3145 = vadd.xlane.f32.xlu0 %v3144
      %v3146 = vpop.xlane.xlu0 %3145
      %v3147 = vmul.f32 %v3146, %v2002
      %v3148 = vadd.f32 %v3147, 1e-05
      %v3149 = vrsqrt.pop %v3148
      %v3150 = vmul.f32 %v3142, %v3149
      %v3151 = vlaneseq
      %v3152 = vshrl.u32 %v3151, 7
      %v3153 = vsub.s32 0, %v3152
      %v3154 = vrot.slane %v3136, %v3153
      %v3155 = vmul.f32 %v3150, %v3154
      %v3156 = vlaneseq
      %v3157 = vshrl.u32 %v3156, 7
      %v3158 = vsub.s32 0, %v3157
      %v3159 = vrot.slane %v3137, %v3158
      %v3160 = vadd.f32 %v3155, %v3159
      %v3161 = vadd.f32 %v3160, %v270
      %v3162 = vld [vmem:[%s3 + $0x98] sm:$0xf]
      %v3163 = vld [vmem:[%s3 + $0x9c] sm:$0xf]
      %v3164 = vld [vmem:[%s3 + $0xa0] sm:$0xf]
      %v3165 = vld [vmem:[%s3 + $0xa4] sm:$0xf]
      %v3166 = vpack.c.bf16 %v3161, %v3161
      %v3167 = vld [vmem:[%s4 + $0xd] sm:$0x1]
      %v3168 = vlaneseq
      %v3169 = vshrl.u32 %v3168, 7
      %v3170 = vsub.s32 0, %v3169
      %v3171 = vrot.slane %v3167, %v3170
      %v3176 = vunpack.c.l.b16 %v3162
      %v3177 = vunpack.c.l.b16 %v3163
      %v3178 = vunpack.c.l.b16 %v3164
      %v3179 = vunpack.c.l.b16 %v3165
      %v3180 = vpack.c.b16 %v3177, %v3176
      %v3181 = vpack.c.b16 %v3179, %v3178
      %v3185 = vsel %vm407, %v3166, 0
      %3187 = vmatprep.subr.bf16.mxu0 0
      %3188 = vmatpush1.bf16.msra.mxu0 %v3180
      %3189 = vmatprep.subr.bf16.mxu0 0
      %3190 = vmatpush1.bf16.msra.mxu0 %v3181
      %3191 = vmatprep.subr.bf16.mxu0 0
      %3192 = vmatpush1.bf16.msra.mxu0 0
      %3193 = vmatprep.subr.bf16.mxu0 0
      %3194 = vmatpush1.bf16.msra.mxu0 0
      %3195 = vmatprep.subr.bf16.mxu0 0
      %3196 = vmatpush1.bf16.msra.mxu0 0
      %3197 = vmatprep.subr.bf16.mxu0 0
      %3198 = vmatpush1.bf16.msra.mxu0 0
      %3199 = vmatprep.subr.bf16.mxu0 0
      %3200 = vmatpush1.bf16.msra.mxu0 0
      %3201 = vmatprep.subr.bf16.mxu0 0
      %3202 = vmatpush1.bf16.msra.mxu0 0
      %3203 = vmatprep.subr.bf16.mxu0 0
      %3204 = vmatpush1.bf16.msra.mxu0 0
      %3205 = vmatprep.subr.bf16.mxu0 0
      %3206 = vmatpush1.bf16.msra.mxu0 0
      %3207 = vmatprep.subr.bf16.mxu0 0
      %3208 = vmatpush1.bf16.msra.mxu0 0
      %3209 = vmatprep.subr.bf16.mxu0 0
      %3210 = vmatpush1.bf16.msra.mxu0 0
      %3211 = vmatprep.subr.bf16.mxu0 0
      %3212 = vmatpush1.bf16.msra.mxu0 0
      %3213 = vmatprep.subr.bf16.mxu0 0
      %3214 = vmatpush1.bf16.msra.mxu0 0
      %3215 = vmatprep.subr.bf16.mxu0 0
      %3216 = vmatpush1.bf16.msra.mxu0 0
      %3217 = vmatprep.subr.bf16.mxu0 0
      %3218 = vmatpush1.bf16.msra.mxu0 0
      %3219 = vmatprep.mubr.bf16.mxu0 0
      %3220 = vmatmul.mubr.bf16.gmra.mrb[0].mxu0 %v3185
      %v3221 = vpop.f32.mrb[0].mxu0
      %v3222 = vadd.f32 %v3171, %v3221
      %v3223 = vpop.f32.mrb[0].mxu0
      %v3224 = vpop.f32.mrb[0].mxu0
      %v3225 = vpop.f32.mrb[0].mxu0
      %3226 = vdwg.mxu0
      %v3227 = vld [vmem:[%s3 + $0xa8] sm:$0xf]
      %v3228 = vld [vmem:[%s3 + $0xac] sm:$0xf]
      %v3229 = vld [vmem:[%s3 + $0xb0] sm:$0xf]
      %v3230 = vld [vmem:[%s3 + $0xb4] sm:$0xf]
      %v3231 = vpack.c.bf16 %v2474, %v2473
      %v3232 = vpack.c.bf16 %v2476, %v2475
      %v3233 = vpack.c.bf16 %v2478, %v2477
      %v3234 = vpack.c.bf16 %v2480, %v2479
      %v3235 = vld [vmem:[%s4 + $0xe] sm:$0x1]
      %v3236 = vlaneseq
      %v3237 = vshrl.u32 %v3236, 7
      %v3238 = vsub.s32 0, %v3237
      %v3239 = vrot.slane %v3235, %v3238
      %v3244 = vunpack.c.l.b16 %v3227
      %v3245 = vunpack.c.l.b16 %v3228
      %v3246 = vunpack.c.l.b16 %v3229
      %v3247 = vunpack.c.l.b16 %v3230
      %v3248 = vpack.c.b16 %v3245, %v3244
      %v3249 = vpack.c.b16 %v3247, %v3246
      %v3253 = vsel %vm407, %v3231, 0
      %v3256 = vsel %vm407, %v3232, 0
      %v3259 = vsel %vm407, %v3233, 0
      %v3262 = vsel %vm407, %v3234, 0
      %3264 = vmatprep.subr.bf16.mxu0 0
      %3265 = vmatpush1.bf16.msra.mxu0 %v3248
      %3266 = vmatprep.subr.bf16.mxu0 0
      %3267 = vmatpush1.bf16.msra.mxu0 %v3249
      %3268 = vmatprep.subr.bf16.mxu0 0
      %3269 = vmatpush1.bf16.msra.mxu0 0
      %3270 = vmatprep.subr.bf16.mxu0 0
      %3271 = vmatpush1.bf16.msra.mxu0 0
      %3272 = vmatprep.subr.bf16.mxu0 0
      %3273 = vmatpush1.bf16.msra.mxu0 0
      %3274 = vmatprep.subr.bf16.mxu0 0
      %3275 = vmatpush1.bf16.msra.mxu0 0
      %3276 = vmatprep.subr.bf16.mxu0 0
      %3277 = vmatpush1.bf16.msra.mxu0 0
      %3278 = vmatprep.subr.bf16.mxu0 0
      %3279 = vmatpush1.bf16.msra.mxu0 0
      %3280 = vmatprep.subr.bf16.mxu0 0
      %3281 = vmatpush1.bf16.msra.mxu0 0
      %3282 = vmatprep.subr.bf16.mxu0 0
      %3283 = vmatpush1.bf16.msra.mxu0 0
      %3284 = vmatprep.subr.bf16.mxu0 0
      %3285 = vmatpush1.bf16.msra.mxu0 0
      %3286 = vmatprep.subr.bf16.mxu0 0
      %3287 = vmatpush1.bf16.msra.mxu0 0
      %3288 = vmatprep.subr.bf16.mxu0 0
      %3289 = vmatpush1.bf16.msra.mxu0 0
      %3290 = vmatprep.subr.bf16.mxu0 0
      %3291 = vmatpush1.bf16.msra.mxu0 0
      %3292 = vmatprep.subr.bf16.mxu0 0
      %3293 = vmatpush1.bf16.msra.mxu0 0
      %3294 = vmatprep.subr.bf16.mxu0 0
      %3295 = vmatpush1.bf16.msra.mxu0 0
      %3296 = vmatprep.mubr.bf16.mxu0 0
      %3297 = vmatmul.mubr.bf16.gmra.mrb[0].mxu0 %v3253
      %v3298 = vpop.f32.mrb[0].mxu0
      %v3299 = vadd.f32 %v3239, %v3298
      %v3300 = vpop.f32.mrb[0].mxu0
      %v3301 = vpop.f32.mrb[0].mxu0
      %v3302 = vadd.f32 %v3239, %v3301
      %v3303 = vpop.f32.mrb[0].mxu0
      %3304 = vmatprep.mubr.bf16.mxu0 0
      %3305 = vmatmul.mubr.bf16.gmra.mrb[0].mxu0 %v3256
      %v3306 = vpop.f32.mrb[0].mxu0
      %v3307 = vadd.f32 %v3239, %v3306
      %v3308 = vpop.f32.mrb[0].mxu0
      %v3309 = vpop.f32.mrb[0].mxu0
      %v3310 = vadd.f32 %v3239, %v3309
      %v3311 = vpop.f32.mrb[0].mxu0
      %3312 = vmatprep.mubr.bf16.mxu0 0
      %3313 = vmatmul.mubr.bf16.gmra.mrb[0].mxu0 %v3259
      %v3314 = vpop.f32.mrb[0].mxu0
      %v3315 = vadd.f32 %v3239, %v3314
      %v3316 = vpop.f32.mrb[0].mxu0
      %v3317 = vpop.f32.mrb[0].mxu0
      %v3318 = vadd.f32 %v3239, %v3317
      %v3319 = vpop.f32.mrb[0].mxu0
      %3320 = vmatprep.mubr.bf16.mxu0 0
      %3321 = vmatmul.mubr.bf16.gmra.mrb[0].mxu0 %v3262
      %v3322 = vpop.f32.mrb[0].mxu0
      %v3323 = vadd.f32 %v3239, %v3322
      %v3324 = vpop.f32.mrb[0].mxu0
      %v3325 = vpop.f32.mrb[0].mxu0
      %v3326 = vadd.f32 %v3239, %v3325
      %v3327 = vpop.f32.mrb[0].mxu0
      %3328 = vdwg.mxu0
      %v3329 = vld [vmem:[%s3 + $0xb8] sm:$0xf]
      %v3330 = vld [vmem:[%s3 + $0xbc] sm:$0xf]
      %v3331 = vld [vmem:[%s3 + $0xc0] sm:$0xf]
      %v3332 = vld [vmem:[%s3 + $0xc4] sm:$0xf]
      %v3333 = vpack.c.bf16 %v2466, %v2465
      %v3334 = vpack.c.bf16 %v2468, %v2467
      %v3335 = vpack.c.bf16 %v2470, %v2469
      %v3336 = vpack.c.bf16 %v2472, %v2471
      %v3337 = vld [vmem:[%s4 + $0xf] sm:$0x1]
      %v3338 = vlaneseq
      %v3339 = vshrl.u32 %v3338, 7
      %v3340 = vsub.s32 0, %v3339
      %v3341 = vrot.slane %v3337, %v3340
      %v3346 = vunpack.c.l.b16 %v3329
      %v3347 = vunpack.c.l.b16 %v3330
      %v3348 = vunpack.c.l.b16 %v3331
      %v3349 = vunpack.c.l.b16 %v3332
      %v3350 = vpack.c.b16 %v3347, %v3346
      %v3351 = vpack.c.b16 %v3349, %v3348
      %v3355 = vsel %vm407, %v3333, 0
      %v3358 = vsel %vm407, %v3334, 0
      %v3361 = vsel %vm407, %v3335, 0
      %v3364 = vsel %vm407, %v3336, 0
      %3366 = vmatprep.subr.bf16.mxu0 0
      %3367 = vmatpush1.bf16.msra.mxu0 %v3350
      %3368 = vmatprep.subr.bf16.mxu0 0
      %3369 = vmatpush1.bf16.msra.mxu0 %v3351
      %3370 = vmatprep.subr.bf16.mxu0 0
      %3371 = vmatpush1.bf16.msra.mxu0 0
      %3372 = vmatprep.subr.bf16.mxu0 0
      %3373 = vmatpush1.bf16.msra.mxu0 0
      %3374 = vmatprep.subr.bf16.mxu0 0
      %3375 = vmatpush1.bf16.msra.mxu0 0
      %3376 = vmatprep.subr.bf16.mxu0 0
      %3377 = vmatpush1.bf16.msra.mxu0 0
      %3378 = vmatprep.subr.bf16.mxu0 0
      %3379 = vmatpush1.bf16.msra.mxu0 0
      %3380 = vmatprep.subr.bf16.mxu0 0
      %3381 = vmatpush1.bf16.msra.mxu0 0
      %3382 = vmatprep.subr.bf16.mxu0 0
      %3383 = vmatpush1.bf16.msra.mxu0 0
      %3384 = vmatprep.subr.bf16.mxu0 0
      %3385 = vmatpush1.bf16.msra.mxu0 0
      %3386 = vmatprep.subr.bf16.mxu0 0
      %3387 = vmatpush1.bf16.msra.mxu0 0
      %3388 = vmatprep.subr.bf16.mxu0 0
      %3389 = vmatpush1.bf16.msra.mxu0 0
      %3390 = vmatprep.subr.bf16.mxu0 0
      %3391 = vmatpush1.bf16.msra.mxu0 0
      %3392 = vmatprep.subr.bf16.mxu0 0
      %3393 = vmatpush1.bf16.msra.mxu0 0
      %3394 = vmatprep.subr.bf16.mxu0 0
      %3395 = vmatpush1.bf16.msra.mxu0 0
      %3396 = vmatprep.subr.bf16.mxu0 0
      %3397 = vmatpush1.bf16.msra.mxu0 0
      %3398 = vmatprep.mubr.bf16.mxu0 0
      %3399 = vmatmul.mubr.bf16.gmra.mrb[0].mxu0 %v3355
      %v3400 = vpop.f32.mrb[0].mxu0
      %v3401 = vadd.f32 %v3341, %v3400
      %v3402 = vpop.f32.mrb[0].mxu0
      %v3403 = vpop.f32.mrb[0].mxu0
      %v3404 = vadd.f32 %v3341, %v3403
      %v3405 = vpop.f32.mrb[0].mxu0
      %3406 = vmatprep.mubr.bf16.mxu0 0
      %3407 = vmatmul.mubr.bf16.gmra.mrb[0].mxu0 %v3358
      %v3408 = vpop.f32.mrb[0].mxu0
      %v3409 = vadd.f32 %v3341, %v3408
      %v3410 = vpop.f32.mrb[0].mxu0
      %v3411 = vpop.f32.mrb[0].mxu0
      %v3412 = vadd.f32 %v3341, %v3411
      %v3413 = vpop.f32.mrb[0].mxu0
      %3414 = vmatprep.mubr.bf16.mxu0 0
      %3415 = vmatmul.mubr.bf16.gmra.mrb[0].mxu0 %v3361
      %v3416 = vpop.f32.mrb[0].mxu0
      %v3417 = vadd.f32 %v3341, %v3416
      %v3418 = vpop.f32.mrb[0].mxu0
      %v3419 = vpop.f32.mrb[0].mxu0
      %v3420 = vadd.f32 %v3341, %v3419
      %v3421 = vpop.f32.mrb[0].mxu0
      %3422 = vmatprep.mubr.bf16.mxu0 0
      %3423 = vmatmul.mubr.bf16.gmra.mrb[0].mxu0 %v3364
      %v3424 = vpop.f32.mrb[0].mxu0
      %v3425 = vadd.f32 %v3341, %v3424
      %v3426 = vpop.f32.mrb[0].mxu0
      %v3427 = vpop.f32.mrb[0].mxu0
      %v3428 = vadd.f32 %v3341, %v3427
      %v3429 = vpop.f32.mrb[0].mxu0
      %3430 = vdwg.mxu0
      %v3431 = vld [vmem:[%s3 + $0xc8] sm:$0xf]
      %v3432 = vld [vmem:[%s3 + $0xcc] sm:$0xf]
      %v3433 = vld [vmem:[%s3 + $0xd0] sm:$0xf]
      %v3434 = vld [vmem:[%s3 + $0xd4] sm:$0xf]
      %v3435 = vld [vmem:[%s4 + $0x10] sm:$0x1]
      %v3436 = vmul.f32 %v3222, 0.35355338
      %v3437 = vpack.c.bf16 %v3436, %v3436
      %v3438 = vpack.c.bf16 %v3302, %v3299
      %v3439 = vpack.c.bf16 %v3310, %v3307
      %v3440 = vpack.c.bf16 %v3318, %v3315
      %v3441 = vpack.c.bf16 %v3326, %v3323
      %v3442 = vpack.c.bf16 %v3404, %v3401
      %v3443 = vpack.c.bf16 %v3412, %v3409
      %v3444 = vpack.c.bf16 %v3420, %v3417
      %v3445 = vpack.c.bf16 %v3428, %v3425
      %v3447 = vsel %vm624, %v3437, 0
      %v3450 = vsel %vm624, %v3438, 0
      %v3453 = vsel %vm624, %v3439, 0
      %v3456 = vsel %vm624, %v3440, 0
      %v3459 = vsel %vm624, %v3441, 0
      %3461 = vmatprep.subr.bf16.mxu0 0
      %3462 = vmatpush1.bf16.xpose.msra.mxu0 %v3450
      %3463 = vmatprep.subr.bf16.mxu0 0
      %3464 = vmatpush1.bf16.xpose.msra.mxu0 %v3453
      %3465 = vmatprep.subr.bf16.mxu0 0
      %3466 = vmatpush1.bf16.xpose.msra.mxu0 %v3456
      %3467 = vmatprep.subr.bf16.mxu0 0
      %3468 = vmatpush1.bf16.xpose.msra.mxu0 %v3459
      %3469 = vmatprep.subr.bf16.mxu0 0
      %3470 = vmatpush1.bf16.xpose.msra.mxu0 0
      %3471 = vmatprep.subr.bf16.mxu0 0
      %3472 = vmatpush1.bf16.xpose.msra.mxu0 0
      %3473 = vmatprep.subr.bf16.mxu0 0
      %3474 = vmatpush1.bf16.xpose.msra.mxu0 0
      %3475 = vmatprep.subr.bf16.mxu0 0
      %3476 = vmatpush1.bf16.xpose.msra.mxu0 0
      %3477 = vmatprep.subr.bf16.mxu0 0
      %3478 = vmatpush1.bf16.xpose.msra.mxu0 0
      %3479 = vmatprep.subr.bf16.mxu0 0
      %3480 = vmatpush1.bf16.xpose.msra.mxu0 0
      %3481 = vmatprep.subr.bf16.mxu0 0
      %3482 = vmatpush1.bf16.xpose.msra.mxu0 0
      %3483 = vmatprep.subr.bf16.mxu0 0
      %3484 = vmatpush1.bf16.xpose.msra.mxu0 0
      %3485 = vmatprep.subr.bf16.mxu0 0
      %3486 = vmatpush1.bf16.xpose.msra.mxu0 0
      %3487 = vmatprep.subr.bf16.mxu0 0
      %3488 = vmatpush1.bf16.xpose.msra.mxu0 0
      %3489 = vmatprep.subr.bf16.mxu0 0
      %3490 = vmatpush1.bf16.xpose.msra.mxu0 0
      %3491 = vmatprep.subr.bf16.mxu0 0
      %3492 = vmatpush1.bf16.xpose.msra.mxu0 0
      %3493 = vmatprep.mubr.bf16.mxu0 0
      %3494 = vmatmul.mubr.bf16.gmra.mrb[0].mxu0 %v3447
      %v3495 = vpop.f32.mrb[0].mxu0
      %v3496 = vadd.f32 0.0, %v3495
      %v3497 = vpop.f32.mrb[0].mxu0
      %v3498 = vpop.f32.mrb[0].mxu0
      %v3499 = vpop.f32.mrb[0].mxu0
      %3500 = vdwg.mxu0
      %v3501 = vsel %vm714, %v3496, -inf
      %3502 = vmax.xlane.f32.xlu0 %v3501
      %v3503 = vpop.xlane.xlu0 %3502
      %v3504 = vsub.f32 %v3496, %v3503
      %v3505 = vmul.f32 %v3504, 1.442695
      %v3506 = vpow.pop %v3505
      %v3507 = vsel %vm714, %v3506, 0.0
      %3508 = vadd.xlane.f32.xlu0 %v3507
      %v3509 = vpop.xlane.xlu0 %3508
      %v3510 = vrcp.pop %v3509
      %v3511 = vmul.f32 %v3506, %v3510
      %v3512 = vpack.c.bf16 %v3511, %v3511
      %v3514 = vsel %vm714, %v3512, 0
      %3516 = vmatprep.subr.bf16.mxu0 0
      %3517 = vmatpush1.bf16.msra.mxu0 %v3442
      %3518 = vmatprep.subr.bf16.mxu0 0
      %3519 = vmatpush1.bf16.msra.mxu0 %v3443
      %3520 = vmatprep.subr.bf16.mxu0 0
      %3521 = vmatpush1.bf16.msra.mxu0 %v3444
      %3522 = vmatprep.subr.bf16.mxu0 0
      %3523 = vmatpush1.bf16.msra.mxu0 %v3445
      %3524 = vmatprep.subr.bf16.mxu0 0
      %3525 = vmatpush1.bf16.msra.mxu0 0
      %3526 = vmatprep.subr.bf16.mxu0 0
      %3527 = vmatpush1.bf16.msra.mxu0 0
      %3528 = vmatprep.subr.bf16.mxu0 0
      %3529 = vmatpush1.bf16.msra.mxu0 0
      %3530 = vmatprep.subr.bf16.mxu0 0
      %3531 = vmatpush1.bf16.msra.mxu0 0
      %3532 = vmatprep.subr.bf16.mxu0 0
      %3533 = vmatpush1.bf16.msra.mxu0 0
      %3534 = vmatprep.subr.bf16.mxu0 0
      %3535 = vmatpush1.bf16.msra.mxu0 0
      %3536 = vmatprep.subr.bf16.mxu0 0
      %3537 = vmatpush1.bf16.msra.mxu0 0
      %3538 = vmatprep.subr.bf16.mxu0 0
      %3539 = vmatpush1.bf16.msra.mxu0 0
      %3540 = vmatprep.subr.bf16.mxu0 0
      %3541 = vmatpush1.bf16.msra.mxu0 0
      %3542 = vmatprep.subr.bf16.mxu0 0
      %3543 = vmatpush1.bf16.msra.mxu0 0
      %3544 = vmatprep.subr.bf16.mxu0 0
      %3545 = vmatpush1.bf16.msra.mxu0 0
      %3546 = vmatprep.subr.bf16.mxu0 0
      %3547 = vmatpush1.bf16.msra.mxu0 0
      %3548 = vmatprep.mubr.bf16.mxu0 0
      %3549 = vmatmul.mubr.bf16.gmra.mrb[0].mxu0 %v3514
      %v3550 = vpop.f32.mrb[0].mxu0
      %v3551 = vadd.f32 0.0, %v3550
      %v3552 = vpop.f32.mrb[0].mxu0
      %v3553 = vpop.f32.mrb[0].mxu0
      %v3554 = vpop.f32.mrb[0].mxu0
      %3555 = vdwg.mxu0
      %3557 = vrot.lane.b32.xlu0 %v3437, 120
      %v3558 = vpop.permute.xlu0 %3557
      %3563 = vrot.lane.b32.xlu0 %v3438, 120
      %v3564 = vpop.permute.xlu0 %3563
      %3565 = vrot.lane.b32.xlu0 %v3439, 120
      %v3566 = vpop.permute.xlu0 %3565
      %3567 = vrot.lane.b32.xlu0 %v3440, 120
      %v3568 = vpop.permute.xlu0 %3567
      %3569 = vrot.lane.b32.xlu0 %v3441, 120
      %v3570 = vpop.permute.xlu0 %3569
      %v3572 = vsel %vm624, %v3558, 0
      %v3575 = vsel %vm624, %v3564, 0
      %v3578 = vsel %vm624, %v3566, 0
      %v3581 = vsel %vm624, %v3568, 0
      %v3584 = vsel %vm624, %v3570, 0
      %3586 = vmatprep.subr.bf16.mxu0 0
      %3587 = vmatpush1.bf16.xpose.msra.mxu0 %v3575
      %3588 = vmatprep.subr.bf16.mxu0 0
      %3589 = vmatpush1.bf16.xpose.msra.mxu0 %v3578
      %3590 = vmatprep.subr.bf16.mxu0 0
      %3591 = vmatpush1.bf16.xpose.msra.mxu0 %v3581
      %3592 = vmatprep.subr.bf16.mxu0 0
      %3593 = vmatpush1.bf16.xpose.msra.mxu0 %v3584
      %3594 = vmatprep.subr.bf16.mxu0 0
      %3595 = vmatpush1.bf16.xpose.msra.mxu0 0
      %3596 = vmatprep.subr.bf16.mxu0 0
      %3597 = vmatpush1.bf16.xpose.msra.mxu0 0
      %3598 = vmatprep.subr.bf16.mxu0 0
      %3599 = vmatpush1.bf16.xpose.msra.mxu0 0
      %3600 = vmatprep.subr.bf16.mxu0 0
      %3601 = vmatpush1.bf16.xpose.msra.mxu0 0
      %3602 = vmatprep.subr.bf16.mxu0 0
      %3603 = vmatpush1.bf16.xpose.msra.mxu0 0
      %3604 = vmatprep.subr.bf16.mxu0 0
      %3605 = vmatpush1.bf16.xpose.msra.mxu0 0
      %3606 = vmatprep.subr.bf16.mxu0 0
      %3607 = vmatpush1.bf16.xpose.msra.mxu0 0
      %3608 = vmatprep.subr.bf16.mxu0 0
      %3609 = vmatpush1.bf16.xpose.msra.mxu0 0
      %3610 = vmatprep.subr.bf16.mxu0 0
      %3611 = vmatpush1.bf16.xpose.msra.mxu0 0
      %3612 = vmatprep.subr.bf16.mxu0 0
      %3613 = vmatpush1.bf16.xpose.msra.mxu0 0
      %3614 = vmatprep.subr.bf16.mxu0 0
      %3615 = vmatpush1.bf16.xpose.msra.mxu0 0
      %3616 = vmatprep.subr.bf16.mxu0 0
      %3617 = vmatpush1.bf16.xpose.msra.mxu0 0
      %3618 = vmatprep.mubr.bf16.mxu0 0
      %3619 = vmatmul.mubr.bf16.gmra.mrb[0].mxu0 %v3572
      %v3620 = vpop.f32.mrb[0].mxu0
      %v3621 = vadd.f32 0.0, %v3620
      %v3622 = vpop.f32.mrb[0].mxu0
      %v3623 = vpop.f32.mrb[0].mxu0
      %v3624 = vpop.f32.mrb[0].mxu0
      %3625 = vdwg.mxu0
      %v3626 = vsel %vm714, %v3621, -inf
      %3627 = vmax.xlane.f32.xlu0 %v3626
      %v3628 = vpop.xlane.xlu0 %3627
      %v3629 = vsub.f32 %v3621, %v3628
      %v3630 = vmul.f32 %v3629, 1.442695
      %v3631 = vpow.pop %v3630
      %v3632 = vsel %vm714, %v3631, 0.0
      %3633 = vadd.xlane.f32.xlu0 %v3632
      %v3634 = vpop.xlane.xlu0 %3633
      %v3635 = vrcp.pop %v3634
      %v3636 = vmul.f32 %v3631, %v3635
      %v3637 = vpack.c.bf16 %v3636, %v3636
      %3642 = vrot.lane.b32.xlu0 %v3442, 120
      %v3643 = vpop.permute.xlu0 %3642
      %3644 = vrot.lane.b32.xlu0 %v3443, 120
      %v3645 = vpop.permute.xlu0 %3644
      %3646 = vrot.lane.b32.xlu0 %v3444, 120
      %v3647 = vpop.permute.xlu0 %3646
      %3648 = vrot.lane.b32.xlu0 %v3445, 120
      %v3649 = vpop.permute.xlu0 %3648
      %v3655 = vsel %vm714, %v3637, 0
      %3657 = vmatprep.subr.bf16.mxu0 0
      %3658 = vmatpush1.bf16.msra.mxu0 %v3643
      %3659 = vmatprep.subr.bf16.mxu0 0
      %3660 = vmatpush1.bf16.msra.mxu0 %v3645
      %3661 = vmatprep.subr.bf16.mxu0 0
      %3662 = vmatpush1.bf16.msra.mxu0 %v3647
      %3663 = vmatprep.subr.bf16.mxu0 0
      %3664 = vmatpush1.bf16.msra.mxu0 %v3649
      %3665 = vmatprep.subr.bf16.mxu0 0
      %3666 = vmatpush1.bf16.msra.mxu0 0
      %3667 = vmatprep.subr.bf16.mxu0 0
      %3668 = vmatpush1.bf16.msra.mxu0 0
      %3669 = vmatprep.subr.bf16.mxu0 0
      %3670 = vmatpush1.bf16.msra.mxu0 0
      %3671 = vmatprep.subr.bf16.mxu0 0
      %3672 = vmatpush1.bf16.msra.mxu0 0
      %3673 = vmatprep.subr.bf16.mxu0 0
      %3674 = vmatpush1.bf16.msra.mxu0 0
      %3675 = vmatprep.subr.bf16.mxu0 0
      %3676 = vmatpush1.bf16.msra.mxu0 0
      %3677 = vmatprep.subr.bf16.mxu0 0
      %3678 = vmatpush1.bf16.msra.mxu0 0
      %3679 = vmatprep.subr.bf16.mxu0 0
      %3680 = vmatpush1.bf16.msra.mxu0 0
      %3681 = vmatprep.subr.bf16.mxu0 0
      %3682 = vmatpush1.bf16.msra.mxu0 0
      %3683 = vmatprep.subr.bf16.mxu0 0
      %3684 = vmatpush1.bf16.msra.mxu0 0
      %3685 = vmatprep.subr.bf16.mxu0 0
      %3686 = vmatpush1.bf16.msra.mxu0 0
      %3687 = vmatprep.subr.bf16.mxu0 0
      %3688 = vmatpush1.bf16.msra.mxu0 0
      %3689 = vmatprep.mubr.bf16.mxu0 0
      %3690 = vmatmul.mubr.bf16.gmra.mrb[0].mxu0 %v3655
      %v3691 = vpop.f32.mrb[0].mxu0
      %v3692 = vadd.f32 0.0, %v3691
      %v3693 = vpop.f32.mrb[0].mxu0
      %v3694 = vpop.f32.mrb[0].mxu0
      %v3695 = vpop.f32.mrb[0].mxu0
      %3696 = vdwg.mxu0
      %3697 = vrot.lane.b32.xlu0 %v3437, 112
      %v3698 = vpop.permute.xlu0 %3697
      %3699 = vrot.lane.b32.xlu0 %v3438, 112
      %v3700 = vpop.permute.xlu0 %3699
      %3701 = vrot.lane.b32.xlu0 %v3439, 112
      %v3702 = vpop.permute.xlu0 %3701
      %3703 = vrot.lane.b32.xlu0 %v3440, 112
      %v3704 = vpop.permute.xlu0 %3703
      %3705 = vrot.lane.b32.xlu0 %v3441, 112
      %v3706 = vpop.permute.xlu0 %3705
      %v3708 = vsel %vm624, %v3698, 0
      %v3711 = vsel %vm624, %v3700, 0
      %v3714 = vsel %vm624, %v3702, 0
      %v3717 = vsel %vm624, %v3704, 0
      %v3720 = vsel %vm624, %v3706, 0
      %3722 = vmatprep.subr.bf16.mxu0 0
      %3723 = vmatpush1.bf16.xpose.msra.mxu0 %v3711
      %3724 = vmatprep.subr.bf16.mxu0 0
      %3725 = vmatpush1.bf16.xpose.msra.mxu0 %v3714
      %3726 = vmatprep.subr.bf16.mxu0 0
      %3727 = vmatpush1.bf16.xpose.msra.mxu0 %v3717
      %3728 = vmatprep.subr.bf16.mxu0 0
      %3729 = vmatpush1.bf16.xpose.msra.mxu0 %v3720
      %3730 = vmatprep.subr.bf16.mxu0 0
      %3731 = vmatpush1.bf16.xpose.msra.mxu0 0
      %3732 = vmatprep.subr.bf16.mxu0 0
      %3733 = vmatpush1.bf16.xpose.msra.mxu0 0
      %3734 = vmatprep.subr.bf16.mxu0 0
      %3735 = vmatpush1.bf16.xpose.msra.mxu0 0
      %3736 = vmatprep.subr.bf16.mxu0 0
      %3737 = vmatpush1.bf16.xpose.msra.mxu0 0
      %3738 = vmatprep.subr.bf16.mxu0 0
      %3739 = vmatpush1.bf16.xpose.msra.mxu0 0
      %3740 = vmatprep.subr.bf16.mxu0 0
      %3741 = vmatpush1.bf16.xpose.msra.mxu0 0
      %3742 = vmatprep.subr.bf16.mxu0 0
      %3743 = vmatpush1.bf16.xpose.msra.mxu0 0
      %3744 = vmatprep.subr.bf16.mxu0 0
      %3745 = vmatpush1.bf16.xpose.msra.mxu0 0
      %3746 = vmatprep.subr.bf16.mxu0 0
      %3747 = vmatpush1.bf16.xpose.msra.mxu0 0
      %3748 = vmatprep.subr.bf16.mxu0 0
      %3749 = vmatpush1.bf16.xpose.msra.mxu0 0
      %3750 = vmatprep.subr.bf16.mxu0 0
      %3751 = vmatpush1.bf16.xpose.msra.mxu0 0
      %3752 = vmatprep.subr.bf16.mxu0 0
      %3753 = vmatpush1.bf16.xpose.msra.mxu0 0
      %3754 = vmatprep.mubr.bf16.mxu0 0
      %3755 = vmatmul.mubr.bf16.gmra.mrb[0].mxu0 %v3708
      %v3756 = vpop.f32.mrb[0].mxu0
      %v3757 = vadd.f32 0.0, %v3756
      %v3758 = vpop.f32.mrb[0].mxu0
      %v3759 = vpop.f32.mrb[0].mxu0
      %v3760 = vpop.f32.mrb[0].mxu0
      %3761 = vdwg.mxu0
      %v3762 = vsel %vm714, %v3757, -inf
      %3763 = vmax.xlane.f32.xlu0 %v3762
      %v3764 = vpop.xlane.xlu0 %3763
      %v3765 = vsub.f32 %v3757, %v3764
      %v3766 = vmul.f32 %v3765, 1.442695
      %v3767 = vpow.pop %v3766
      %v3768 = vsel %vm714, %v3767, 0.0
      %3769 = vadd.xlane.f32.xlu0 %v3768
      %v3770 = vpop.xlane.xlu0 %3769
      %v3771 = vrcp.pop %v3770
      %v3772 = vmul.f32 %v3767, %v3771
      %v3773 = vpack.c.bf16 %v3772, %v3772
      %3774 = vrot.lane.b32.xlu0 %v3442, 112
      %v3775 = vpop.permute.xlu0 %3774
      %3776 = vrot.lane.b32.xlu0 %v3443, 112
      %v3777 = vpop.permute.xlu0 %3776
      %3778 = vrot.lane.b32.xlu0 %v3444, 112
      %v3779 = vpop.permute.xlu0 %3778
      %3780 = vrot.lane.b32.xlu0 %v3445, 112
      %v3781 = vpop.permute.xlu0 %3780
      %v3787 = vsel %vm714, %v3773, 0
      %3789 = vmatprep.subr.bf16.mxu0 0
      %3790 = vmatpush1.bf16.msra.mxu0 %v3775
      %3791 = vmatprep.subr.bf16.mxu0 0
      %3792 = vmatpush1.bf16.msra.mxu0 %v3777
      %3793 = vmatprep.subr.bf16.mxu0 0
      %3794 = vmatpush1.bf16.msra.mxu0 %v3779
      %3795 = vmatprep.subr.bf16.mxu0 0
      %3796 = vmatpush1.bf16.msra.mxu0 %v3781
      %3797 = vmatprep.subr.bf16.mxu0 0
      %3798 = vmatpush1.bf16.msra.mxu0 0
      %3799 = vmatprep.subr.bf16.mxu0 0
      %3800 = vmatpush1.bf16.msra.mxu0 0
      %3801 = vmatprep.subr.bf16.mxu0 0
      %3802 = vmatpush1.bf16.msra.mxu0 0
      %3803 = vmatprep.subr.bf16.mxu0 0
      %3804 = vmatpush1.bf16.msra.mxu0 0
      %3805 = vmatprep.subr.bf16.mxu0 0
      %3806 = vmatpush1.bf16.msra.mxu0 0
      %3807 = vmatprep.subr.bf16.mxu0 0
      %3808 = vmatpush1.bf16.msra.mxu0 0
      %3809 = vmatprep.subr.bf16.mxu0 0
      %3810 = vmatpush1.bf16.msra.mxu0 0
      %3811 = vmatprep.subr.bf16.mxu0 0
      %3812 = vmatpush1.bf16.msra.mxu0 0
      %3813 = vmatprep.subr.bf16.mxu0 0
      %3814 = vmatpush1.bf16.msra.mxu0 0
      %3815 = vmatprep.subr.bf16.mxu0 0
      %3816 = vmatpush1.bf16.msra.mxu0 0
      %3817 = vmatprep.subr.bf16.mxu0 0
      %3818 = vmatpush1.bf16.msra.mxu0 0
      %3819 = vmatprep.subr.bf16.mxu0 0
      %3820 = vmatpush1.bf16.msra.mxu0 0
      %3821 = vmatprep.mubr.bf16.mxu0 0
      %3822 = vmatmul.mubr.bf16.gmra.mrb[0].mxu0 %v3787
      %v3823 = vpop.f32.mrb[0].mxu0
      %v3824 = vadd.f32 0.0, %v3823
      %v3825 = vpop.f32.mrb[0].mxu0
      %v3826 = vpop.f32.mrb[0].mxu0
      %v3827 = vpop.f32.mrb[0].mxu0
      %3828 = vdwg.mxu0
      %3829 = vrot.lane.b32.xlu0 %v3437, 104
      %v3830 = vpop.permute.xlu0 %3829
      %3831 = vrot.lane.b32.xlu0 %v3438, 104
      %v3832 = vpop.permute.xlu0 %3831
      %3833 = vrot.lane.b32.xlu0 %v3439, 104
      %v3834 = vpop.permute.xlu0 %3833
      %3835 = vrot.lane.b32.xlu0 %v3440, 104
      %v3836 = vpop.permute.xlu0 %3835
      %3837 = vrot.lane.b32.xlu0 %v3441, 104
      %v3838 = vpop.permute.xlu0 %3837
      %v3840 = vsel %vm624, %v3830, 0
      %v3843 = vsel %vm624, %v3832, 0
      %v3846 = vsel %vm624, %v3834, 0
      %v3849 = vsel %vm624, %v3836, 0
      %v3852 = vsel %vm624, %v3838, 0
      %3854 = vmatprep.subr.bf16.mxu0 0
      %3855 = vmatpush1.bf16.xpose.msra.mxu0 %v3843
      %3856 = vmatprep.subr.bf16.mxu0 0
      %3857 = vmatpush1.bf16.xpose.msra.mxu0 %v3846
      %3858 = vmatprep.subr.bf16.mxu0 0
      %3859 = vmatpush1.bf16.xpose.msra.mxu0 %v3849
      %3860 = vmatprep.subr.bf16.mxu0 0
      %3861 = vmatpush1.bf16.xpose.msra.mxu0 %v3852
      %3862 = vmatprep.subr.bf16.mxu0 0
      %3863 = vmatpush1.bf16.xpose.msra.mxu0 0
      %3864 = vmatprep.subr.bf16.mxu0 0
      %3865 = vmatpush1.bf16.xpose.msra.mxu0 0
      %3866 = vmatprep.subr.bf16.mxu0 0
      %3867 = vmatpush1.bf16.xpose.msra.mxu0 0
      %3868 = vmatprep.subr.bf16.mxu0 0
      %3869 = vmatpush1.bf16.xpose.msra.mxu0 0
      %3870 = vmatprep.subr.bf16.mxu0 0
      %3871 = vmatpush1.bf16.xpose.msra.mxu0 0
      %3872 = vmatprep.subr.bf16.mxu0 0
      %3873 = vmatpush1.bf16.xpose.msra.mxu0 0
      %3874 = vmatprep.subr.bf16.mxu0 0
      %3875 = vmatpush1.bf16.xpose.msra.mxu0 0
      %3876 = vmatprep.subr.bf16.mxu0 0
      %3877 = vmatpush1.bf16.xpose.msra.mxu0 0
      %3878 = vmatprep.subr.bf16.mxu0 0
      %3879 = vmatpush1.bf16.xpose.msra.mxu0 0
      %3880 = vmatprep.subr.bf16.mxu0 0
      %3881 = vmatpush1.bf16.xpose.msra.mxu0 0
      %3882 = vmatprep.subr.bf16.mxu0 0
      %3883 = vmatpush1.bf16.xpose.msra.mxu0 0
      %3884 = vmatprep.subr.bf16.mxu0 0
      %3885 = vmatpush1.bf16.xpose.msra.mxu0 0
      %3886 = vmatprep.mubr.bf16.mxu0 0
      %3887 = vmatmul.mubr.bf16.gmra.mrb[0].mxu0 %v3840
      %v3888 = vpop.f32.mrb[0].mxu0
      %v3889 = vadd.f32 0.0, %v3888
      %v3890 = vpop.f32.mrb[0].mxu0
      %v3891 = vpop.f32.mrb[0].mxu0
      %v3892 = vpop.f32.mrb[0].mxu0
      %3893 = vdwg.mxu0
      %v3894 = vsel %vm714, %v3889, -inf
      %3895 = vmax.xlane.f32.xlu0 %v3894
      %v3896 = vpop.xlane.xlu0 %3895
      %v3897 = vsub.f32 %v3889, %v3896
      %v3898 = vmul.f32 %v3897, 1.442695
      %v3899 = vpow.pop %v3898
      %v3900 = vsel %vm714, %v3899, 0.0
      %3901 = vadd.xlane.f32.xlu0 %v3900
      %v3902 = vpop.xlane.xlu0 %3901
      %v3903 = vrcp.pop %v3902
      %v3904 = vmul.f32 %v3899, %v3903
      %v3905 = vpack.c.bf16 %v3904, %v3904
      %3906 = vrot.lane.b32.xlu0 %v3442, 104
      %v3907 = vpop.permute.xlu0 %3906
      %3908 = vrot.lane.b32.xlu0 %v3443, 104
      %v3909 = vpop.permute.xlu0 %3908
      %3910 = vrot.lane.b32.xlu0 %v3444, 104
      %v3911 = vpop.permute.xlu0 %3910
      %3912 = vrot.lane.b32.xlu0 %v3445, 104
      %v3913 = vpop.permute.xlu0 %3912
      %v3919 = vsel %vm714, %v3905, 0
      %3921 = vmatprep.subr.bf16.mxu0 0
      %3922 = vmatpush1.bf16.msra.mxu0 %v3907
      %3923 = vmatprep.subr.bf16.mxu0 0
      %3924 = vmatpush1.bf16.msra.mxu0 %v3909
      %3925 = vmatprep.subr.bf16.mxu0 0
      %3926 = vmatpush1.bf16.msra.mxu0 %v3911
      %3927 = vmatprep.subr.bf16.mxu0 0
      %3928 = vmatpush1.bf16.msra.mxu0 %v3913
      %3929 = vmatprep.subr.bf16.mxu0 0
      %3930 = vmatpush1.bf16.msra.mxu0 0
      %3931 = vmatprep.subr.bf16.mxu0 0
      %3932 = vmatpush1.bf16.msra.mxu0 0
      %3933 = vmatprep.subr.bf16.mxu0 0
      %3934 = vmatpush1.bf16.msra.mxu0 0
      %3935 = vmatprep.subr.bf16.mxu0 0
      %3936 = vmatpush1.bf16.msra.mxu0 0
      %3937 = vmatprep.subr.bf16.mxu0 0
      %3938 = vmatpush1.bf16.msra.mxu0 0
      %3939 = vmatprep.subr.bf16.mxu0 0
      %3940 = vmatpush1.bf16.msra.mxu0 0
      %3941 = vmatprep.subr.bf16.mxu0 0
      %3942 = vmatpush1.bf16.msra.mxu0 0
      %3943 = vmatprep.subr.bf16.mxu0 0
      %3944 = vmatpush1.bf16.msra.mxu0 0
      %3945 = vmatprep.subr.bf16.mxu0 0
      %3946 = vmatpush1.bf16.msra.mxu0 0
      %3947 = vmatprep.subr.bf16.mxu0 0
      %3948 = vmatpush1.bf16.msra.mxu0 0
      %3949 = vmatprep.subr.bf16.mxu0 0
      %3950 = vmatpush1.bf16.msra.mxu0 0
      %3951 = vmatprep.subr.bf16.mxu0 0
      %3952 = vmatpush1.bf16.msra.mxu0 0
      %3953 = vmatprep.mubr.bf16.mxu0 0
      %3954 = vmatmul.mubr.bf16.gmra.mrb[0].mxu0 %v3919
      %v3955 = vpop.f32.mrb[0].mxu0
      %v3956 = vadd.f32 0.0, %v3955
      %v3957 = vpop.f32.mrb[0].mxu0
      %v3958 = vpop.f32.mrb[0].mxu0
      %v3959 = vpop.f32.mrb[0].mxu0
      %3960 = vdwg.mxu0
      %3962 = vrot.lane.b32.xlu0 %v3692, 8
      %v3963 = vpop.permute.xlu0 %3962
      %3966 = vrot.lane.b32.xlu0 %v3824, 16
      %v3967 = vpop.permute.xlu0 %3966
      %3970 = vrot.lane.b32.xlu0 %v3956, 24
      %v3971 = vpop.permute.xlu0 %3970
      %v3973 = vsel %vm624, %v3551, %v3963
      %v3974 = vsel %vm296, %v3973, %v3967
      %v3975 = vsel %vm1862, %v3974, %v3971
      %v3976 = vpack.c.bf16 %v3975, %v3975
      %v3977 = vlaneseq
      %v3978 = vshrl.u32 %v3977, 7
      %v3979 = vsub.s32 0, %v3978
      %v3980 = vrot.slane %v3435, %v3979
      %v3985 = vunpack.c.l.b16 %v3431
      %v3986 = vunpack.c.l.b16 %v3432
      %v3987 = vunpack.c.l.b16 %v3433
      %v3988 = vunpack.c.l.b16 %v3434
      %v3989 = vpack.c.b16 %v3986, %v3985
      %v3990 = vpack.c.b16 %v3988, %v3987
      %v3994 = vsel %vm407, %v3976, 0
      %3996 = vmatprep.subr.bf16.mxu0 0
      %3997 = vmatpush1.bf16.msra.mxu0 %v3989
      %3998 = vmatprep.subr.bf16.mxu0 0
      %3999 = vmatpush1.bf16.msra.mxu0 %v3990
      %4000 = vmatprep.subr.bf16.mxu0 0
      %4001 = vmatpush1.bf16.msra.mxu0 0
      %4002 = vmatprep.subr.bf16.mxu0 0
      %4003 = vmatpush1.bf16.msra.mxu0 0
      %4004 = vmatprep.subr.bf16.mxu0 0
      %4005 = vmatpush1.bf16.msra.mxu0 0
      %4006 = vmatprep.subr.bf16.mxu0 0
      %4007 = vmatpush1.bf16.msra.mxu0 0
      %4008 = vmatprep.subr.bf16.mxu0 0
      %4009 = vmatpush1.bf16.msra.mxu0 0
      %4010 = vmatprep.subr.bf16.mxu0 0
      %4011 = vmatpush1.bf16.msra.mxu0 0
      %4012 = vmatprep.subr.bf16.mxu0 0
      %4013 = vmatpush1.bf16.msra.mxu0 0
      %4014 = vmatprep.subr.bf16.mxu0 0
      %4015 = vmatpush1.bf16.msra.mxu0 0
      %4016 = vmatprep.subr.bf16.mxu0 0
      %4017 = vmatpush1.bf16.msra.mxu0 0
      %4018 = vmatprep.subr.bf16.mxu0 0
      %4019 = vmatpush1.bf16.msra.mxu0 0
      %4020 = vmatprep.subr.bf16.mxu0 0
      %4021 = vmatpush1.bf16.msra.mxu0 0
      %4022 = vmatprep.subr.bf16.mxu0 0
      %4023 = vmatpush1.bf16.msra.mxu0 0
      %4024 = vmatprep.subr.bf16.mxu0 0
      %4025 = vmatpush1.bf16.msra.mxu0 0
      %4026 = vmatprep.subr.bf16.mxu0 0
      %4027 = vmatpush1.bf16.msra.mxu0 0
      %4028 = vmatprep.mubr.bf16.mxu0 0
      %4029 = vmatmul.mubr.bf16.gmra.mrb[0].mxu0 %v3994
      %v4030 = vpop.f32.mrb[0].mxu0
      %v4031 = vadd.f32 %v3980, %v4030
      %v4032 = vpop.f32.mrb[0].mxu0
      %v4033 = vpop.f32.mrb[0].mxu0
      %v4034 = vpop.f32.mrb[0].mxu0
      %4035 = vdwg.mxu0
      %v4036 = vadd.f32 %v3160, %v4031
      %v4037 = vld [vmem:[%s4 + $0x15] sm:$0x1]
      %v4038 = vld [vmem:[%s4 + $0x16] sm:$0x1]
      %v4039 = vsel %vm407, %v4036, 0.0
      %4040 = vadd.xlane.f32.xlu0 %v4039
      %v4041 = vpop.xlane.xlu0 %4040
      %v4042 = vmul.f32 %v4041, %v2002
      %v4043 = vsub.f32 %v4036, %v4042
      %v4044 = vmul.f32 %v4043, %v4043
      %v4045 = vsel %vm407, %v4044, 0.0
      %4046 = vadd.xlane.f32.xlu0 %v4045
      %v4047 = vpop.xlane.xlu0 %4046
      %v4048 = vmul.f32 %v4047, %v2002
      %v4049 = vadd.f32 %v4048, 1e-05
      %v4050 = vrsqrt.pop %v4049
      %v4051 = vmul.f32 %v4043, %v4050
      %v4052 = vlaneseq
      %v4053 = vshrl.u32 %v4052, 7
      %v4054 = vsub.s32 0, %v4053
      %v4055 = vrot.slane %v4037, %v4054
      %v4056 = vmul.f32 %v4051, %v4055
      %v4057 = vlaneseq
      %v4058 = vshrl.u32 %v4057, 7
      %v4059 = vsub.s32 0, %v4058
      %v4060 = vrot.slane %v4038, %v4059
      %v4061 = vadd.f32 %v4056, %v4060
      %v4062 = vld [vmem:[%s3 + $0xd8] sm:$0xf]
      %v4063 = vld [vmem:[%s3 + $0xdc] sm:$0xf]
      %v4064 = vld [vmem:[%s3 + $0xe0] sm:$0xf]
      %v4065 = vld [vmem:[%s3 + $0xe4] sm:$0xf]
      %v4066 = vpack.c.bf16 %v4061, %v4061
      %v4067 = vld [vmem:[%s4 + $0x11] sm:$0x1]
      %v4068 = vlaneseq
      %v4069 = vshrl.u32 %v4068, 7
      %v4070 = vsub.s32 0, %v4069
      %v4071 = vrot.slane %v4067, %v4070
      %v4076 = vunpack.c.l.b16 %v4062
      %v4077 = vunpack.c.l.b16 %v4063
      %v4078 = vunpack.c.l.b16 %v4064
      %v4079 = vunpack.c.l.b16 %v4065
      %v4080 = vpack.c.b16 %v4077, %v4076
      %v4081 = vpack.c.b16 %v4079, %v4078
      %v4085 = vsel %vm407, %v4066, 0
      %4087 = vmatprep.subr.bf16.mxu0 0
      %4088 = vmatpush1.bf16.msra.mxu0 %v4080
      %4089 = vmatprep.subr.bf16.mxu0 0
      %4090 = vmatpush1.bf16.msra.mxu0 %v4081
      %4091 = vmatprep.subr.bf16.mxu0 0
      %4092 = vmatpush1.bf16.msra.mxu0 0
      %4093 = vmatprep.subr.bf16.mxu0 0
      %4094 = vmatpush1.bf16.msra.mxu0 0
      %4095 = vmatprep.subr.bf16.mxu0 0
      %4096 = vmatpush1.bf16.msra.mxu0 0
      %4097 = vmatprep.subr.bf16.mxu0 0
      %4098 = vmatpush1.bf16.msra.mxu0 0
      %4099 = vmatprep.subr.bf16.mxu0 0
      %4100 = vmatpush1.bf16.msra.mxu0 0
      %4101 = vmatprep.subr.bf16.mxu0 0
      %4102 = vmatpush1.bf16.msra.mxu0 0
      %4103 = vmatprep.subr.bf16.mxu0 0
      %4104 = vmatpush1.bf16.msra.mxu0 0
      %4105 = vmatprep.subr.bf16.mxu0 0
      %4106 = vmatpush1.bf16.msra.mxu0 0
      %4107 = vmatprep.subr.bf16.mxu0 0
      %4108 = vmatpush1.bf16.msra.mxu0 0
      %4109 = vmatprep.subr.bf16.mxu0 0
      %4110 = vmatpush1.bf16.msra.mxu0 0
      %4111 = vmatprep.subr.bf16.mxu0 0
      %4112 = vmatpush1.bf16.msra.mxu0 0
      %4113 = vmatprep.subr.bf16.mxu0 0
      %4114 = vmatpush1.bf16.msra.mxu0 0
      %4115 = vmatprep.subr.bf16.mxu0 0
      %4116 = vmatpush1.bf16.msra.mxu0 0
      %4117 = vmatprep.subr.bf16.mxu0 0
      %4118 = vmatpush1.bf16.msra.mxu0 0
      %4119 = vmatprep.mubr.bf16.mxu0 0
      %4120 = vmatmul.mubr.bf16.gmra.mrb[0].mxu0 %v4085
      %v4121 = vpop.f32.mrb[0].mxu0
      %v4122 = vadd.f32 %v4071, %v4121
      %v4123 = vpop.f32.mrb[0].mxu0
      %v4124 = vpop.f32.mrb[0].mxu0
      %v4125 = vpop.f32.mrb[0].mxu0
      %4126 = vdwg.mxu0
      %v4127 = vmax.f32 %v4122, 0.0
      %v4128 = vld [vmem:[%s3 + $0xe8] sm:$0xf]
      %v4129 = vld [vmem:[%s3 + $0xec] sm:$0xf]
      %v4130 = vld [vmem:[%s3 + $0xf0] sm:$0xf]
      %v4131 = vld [vmem:[%s3 + $0xf4] sm:$0xf]
      %v4132 = vld [vmem:[%s3 + $0xf8] sm:$0xf]
      %v4133 = vld [vmem:[%s3 + $0xfc] sm:$0xf]
      %v4134 = vld [vmem:[%s3 + $0x100] sm:$0xf]
      %v4135 = vld [vmem:[%s3 + $0x104] sm:$0xf]
      %v4136 = vpack.c.bf16 %v4127, %v4127
      %v4137 = vld [vmem:[%s4 + $0x12] sm:$0x1]
      %v4138 = vlaneseq
      %v4139 = vshrl.u32 %v4138, 7
      %v4140 = vsub.s32 0, %v4139
      %v4141 = vrot.slane %v4137, %v4140
      %v4150 = vunpack.c.l.b16 %v4128
      %v4151 = vunpack.c.l.b16 %v4129
      %v4152 = vunpack.c.l.b16 %v4130
      %v4153 = vunpack.c.l.b16 %v4131
      %v4154 = vunpack.c.l.b16 %v4132
      %v4155 = vunpack.c.l.b16 %v4133
      %v4156 = vunpack.c.l.b16 %v4134
      %v4157 = vunpack.c.l.b16 %v4135
      %v4158 = vpack.c.b16 %v4151, %v4150
      %v4159 = vpack.c.b16 %v4153, %v4152
      %v4160 = vpack.c.b16 %v4155, %v4154
      %v4161 = vpack.c.b16 %v4157, %v4156
      %v4167 = vsel %vm714, %v4136, 0
      %4169 = vmatprep.subr.bf16.mxu0 0
      %4170 = vmatpush1.bf16.msra.mxu0 %v4158
      %4171 = vmatprep.subr.bf16.mxu0 0
      %4172 = vmatpush1.bf16.msra.mxu0 %v4159
      %4173 = vmatprep.subr.bf16.mxu0 0
      %4174 = vmatpush1.bf16.msra.mxu0 %v4160
      %4175 = vmatprep.subr.bf16.mxu0 0
      %4176 = vmatpush1.bf16.msra.mxu0 %v4161
      %4177 = vmatprep.subr.bf16.mxu0 0
      %4178 = vmatpush1.bf16.msra.mxu0 0
      %4179 = vmatprep.subr.bf16.mxu0 0
      %4180 = vmatpush1.bf16.msra.mxu0 0
      %4181 = vmatprep.subr.bf16.mxu0 0
      %4182 = vmatpush1.bf16.msra.mxu0 0
      %4183 = vmatprep.subr.bf16.mxu0 0
      %4184 = vmatpush1.bf16.msra.mxu0 0
      %4185 = vmatprep.subr.bf16.mxu0 0
      %4186 = vmatpush1.bf16.msra.mxu0 0
      %4187 = vmatprep.subr.bf16.mxu0 0
      %4188 = vmatpush1.bf16.msra.mxu0 0
      %4189 = vmatprep.subr.bf16.mxu0 0
      %4190 = vmatpush1.bf16.msra.mxu0 0
      %4191 = vmatprep.subr.bf16.mxu0 0
      %4192 = vmatpush1.bf16.msra.mxu0 0
      %4193 = vmatprep.subr.bf16.mxu0 0
      %4194 = vmatpush1.bf16.msra.mxu0 0
      %4195 = vmatprep.subr.bf16.mxu0 0
      %4196 = vmatpush1.bf16.msra.mxu0 0
      %4197 = vmatprep.subr.bf16.mxu0 0
      %4198 = vmatpush1.bf16.msra.mxu0 0
      %4199 = vmatprep.subr.bf16.mxu0 0
      %4200 = vmatpush1.bf16.msra.mxu0 0
      %4201 = vmatprep.mubr.bf16.mxu0 0
      %4202 = vmatmul.mubr.bf16.gmra.mrb[0].mxu0 %v4167
      %v4203 = vpop.f32.mrb[0].mxu0
      %v4204 = vadd.f32 %v4141, %v4203
      %v4205 = vpop.f32.mrb[0].mxu0
      %v4206 = vpop.f32.mrb[0].mxu0
      %v4207 = vpop.f32.mrb[0].mxu0
      %4208 = vdwg.mxu0
      %v4209 = vadd.f32 %v4061, %v4204
      %v4210 = vld [vmem:[%s4 + $0x17] sm:$0x1]
      %v4211 = vld [vmem:[%s4 + $0x18] sm:$0x1]
      %v4212 = vsel %vm407, %v4209, 0.0
      %4213 = vadd.xlane.f32.xlu0 %v4212
      %v4214 = vpop.xlane.xlu0 %4213
      %v4215 = vmul.f32 %v4214, %v2002
      %v4216 = vsub.f32 %v4209, %v4215
      %v4217 = vmul.f32 %v4216, %v4216
      %v4218 = vsel %vm407, %v4217, 0.0
      %4219 = vadd.xlane.f32.xlu0 %v4218
      %v4220 = vpop.xlane.xlu0 %4219
      %v4221 = vmul.f32 %v4220, %v2002
      %v4222 = vadd.f32 %v4221, 1e-05
      %v4223 = vrsqrt.pop %v4222
      %v4224 = vmul.f32 %v4216, %v4223
      %v4225 = vlaneseq
      %v4226 = vshrl.u32 %v4225, 7
      %v4227 = vsub.s32 0, %v4226
      %v4228 = vrot.slane %v4210, %v4227
      %v4229 = vmul.f32 %v4224, %v4228
      %v4230 = vlaneseq
      %v4231 = vshrl.u32 %v4230, 7
      %v4232 = vsub.s32 0, %v4231
      %v4233 = vrot.slane %v4211, %v4232
      %v4234 = vadd.f32 %v4229, %v4233
      %v4235 = vadd.f32 %v4234, %v270
      %v4236 = vld [vmem:[%s3 + $0x108] sm:$0xf]
      %v4237 = vld [vmem:[%s3 + $0x10c] sm:$0xf]
      %v4238 = vld [vmem:[%s3 + $0x110] sm:$0xf]
      %v4239 = vld [vmem:[%s3 + $0x114] sm:$0xf]
      %v4240 = vpack.c.bf16 %v4235, %v4235
      %v4241 = vld [vmem:[%s4 + $0x19] sm:$0x1]
      %v4242 = vlaneseq
      %v4243 = vshrl.u32 %v4242, 7
      %v4244 = vsub.s32 0, %v4243
      %v4245 = vrot.slane %v4241, %v4244
      %v4250 = vunpack.c.l.b16 %v4236
      %v4251 = vunpack.c.l.b16 %v4237
      %v4252 = vunpack.c.l.b16 %v4238
      %v4253 = vunpack.c.l.b16 %v4239
      %v4254 = vpack.c.b16 %v4251, %v4250
      %v4255 = vpack.c.b16 %v4253, %v4252
      %v4259 = vsel %vm407, %v4240, 0
      %4261 = vmatprep.subr.bf16.mxu0 0
      %4262 = vmatpush1.bf16.msra.mxu0 %v4254
      %4263 = vmatprep.subr.bf16.mxu0 0
      %4264 = vmatpush1.bf16.msra.mxu0 %v4255
      %4265 = vmatprep.subr.bf16.mxu0 0
      %4266 = vmatpush1.bf16.msra.mxu0 0
      %4267 = vmatprep.subr.bf16.mxu0 0
      %4268 = vmatpush1.bf16.msra.mxu0 0
      %4269 = vmatprep.subr.bf16.mxu0 0
      %4270 = vmatpush1.bf16.msra.mxu0 0
      %4271 = vmatprep.subr.bf16.mxu0 0
      %4272 = vmatpush1.bf16.msra.mxu0 0
      %4273 = vmatprep.subr.bf16.mxu0 0
      %4274 = vmatpush1.bf16.msra.mxu0 0
      %4275 = vmatprep.subr.bf16.mxu0 0
      %4276 = vmatpush1.bf16.msra.mxu0 0
      %4277 = vmatprep.subr.bf16.mxu0 0
      %4278 = vmatpush1.bf16.msra.mxu0 0
      %4279 = vmatprep.subr.bf16.mxu0 0
      %4280 = vmatpush1.bf16.msra.mxu0 0
      %4281 = vmatprep.subr.bf16.mxu0 0
      %4282 = vmatpush1.bf16.msra.mxu0 0
      %4283 = vmatprep.subr.bf16.mxu0 0
      %4284 = vmatpush1.bf16.msra.mxu0 0
      %4285 = vmatprep.subr.bf16.mxu0 0
      %4286 = vmatpush1.bf16.msra.mxu0 0
      %4287 = vmatprep.subr.bf16.mxu0 0
      %4288 = vmatpush1.bf16.msra.mxu0 0
      %4289 = vmatprep.subr.bf16.mxu0 0
      %4290 = vmatpush1.bf16.msra.mxu0 0
      %4291 = vmatprep.subr.bf16.mxu0 0
      %4292 = vmatpush1.bf16.msra.mxu0 0
      %4293 = vmatprep.mubr.bf16.mxu0 0
      %4294 = vmatmul.mubr.bf16.gmra.mrb[0].mxu0 %v4259
      %v4295 = vpop.f32.mrb[0].mxu0
      %v4296 = vadd.f32 %v4245, %v4295
      %v4297 = vpop.f32.mrb[0].mxu0
      %v4298 = vpop.f32.mrb[0].mxu0
      %v4299 = vpop.f32.mrb[0].mxu0
      %4300 = vdwg.mxu0
      %v4301 = vld [vmem:[%s3 + $0x118] sm:$0xf]
      %v4302 = vld [vmem:[%s3 + $0x11c] sm:$0xf]
      %v4303 = vld [vmem:[%s3 + $0x120] sm:$0xf]
      %v4304 = vld [vmem:[%s3 + $0x124] sm:$0xf]
      %v4305 = vpack.c.bf16 %v4234, %v4234
      %v4306 = vld [vmem:[%s4 + $0x1a] sm:$0x1]
      %v4307 = vlaneseq
      %v4308 = vshrl.u32 %v4307, 7
      %v4309 = vsub.s32 0, %v4308
      %v4310 = vrot.slane %v4306, %v4309
      %v4315 = vunpack.c.l.b16 %v4301
      %v4316 = vunpack.c.l.b16 %v4302
      %v4317 = vunpack.c.l.b16 %v4303
      %v4318 = vunpack.c.l.b16 %v4304
      %v4319 = vpack.c.b16 %v4316, %v4315
      %v4320 = vpack.c.b16 %v4318, %v4317
      %v4324 = vsel %vm407, %v4305, 0
      %4326 = vmatprep.subr.bf16.mxu0 0
      %4327 = vmatpush1.bf16.msra.mxu0 %v4319
      %4328 = vmatprep.subr.bf16.mxu0 0
      %4329 = vmatpush1.bf16.msra.mxu0 %v4320
      %4330 = vmatprep.subr.bf16.mxu0 0
      %4331 = vmatpush1.bf16.msra.mxu0 0
      %4332 = vmatprep.subr.bf16.mxu0 0
      %4333 = vmatpush1.bf16.msra.mxu0 0
      %4334 = vmatprep.subr.bf16.mxu0 0
      %4335 = vmatpush1.bf16.msra.mxu0 0
      %4336 = vmatprep.subr.bf16.mxu0 0
      %4337 = vmatpush1.bf16.msra.mxu0 0
      %4338 = vmatprep.subr.bf16.mxu0 0
      %4339 = vmatpush1.bf16.msra.mxu0 0
      %4340 = vmatprep.subr.bf16.mxu0 0
      %4341 = vmatpush1.bf16.msra.mxu0 0
      %4342 = vmatprep.subr.bf16.mxu0 0
      %4343 = vmatpush1.bf16.msra.mxu0 0
      %4344 = vmatprep.subr.bf16.mxu0 0
      %4345 = vmatpush1.bf16.msra.mxu0 0
      %4346 = vmatprep.subr.bf16.mxu0 0
      %4347 = vmatpush1.bf16.msra.mxu0 0
      %4348 = vmatprep.subr.bf16.mxu0 0
      %4349 = vmatpush1.bf16.msra.mxu0 0
      %4350 = vmatprep.subr.bf16.mxu0 0
      %4351 = vmatpush1.bf16.msra.mxu0 0
      %4352 = vmatprep.subr.bf16.mxu0 0
      %4353 = vmatpush1.bf16.msra.mxu0 0
      %4354 = vmatprep.subr.bf16.mxu0 0
      %4355 = vmatpush1.bf16.msra.mxu0 0
      %4356 = vmatprep.subr.bf16.mxu0 0
      %4357 = vmatpush1.bf16.msra.mxu0 0
      %4358 = vmatprep.mubr.bf16.mxu0 0
      %4359 = vmatmul.mubr.bf16.gmra.mrb[0].mxu0 %v4324
      %v4360 = vpop.f32.mrb[0].mxu0
      %v4361 = vadd.f32 %v4310, %v4360
      %v4362 = vpop.f32.mrb[0].mxu0
      %v4363 = vpop.f32.mrb[0].mxu0
      %v4364 = vpop.f32.mrb[0].mxu0
      %4365 = vdwg.mxu0
      %v4366 = vld [vmem:[%s3 + $0x128] sm:$0xf]
      %v4367 = vld [vmem:[%s3 + $0x12c] sm:$0xf]
      %v4368 = vld [vmem:[%s3 + $0x130] sm:$0xf]
      %v4369 = vld [vmem:[%s3 + $0x134] sm:$0xf]
      %v4370 = vld [vmem:[%s4 + $0x1b] sm:$0x1]
      %v4371 = vmul.f32 %v4296, 0.35355338
      %v4372 = vpack.c.bf16 %v4371, %v4371
      %v4373 = vpack.c.bf16 %v4296, %v4296
      %v4374 = vpack.c.bf16 %v4361, %v4361
      %4376 = vrot.lane.b32.xlu0 %v4373, 96
      %v4377 = vpop.permute.xlu0 %4376
      %v4379 = vsel %vm624, %v4372, 0
      %v4382 = vsel %vm624, %v4377, 0
      %4384 = vmatprep.subr.bf16.mxu0 0
      %4385 = vmatpush1.bf16.xpose.msra.mxu0 %v4382
      %4386 = vmatprep.subr.bf16.mxu0 0
      %4387 = vmatpush1.bf16.xpose.msra.mxu0 0
      %4388 = vmatprep.subr.bf16.mxu0 0
      %4389 = vmatpush1.bf16.xpose.msra.mxu0 0
      %4390 = vmatprep.subr.bf16.mxu0 0
      %4391 = vmatpush1.bf16.xpose.msra.mxu0 0
      %4392 = vmatprep.subr.bf16.mxu0 0
      %4393 = vmatpush1.bf16.xpose.msra.mxu0 0
      %4394 = vmatprep.subr.bf16.mxu0 0
      %4395 = vmatpush1.bf16.xpose.msra.mxu0 0
      %4396 = vmatprep.subr.bf16.mxu0 0
      %4397 = vmatpush1.bf16.xpose.msra.mxu0 0
      %4398 = vmatprep.subr.bf16.mxu0 0
      %4399 = vmatpush1.bf16.xpose.msra.mxu0 0
      %4400 = vmatprep.subr.bf16.mxu0 0
      %4401 = vmatpush1.bf16.xpose.msra.mxu0 0
      %4402 = vmatprep.subr.bf16.mxu0 0
      %4403 = vmatpush1.bf16.xpose.msra.mxu0 0
      %4404 = vmatprep.subr.bf16.mxu0 0
      %4405 = vmatpush1.bf16.xpose.msra.mxu0 0
      %4406 = vmatprep.subr.bf16.mxu0 0
      %4407 = vmatpush1.bf16.xpose.msra.mxu0 0
      %4408 = vmatprep.subr.bf16.mxu0 0
      %4409 = vmatpush1.bf16.xpose.msra.mxu0 0
      %4410 = vmatprep.subr.bf16.mxu0 0
      %4411 = vmatpush1.bf16.xpose.msra.mxu0 0
      %4412 = vmatprep.subr.bf16.mxu0 0
      %4413 = vmatpush1.bf16.xpose.msra.mxu0 0
      %4414 = vmatprep.subr.bf16.mxu0 0
      %4415 = vmatpush1.bf16.xpose.msra.mxu0 0
      %4416 = vmatprep.mubr.bf16.mxu0 0
      %4417 = vmatmul.mubr.bf16.gmra.mrb[0].mxu0 %v4379
      %v4418 = vpop.f32.mrb[0].mxu0
      %v4419 = vadd.f32 0.0, %v4418
      %v4420 = vpop.f32.mrb[0].mxu0
      %v4421 = vpop.f32.mrb[0].mxu0
      %v4422 = vpop.f32.mrb[0].mxu0
      %4423 = vdwg.mxu0
      %v4424 = vsel %vm624, %v4419, -inf
      %4425 = vmax.xlane.f32.xlu0 %v4424
      %v4426 = vpop.xlane.xlu0 %4425
      %v4427 = vsub.f32 %v4419, %v4426
      %v4428 = vmul.f32 %v4427, 1.442695
      %v4429 = vpow.pop %v4428
      %v4430 = vsel %vm624, %v4429, 0.0
      %4431 = vadd.xlane.f32.xlu0 %v4430
      %v4432 = vpop.xlane.xlu0 %4431
      %v4433 = vrcp.pop %v4432
      %v4434 = vmul.f32 %v4429, %v4433
      %v4435 = vpack.c.bf16 %v4434, %v4434
      %v4437 = vsel %vm624, %v4435, 0
      %v4440 = vsel %vm2684, %v4374, 0
      %4442 = vmatprep.subr.bf16.mxu0 0
      %4443 = vmatpush1.bf16.msra.mxu0 %v4440
      %4444 = vmatprep.subr.bf16.mxu0 0
      %4445 = vmatpush1.bf16.msra.mxu0 0
      %4446 = vmatprep.subr.bf16.mxu0 0
      %4447 = vmatpush1.bf16.msra.mxu0 0
      %4448 = vmatprep.subr.bf16.mxu0 0
      %4449 = vmatpush1.bf16.msra.mxu0 0
      %4450 = vmatprep.subr.bf16.mxu0 0
      %4451 = vmatpush1.bf16.msra.mxu0 0
      %4452 = vmatprep.subr.bf16.mxu0 0
      %4453 = vmatpush1.bf16.msra.mxu0 0
      %4454 = vmatprep.subr.bf16.mxu0 0
      %4455 = vmatpush1.bf16.msra.mxu0 0
      %4456 = vmatprep.subr.bf16.mxu0 0
      %4457 = vmatpush1.bf16.msra.mxu0 0
      %4458 = vmatprep.subr.bf16.mxu0 0
      %4459 = vmatpush1.bf16.msra.mxu0 0
      %4460 = vmatprep.subr.bf16.mxu0 0
      %4461 = vmatpush1.bf16.msra.mxu0 0
      %4462 = vmatprep.subr.bf16.mxu0 0
      %4463 = vmatpush1.bf16.msra.mxu0 0
      %4464 = vmatprep.subr.bf16.mxu0 0
      %4465 = vmatpush1.bf16.msra.mxu0 0
      %4466 = vmatprep.subr.bf16.mxu0 0
      %4467 = vmatpush1.bf16.msra.mxu0 0
      %4468 = vmatprep.subr.bf16.mxu0 0
      %4469 = vmatpush1.bf16.msra.mxu0 0
      %4470 = vmatprep.subr.bf16.mxu0 0
      %4471 = vmatpush1.bf16.msra.mxu0 0
      %4472 = vmatprep.subr.bf16.mxu0 0
      %4473 = vmatpush1.bf16.msra.mxu0 0
      %4474 = vmatprep.mubr.bf16.mxu0 0
      %4475 = vmatmul.mubr.bf16.gmra.mrb[0].mxu0 %v4437
      %v4476 = vpop.f32.mrb[0].mxu0
      %v4477 = vadd.f32 0.0, %v4476
      %v4478 = vpop.f32.mrb[0].mxu0
      %v4479 = vpop.f32.mrb[0].mxu0
      %v4480 = vpop.f32.mrb[0].mxu0
      %4481 = vdwg.mxu0
      %4483 = vrot.lane.b32.xlu0 %v4372, 120
      %v4484 = vpop.permute.xlu0 %4483
      %4485 = vrot.lane.b32.xlu0 %v4373, 88
      %v4486 = vpop.permute.xlu0 %4485
      %v4488 = vsel %vm624, %v4484, 0
      %v4491 = vsel %vm624, %v4486, 0
      %4493 = vmatprep.subr.bf16.mxu0 0
      %4494 = vmatpush1.bf16.xpose.msra.mxu0 %v4491
      %4495 = vmatprep.subr.bf16.mxu0 0
      %4496 = vmatpush1.bf16.xpose.msra.mxu0 0
      %4497 = vmatprep.subr.bf16.mxu0 0
      %4498 = vmatpush1.bf16.xpose.msra.mxu0 0
      %4499 = vmatprep.subr.bf16.mxu0 0
      %4500 = vmatpush1.bf16.xpose.msra.mxu0 0
      %4501 = vmatprep.subr.bf16.mxu0 0
      %4502 = vmatpush1.bf16.xpose.msra.mxu0 0
      %4503 = vmatprep.subr.bf16.mxu0 0
      %4504 = vmatpush1.bf16.xpose.msra.mxu0 0
      %4505 = vmatprep.subr.bf16.mxu0 0
      %4506 = vmatpush1.bf16.xpose.msra.mxu0 0
      %4507 = vmatprep.subr.bf16.mxu0 0
      %4508 = vmatpush1.bf16.xpose.msra.mxu0 0
      %4509 = vmatprep.subr.bf16.mxu0 0
      %4510 = vmatpush1.bf16.xpose.msra.mxu0 0
      %4511 = vmatprep.subr.bf16.mxu0 0
      %4512 = vmatpush1.bf16.xpose.msra.mxu0 0
      %4513 = vmatprep.subr.bf16.mxu0 0
      %4514 = vmatpush1.bf16.xpose.msra.mxu0 0
      %4515 = vmatprep.subr.bf16.mxu0 0
      %4516 = vmatpush1.bf16.xpose.msra.mxu0 0
      %4517 = vmatprep.subr.bf16.mxu0 0
      %4518 = vmatpush1.bf16.xpose.msra.mxu0 0
      %4519 = vmatprep.subr.bf16.mxu0 0
      %4520 = vmatpush1.bf16.xpose.msra.mxu0 0
      %4521 = vmatprep.subr.bf16.mxu0 0
      %4522 = vmatpush1.bf16.xpose.msra.mxu0 0
      %4523 = vmatprep.subr.bf16.mxu0 0
      %4524 = vmatpush1.bf16.xpose.msra.mxu0 0
      %4525 = vmatprep.mubr.bf16.mxu0 0
      %4526 = vmatmul.mubr.bf16.gmra.mrb[0].mxu0 %v4488
      %v4527 = vpop.f32.mrb[0].mxu0
      %v4528 = vadd.f32 0.0, %v4527
      %v4529 = vpop.f32.mrb[0].mxu0
      %v4530 = vpop.f32.mrb[0].mxu0
      %v4531 = vpop.f32.mrb[0].mxu0
      %4532 = vdwg.mxu0
      %v4533 = vsel %vm624, %v4528, -inf
      %4534 = vmax.xlane.f32.xlu0 %v4533
      %v4535 = vpop.xlane.xlu0 %4534
      %v4536 = vsub.f32 %v4528, %v4535
      %v4537 = vmul.f32 %v4536, 1.442695
      %v4538 = vpow.pop %v4537
      %v4539 = vsel %vm624, %v4538, 0.0
      %4540 = vadd.xlane.f32.xlu0 %v4539
      %v4541 = vpop.xlane.xlu0 %4540
      %v4542 = vrcp.pop %v4541
      %v4543 = vmul.f32 %v4538, %v4542
      %v4544 = vpack.c.bf16 %v4543, %v4543
      %4546 = vrot.lane.b32.xlu0 %v4374, 120
      %v4547 = vpop.permute.xlu0 %4546
      %v4549 = vsel %vm624, %v4544, 0
      %v4552 = vsel %vm2684, %v4547, 0
      %4554 = vmatprep.subr.bf16.mxu0 0
      %4555 = vmatpush1.bf16.msra.mxu0 %v4552
      %4556 = vmatprep.subr.bf16.mxu0 0
      %4557 = vmatpush1.bf16.msra.mxu0 0
      %4558 = vmatprep.subr.bf16.mxu0 0
      %4559 = vmatpush1.bf16.msra.mxu0 0
      %4560 = vmatprep.subr.bf16.mxu0 0
      %4561 = vmatpush1.bf16.msra.mxu0 0
      %4562 = vmatprep.subr.bf16.mxu0 0
      %4563 = vmatpush1.bf16.msra.mxu0 0
      %4564 = vmatprep.subr.bf16.mxu0 0
      %4565 = vmatpush1.bf16.msra.mxu0 0
      %4566 = vmatprep.subr.bf16.mxu0 0
      %4567 = vmatpush1.bf16.msra.mxu0 0
      %4568 = vmatprep.subr.bf16.mxu0 0
      %4569 = vmatpush1.bf16.msra.mxu0 0
      %4570 = vmatprep.subr.bf16.mxu0 0
      %4571 = vmatpush1.bf16.msra.mxu0 0
      %4572 = vmatprep.subr.bf16.mxu0 0
      %4573 = vmatpush1.bf16.msra.mxu0 0
      %4574 = vmatprep.subr.bf16.mxu0 0
      %4575 = vmatpush1.bf16.msra.mxu0 0
      %4576 = vmatprep.subr.bf16.mxu0 0
      %4577 = vmatpush1.bf16.msra.mxu0 0
      %4578 = vmatprep.subr.bf16.mxu0 0
      %4579 = vmatpush1.bf16.msra.mxu0 0
      %4580 = vmatprep.subr.bf16.mxu0 0
      %4581 = vmatpush1.bf16.msra.mxu0 0
      %4582 = vmatprep.subr.bf16.mxu0 0
      %4583 = vmatpush1.bf16.msra.mxu0 0
      %4584 = vmatprep.subr.bf16.mxu0 0
      %4585 = vmatpush1.bf16.msra.mxu0 0
      %4586 = vmatprep.mubr.bf16.mxu0 0
      %4587 = vmatmul.mubr.bf16.gmra.mrb[0].mxu0 %v4549
      %v4588 = vpop.f32.mrb[0].mxu0
      %v4589 = vadd.f32 0.0, %v4588
      %v4590 = vpop.f32.mrb[0].mxu0
      %v4591 = vpop.f32.mrb[0].mxu0
      %v4592 = vpop.f32.mrb[0].mxu0
      %4593 = vdwg.mxu0
      %4594 = vrot.lane.b32.xlu0 %v4372, 112
      %v4595 = vpop.permute.xlu0 %4594
      %4596 = vrot.lane.b32.xlu0 %v4373, 80
      %v4597 = vpop.permute.xlu0 %4596
      %v4599 = vsel %vm624, %v4595, 0
      %v4602 = vsel %vm624, %v4597, 0
      %4604 = vmatprep.subr.bf16.mxu0 0
      %4605 = vmatpush1.bf16.xpose.msra.mxu0 %v4602
      %4606 = vmatprep.subr.bf16.mxu0 0
      %4607 = vmatpush1.bf16.xpose.msra.mxu0 0
      %4608 = vmatprep.subr.bf16.mxu0 0
      %4609 = vmatpush1.bf16.xpose.msra.mxu0 0
      %4610 = vmatprep.subr.bf16.mxu0 0
      %4611 = vmatpush1.bf16.xpose.msra.mxu0 0
      %4612 = vmatprep.subr.bf16.mxu0 0
      %4613 = vmatpush1.bf16.xpose.msra.mxu0 0
      %4614 = vmatprep.subr.bf16.mxu0 0
      %4615 = vmatpush1.bf16.xpose.msra.mxu0 0
      %4616 = vmatprep.subr.bf16.mxu0 0
      %4617 = vmatpush1.bf16.xpose.msra.mxu0 0
      %4618 = vmatprep.subr.bf16.mxu0 0
      %4619 = vmatpush1.bf16.xpose.msra.mxu0 0
      %4620 = vmatprep.subr.bf16.mxu0 0
      %4621 = vmatpush1.bf16.xpose.msra.mxu0 0
      %4622 = vmatprep.subr.bf16.mxu0 0
      %4623 = vmatpush1.bf16.xpose.msra.mxu0 0
      %4624 = vmatprep.subr.bf16.mxu0 0
      %4625 = vmatpush1.bf16.xpose.msra.mxu0 0
      %4626 = vmatprep.subr.bf16.mxu0 0
      %4627 = vmatpush1.bf16.xpose.msra.mxu0 0
      %4628 = vmatprep.subr.bf16.mxu0 0
      %4629 = vmatpush1.bf16.xpose.msra.mxu0 0
      %4630 = vmatprep.subr.bf16.mxu0 0
      %4631 = vmatpush1.bf16.xpose.msra.mxu0 0
      %4632 = vmatprep.subr.bf16.mxu0 0
      %4633 = vmatpush1.bf16.xpose.msra.mxu0 0
      %4634 = vmatprep.subr.bf16.mxu0 0
      %4635 = vmatpush1.bf16.xpose.msra.mxu0 0
      %4636 = vmatprep.mubr.bf16.mxu0 0
      %4637 = vmatmul.mubr.bf16.gmra.mrb[0].mxu0 %v4599
      %v4638 = vpop.f32.mrb[0].mxu0
      %v4639 = vadd.f32 0.0, %v4638
      %v4640 = vpop.f32.mrb[0].mxu0
      %v4641 = vpop.f32.mrb[0].mxu0
      %v4642 = vpop.f32.mrb[0].mxu0
      %4643 = vdwg.mxu0
      %v4644 = vsel %vm624, %v4639, -inf
      %4645 = vmax.xlane.f32.xlu0 %v4644
      %v4646 = vpop.xlane.xlu0 %4645
      %v4647 = vsub.f32 %v4639, %v4646
      %v4648 = vmul.f32 %v4647, 1.442695
      %v4649 = vpow.pop %v4648
      %v4650 = vsel %vm624, %v4649, 0.0
      %4651 = vadd.xlane.f32.xlu0 %v4650
      %v4652 = vpop.xlane.xlu0 %4651
      %v4653 = vrcp.pop %v4652
      %v4654 = vmul.f32 %v4649, %v4653
      %v4655 = vpack.c.bf16 %v4654, %v4654
      %4656 = vrot.lane.b32.xlu0 %v4374, 112
      %v4657 = vpop.permute.xlu0 %4656
      %v4659 = vsel %vm624, %v4655, 0
      %v4662 = vsel %vm2684, %v4657, 0
      %4664 = vmatprep.subr.bf16.mxu0 0
      %4665 = vmatpush1.bf16.msra.mxu0 %v4662
      %4666 = vmatprep.subr.bf16.mxu0 0
      %4667 = vmatpush1.bf16.msra.mxu0 0
      %4668 = vmatprep.subr.bf16.mxu0 0
      %4669 = vmatpush1.bf16.msra.mxu0 0
      %4670 = vmatprep.subr.bf16.mxu0 0
      %4671 = vmatpush1.bf16.msra.mxu0 0
      %4672 = vmatprep.subr.bf16.mxu0 0
      %4673 = vmatpush1.bf16.msra.mxu0 0
      %4674 = vmatprep.subr.bf16.mxu0 0
      %4675 = vmatpush1.bf16.msra.mxu0 0
      %4676 = vmatprep.subr.bf16.mxu0 0
      %4677 = vmatpush1.bf16.msra.mxu0 0
      %4678 = vmatprep.subr.bf16.mxu0 0
      %4679 = vmatpush1.bf16.msra.mxu0 0
      %4680 = vmatprep.subr.bf16.mxu0 0
      %4681 = vmatpush1.bf16.msra.mxu0 0
      %4682 = vmatprep.subr.bf16.mxu0 0
      %4683 = vmatpush1.bf16.msra.mxu0 0
      %4684 = vmatprep.subr.bf16.mxu0 0
      %4685 = vmatpush1.bf16.msra.mxu0 0
      %4686 = vmatprep.subr.bf16.mxu0 0
      %4687 = vmatpush1.bf16.msra.mxu0 0
      %4688 = vmatprep.subr.bf16.mxu0 0
      %4689 = vmatpush1.bf16.msra.mxu0 0
      %4690 = vmatprep.subr.bf16.mxu0 0
      %4691 = vmatpush1.bf16.msra.mxu0 0
      %4692 = vmatprep.subr.bf16.mxu0 0
      %4693 = vmatpush1.bf16.msra.mxu0 0
      %4694 = vmatprep.subr.bf16.mxu0 0
      %4695 = vmatpush1.bf16.msra.mxu0 0
      %4696 = vmatprep.mubr.bf16.mxu0 0
      %4697 = vmatmul.mubr.bf16.gmra.mrb[0].mxu0 %v4659
      %v4698 = vpop.f32.mrb[0].mxu0
      %v4699 = vadd.f32 0.0, %v4698
      %v4700 = vpop.f32.mrb[0].mxu0
      %v4701 = vpop.f32.mrb[0].mxu0
      %v4702 = vpop.f32.mrb[0].mxu0
      %4703 = vdwg.mxu0
      %4704 = vrot.lane.b32.xlu0 %v4372, 104
      %v4705 = vpop.permute.xlu0 %4704
      %4706 = vrot.lane.b32.xlu0 %v4373, 72
      %v4707 = vpop.permute.xlu0 %4706
      %v4709 = vsel %vm624, %v4705, 0
      %v4712 = vsel %vm624, %v4707, 0
      %4714 = vmatprep.subr.bf16.mxu0 0
      %4715 = vmatpush1.bf16.xpose.msra.mxu0 %v4712
      %4716 = vmatprep.subr.bf16.mxu0 0
      %4717 = vmatpush1.bf16.xpose.msra.mxu0 0
      %4718 = vmatprep.subr.bf16.mxu0 0
      %4719 = vmatpush1.bf16.xpose.msra.mxu0 0
      %4720 = vmatprep.subr.bf16.mxu0 0
      %4721 = vmatpush1.bf16.xpose.msra.mxu0 0
      %4722 = vmatprep.subr.bf16.mxu0 0
      %4723 = vmatpush1.bf16.xpose.msra.mxu0 0
      %4724 = vmatprep.subr.bf16.mxu0 0
      %4725 = vmatpush1.bf16.xpose.msra.mxu0 0
      %4726 = vmatprep.subr.bf16.mxu0 0
      %4727 = vmatpush1.bf16.xpose.msra.mxu0 0
      %4728 = vmatprep.subr.bf16.mxu0 0
      %4729 = vmatpush1.bf16.xpose.msra.mxu0 0
      %4730 = vmatprep.subr.bf16.mxu0 0
      %4731 = vmatpush1.bf16.xpose.msra.mxu0 0
      %4732 = vmatprep.subr.bf16.mxu0 0
      %4733 = vmatpush1.bf16.xpose.msra.mxu0 0
      %4734 = vmatprep.subr.bf16.mxu0 0
      %4735 = vmatpush1.bf16.xpose.msra.mxu0 0
      %4736 = vmatprep.subr.bf16.mxu0 0
      %4737 = vmatpush1.bf16.xpose.msra.mxu0 0
      %4738 = vmatprep.subr.bf16.mxu0 0
      %4739 = vmatpush1.bf16.xpose.msra.mxu0 0
      %4740 = vmatprep.subr.bf16.mxu0 0
      %4741 = vmatpush1.bf16.xpose.msra.mxu0 0
      %4742 = vmatprep.subr.bf16.mxu0 0
      %4743 = vmatpush1.bf16.xpose.msra.mxu0 0
      %4744 = vmatprep.subr.bf16.mxu0 0
      %4745 = vmatpush1.bf16.xpose.msra.mxu0 0
      %4746 = vmatprep.mubr.bf16.mxu0 0
      %4747 = vmatmul.mubr.bf16.gmra.mrb[0].mxu0 %v4709
      %v4748 = vpop.f32.mrb[0].mxu0
      %v4749 = vadd.f32 0.0, %v4748
      %v4750 = vpop.f32.mrb[0].mxu0
      %v4751 = vpop.f32.mrb[0].mxu0
      %v4752 = vpop.f32.mrb[0].mxu0
      %4753 = vdwg.mxu0
      %v4754 = vsel %vm624, %v4749, -inf
      %4755 = vmax.xlane.f32.xlu0 %v4754
      %v4756 = vpop.xlane.xlu0 %4755
      %v4757 = vsub.f32 %v4749, %v4756
      %v4758 = vmul.f32 %v4757, 1.442695
      %v4759 = vpow.pop %v4758
      %v4760 = vsel %vm624, %v4759, 0.0
      %4761 = vadd.xlane.f32.xlu0 %v4760
      %v4762 = vpop.xlane.xlu0 %4761
      %v4763 = vrcp.pop %v4762
      %v4764 = vmul.f32 %v4759, %v4763
      %v4765 = vpack.c.bf16 %v4764, %v4764
      %4766 = vrot.lane.b32.xlu0 %v4374, 104
      %v4767 = vpop.permute.xlu0 %4766
      %v4769 = vsel %vm624, %v4765, 0
      %v4772 = vsel %vm2684, %v4767, 0
      %4774 = vmatprep.subr.bf16.mxu0 0
      %4775 = vmatpush1.bf16.msra.mxu0 %v4772
      %4776 = vmatprep.subr.bf16.mxu0 0
      %4777 = vmatpush1.bf16.msra.mxu0 0
      %4778 = vmatprep.subr.bf16.mxu0 0
      %4779 = vmatpush1.bf16.msra.mxu0 0
      %4780 = vmatprep.subr.bf16.mxu0 0
      %4781 = vmatpush1.bf16.msra.mxu0 0
      %4782 = vmatprep.subr.bf16.mxu0 0
      %4783 = vmatpush1.bf16.msra.mxu0 0
      %4784 = vmatprep.subr.bf16.mxu0 0
      %4785 = vmatpush1.bf16.msra.mxu0 0
      %4786 = vmatprep.subr.bf16.mxu0 0
      %4787 = vmatpush1.bf16.msra.mxu0 0
      %4788 = vmatprep.subr.bf16.mxu0 0
      %4789 = vmatpush1.bf16.msra.mxu0 0
      %4790 = vmatprep.subr.bf16.mxu0 0
      %4791 = vmatpush1.bf16.msra.mxu0 0
      %4792 = vmatprep.subr.bf16.mxu0 0
      %4793 = vmatpush1.bf16.msra.mxu0 0
      %4794 = vmatprep.subr.bf16.mxu0 0
      %4795 = vmatpush1.bf16.msra.mxu0 0
      %4796 = vmatprep.subr.bf16.mxu0 0
      %4797 = vmatpush1.bf16.msra.mxu0 0
      %4798 = vmatprep.subr.bf16.mxu0 0
      %4799 = vmatpush1.bf16.msra.mxu0 0
      %4800 = vmatprep.subr.bf16.mxu0 0
      %4801 = vmatpush1.bf16.msra.mxu0 0
      %4802 = vmatprep.subr.bf16.mxu0 0
      %4803 = vmatpush1.bf16.msra.mxu0 0
      %4804 = vmatprep.subr.bf16.mxu0 0
      %4805 = vmatpush1.bf16.msra.mxu0 0
      %4806 = vmatprep.mubr.bf16.mxu0 0
      %4807 = vmatmul.mubr.bf16.gmra.mrb[0].mxu0 %v4769
      %v4808 = vpop.f32.mrb[0].mxu0
      %v4809 = vadd.f32 0.0, %v4808
      %v4810 = vpop.f32.mrb[0].mxu0
      %v4811 = vpop.f32.mrb[0].mxu0
      %v4812 = vpop.f32.mrb[0].mxu0
      %4813 = vdwg.mxu0
      %4815 = vrot.lane.b32.xlu0 %v4589, 8
      %v4816 = vpop.permute.xlu0 %4815
      %4819 = vrot.lane.b32.xlu0 %v4699, 16
      %v4820 = vpop.permute.xlu0 %4819
      %4823 = vrot.lane.b32.xlu0 %v4809, 24
      %v4824 = vpop.permute.xlu0 %4823
      %v4826 = vsel %vm624, %v4477, %v4816
      %v4827 = vsel %vm296, %v4826, %v4820
      %v4828 = vsel %vm1862, %v4827, %v4824
      %v4829 = vpack.c.bf16 %v4828, %v4828
      %v4830 = vlaneseq
      %v4831 = vshrl.u32 %v4830, 7
      %v4832 = vsub.s32 0, %v4831
      %v4833 = vrot.slane %v4370, %v4832
      %v4838 = vunpack.c.l.b16 %v4366
      %v4839 = vunpack.c.l.b16 %v4367
      %v4840 = vunpack.c.l.b16 %v4368
      %v4841 = vunpack.c.l.b16 %v4369
      %v4842 = vpack.c.b16 %v4839, %v4838
      %v4843 = vpack.c.b16 %v4841, %v4840
      %v4847 = vsel %vm407, %v4829, 0
      %4849 = vmatprep.subr.bf16.mxu0 0
      %4850 = vmatpush1.bf16.msra.mxu0 %v4842
      %4851 = vmatprep.subr.bf16.mxu0 0
      %4852 = vmatpush1.bf16.msra.mxu0 %v4843
      %4853 = vmatprep.subr.bf16.mxu0 0
      %4854 = vmatpush1.bf16.msra.mxu0 0
      %4855 = vmatprep.subr.bf16.mxu0 0
      %4856 = vmatpush1.bf16.msra.mxu0 0
      %4857 = vmatprep.subr.bf16.mxu0 0
      %4858 = vmatpush1.bf16.msra.mxu0 0
      %4859 = vmatprep.subr.bf16.mxu0 0
      %4860 = vmatpush1.bf16.msra.mxu0 0
      %4861 = vmatprep.subr.bf16.mxu0 0
      %4862 = vmatpush1.bf16.msra.mxu0 0
      %4863 = vmatprep.subr.bf16.mxu0 0
      %4864 = vmatpush1.bf16.msra.mxu0 0
      %4865 = vmatprep.subr.bf16.mxu0 0
      %4866 = vmatpush1.bf16.msra.mxu0 0
      %4867 = vmatprep.subr.bf16.mxu0 0
      %4868 = vmatpush1.bf16.msra.mxu0 0
      %4869 = vmatprep.subr.bf16.mxu0 0
      %4870 = vmatpush1.bf16.msra.mxu0 0
      %4871 = vmatprep.subr.bf16.mxu0 0
      %4872 = vmatpush1.bf16.msra.mxu0 0
      %4873 = vmatprep.subr.bf16.mxu0 0
      %4874 = vmatpush1.bf16.msra.mxu0 0
      %4875 = vmatprep.subr.bf16.mxu0 0
      %4876 = vmatpush1.bf16.msra.mxu0 0
      %4877 = vmatprep.subr.bf16.mxu0 0
      %4878 = vmatpush1.bf16.msra.mxu0 0
      %4879 = vmatprep.subr.bf16.mxu0 0
      %4880 = vmatpush1.bf16.msra.mxu0 0
      %4881 = vmatprep.mubr.bf16.mxu0 0
      %4882 = vmatmul.mubr.bf16.gmra.mrb[0].mxu0 %v4847
      %v4883 = vpop.f32.mrb[0].mxu0
      %v4884 = vadd.f32 %v4833, %v4883
      %v4885 = vpop.f32.mrb[0].mxu0
      %v4886 = vpop.f32.mrb[0].mxu0
      %v4887 = vpop.f32.mrb[0].mxu0
      %4888 = vdwg.mxu0
      %v4889 = vadd.f32 %v4234, %v4884
      %v4890 = vld [vmem:[%s4 + $0x22] sm:$0x1]
      %v4891 = vld [vmem:[%s4 + $0x23] sm:$0x1]
      %v4892 = vsel %vm407, %v4889, 0.0
      %4893 = vadd.xlane.f32.xlu0 %v4892
      %v4894 = vpop.xlane.xlu0 %4893
      %v4895 = vmul.f32 %v4894, %v2002
      %v4896 = vsub.f32 %v4889, %v4895
      %v4897 = vmul.f32 %v4896, %v4896
      %v4898 = vsel %vm407, %v4897, 0.0
      %4899 = vadd.xlane.f32.xlu0 %v4898
      %v4900 = vpop.xlane.xlu0 %4899
      %v4901 = vmul.f32 %v4900, %v2002
      %v4902 = vadd.f32 %v4901, 1e-05
      %v4903 = vrsqrt.pop %v4902
      %v4904 = vmul.f32 %v4896, %v4903
      %v4905 = vlaneseq
      %v4906 = vshrl.u32 %v4905, 7
      %v4907 = vsub.s32 0, %v4906
      %v4908 = vrot.slane %v4890, %v4907
      %v4909 = vmul.f32 %v4904, %v4908
      %v4910 = vlaneseq
      %v4911 = vshrl.u32 %v4910, 7
      %v4912 = vsub.s32 0, %v4911
      %v4913 = vrot.slane %v4891, %v4912
      %v4914 = vadd.f32 %v4909, %v4913
      %v4915 = vadd.f32 %v4914, %v270
      %v4916 = vld [vmem:[%s3 + $0x138] sm:$0xf]
      %v4917 = vld [vmem:[%s3 + $0x13c] sm:$0xf]
      %v4918 = vld [vmem:[%s3 + $0x140] sm:$0xf]
      %v4919 = vld [vmem:[%s3 + $0x144] sm:$0xf]
      %v4920 = vpack.c.bf16 %v4915, %v4915
      %v4921 = vld [vmem:[%s4 + $0x1c] sm:$0x1]
      %v4922 = vlaneseq
      %v4923 = vshrl.u32 %v4922, 7
      %v4924 = vsub.s32 0, %v4923
      %v4925 = vrot.slane %v4921, %v4924
      %v4930 = vunpack.c.l.b16 %v4916
      %v4931 = vunpack.c.l.b16 %v4917
      %v4932 = vunpack.c.l.b16 %v4918
      %v4933 = vunpack.c.l.b16 %v4919
      %v4934 = vpack.c.b16 %v4931, %v4930
      %v4935 = vpack.c.b16 %v4933, %v4932
      %v4939 = vsel %vm407, %v4920, 0
      %4941 = vmatprep.subr.bf16.mxu0 0
      %4942 = vmatpush1.bf16.msra.mxu0 %v4934
      %4943 = vmatprep.subr.bf16.mxu0 0
      %4944 = vmatpush1.bf16.msra.mxu0 %v4935
      %4945 = vmatprep.subr.bf16.mxu0 0
      %4946 = vmatpush1.bf16.msra.mxu0 0
      %4947 = vmatprep.subr.bf16.mxu0 0
      %4948 = vmatpush1.bf16.msra.mxu0 0
      %4949 = vmatprep.subr.bf16.mxu0 0
      %4950 = vmatpush1.bf16.msra.mxu0 0
      %4951 = vmatprep.subr.bf16.mxu0 0
      %4952 = vmatpush1.bf16.msra.mxu0 0
      %4953 = vmatprep.subr.bf16.mxu0 0
      %4954 = vmatpush1.bf16.msra.mxu0 0
      %4955 = vmatprep.subr.bf16.mxu0 0
      %4956 = vmatpush1.bf16.msra.mxu0 0
      %4957 = vmatprep.subr.bf16.mxu0 0
      %4958 = vmatpush1.bf16.msra.mxu0 0
      %4959 = vmatprep.subr.bf16.mxu0 0
      %4960 = vmatpush1.bf16.msra.mxu0 0
      %4961 = vmatprep.subr.bf16.mxu0 0
      %4962 = vmatpush1.bf16.msra.mxu0 0
      %4963 = vmatprep.subr.bf16.mxu0 0
      %4964 = vmatpush1.bf16.msra.mxu0 0
      %4965 = vmatprep.subr.bf16.mxu0 0
      %4966 = vmatpush1.bf16.msra.mxu0 0
      %4967 = vmatprep.subr.bf16.mxu0 0
      %4968 = vmatpush1.bf16.msra.mxu0 0
      %4969 = vmatprep.subr.bf16.mxu0 0
      %4970 = vmatpush1.bf16.msra.mxu0 0
      %4971 = vmatprep.subr.bf16.mxu0 0
      %4972 = vmatpush1.bf16.msra.mxu0 0
      %4973 = vmatprep.mubr.bf16.mxu0 0
      %4974 = vmatmul.mubr.bf16.gmra.mrb[0].mxu0 %v4939
      %v4975 = vpop.f32.mrb[0].mxu0
      %v4976 = vadd.f32 %v4925, %v4975
      %v4977 = vpop.f32.mrb[0].mxu0
      %v4978 = vpop.f32.mrb[0].mxu0
      %v4979 = vpop.f32.mrb[0].mxu0
      %4980 = vdwg.mxu0
      %v4981 = vld [vmem:[%s3 + $0x148] sm:$0xf]
      %v4982 = vld [vmem:[%s3 + $0x14c] sm:$0xf]
      %v4983 = vld [vmem:[%s3 + $0x150] sm:$0xf]
      %v4984 = vld [vmem:[%s3 + $0x154] sm:$0xf]
      %v4985 = vld [vmem:[%s4 + $0x1d] sm:$0x1]
      %v4986 = vlaneseq
      %v4987 = vshrl.u32 %v4986, 7
      %v4988 = vsub.s32 0, %v4987
      %v4989 = vrot.slane %v4985, %v4988
      %v4994 = vunpack.c.l.b16 %v4981
      %v4995 = vunpack.c.l.b16 %v4982
      %v4996 = vunpack.c.l.b16 %v4983
      %v4997 = vunpack.c.l.b16 %v4984
      %v4998 = vpack.c.b16 %v4995, %v4994
      %v4999 = vpack.c.b16 %v4997, %v4996
      %5002 = vmatprep.subr.bf16.mxu0 0
      %5003 = vmatpush1.bf16.msra.mxu0 %v4998
      %5004 = vmatprep.subr.bf16.mxu0 0
      %5005 = vmatpush1.bf16.msra.mxu0 %v4999
      %5006 = vmatprep.subr.bf16.mxu0 0
      %5007 = vmatpush1.bf16.msra.mxu0 0
      %5008 = vmatprep.subr.bf16.mxu0 0
      %5009 = vmatpush1.bf16.msra.mxu0 0
      %5010 = vmatprep.subr.bf16.mxu0 0
      %5011 = vmatpush1.bf16.msra.mxu0 0
      %5012 = vmatprep.subr.bf16.mxu0 0
      %5013 = vmatpush1.bf16.msra.mxu0 0
      %5014 = vmatprep.subr.bf16.mxu0 0
      %5015 = vmatpush1.bf16.msra.mxu0 0
      %5016 = vmatprep.subr.bf16.mxu0 0
      %5017 = vmatpush1.bf16.msra.mxu0 0
      %5018 = vmatprep.subr.bf16.mxu0 0
      %5019 = vmatpush1.bf16.msra.mxu0 0
      %5020 = vmatprep.subr.bf16.mxu0 0
      %5021 = vmatpush1.bf16.msra.mxu0 0
      %5022 = vmatprep.subr.bf16.mxu0 0
      %5023 = vmatpush1.bf16.msra.mxu0 0
      %5024 = vmatprep.subr.bf16.mxu0 0
      %5025 = vmatpush1.bf16.msra.mxu0 0
      %5026 = vmatprep.subr.bf16.mxu0 0
      %5027 = vmatpush1.bf16.msra.mxu0 0
      %5028 = vmatprep.subr.bf16.mxu0 0
      %5029 = vmatpush1.bf16.msra.mxu0 0
      %5030 = vmatprep.subr.bf16.mxu0 0
      %5031 = vmatpush1.bf16.msra.mxu0 0
      %5032 = vmatprep.subr.bf16.mxu0 0
      %5033 = vmatpush1.bf16.msra.mxu0 0
      %5034 = vmatprep.mubr.bf16.mxu0 0
      %5035 = vmatmul.mubr.bf16.gmra.mrb[0].mxu0 %v3253
      %v5036 = vpop.f32.mrb[0].mxu0
      %v5037 = vadd.f32 %v4989, %v5036
      %v5038 = vpop.f32.mrb[0].mxu0
      %v5039 = vpop.f32.mrb[0].mxu0
      %v5040 = vadd.f32 %v4989, %v5039
      %v5041 = vpop.f32.mrb[0].mxu0
      %5042 = vmatprep.mubr.bf16.mxu0 0
      %5043 = vmatmul.mubr.bf16.gmra.mrb[0].mxu0 %v3256
      %v5044 = vpop.f32.mrb[0].mxu0
      %v5045 = vadd.f32 %v4989, %v5044
      %v5046 = vpop.f32.mrb[0].mxu0
      %v5047 = vpop.f32.mrb[0].mxu0
      %v5048 = vadd.f32 %v4989, %v5047
      %v5049 = vpop.f32.mrb[0].mxu0
      %5050 = vmatprep.mubr.bf16.mxu0 0
      %5051 = vmatmul.mubr.bf16.gmra.mrb[0].mxu0 %v3259
      %v5052 = vpop.f32.mrb[0].mxu0
      %v5053 = vadd.f32 %v4989, %v5052
      %v5054 = vpop.f32.mrb[0].mxu0
      %v5055 = vpop.f32.mrb[0].mxu0
      %v5056 = vadd.f32 %v4989, %v5055
      %v5057 = vpop.f32.mrb[0].mxu0
      %5058 = vmatprep.mubr.bf16.mxu0 0
      %5059 = vmatmul.mubr.bf16.gmra.mrb[0].mxu0 %v3262
      %v5060 = vpop.f32.mrb[0].mxu0
      %v5061 = vadd.f32 %v4989, %v5060
      %v5062 = vpop.f32.mrb[0].mxu0
      %v5063 = vpop.f32.mrb[0].mxu0
      %v5064 = vadd.f32 %v4989, %v5063
      %v5065 = vpop.f32.mrb[0].mxu0
      %5066 = vdwg.mxu0
      %v5067 = vld [vmem:[%s3 + $0x158] sm:$0xf]
      %v5068 = vld [vmem:[%s3 + $0x15c] sm:$0xf]
      %v5069 = vld [vmem:[%s3 + $0x160] sm:$0xf]
      %v5070 = vld [vmem:[%s3 + $0x164] sm:$0xf]
      %v5071 = vld [vmem:[%s4 + $0x1e] sm:$0x1]
      %v5072 = vlaneseq
      %v5073 = vshrl.u32 %v5072, 7
      %v5074 = vsub.s32 0, %v5073
      %v5075 = vrot.slane %v5071, %v5074
      %v5080 = vunpack.c.l.b16 %v5067
      %v5081 = vunpack.c.l.b16 %v5068
      %v5082 = vunpack.c.l.b16 %v5069
      %v5083 = vunpack.c.l.b16 %v5070
      %v5084 = vpack.c.b16 %v5081, %v5080
      %v5085 = vpack.c.b16 %v5083, %v5082
      %5088 = vmatprep.subr.bf16.mxu0 0
      %5089 = vmatpush1.bf16.msra.mxu0 %v5084
      %5090 = vmatprep.subr.bf16.mxu0 0
      %5091 = vmatpush1.bf16.msra.mxu0 %v5085
      %5092 = vmatprep.subr.bf16.mxu0 0
      %5093 = vmatpush1.bf16.msra.mxu0 0
      %5094 = vmatprep.subr.bf16.mxu0 0
      %5095 = vmatpush1.bf16.msra.mxu0 0
      %5096 = vmatprep.subr.bf16.mxu0 0
      %5097 = vmatpush1.bf16.msra.mxu0 0
      %5098 = vmatprep.subr.bf16.mxu0 0
      %5099 = vmatpush1.bf16.msra.mxu0 0
      %5100 = vmatprep.subr.bf16.mxu0 0
      %5101 = vmatpush1.bf16.msra.mxu0 0
      %5102 = vmatprep.subr.bf16.mxu0 0
      %5103 = vmatpush1.bf16.msra.mxu0 0
      %5104 = vmatprep.subr.bf16.mxu0 0
      %5105 = vmatpush1.bf16.msra.mxu0 0
      %5106 = vmatprep.subr.bf16.mxu0 0
      %5107 = vmatpush1.bf16.msra.mxu0 0
      %5108 = vmatprep.subr.bf16.mxu0 0
      %5109 = vmatpush1.bf16.msra.mxu0 0
      %5110 = vmatprep.subr.bf16.mxu0 0
      %5111 = vmatpush1.bf16.msra.mxu0 0
      %5112 = vmatprep.subr.bf16.mxu0 0
      %5113 = vmatpush1.bf16.msra.mxu0 0
      %5114 = vmatprep.subr.bf16.mxu0 0
      %5115 = vmatpush1.bf16.msra.mxu0 0
      %5116 = vmatprep.subr.bf16.mxu0 0
      %5117 = vmatpush1.bf16.msra.mxu0 0
      %5118 = vmatprep.subr.bf16.mxu0 0
      %5119 = vmatpush1.bf16.msra.mxu0 0
      %5120 = vmatprep.mubr.bf16.mxu0 0
      %5121 = vmatmul.mubr.bf16.gmra.mrb[0].mxu0 %v3355
      %v5122 = vpop.f32.mrb[0].mxu0
      %v5123 = vadd.f32 %v5075, %v5122
      %v5124 = vpop.f32.mrb[0].mxu0
      %v5125 = vpop.f32.mrb[0].mxu0
      %v5126 = vadd.f32 %v5075, %v5125
      %v5127 = vpop.f32.mrb[0].mxu0
      %5128 = vmatprep.mubr.bf16.mxu0 0
      %5129 = vmatmul.mubr.bf16.gmra.mrb[0].mxu0 %v3358
      %v5130 = vpop.f32.mrb[0].mxu0
      %v5131 = vadd.f32 %v5075, %v5130
      %v5132 = vpop.f32.mrb[0].mxu0
      %v5133 = vpop.f32.mrb[0].mxu0
      %v5134 = vadd.f32 %v5075, %v5133
      %v5135 = vpop.f32.mrb[0].mxu0
      %5136 = vmatprep.mubr.bf16.mxu0 0
      %5137 = vmatmul.mubr.bf16.gmra.mrb[0].mxu0 %v3361
      %v5138 = vpop.f32.mrb[0].mxu0
      %v5139 = vadd.f32 %v5075, %v5138
      %v5140 = vpop.f32.mrb[0].mxu0
      %v5141 = vpop.f32.mrb[0].mxu0
      %v5142 = vadd.f32 %v5075, %v5141
      %v5143 = vpop.f32.mrb[0].mxu0
      %5144 = vmatprep.mubr.bf16.mxu0 0
      %5145 = vmatmul.mubr.bf16.gmra.mrb[0].mxu0 %v3364
      %v5146 = vpop.f32.mrb[0].mxu0
      %v5147 = vadd.f32 %v5075, %v5146
      %v5148 = vpop.f32.mrb[0].mxu0
      %v5149 = vpop.f32.mrb[0].mxu0
      %v5150 = vadd.f32 %v5075, %v5149
      %v5151 = vpop.f32.mrb[0].mxu0
      %5152 = vdwg.mxu0
      %v5153 = vld [vmem:[%s3 + $0x168] sm:$0xf]
      %v5154 = vld [vmem:[%s3 + $0x16c] sm:$0xf]
      %v5155 = vld [vmem:[%s3 + $0x170] sm:$0xf]
      %v5156 = vld [vmem:[%s3 + $0x174] sm:$0xf]
      %v5157 = vld [vmem:[%s4 + $0x1f] sm:$0x1]
      %v5158 = vmul.f32 %v4976, 0.35355338
      %v5159 = vpack.c.bf16 %v5158, %v5158
      %v5160 = vpack.c.bf16 %v5040, %v5037
      %v5161 = vpack.c.bf16 %v5048, %v5045
      %v5162 = vpack.c.bf16 %v5056, %v5053
      %v5163 = vpack.c.bf16 %v5064, %v5061
      %v5164 = vpack.c.bf16 %v5126, %v5123
      %v5165 = vpack.c.bf16 %v5134, %v5131
      %v5166 = vpack.c.bf16 %v5142, %v5139
      %v5167 = vpack.c.bf16 %v5150, %v5147
      %v5169 = vsel %vm624, %v5159, 0
      %v5172 = vsel %vm624, %v5160, 0
      %v5175 = vsel %vm624, %v5161, 0
      %v5178 = vsel %vm624, %v5162, 0
      %v5181 = vsel %vm624, %v5163, 0
      %5183 = vmatprep.subr.bf16.mxu0 0
      %5184 = vmatpush1.bf16.xpose.msra.mxu0 %v5172
      %5185 = vmatprep.subr.bf16.mxu0 0
      %5186 = vmatpush1.bf16.xpose.msra.mxu0 %v5175
      %5187 = vmatprep.subr.bf16.mxu0 0
      %5188 = vmatpush1.bf16.xpose.msra.mxu0 %v5178
      %5189 = vmatprep.subr.bf16.mxu0 0
      %5190 = vmatpush1.bf16.xpose.msra.mxu0 %v5181
      %5191 = vmatprep.subr.bf16.mxu0 0
      %5192 = vmatpush1.bf16.xpose.msra.mxu0 0
      %5193 = vmatprep.subr.bf16.mxu0 0
      %5194 = vmatpush1.bf16.xpose.msra.mxu0 0
      %5195 = vmatprep.subr.bf16.mxu0 0
      %5196 = vmatpush1.bf16.xpose.msra.mxu0 0
      %5197 = vmatprep.subr.bf16.mxu0 0
      %5198 = vmatpush1.bf16.xpose.msra.mxu0 0
      %5199 = vmatprep.subr.bf16.mxu0 0
      %5200 = vmatpush1.bf16.xpose.msra.mxu0 0
      %5201 = vmatprep.subr.bf16.mxu0 0
      %5202 = vmatpush1.bf16.xpose.msra.mxu0 0
      %5203 = vmatprep.subr.bf16.mxu0 0
      %5204 = vmatpush1.bf16.xpose.msra.mxu0 0
      %5205 = vmatprep.subr.bf16.mxu0 0
      %5206 = vmatpush1.bf16.xpose.msra.mxu0 0
      %5207 = vmatprep.subr.bf16.mxu0 0
      %5208 = vmatpush1.bf16.xpose.msra.mxu0 0
      %5209 = vmatprep.subr.bf16.mxu0 0
      %5210 = vmatpush1.bf16.xpose.msra.mxu0 0
      %5211 = vmatprep.subr.bf16.mxu0 0
      %5212 = vmatpush1.bf16.xpose.msra.mxu0 0
      %5213 = vmatprep.subr.bf16.mxu0 0
      %5214 = vmatpush1.bf16.xpose.msra.mxu0 0
      %5215 = vmatprep.mubr.bf16.mxu0 0
      %5216 = vmatmul.mubr.bf16.gmra.mrb[0].mxu0 %v5169
      %v5217 = vpop.f32.mrb[0].mxu0
      %v5218 = vadd.f32 0.0, %v5217
      %v5219 = vpop.f32.mrb[0].mxu0
      %v5220 = vpop.f32.mrb[0].mxu0
      %v5221 = vpop.f32.mrb[0].mxu0
      %5222 = vdwg.mxu0
      %v5223 = vsel %vm714, %v5218, -inf
      %5224 = vmax.xlane.f32.xlu0 %v5223
      %v5225 = vpop.xlane.xlu0 %5224
      %v5226 = vsub.f32 %v5218, %v5225
      %v5227 = vmul.f32 %v5226, 1.442695
      %v5228 = vpow.pop %v5227
      %v5229 = vsel %vm714, %v5228, 0.0
      %5230 = vadd.xlane.f32.xlu0 %v5229
      %v5231 = vpop.xlane.xlu0 %5230
      %v5232 = vrcp.pop %v5231
      %v5233 = vmul.f32 %v5228, %v5232
      %v5234 = vpack.c.bf16 %v5233, %v5233
      %v5236 = vsel %vm714, %v5234, 0
      %5238 = vmatprep.subr.bf16.mxu0 0
      %5239 = vmatpush1.bf16.msra.mxu0 %v5164
      %5240 = vmatprep.subr.bf16.mxu0 0
      %5241 = vmatpush1.bf16.msra.mxu0 %v5165
      %5242 = vmatprep.subr.bf16.mxu0 0
      %5243 = vmatpush1.bf16.msra.mxu0 %v5166
      %5244 = vmatprep.subr.bf16.mxu0 0
      %5245 = vmatpush1.bf16.msra.mxu0 %v5167
      %5246 = vmatprep.subr.bf16.mxu0 0
      %5247 = vmatpush1.bf16.msra.mxu0 0
      %5248 = vmatprep.subr.bf16.mxu0 0
      %5249 = vmatpush1.bf16.msra.mxu0 0
      %5250 = vmatprep.subr.bf16.mxu0 0
      %5251 = vmatpush1.bf16.msra.mxu0 0
      %5252 = vmatprep.subr.bf16.mxu0 0
      %5253 = vmatpush1.bf16.msra.mxu0 0
      %5254 = vmatprep.subr.bf16.mxu0 0
      %5255 = vmatpush1.bf16.msra.mxu0 0
      %5256 = vmatprep.subr.bf16.mxu0 0
      %5257 = vmatpush1.bf16.msra.mxu0 0
      %5258 = vmatprep.subr.bf16.mxu0 0
      %5259 = vmatpush1.bf16.msra.mxu0 0
      %5260 = vmatprep.subr.bf16.mxu0 0
      %5261 = vmatpush1.bf16.msra.mxu0 0
      %5262 = vmatprep.subr.bf16.mxu0 0
      %5263 = vmatpush1.bf16.msra.mxu0 0
      %5264 = vmatprep.subr.bf16.mxu0 0
      %5265 = vmatpush1.bf16.msra.mxu0 0
      %5266 = vmatprep.subr.bf16.mxu0 0
      %5267 = vmatpush1.bf16.msra.mxu0 0
      %5268 = vmatprep.subr.bf16.mxu0 0
      %5269 = vmatpush1.bf16.msra.mxu0 0
      %5270 = vmatprep.mubr.bf16.mxu0 0
      %5271 = vmatmul.mubr.bf16.gmra.mrb[0].mxu0 %v5236
      %v5272 = vpop.f32.mrb[0].mxu0
      %v5273 = vadd.f32 0.0, %v5272
      %v5274 = vpop.f32.mrb[0].mxu0
      %v5275 = vpop.f32.mrb[0].mxu0
      %v5276 = vpop.f32.mrb[0].mxu0
      %5277 = vdwg.mxu0
      %5279 = vrot.lane.b32.xlu0 %v5159, 120
      %v5280 = vpop.permute.xlu0 %5279
      %5285 = vrot.lane.b32.xlu0 %v5160, 120
      %v5286 = vpop.permute.xlu0 %5285
      %5287 = vrot.lane.b32.xlu0 %v5161, 120
      %v5288 = vpop.permute.xlu0 %5287
      %5289 = vrot.lane.b32.xlu0 %v5162, 120
      %v5290 = vpop.permute.xlu0 %5289
      %5291 = vrot.lane.b32.xlu0 %v5163, 120
      %v5292 = vpop.permute.xlu0 %5291
      %v5294 = vsel %vm624, %v5280, 0
      %v5297 = vsel %vm624, %v5286, 0
      %v5300 = vsel %vm624, %v5288, 0
      %v5303 = vsel %vm624, %v5290, 0
      %v5306 = vsel %vm624, %v5292, 0
      %5308 = vmatprep.subr.bf16.mxu0 0
      %5309 = vmatpush1.bf16.xpose.msra.mxu0 %v5297
      %5310 = vmatprep.subr.bf16.mxu0 0
      %5311 = vmatpush1.bf16.xpose.msra.mxu0 %v5300
      %5312 = vmatprep.subr.bf16.mxu0 0
      %5313 = vmatpush1.bf16.xpose.msra.mxu0 %v5303
      %5314 = vmatprep.subr.bf16.mxu0 0
      %5315 = vmatpush1.bf16.xpose.msra.mxu0 %v5306
      %5316 = vmatprep.subr.bf16.mxu0 0
      %5317 = vmatpush1.bf16.xpose.msra.mxu0 0
      %5318 = vmatprep.subr.bf16.mxu0 0
      %5319 = vmatpush1.bf16.xpose.msra.mxu0 0
      %5320 = vmatprep.subr.bf16.mxu0 0
      %5321 = vmatpush1.bf16.xpose.msra.mxu0 0
      %5322 = vmatprep.subr.bf16.mxu0 0
      %5323 = vmatpush1.bf16.xpose.msra.mxu0 0
      %5324 = vmatprep.subr.bf16.mxu0 0
      %5325 = vmatpush1.bf16.xpose.msra.mxu0 0
      %5326 = vmatprep.subr.bf16.mxu0 0
      %5327 = vmatpush1.bf16.xpose.msra.mxu0 0
      %5328 = vmatprep.subr.bf16.mxu0 0
      %5329 = vmatpush1.bf16.xpose.msra.mxu0 0
      %5330 = vmatprep.subr.bf16.mxu0 0
      %5331 = vmatpush1.bf16.xpose.msra.mxu0 0
      %5332 = vmatprep.subr.bf16.mxu0 0
      %5333 = vmatpush1.bf16.xpose.msra.mxu0 0
      %5334 = vmatprep.subr.bf16.mxu0 0
      %5335 = vmatpush1.bf16.xpose.msra.mxu0 0
      %5336 = vmatprep.subr.bf16.mxu0 0
      %5337 = vmatpush1.bf16.xpose.msra.mxu0 0
      %5338 = vmatprep.subr.bf16.mxu0 0
      %5339 = vmatpush1.bf16.xpose.msra.mxu0 0
      %5340 = vmatprep.mubr.bf16.mxu0 0
      %5341 = vmatmul.mubr.bf16.gmra.mrb[0].mxu0 %v5294
      %v5342 = vpop.f32.mrb[0].mxu0
      %v5343 = vadd.f32 0.0, %v5342
      %v5344 = vpop.f32.mrb[0].mxu0
      %v5345 = vpop.f32.mrb[0].mxu0
      %v5346 = vpop.f32.mrb[0].mxu0
      %5347 = vdwg.mxu0
      %v5348 = vsel %vm714, %v5343, -inf
      %5349 = vmax.xlane.f32.xlu0 %v5348
      %v5350 = vpop.xlane.xlu0 %5349
      %v5351 = vsub.f32 %v5343, %v5350
      %v5352 = vmul.f32 %v5351, 1.442695
      %v5353 = vpow.pop %v5352
      %v5354 = vsel %vm714, %v5353, 0.0
      %5355 = vadd.xlane.f32.xlu0 %v5354
      %v5356 = vpop.xlane.xlu0 %5355
      %v5357 = vrcp.pop %v5356
      %v5358 = vmul.f32 %v5353, %v5357
      %v5359 = vpack.c.bf16 %v5358, %v5358
      %5364 = vrot.lane.b32.xlu0 %v5164, 120
      %v5365 = vpop.permute.xlu0 %5364
      %5366 = vrot.lane.b32.xlu0 %v5165, 120
      %v5367 = vpop.permute.xlu0 %5366
      %5368 = vrot.lane.b32.xlu0 %v5166, 120
      %v5369 = vpop.permute.xlu0 %5368
      %5370 = vrot.lane.b32.xlu0 %v5167, 120
      %v5371 = vpop.permute.xlu0 %5370
      %v5377 = vsel %vm714, %v5359, 0
      %5379 = vmatprep.subr.bf16.mxu0 0
      %5380 = vmatpush1.bf16.msra.mxu0 %v5365
      %5381 = vmatprep.subr.bf16.mxu0 0
      %5382 = vmatpush1.bf16.msra.mxu0 %v5367
      %5383 = vmatprep.subr.bf16.mxu0 0
      %5384 = vmatpush1.bf16.msra.mxu0 %v5369
      %5385 = vmatprep.subr.bf16.mxu0 0
      %5386 = vmatpush1.bf16.msra.mxu0 %v5371
      %5387 = vmatprep.subr.bf16.mxu0 0
      %5388 = vmatpush1.bf16.msra.mxu0 0
      %5389 = vmatprep.subr.bf16.mxu0 0
      %5390 = vmatpush1.bf16.msra.mxu0 0
      %5391 = vmatprep.subr.bf16.mxu0 0
      %5392 = vmatpush1.bf16.msra.mxu0 0
      %5393 = vmatprep.subr.bf16.mxu0 0
      %5394 = vmatpush1.bf16.msra.mxu0 0
      %5395 = vmatprep.subr.bf16.mxu0 0
      %5396 = vmatpush1.bf16.msra.mxu0 0
      %5397 = vmatprep.subr.bf16.mxu0 0
      %5398 = vmatpush1.bf16.msra.mxu0 0
      %5399 = vmatprep.subr.bf16.mxu0 0
      %5400 = vmatpush1.bf16.msra.mxu0 0
      %5401 = vmatprep.subr.bf16.mxu0 0
      %5402 = vmatpush1.bf16.msra.mxu0 0
      %5403 = vmatprep.subr.bf16.mxu0 0
      %5404 = vmatpush1.bf16.msra.mxu0 0
      %5405 = vmatprep.subr.bf16.mxu0 0
      %5406 = vmatpush1.bf16.msra.mxu0 0
      %5407 = vmatprep.subr.bf16.mxu0 0
      %5408 = vmatpush1.bf16.msra.mxu0 0
      %5409 = vmatprep.subr.bf16.mxu0 0
      %5410 = vmatpush1.bf16.msra.mxu0 0
      %5411 = vmatprep.mubr.bf16.mxu0 0
      %5412 = vmatmul.mubr.bf16.gmra.mrb[0].mxu0 %v5377
      %v5413 = vpop.f32.mrb[0].mxu0
      %v5414 = vadd.f32 0.0, %v5413
      %v5415 = vpop.f32.mrb[0].mxu0
      %v5416 = vpop.f32.mrb[0].mxu0
      %v5417 = vpop.f32.mrb[0].mxu0
      %5418 = vdwg.mxu0
      %5419 = vrot.lane.b32.xlu0 %v5159, 112
      %v5420 = vpop.permute.xlu0 %5419
      %5421 = vrot.lane.b32.xlu0 %v5160, 112
      %v5422 = vpop.permute.xlu0 %5421
      %5423 = vrot.lane.b32.xlu0 %v5161, 112
      %v5424 = vpop.permute.xlu0 %5423
      %5425 = vrot.lane.b32.xlu0 %v5162, 112
      %v5426 = vpop.permute.xlu0 %5425
      %5427 = vrot.lane.b32.xlu0 %v5163, 112
      %v5428 = vpop.permute.xlu0 %5427
      %v5430 = vsel %vm624, %v5420, 0
      %v5433 = vsel %vm624, %v5422, 0
      %v5436 = vsel %vm624, %v5424, 0
      %v5439 = vsel %vm624, %v5426, 0
      %v5442 = vsel %vm624, %v5428, 0
      %5444 = vmatprep.subr.bf16.mxu0 0
      %5445 = vmatpush1.bf16.xpose.msra.mxu0 %v5433
      %5446 = vmatprep.subr.bf16.mxu0 0
      %5447 = vmatpush1.bf16.xpose.msra.mxu0 %v5436
      %5448 = vmatprep.subr.bf16.mxu0 0
      %5449 = vmatpush1.bf16.xpose.msra.mxu0 %v5439
      %5450 = vmatprep.subr.bf16.mxu0 0
      %5451 = vmatpush1.bf16.xpose.msra.mxu0 %v5442
      %5452 = vmatprep.subr.bf16.mxu0 0
      %5453 = vmatpush1.bf16.xpose.msra.mxu0 0
      %5454 = vmatprep.subr.bf16.mxu0 0
      %5455 = vmatpush1.bf16.xpose.msra.mxu0 0
      %5456 = vmatprep.subr.bf16.mxu0 0
      %5457 = vmatpush1.bf16.xpose.msra.mxu0 0
      %5458 = vmatprep.subr.bf16.mxu0 0
      %5459 = vmatpush1.bf16.xpose.msra.mxu0 0
      %5460 = vmatprep.subr.bf16.mxu0 0
      %5461 = vmatpush1.bf16.xpose.msra.mxu0 0
      %5462 = vmatprep.subr.bf16.mxu0 0
      %5463 = vmatpush1.bf16.xpose.msra.mxu0 0
      %5464 = vmatprep.subr.bf16.mxu0 0
      %5465 = vmatpush1.bf16.xpose.msra.mxu0 0
      %5466 = vmatprep.subr.bf16.mxu0 0
      %5467 = vmatpush1.bf16.xpose.msra.mxu0 0
      %5468 = vmatprep.subr.bf16.mxu0 0
      %5469 = vmatpush1.bf16.xpose.msra.mxu0 0
      %5470 = vmatprep.subr.bf16.mxu0 0
      %5471 = vmatpush1.bf16.xpose.msra.mxu0 0
      %5472 = vmatprep.subr.bf16.mxu0 0
      %5473 = vmatpush1.bf16.xpose.msra.mxu0 0
      %5474 = vmatprep.subr.bf16.mxu0 0
      %5475 = vmatpush1.bf16.xpose.msra.mxu0 0
      %5476 = vmatprep.mubr.bf16.mxu0 0
      %5477 = vmatmul.mubr.bf16.gmra.mrb[0].mxu0 %v5430
      %v5478 = vpop.f32.mrb[0].mxu0
      %v5479 = vadd.f32 0.0, %v5478
      %v5480 = vpop.f32.mrb[0].mxu0
      %v5481 = vpop.f32.mrb[0].mxu0
      %v5482 = vpop.f32.mrb[0].mxu0
      %5483 = vdwg.mxu0
      %v5484 = vsel %vm714, %v5479, -inf
      %5485 = vmax.xlane.f32.xlu0 %v5484
      %v5486 = vpop.xlane.xlu0 %5485
      %v5487 = vsub.f32 %v5479, %v5486
      %v5488 = vmul.f32 %v5487, 1.442695
      %v5489 = vpow.pop %v5488
      %v5490 = vsel %vm714, %v5489, 0.0
      %5491 = vadd.xlane.f32.xlu0 %v5490
      %v5492 = vpop.xlane.xlu0 %5491
      %v5493 = vrcp.pop %v5492
      %v5494 = vmul.f32 %v5489, %v5493
      %v5495 = vpack.c.bf16 %v5494, %v5494
      %5496 = vrot.lane.b32.xlu0 %v5164, 112
      %v5497 = vpop.permute.xlu0 %5496
      %5498 = vrot.lane.b32.xlu0 %v5165, 112
      %v5499 = vpop.permute.xlu0 %5498
      %5500 = vrot.lane.b32.xlu0 %v5166, 112
      %v5501 = vpop.permute.xlu0 %5500
      %5502 = vrot.lane.b32.xlu0 %v5167, 112
      %v5503 = vpop.permute.xlu0 %5502
      %v5509 = vsel %vm714, %v5495, 0
      %5511 = vmatprep.subr.bf16.mxu0 0
      %5512 = vmatpush1.bf16.msra.mxu0 %v5497
      %5513 = vmatprep.subr.bf16.mxu0 0
      %5514 = vmatpush1.bf16.msra.mxu0 %v5499
      %5515 = vmatprep.subr.bf16.mxu0 0
      %5516 = vmatpush1.bf16.msra.mxu0 %v5501
      %5517 = vmatprep.subr.bf16.mxu0 0
      %5518 = vmatpush1.bf16.msra.mxu0 %v5503
      %5519 = vmatprep.subr.bf16.mxu0 0
      %5520 = vmatpush1.bf16.msra.mxu0 0
      %5521 = vmatprep.subr.bf16.mxu0 0
      %5522 = vmatpush1.bf16.msra.mxu0 0
      %5523 = vmatprep.subr.bf16.mxu0 0
      %5524 = vmatpush1.bf16.msra.mxu0 0
      %5525 = vmatprep.subr.bf16.mxu0 0
      %5526 = vmatpush1.bf16.msra.mxu0 0
      %5527 = vmatprep.subr.bf16.mxu0 0
      %5528 = vmatpush1.bf16.msra.mxu0 0
      %5529 = vmatprep.subr.bf16.mxu0 0
      %5530 = vmatpush1.bf16.msra.mxu0 0
      %5531 = vmatprep.subr.bf16.mxu0 0
      %5532 = vmatpush1.bf16.msra.mxu0 0
      %5533 = vmatprep.subr.bf16.mxu0 0
      %5534 = vmatpush1.bf16.msra.mxu0 0
      %5535 = vmatprep.subr.bf16.mxu0 0
      %5536 = vmatpush1.bf16.msra.mxu0 0
      %5537 = vmatprep.subr.bf16.mxu0 0
      %5538 = vmatpush1.bf16.msra.mxu0 0
      %5539 = vmatprep.subr.bf16.mxu0 0
      %5540 = vmatpush1.bf16.msra.mxu0 0
      %5541 = vmatprep.subr.bf16.mxu0 0
      %5542 = vmatpush1.bf16.msra.mxu0 0
      %5543 = vmatprep.mubr.bf16.mxu0 0
      %5544 = vmatmul.mubr.bf16.gmra.mrb[0].mxu0 %v5509
      %v5545 = vpop.f32.mrb[0].mxu0
      %v5546 = vadd.f32 0.0, %v5545
      %v5547 = vpop.f32.mrb[0].mxu0
      %v5548 = vpop.f32.mrb[0].mxu0
      %v5549 = vpop.f32.mrb[0].mxu0
      %5550 = vdwg.mxu0
      %5551 = vrot.lane.b32.xlu0 %v5159, 104
      %v5552 = vpop.permute.xlu0 %5551
      %5553 = vrot.lane.b32.xlu0 %v5160, 104
      %v5554 = vpop.permute.xlu0 %5553
      %5555 = vrot.lane.b32.xlu0 %v5161, 104
      %v5556 = vpop.permute.xlu0 %5555
      %5557 = vrot.lane.b32.xlu0 %v5162, 104
      %v5558 = vpop.permute.xlu0 %5557
      %5559 = vrot.lane.b32.xlu0 %v5163, 104
      %v5560 = vpop.permute.xlu0 %5559
      %v5562 = vsel %vm624, %v5552, 0
      %v5565 = vsel %vm624, %v5554, 0
      %v5568 = vsel %vm624, %v5556, 0
      %v5571 = vsel %vm624, %v5558, 0
      %v5574 = vsel %vm624, %v5560, 0
      %5576 = vmatprep.subr.bf16.mxu0 0
      %5577 = vmatpush1.bf16.xpose.msra.mxu0 %v5565
      %5578 = vmatprep.subr.bf16.mxu0 0
      %5579 = vmatpush1.bf16.xpose.msra.mxu0 %v5568
      %5580 = vmatprep.subr.bf16.mxu0 0
      %5581 = vmatpush1.bf16.xpose.msra.mxu0 %v5571
      %5582 = vmatprep.subr.bf16.mxu0 0
      %5583 = vmatpush1.bf16.xpose.msra.mxu0 %v5574
      %5584 = vmatprep.subr.bf16.mxu0 0
      %5585 = vmatpush1.bf16.xpose.msra.mxu0 0
      %5586 = vmatprep.subr.bf16.mxu0 0
      %5587 = vmatpush1.bf16.xpose.msra.mxu0 0
      %5588 = vmatprep.subr.bf16.mxu0 0
      %5589 = vmatpush1.bf16.xpose.msra.mxu0 0
      %5590 = vmatprep.subr.bf16.mxu0 0
      %5591 = vmatpush1.bf16.xpose.msra.mxu0 0
      %5592 = vmatprep.subr.bf16.mxu0 0
      %5593 = vmatpush1.bf16.xpose.msra.mxu0 0
      %5594 = vmatprep.subr.bf16.mxu0 0
      %5595 = vmatpush1.bf16.xpose.msra.mxu0 0
      %5596 = vmatprep.subr.bf16.mxu0 0
      %5597 = vmatpush1.bf16.xpose.msra.mxu0 0
      %5598 = vmatprep.subr.bf16.mxu0 0
      %5599 = vmatpush1.bf16.xpose.msra.mxu0 0
      %5600 = vmatprep.subr.bf16.mxu0 0
      %5601 = vmatpush1.bf16.xpose.msra.mxu0 0
      %5602 = vmatprep.subr.bf16.mxu0 0
      %5603 = vmatpush1.bf16.xpose.msra.mxu0 0
      %5604 = vmatprep.subr.bf16.mxu0 0
      %5605 = vmatpush1.bf16.xpose.msra.mxu0 0
      %5606 = vmatprep.subr.bf16.mxu0 0
      %5607 = vmatpush1.bf16.xpose.msra.mxu0 0
      %5608 = vmatprep.mubr.bf16.mxu0 0
      %5609 = vmatmul.mubr.bf16.gmra.mrb[0].mxu0 %v5562
      %v5610 = vpop.f32.mrb[0].mxu0
      %v5611 = vadd.f32 0.0, %v5610
      %v5612 = vpop.f32.mrb[0].mxu0
      %v5613 = vpop.f32.mrb[0].mxu0
      %v5614 = vpop.f32.mrb[0].mxu0
      %5615 = vdwg.mxu0
      %v5616 = vsel %vm714, %v5611, -inf
      %5617 = vmax.xlane.f32.xlu0 %v5616
      %v5618 = vpop.xlane.xlu0 %5617
      %v5619 = vsub.f32 %v5611, %v5618
      %v5620 = vmul.f32 %v5619, 1.442695
      %v5621 = vpow.pop %v5620
      %v5622 = vsel %vm714, %v5621, 0.0
      %5623 = vadd.xlane.f32.xlu0 %v5622
      %v5624 = vpop.xlane.xlu0 %5623
      %v5625 = vrcp.pop %v5624
      %v5626 = vmul.f32 %v5621, %v5625
      %v5627 = vpack.c.bf16 %v5626, %v5626
      %5628 = vrot.lane.b32.xlu0 %v5164, 104
      %v5629 = vpop.permute.xlu0 %5628
      %5630 = vrot.lane.b32.xlu0 %v5165, 104
      %v5631 = vpop.permute.xlu0 %5630
      %5632 = vrot.lane.b32.xlu0 %v5166, 104
      %v5633 = vpop.permute.xlu0 %5632
      %5634 = vrot.lane.b32.xlu0 %v5167, 104
      %v5635 = vpop.permute.xlu0 %5634
      %v5641 = vsel %vm714, %v5627, 0
      %5643 = vmatprep.subr.bf16.mxu0 0
      %5644 = vmatpush1.bf16.msra.mxu0 %v5629
      %5645 = vmatprep.subr.bf16.mxu0 0
      %5646 = vmatpush1.bf16.msra.mxu0 %v5631
      %5647 = vmatprep.subr.bf16.mxu0 0
      %5648 = vmatpush1.bf16.msra.mxu0 %v5633
      %5649 = vmatprep.subr.bf16.mxu0 0
      %5650 = vmatpush1.bf16.msra.mxu0 %v5635
      %5651 = vmatprep.subr.bf16.mxu0 0
      %5652 = vmatpush1.bf16.msra.mxu0 0
      %5653 = vmatprep.subr.bf16.mxu0 0
      %5654 = vmatpush1.bf16.msra.mxu0 0
      %5655 = vmatprep.subr.bf16.mxu0 0
      %5656 = vmatpush1.bf16.msra.mxu0 0
      %5657 = vmatprep.subr.bf16.mxu0 0
      %5658 = vmatpush1.bf16.msra.mxu0 0
      %5659 = vmatprep.subr.bf16.mxu0 0
      %5660 = vmatpush1.bf16.msra.mxu0 0
      %5661 = vmatprep.subr.bf16.mxu0 0
      %5662 = vmatpush1.bf16.msra.mxu0 0
      %5663 = vmatprep.subr.bf16.mxu0 0
      %5664 = vmatpush1.bf16.msra.mxu0 0
      %5665 = vmatprep.subr.bf16.mxu0 0
      %5666 = vmatpush1.bf16.msra.mxu0 0
      %5667 = vmatprep.subr.bf16.mxu0 0
      %5668 = vmatpush1.bf16.msra.mxu0 0
      %5669 = vmatprep.subr.bf16.mxu0 0
      %5670 = vmatpush1.bf16.msra.mxu0 0
      %5671 = vmatprep.subr.bf16.mxu0 0
      %5672 = vmatpush1.bf16.msra.mxu0 0
      %5673 = vmatprep.subr.bf16.mxu0 0
      %5674 = vmatpush1.bf16.msra.mxu0 0
      %5675 = vmatprep.mubr.bf16.mxu0 0
      %5676 = vmatmul.mubr.bf16.gmra.mrb[0].mxu0 %v5641
      %v5677 = vpop.f32.mrb[0].mxu0
      %v5678 = vadd.f32 0.0, %v5677
      %v5679 = vpop.f32.mrb[0].mxu0
      %v5680 = vpop.f32.mrb[0].mxu0
      %v5681 = vpop.f32.mrb[0].mxu0
      %5682 = vdwg.mxu0
      %5684 = vrot.lane.b32.xlu0 %v5414, 8
      %v5685 = vpop.permute.xlu0 %5684
      %5688 = vrot.lane.b32.xlu0 %v5546, 16
      %v5689 = vpop.permute.xlu0 %5688
      %5692 = vrot.lane.b32.xlu0 %v5678, 24
      %v5693 = vpop.permute.xlu0 %5692
      %v5695 = vsel %vm624, %v5273, %v5685
      %v5696 = vsel %vm296, %v5695, %v5689
      %v5697 = vsel %vm1862, %v5696, %v5693
      %v5698 = vpack.c.bf16 %v5697, %v5697
      %v5699 = vlaneseq
      %v5700 = vshrl.u32 %v5699, 7
      %v5701 = vsub.s32 0, %v5700
      %v5702 = vrot.slane %v5157, %v5701
      %v5707 = vunpack.c.l.b16 %v5153
      %v5708 = vunpack.c.l.b16 %v5154
      %v5709 = vunpack.c.l.b16 %v5155
      %v5710 = vunpack.c.l.b16 %v5156
      %v5711 = vpack.c.b16 %v5708, %v5707
      %v5712 = vpack.c.b16 %v5710, %v5709
      %v5716 = vsel %vm407, %v5698, 0
      %5718 = vmatprep.subr.bf16.mxu0 0
      %5719 = vmatpush1.bf16.msra.mxu0 %v5711
      %5720 = vmatprep.subr.bf16.mxu0 0
      %5721 = vmatpush1.bf16.msra.mxu0 %v5712
      %5722 = vmatprep.subr.bf16.mxu0 0
      %5723 = vmatpush1.bf16.msra.mxu0 0
      %5724 = vmatprep.subr.bf16.mxu0 0
      %5725 = vmatpush1.bf16.msra.mxu0 0
      %5726 = vmatprep.subr.bf16.mxu0 0
      %5727 = vmatpush1.bf16.msra.mxu0 0
      %5728 = vmatprep.subr.bf16.mxu0 0
      %5729 = vmatpush1.bf16.msra.mxu0 0
      %5730 = vmatprep.subr.bf16.mxu0 0
      %5731 = vmatpush1.bf16.msra.mxu0 0
      %5732 = vmatprep.subr.bf16.mxu0 0
      %5733 = vmatpush1.bf16.msra.mxu0 0
      %5734 = vmatprep.subr.bf16.mxu0 0
      %5735 = vmatpush1.bf16.msra.mxu0 0
      %5736 = vmatprep.subr.bf16.mxu0 0
      %5737 = vmatpush1.bf16.msra.mxu0 0
      %5738 = vmatprep.subr.bf16.mxu0 0
      %5739 = vmatpush1.bf16.msra.mxu0 0
      %5740 = vmatprep.subr.bf16.mxu0 0
      %5741 = vmatpush1.bf16.msra.mxu0 0
      %5742 = vmatprep.subr.bf16.mxu0 0
      %5743 = vmatpush1.bf16.msra.mxu0 0
      %5744 = vmatprep.subr.bf16.mxu0 0
      %5745 = vmatpush1.bf16.msra.mxu0 0
      %5746 = vmatprep.subr.bf16.mxu0 0
      %5747 = vmatpush1.bf16.msra.mxu0 0
      %5748 = vmatprep.subr.bf16.mxu0 0
      %5749 = vmatpush1.bf16.msra.mxu0 0
      %5750 = vmatprep.mubr.bf16.mxu0 0
      %5751 = vmatmul.mubr.bf16.gmra.mrb[0].mxu0 %v5716
      %v5752 = vpop.f32.mrb[0].mxu0
      %v5753 = vadd.f32 %v5702, %v5752
      %v5754 = vpop.f32.mrb[0].mxu0
      %v5755 = vpop.f32.mrb[0].mxu0
      %v5756 = vpop.f32.mrb[0].mxu0
      %5757 = vdwg.mxu0
      %v5758 = vadd.f32 %v4914, %v5753
      %v5759 = vld [vmem:[%s4 + $0x24] sm:$0x1]
      %v5760 = vld [vmem:[%s4 + $0x25] sm:$0x1]
      %v5761 = vsel %vm407, %v5758, 0.0
      %5762 = vadd.xlane.f32.xlu0 %v5761
      %v5763 = vpop.xlane.xlu0 %5762
      %v5764 = vmul.f32 %v5763, %v2002
      %v5765 = vsub.f32 %v5758, %v5764
      %v5766 = vmul.f32 %v5765, %v5765
      %v5767 = vsel %vm407, %v5766, 0.0
      %5768 = vadd.xlane.f32.xlu0 %v5767
      %v5769 = vpop.xlane.xlu0 %5768
      %v5770 = vmul.f32 %v5769, %v2002
      %v5771 = vadd.f32 %v5770, 1e-05
      %v5772 = vrsqrt.pop %v5771
      %v5773 = vmul.f32 %v5765, %v5772
      %v5774 = vlaneseq
      %v5775 = vshrl.u32 %v5774, 7
      %v5776 = vsub.s32 0, %v5775
      %v5777 = vrot.slane %v5759, %v5776
      %v5778 = vmul.f32 %v5773, %v5777
      %v5779 = vlaneseq
      %v5780 = vshrl.u32 %v5779, 7
      %v5781 = vsub.s32 0, %v5780
      %v5782 = vrot.slane %v5760, %v5781
      %v5783 = vadd.f32 %v5778, %v5782
      %v5784 = vld [vmem:[%s3 + $0x178] sm:$0xf]
      %v5785 = vld [vmem:[%s3 + $0x17c] sm:$0xf]
      %v5786 = vld [vmem:[%s3 + $0x180] sm:$0xf]
      %v5787 = vld [vmem:[%s3 + $0x184] sm:$0xf]
      %v5788 = vpack.c.bf16 %v5783, %v5783
      %v5789 = vld [vmem:[%s4 + $0x20] sm:$0x1]
      %v5790 = vlaneseq
      %v5791 = vshrl.u32 %v5790, 7
      %v5792 = vsub.s32 0, %v5791
      %v5793 = vrot.slane %v5789, %v5792
      %v5798 = vunpack.c.l.b16 %v5784
      %v5799 = vunpack.c.l.b16 %v5785
      %v5800 = vunpack.c.l.b16 %v5786
      %v5801 = vunpack.c.l.b16 %v5787
      %v5802 = vpack.c.b16 %v5799, %v5798
      %v5803 = vpack.c.b16 %v5801, %v5800
      %v5807 = vsel %vm407, %v5788, 0
      %5809 = vmatprep.subr.bf16.mxu0 0
      %5810 = vmatpush1.bf16.msra.mxu0 %v5802
      %5811 = vmatprep.subr.bf16.mxu0 0
      %5812 = vmatpush1.bf16.msra.mxu0 %v5803
      %5813 = vmatprep.subr.bf16.mxu0 0
      %5814 = vmatpush1.bf16.msra.mxu0 0
      %5815 = vmatprep.subr.bf16.mxu0 0
      %5816 = vmatpush1.bf16.msra.mxu0 0
      %5817 = vmatprep.subr.bf16.mxu0 0
      %5818 = vmatpush1.bf16.msra.mxu0 0
      %5819 = vmatprep.subr.bf16.mxu0 0
      %5820 = vmatpush1.bf16.msra.mxu0 0
      %5821 = vmatprep.subr.bf16.mxu0 0
      %5822 = vmatpush1.bf16.msra.mxu0 0
      %5823 = vmatprep.subr.bf16.mxu0 0
      %5824 = vmatpush1.bf16.msra.mxu0 0
      %5825 = vmatprep.subr.bf16.mxu0 0
      %5826 = vmatpush1.bf16.msra.mxu0 0
      %5827 = vmatprep.subr.bf16.mxu0 0
      %5828 = vmatpush1.bf16.msra.mxu0 0
      %5829 = vmatprep.subr.bf16.mxu0 0
      %5830 = vmatpush1.bf16.msra.mxu0 0
      %5831 = vmatprep.subr.bf16.mxu0 0
      %5832 = vmatpush1.bf16.msra.mxu0 0
      %5833 = vmatprep.subr.bf16.mxu0 0
      %5834 = vmatpush1.bf16.msra.mxu0 0
      %5835 = vmatprep.subr.bf16.mxu0 0
      %5836 = vmatpush1.bf16.msra.mxu0 0
      %5837 = vmatprep.subr.bf16.mxu0 0
      %5838 = vmatpush1.bf16.msra.mxu0 0
      %5839 = vmatprep.subr.bf16.mxu0 0
      %5840 = vmatpush1.bf16.msra.mxu0 0
      %5841 = vmatprep.mubr.bf16.mxu0 0
      %5842 = vmatmul.mubr.bf16.gmra.mrb[0].mxu0 %v5807
      %v5843 = vpop.f32.mrb[0].mxu0
      %v5844 = vadd.f32 %v5793, %v5843
      %v5845 = vpop.f32.mrb[0].mxu0
      %v5846 = vpop.f32.mrb[0].mxu0
      %v5847 = vpop.f32.mrb[0].mxu0
      %5848 = vdwg.mxu0
      %v5849 = vmax.f32 %v5844, 0.0
      %v5850 = vld [vmem:[%s3 + $0x188] sm:$0xf]
      %v5851 = vld [vmem:[%s3 + $0x18c] sm:$0xf]
      %v5852 = vld [vmem:[%s3 + $0x190] sm:$0xf]
      %v5853 = vld [vmem:[%s3 + $0x194] sm:$0xf]
      %v5854 = vld [vmem:[%s3 + $0x198] sm:$0xf]
      %v5855 = vld [vmem:[%s3 + $0x19c] sm:$0xf]
      %v5856 = vld [vmem:[%s3 + $0x1a0] sm:$0xf]
      %v5857 = vld [vmem:[%s3 + $0x1a4] sm:$0xf]
      %v5858 = vpack.c.bf16 %v5849, %v5849
      %v5859 = vld [vmem:[%s4 + $0x21] sm:$0x1]
      %v5860 = vlaneseq
      %v5861 = vshrl.u32 %v5860, 7
      %v5862 = vsub.s32 0, %v5861
      %v5863 = vrot.slane %v5859, %v5862
      %v5872 = vunpack.c.l.b16 %v5850
      %v5873 = vunpack.c.l.b16 %v5851
      %v5874 = vunpack.c.l.b16 %v5852
      %v5875 = vunpack.c.l.b16 %v5853
      %v5876 = vunpack.c.l.b16 %v5854
      %v5877 = vunpack.c.l.b16 %v5855
      %v5878 = vunpack.c.l.b16 %v5856
      %v5879 = vunpack.c.l.b16 %v5857
      %v5880 = vpack.c.b16 %v5873, %v5872
      %v5881 = vpack.c.b16 %v5875, %v5874
      %v5882 = vpack.c.b16 %v5877, %v5876
      %v5883 = vpack.c.b16 %v5879, %v5878
      %v5889 = vsel %vm714, %v5858, 0
      %5891 = vmatprep.subr.bf16.mxu0 0
      %5892 = vmatpush1.bf16.msra.mxu0 %v5880
      %5893 = vmatprep.subr.bf16.mxu0 0
      %5894 = vmatpush1.bf16.msra.mxu0 %v5881
      %5895 = vmatprep.subr.bf16.mxu0 0
      %5896 = vmatpush1.bf16.msra.mxu0 %v5882
      %5897 = vmatprep.subr.bf16.mxu0 0
      %5898 = vmatpush1.bf16.msra.mxu0 %v5883
      %5899 = vmatprep.subr.bf16.mxu0 0
      %5900 = vmatpush1.bf16.msra.mxu0 0
      %5901 = vmatprep.subr.bf16.mxu0 0
      %5902 = vmatpush1.bf16.msra.mxu0 0
      %5903 = vmatprep.subr.bf16.mxu0 0
      %5904 = vmatpush1.bf16.msra.mxu0 0
      %5905 = vmatprep.subr.bf16.mxu0 0
      %5906 = vmatpush1.bf16.msra.mxu0 0
      %5907 = vmatprep.subr.bf16.mxu0 0
      %5908 = vmatpush1.bf16.msra.mxu0 0
      %5909 = vmatprep.subr.bf16.mxu0 0
      %5910 = vmatpush1.bf16.msra.mxu0 0
      %5911 = vmatprep.subr.bf16.mxu0 0
      %5912 = vmatpush1.bf16.msra.mxu0 0
      %5913 = vmatprep.subr.bf16.mxu0 0
      %5914 = vmatpush1.bf16.msra.mxu0 0
      %5915 = vmatprep.subr.bf16.mxu0 0
      %5916 = vmatpush1.bf16.msra.mxu0 0
      %5917 = vmatprep.subr.bf16.mxu0 0
      %5918 = vmatpush1.bf16.msra.mxu0 0
      %5919 = vmatprep.subr.bf16.mxu0 0
      %5920 = vmatpush1.bf16.msra.mxu0 0
      %5921 = vmatprep.subr.bf16.mxu0 0
      %5922 = vmatpush1.bf16.msra.mxu0 0
      %5923 = vmatprep.mubr.bf16.mxu0 0
      %5924 = vmatmul.mubr.bf16.gmra.mrb[0].mxu0 %v5889
      %v5925 = vpop.f32.mrb[0].mxu0
      %v5926 = vadd.f32 %v5863, %v5925
      %v5927 = vpop.f32.mrb[0].mxu0
      %v5928 = vpop.f32.mrb[0].mxu0
      %v5929 = vpop.f32.mrb[0].mxu0
      %5930 = vdwg.mxu0
      %v5931 = vadd.f32 %v5783, %v5926
      %v5932 = vld [vmem:[%s4 + $0x26] sm:$0x1]
      %v5933 = vld [vmem:[%s4 + $0x27] sm:$0x1]
      %v5934 = vsel %vm407, %v5931, 0.0
      %5935 = vadd.xlane.f32.xlu0 %v5934
      %v5936 = vpop.xlane.xlu0 %5935
      %v5937 = vmul.f32 %v5936, %v2002
      %v5938 = vsub.f32 %v5931, %v5937
      %v5939 = vmul.f32 %v5938, %v5938
      %v5940 = vsel %vm407, %v5939, 0.0
      %5941 = vadd.xlane.f32.xlu0 %v5940
      %v5942 = vpop.xlane.xlu0 %5941
      %v5943 = vmul.f32 %v5942, %v2002
      %v5944 = vadd.f32 %v5943, 1e-05
      %v5945 = vrsqrt.pop %v5944
      %v5946 = vmul.f32 %v5938, %v5945
      %v5947 = vlaneseq
      %v5948 = vshrl.u32 %v5947, 7
      %v5949 = vsub.s32 0, %v5948
      %v5950 = vrot.slane %v5932, %v5949
      %v5951 = vmul.f32 %v5946, %v5950
      %v5952 = vlaneseq
      %v5953 = vshrl.u32 %v5952, 7
      %v5954 = vsub.s32 0, %v5953
      %v5955 = vrot.slane %v5933, %v5954
      %v5956 = vadd.f32 %v5951, %v5955
      %v5957 = vld [vmem:[%s4 + $0x28] sm:$0x1]
      %v5958 = vld [vmem:[%s4 + $0x29] sm:$0x1]
      %v5959 = vsel %vm407, %v5956, 0.0
      %5960 = vadd.xlane.f32.xlu0 %v5959
      %v5961 = vpop.xlane.xlu0 %5960
      %v5962 = vmul.f32 %v5961, %v2002
      %v5963 = vsub.f32 %v5956, %v5962
      %v5964 = vmul.f32 %v5963, %v5963
      %v5965 = vsel %vm407, %v5964, 0.0
      %5966 = vadd.xlane.f32.xlu0 %v5965
      %v5967 = vpop.xlane.xlu0 %5966
      %v5968 = vmul.f32 %v5967, %v2002
      %v5969 = vadd.f32 %v5968, 1e-05
      %v5970 = vrsqrt.pop %v5969
      %v5971 = vmul.f32 %v5963, %v5970
      %v5972 = vlaneseq
      %v5973 = vshrl.u32 %v5972, 7
      %v5974 = vsub.s32 0, %v5973
      %v5975 = vrot.slane %v5957, %v5974
      %v5976 = vmul.f32 %v5971, %v5975
      %v5977 = vlaneseq
      %v5978 = vshrl.u32 %v5977, 7
      %v5979 = vsub.s32 0, %v5978
      %v5980 = vrot.slane %v5958, %v5979
      %v5981 = vadd.f32 %v5976, %v5980
      %v5982 = vld [vmem:[%s3 + $0x1a8] sm:$0xf]
      %v5983 = vld [vmem:[%s3 + $0x1ac] sm:$0xf]
      %v5984 = vld [vmem:[%s3 + $0x1b0] sm:$0xf]
      %v5985 = vld [vmem:[%s3 + $0x1b4] sm:$0xf]
      %v5986 = vpack.c.bf16 %v5981, %v5981
      %v5987 = vld [vmem:[%s4 + $0x2a] sm:$0x1]
      %v5988 = vlaneseq
      %v5989 = vshrl.u32 %v5988, 7
      %v5990 = vsub.s32 0, %v5989
      %v5991 = vrot.slane %v5987, %v5990
      %v5996 = vunpack.c.l.b16 %v5982
      %v5997 = vunpack.c.l.b16 %v5983
      %v5998 = vunpack.c.l.b16 %v5984
      %v5999 = vunpack.c.l.b16 %v5985
      %v6000 = vpack.c.b16 %v5997, %v5996
      %v6001 = vpack.c.b16 %v5999, %v5998
      %v6005 = vsel %vm407, %v5986, 0
      %6007 = vmatprep.subr.bf16.mxu0 0
      %6008 = vmatpush1.bf16.msra.mxu0 %v6000
      %6009 = vmatprep.subr.bf16.mxu0 0
      %6010 = vmatpush1.bf16.msra.mxu0 %v6001
      %6011 = vmatprep.subr.bf16.mxu0 0
      %6012 = vmatpush1.bf16.msra.mxu0 0
      %6013 = vmatprep.subr.bf16.mxu0 0
      %6014 = vmatpush1.bf16.msra.mxu0 0
      %6015 = vmatprep.subr.bf16.mxu0 0
      %6016 = vmatpush1.bf16.msra.mxu0 0
      %6017 = vmatprep.subr.bf16.mxu0 0
      %6018 = vmatpush1.bf16.msra.mxu0 0
      %6019 = vmatprep.subr.bf16.mxu0 0
      %6020 = vmatpush1.bf16.msra.mxu0 0
      %6021 = vmatprep.subr.bf16.mxu0 0
      %6022 = vmatpush1.bf16.msra.mxu0 0
      %6023 = vmatprep.subr.bf16.mxu0 0
      %6024 = vmatpush1.bf16.msra.mxu0 0
      %6025 = vmatprep.subr.bf16.mxu0 0
      %6026 = vmatpush1.bf16.msra.mxu0 0
      %6027 = vmatprep.subr.bf16.mxu0 0
      %6028 = vmatpush1.bf16.msra.mxu0 0
      %6029 = vmatprep.subr.bf16.mxu0 0
      %6030 = vmatpush1.bf16.msra.mxu0 0
      %6031 = vmatprep.subr.bf16.mxu0 0
      %6032 = vmatpush1.bf16.msra.mxu0 0
      %6033 = vmatprep.subr.bf16.mxu0 0
      %6034 = vmatpush1.bf16.msra.mxu0 0
      %6035 = vmatprep.subr.bf16.mxu0 0
      %6036 = vmatpush1.bf16.msra.mxu0 0
      %6037 = vmatprep.subr.bf16.mxu0 0
      %6038 = vmatpush1.bf16.msra.mxu0 0
      %6039 = vmatprep.mubr.bf16.mxu0 0
      %6040 = vmatmul.mubr.bf16.gmra.mrb[0].mxu0 %v6005
      %v6041 = vpop.f32.mrb[0].mxu0
      %v6042 = vadd.f32 %v5991, %v6041
      %v6043 = vpop.f32.mrb[0].mxu0
      %v6044 = vpop.f32.mrb[0].mxu0
      %v6045 = vpop.f32.mrb[0].mxu0
      %6046 = vdwg.mxu0
      %6047 = vst [vmem:[%s256] sm:$0xff] %v6042
      %v6048 = vld [vmem:[%s3 + $0x1b8] sm:$0xf]
      %v6049 = vld [vmem:[%s3 + $0x1bc] sm:$0xf]
      %v6050 = vld [vmem:[%s3 + $0x1c0] sm:$0xf]
      %v6051 = vld [vmem:[%s3 + $0x1c4] sm:$0xf]
      %v6052 = vld [vmem:[%s4 + $0x2b] sm:$0x1]
      %v6053 = vlaneseq
      %v6054 = vshrl.u32 %v6053, 7
      %v6055 = vsub.s32 0, %v6054
      %v6056 = vrot.slane %v6052, %v6055
      %v6061 = vunpack.c.l.b16 %v6048
      %v6062 = vunpack.c.l.b16 %v6049
      %v6063 = vunpack.c.l.b16 %v6050
      %v6064 = vunpack.c.l.b16 %v6051
      %v6065 = vpack.c.b16 %v6062, %v6061
      %v6066 = vpack.c.b16 %v6064, %v6063
      %6069 = vmatprep.subr.bf16.mxu0 0
      %6070 = vmatpush1.bf16.msra.mxu0 %v6065
      %6071 = vmatprep.subr.bf16.mxu0 0
      %6072 = vmatpush1.bf16.msra.mxu0 %v6066
      %6073 = vmatprep.subr.bf16.mxu0 0
      %6074 = vmatpush1.bf16.msra.mxu0 0
      %6075 = vmatprep.subr.bf16.mxu0 0
      %6076 = vmatpush1.bf16.msra.mxu0 0
      %6077 = vmatprep.subr.bf16.mxu0 0
      %6078 = vmatpush1.bf16.msra.mxu0 0
      %6079 = vmatprep.subr.bf16.mxu0 0
      %6080 = vmatpush1.bf16.msra.mxu0 0
      %6081 = vmatprep.subr.bf16.mxu0 0
      %6082 = vmatpush1.bf16.msra.mxu0 0
      %6083 = vmatprep.subr.bf16.mxu0 0
      %6084 = vmatpush1.bf16.msra.mxu0 0
      %6085 = vmatprep.subr.bf16.mxu0 0
      %6086 = vmatpush1.bf16.msra.mxu0 0
      %6087 = vmatprep.subr.bf16.mxu0 0
      %6088 = vmatpush1.bf16.msra.mxu0 0
      %6089 = vmatprep.subr.bf16.mxu0 0
      %6090 = vmatpush1.bf16.msra.mxu0 0
      %6091 = vmatprep.subr.bf16.mxu0 0
      %6092 = vmatpush1.bf16.msra.mxu0 0
      %6093 = vmatprep.subr.bf16.mxu0 0
      %6094 = vmatpush1.bf16.msra.mxu0 0
      %6095 = vmatprep.subr.bf16.mxu0 0
      %6096 = vmatpush1.bf16.msra.mxu0 0
      %6097 = vmatprep.subr.bf16.mxu0 0
      %6098 = vmatpush1.bf16.msra.mxu0 0
      %6099 = vmatprep.subr.bf16.mxu0 0
      %6100 = vmatpush1.bf16.msra.mxu0 0
      %6101 = vmatprep.mubr.bf16.mxu0 0
      %6102 = vmatmul.mubr.bf16.gmra.mrb[0].mxu0 %v6005
      %v6103 = vpop.f32.mrb[0].mxu0
      %v6104 = vadd.f32 %v6056, %v6103
      %v6105 = vpop.f32.mrb[0].mxu0
      %v6106 = vpop.f32.mrb[0].mxu0
      %v6107 = vpop.f32.mrb[0].mxu0
      %6108 = vdwg.mxu0
      %v6109 = vmax.f32 %v6104, 0.0
      %v6110 = vld [vmem:[%s3 + $0x1c8] sm:$0xf]
      %v6111 = vld [vmem:[%s3 + $0x1cc] sm:$0xf]
      %v6112 = vld [vmem:[%s3 + $0x1d0] sm:$0xf]
      %v6113 = vld [vmem:[%s3 + $0x1d4] sm:$0xf]
      %v6114 = vpack.c.bf16 %v6109, %v6109
      %v6115 = vld [vmem:[%s4 + $0x2c] sm:$0x1]
      %v6116 = vlaneseq
      %v6117 = vshrl.u32 %v6116, 7
      %v6118 = vsub.s32 0, %v6117
      %v6119 = vrot.slane %v6115, %v6118
      %v6124 = vunpack.c.l.b16 %v6110
      %v6125 = vunpack.c.l.b16 %v6111
      %v6126 = vunpack.c.l.b16 %v6112
      %v6127 = vunpack.c.l.b16 %v6113
      %v6128 = vpack.c.b16 %v6125, %v6124
      %v6129 = vpack.c.b16 %v6127, %v6126
      %v6133 = vsel %vm407, %v6114, 0
      %6135 = vmatprep.subr.bf16.mxu0 0
      %6136 = vmatpush1.bf16.msra.mxu0 %v6128
      %6137 = vmatprep.subr.bf16.mxu0 0
      %6138 = vmatpush1.bf16.msra.mxu0 %v6129
      %6139 = vmatprep.subr.bf16.mxu0 0
      %6140 = vmatpush1.bf16.msra.mxu0 0
      %6141 = vmatprep.subr.bf16.mxu0 0
      %6142 = vmatpush1.bf16.msra.mxu0 0
      %6143 = vmatprep.subr.bf16.mxu0 0
      %6144 = vmatpush1.bf16.msra.mxu0 0
      %6145 = vmatprep.subr.bf16.mxu0 0
      %6146 = vmatpush1.bf16.msra.mxu0 0
      %6147 = vmatprep.subr.bf16.mxu0 0
      %6148 = vmatpush1.bf16.msra.mxu0 0
      %6149 = vmatprep.subr.bf16.mxu0 0
      %6150 = vmatpush1.bf16.msra.mxu0 0
      %6151 = vmatprep.subr.bf16.mxu0 0
      %6152 = vmatpush1.bf16.msra.mxu0 0
      %6153 = vmatprep.subr.bf16.mxu0 0
      %6154 = vmatpush1.bf16.msra.mxu0 0
      %6155 = vmatprep.subr.bf16.mxu0 0
      %6156 = vmatpush1.bf16.msra.mxu0 0
      %6157 = vmatprep.subr.bf16.mxu0 0
      %6158 = vmatpush1.bf16.msra.mxu0 0
      %6159 = vmatprep.subr.bf16.mxu0 0
      %6160 = vmatpush1.bf16.msra.mxu0 0
      %6161 = vmatprep.subr.bf16.mxu0 0
      %6162 = vmatpush1.bf16.msra.mxu0 0
      %6163 = vmatprep.subr.bf16.mxu0 0
      %6164 = vmatpush1.bf16.msra.mxu0 0
      %6165 = vmatprep.subr.bf16.mxu0 0
      %6166 = vmatpush1.bf16.msra.mxu0 0
      %6167 = vmatprep.mubr.bf16.mxu0 0
      %6168 = vmatmul.mubr.bf16.gmra.mrb[0].mxu0 %v6133
      %v6169 = vpop.f32.mrb[0].mxu0
      %v6170 = vadd.f32 %v6119, %v6169
      %v6171 = vpop.f32.mrb[0].mxu0
      %v6172 = vpop.f32.mrb[0].mxu0
      %v6173 = vpop.f32.mrb[0].mxu0
      %6174 = vdwg.mxu0
      %v6175 = vmax.f32 %v6170, 0.0
      %v6176 = vld [vmem:[%s3 + $0x1d8] sm:$0xf]
      %v6177 = vld [vmem:[%s3 + $0x1dc] sm:$0xf]
      %v6178 = vld [vmem:[%s3 + $0x1e0] sm:$0xf]
      %v6179 = vld [vmem:[%s3 + $0x1e4] sm:$0xf]
      %v6180 = vpack.c.bf16 %v6175, %v6175
      %v6181 = vld [vmem:[%s4 + $0x2d] sm:$0x1]
      %v6182 = vlaneseq
      %v6183 = vshrl.u32 %v6182, 7
      %v6184 = vsub.s32 0, %v6183
      %v6185 = vrot.slane %v6181, %v6184
      %v6190 = vunpack.c.l.b16 %v6176
      %v6191 = vunpack.c.l.b16 %v6177
      %v6192 = vunpack.c.l.b16 %v6178
      %v6193 = vunpack.c.l.b16 %v6179
      %v6194 = vpack.c.b16 %v6191, %v6190
      %v6195 = vpack.c.b16 %v6193, %v6192
      %v6199 = vsel %vm407, %v6180, 0
      %6201 = vmatprep.subr.bf16.mxu0 0
      %6202 = vmatpush1.bf16.msra.mxu0 %v6194
      %6203 = vmatprep.subr.bf16.mxu0 0
      %6204 = vmatpush1.bf16.msra.mxu0 %v6195
      %6205 = vmatprep.subr.bf16.mxu0 0
      %6206 = vmatpush1.bf16.msra.mxu0 0
      %6207 = vmatprep.subr.bf16.mxu0 0
      %6208 = vmatpush1.bf16.msra.mxu0 0
      %6209 = vmatprep.subr.bf16.mxu0 0
      %6210 = vmatpush1.bf16.msra.mxu0 0
      %6211 = vmatprep.subr.bf16.mxu0 0
      %6212 = vmatpush1.bf16.msra.mxu0 0
      %6213 = vmatprep.subr.bf16.mxu0 0
      %6214 = vmatpush1.bf16.msra.mxu0 0
      %6215 = vmatprep.subr.bf16.mxu0 0
      %6216 = vmatpush1.bf16.msra.mxu0 0
      %6217 = vmatprep.subr.bf16.mxu0 0
      %6218 = vmatpush1.bf16.msra.mxu0 0
      %6219 = vmatprep.subr.bf16.mxu0 0
      %6220 = vmatpush1.bf16.msra.mxu0 0
      %6221 = vmatprep.subr.bf16.mxu0 0
      %6222 = vmatpush1.bf16.msra.mxu0 0
      %6223 = vmatprep.subr.bf16.mxu0 0
      %6224 = vmatpush1.bf16.msra.mxu0 0
      %6225 = vmatprep.subr.bf16.mxu0 0
      %6226 = vmatpush1.bf16.msra.mxu0 0
      %6227 = vmatprep.subr.bf16.mxu0 0
      %6228 = vmatpush1.bf16.msra.mxu0 0
      %6229 = vmatprep.subr.bf16.mxu0 0
      %6230 = vmatpush1.bf16.msra.mxu0 0
      %6231 = vmatprep.subr.bf16.mxu0 0
      %6232 = vmatpush1.bf16.msra.mxu0 0
      %6233 = vmatprep.mubr.bf16.mxu0 0
      %6234 = vmatmul.mubr.bf16.gmra.mrb[0].mxu0 %v6199
      %v6235 = vpop.f32.mrb[0].mxu0
      %v6236 = vadd.f32 %v6185, %v6235
      %v6237 = vpop.f32.mrb[0].mxu0
      %v6238 = vpop.f32.mrb[0].mxu0
      %v6239 = vpop.f32.mrb[0].mxu0
      %6240 = vdwg.mxu0
      %v6241 = vsub.f32 0.0, %v6236
      %v6242 = vmul.f32 %v6241, 1.442695
      %v6243 = vpow.pop %v6242
      %v6244 = vadd.f32 %v6243, 1.0
      %v6245 = vrcp.pop %v6244
      %v6246 = vmul.f32 1.0, %v6245
      %6247 = vst [vmem:[%s260] sm:$0xff] %v6246
      %p6248 = scmp.lt.s32.totalorder %s18, 1
      %s6249 = scalar_select %p6248, %s18, 1
      %s6250 = smul.addr %s6249, 8
      %s6251 = scalar_lea.vmem %s5, %s6250
      %p6252 = scmp.lt.s32.totalorder %s18, 1
      %s6253 = scalar_select %p6252, %s18, 1
      %s6254 = smul.addr %s6253, 8
      %s6255 = scalar_lea.vmem %s6, %s6254
      // Predicated region
      $region41: #{detr_forward.1} parent=39 // pred_check
        %p6256 = pneg %p146
      $region42: #{detr_forward.1} parent=39 // pred_check_branch
        %6258 = sbr.rel (%p6256) target = $region44
      $region43: #{detr_forward.1} parent=39 // pred_region
        _
      $region44: #{detr_forward.1} parent=39 // pred_fallthru
        _
      // Predicated region
      $region45: #{detr_forward.1} parent=39 // pred_check
        %p6259 = pneg %p172
      $region46: #{detr_forward.1} parent=39 // pred_check_branch
        %6261 = sbr.rel (%p6259) target = $region48
      $region47: #{detr_forward.1} parent=39 // pred_region
        _
      $region48: #{detr_forward.1} parent=39 // pred_fallthru
        _
    $region40: #{detr_forward.1} parent=5 // pred_fallthru
      _
    %p6262 = scmp.le.s32.totalorder 2, %s13
    // Predicated region
    $region49: #{detr_forward.1} parent=5 // pred_check
      %p6263 = pneg %p6262
    $region50: #{detr_forward.1} parent=5 // pred_check_branch
      %6265 = sbr.rel (%p6263) target = $region52
    $region51: #{detr_forward.1} parent=5 // pred_region
      %s6266 = ssub.s32 %s13, 2
      // Predicated region
      $region53: #{detr_forward.1} parent=51 // pred_check
        %p6267 = pneg %p152
      $region54: #{detr_forward.1} parent=51 // pred_check_branch
        %6269 = sbr.rel (%p6267) target = $region56
      $region55: #{detr_forward.1} parent=51 // pred_region
        %p6270 = scmp.lt.s32.totalorder %s19, 1
        %s6271 = scalar_select %p6270, %s19, 1
        %s6272 = smul.addr %s6271, 8
        %s6273 = scalar_lea.vmem %s5, %s6272
      $region56: #{detr_forward.1} parent=51 // pred_fallthru
        _
      // Predicated region
      $region57: #{detr_forward.1} parent=51 // pred_check
        %p6274 = pneg %p178
      $region58: #{detr_forward.1} parent=51 // pred_check_branch
        %6276 = sbr.rel (%p6274) target = $region60
      $region59: #{detr_forward.1} parent=51 // pred_region
        %p6277 = scmp.lt.s32.totalorder %s19, 1
        %s6278 = scalar_select %p6277, %s19, 1
        %s6279 = smul.addr %s6278, 8
        %s6280 = scalar_lea.vmem %s6, %s6279
      $region60: #{detr_forward.1} parent=51 // pred_fallthru
        _
    $region52: #{detr_forward.1} parent=5 // pred_fallthru
      _
  $region6: #{detr_forward.1} parent=0 // loop_footer
    %s17 = sadd.s32 1, %s13
  $region7: #{detr_forward.1} parent=0 // loop_footer_branch
    %12 = sbr.rel target = $region3
  $region8: #{detr_forward.1} parent=0 // loop_exit
    _

</llo_original>
